<compile_context>
chip_gen: v6e
topology: v6e:2x2x1
jax: 0.10.0
libtpu: 0.0.40
codegen_flags: <defaults>
</compile_context>

<pallas_src>
import functools

import jax
import jax.numpy as jnp
from jax import lax
from jax.experimental import pallas as pl
from jax.experimental.pallas import tpu as pltpu


def _round_up(x, m):
    return (x + m - 1) // m * m


def _conv3x3_acc(xb_ref, w_ref, m_left, m_right, *, p0, w_cols, hw):
    """3x3 'SAME' conv on a row-padded flattened image buffer, accumulated in registers.

    xb_ref : (nb, Cin_pad)  flattened image (row stride w_cols); padded-image row r lives at
             flat rows [p0 + (r+1)*w_cols, p0 + (r+2)*w_cols); all pad rows are zero.
    w_ref  : (3, 3, Cin_pad, Cout_pad) HWIO weights.
    m_left / m_right : (hw, 1) f32 masks killing the column wrap-around of the dx=0 / dx=2
             partial sums.  Masking the f32 contribution post-matmul is mathematically
             identical to masking the tap (dot is linear in rows).
    Returns the (hw, Cout_pad) f32 conv result.  No scratch RMWs.
    """
    def tap(dy, dx):
        return xb_ref[pl.ds(p0 + dy * w_cols + dx - 1, hw), :]

    def dx_group(dx):
        return (jnp.dot(tap(0, dx), w_ref[0, dx], preferred_element_type=jnp.float32)
                + jnp.dot(tap(1, dx), w_ref[1, dx], preferred_element_type=jnp.float32)
                + jnp.dot(tap(2, dx), w_ref[2, dx], preferred_element_type=jnp.float32))

    acc = dx_group(0) * m_left          # left-neighbour taps: zero contribution at column 0
    acc = acc + dx_group(1)             # centre taps: no wrap-around
    acc = acc + dx_group(2) * m_right   # right-neighbour taps: zero at column W-1
    return acc


def _double_conv_kernel(x_ref, w1_ref, s1_ref, b1_ref, w2_ref, s2_ref, b2_ref, o_ref,
                        xb1_ref, xb2_ref,
                        *, p0, w_cols, hw, front, tail_start, tail_len):
    # Column-wrap masks built in-kernel (f32 so all element-wise work stays in f32).
    row = lax.broadcasted_iota(jnp.int32, (hw, 1), 0)
    if (w_cols & (w_cols - 1)) == 0:          # power-of-two width: cheap bitwise AND
        col = row & (w_cols - 1)
    else:
        col = row % w_cols
    m_left = (col > 0).astype(jnp.float32)
    m_right = (col < w_cols - 1).astype(jnp.float32)

    def fill(xb_ref, interior):
        # Zero only the pad regions; the interior is fully overwritten by one contiguous,
        # packing-aligned store (saves ~HW x C stores per stage on the single vst slot).
        c = xb_ref.shape[1]
        xb_ref[pl.ds(0, front), :] = jnp.zeros((front, c), xb_ref.dtype)
        xb_ref[pl.ds(tail_start, tail_len), :] = jnp.zeros((tail_len, c), xb_ref.dtype)
        xb_ref[pl.ds(front, hw), :] = interior

    # ---- Stage 1: conv1 + folded BN + ReLU --------------------------------------------
    fill(xb1_ref, x_ref[0])
    y1 = _conv3x3_acc(xb1_ref, w1_ref, m_left, m_right, p0=p0, w_cols=w_cols, hw=hw)
    y1 = jnp.maximum(y1 * s1_ref[...] + b1_ref[...], 0.0)    # Dropout(p=0) == identity

    # ---- Stage 2: conv2 + folded BN + ReLU (intermediate never leaves VMEM) ------------
    fill(xb2_ref, y1.astype(xb2_ref.dtype))
    y2 = _conv3x3_acc(xb2_ref, w2_ref, m_left, m_right, p0=p0, w_cols=w_cols, hw=hw)
    y2 = jnp.maximum(y2 * s2_ref[...] + b2_ref[...], 0.0)
    o_ref[0] = y2.astype(o_ref.dtype)


def double_conv_nhwc(x_nhwc, params, compute_dtype=jnp.bfloat16, out_dtype=jnp.float32):
    """Fused DoubleConv on NHWC input; returns NHWC `out_dtype`.
    Pass out_dtype=jnp.bfloat16 when the consumer is the next bf16 layer (halves writeback)."""
    N, H, W, Cin = x_nhwc.shape
    Cmid = params["w1"].shape[-1]
    Cout = params["w2"].shape[-1]
    HW = H * W

    LANES = 128
    cin_p = _round_up(Cin, LANES)
    cmid_p = _round_up(Cmid, LANES)
    cout_p = _round_up(Cout, LANES)

    # Front slack so the interior store lands on a bf16 packing boundary (16 rows) and the
    # earliest tap slice (row p0 - 1) stays in bounds.
    p0 = (-W) % 16
    if p0 == 0:
        p0 = 16
    front = p0 + W                             # slack + top pad row
    nb = _round_up(front + HW + W + 1, 16)     # + bottom pad row + dx=+1 slack
    tail_start = front + HW
    tail_len = nb - tail_start

    def pad_last(a, target):
        pad = target - a.shape[-1]
        if pad:
            a = jnp.pad(a, [(0, 0)] * (a.ndim - 1) + [(0, pad)])
        return a

    # Free reshape (merges contiguous H,W dims); bf16 for MXU rate / halved DMA bytes;
    # channel axes padded to 128 lanes for dense MXU fill and unmasked lane-dense stores.
    x_flat = pad_last(x_nhwc.reshape(N, HW, Cin).astype(compute_dtype), cin_p)

    w1 = pad_last(jnp.pad(params["w1"], ((0, 0), (0, 0), (0, cin_p - Cin), (0, 0))),
                  cmid_p).astype(compute_dtype)
    w2 = pad_last(jnp.pad(params["w2"], ((0, 0), (0, 0), (0, cmid_p - Cmid), (0, 0))),
                  cout_p).astype(compute_dtype)
    s1 = pad_last(params["scale1"].astype(jnp.float32), cmid_p).reshape(1, cmid_p)
    b1 = pad_last(params["bias1"].astype(jnp.float32), cmid_p).reshape(1, cmid_p)
    s2 = pad_last(params["scale2"].astype(jnp.float32), cout_p).reshape(1, cout_p)
    b2 = pad_last(params["bias2"].astype(jnp.float32), cout_p).reshape(1, cout_p)

    kernel = functools.partial(_double_conv_kernel, p0=p0, w_cols=W, hw=HW,
                               front=front, tail_start=tail_start, tail_len=tail_len)

    out_flat = pl.pallas_call(
        kernel,
        out_shape=jax.ShapeDtypeStruct((N, HW, cout_p), out_dtype),
        grid=(N,),
        in_specs=[
            pl.BlockSpec((1, HW, cin_p), lambda n: (n, 0, 0)),
            pl.BlockSpec((3, 3, cin_p, cmid_p), lambda n: (0, 0, 0, 0)),
            pl.BlockSpec((1, cmid_p), lambda n: (0, 0)),
            pl.BlockSpec((1, cmid_p), lambda n: (0, 0)),
            pl.BlockSpec((3, 3, cmid_p, cout_p), lambda n: (0, 0, 0, 0)),
            pl.BlockSpec((1, cout_p), lambda n: (0, 0)),
            pl.BlockSpec((1, cout_p), lambda n: (0, 0)),
        ],
        out_specs=pl.BlockSpec((1, HW, cout_p), lambda n: (n, 0, 0)),
        scratch_shapes=[
            pltpu.VMEM((nb, cin_p), compute_dtype),    # row-padded flat input
            pltpu.VMEM((nb, cmid_p), compute_dtype),   # row-padded flat intermediate
        ],
        compiler_params=pltpu.CompilerParams(
            dimension_semantics=("parallel",),
            vmem_limit_bytes=32 * 1024 * 1024,
        ),
    )(x_flat, w1, s1, b1, w2, s2, b2)

    out = out_flat.reshape(N, H, W, cout_p)
    if cout_p != Cout:
        out = out[..., :Cout]
    return out


def double_conv(x_nchw, params, compute_dtype=jnp.bfloat16, out_dtype=jnp.float32):
    """DoubleConv forward with the PyTorch NCHW interface (transposes only at the boundary)."""
    x = jnp.transpose(x_nchw, (0, 2, 3, 1))
    y = double_conv_nhwc(x, params, compute_dtype, out_dtype)
    return jnp.transpose(y, (0, 3, 1, 2))


def init_double_conv_params(key, in_channels, out_channels, mid_channels=None):
    if not mid_channels:
        mid_channels = out_channels
    k1, k2, k3, k4 = jax.random.split(key, 4)

    def conv_init(kw, kb, cin, cout):
        fan_in = cin * 3 * 3
        bound = 1.0 / jnp.sqrt(jnp.float32(fan_in))
        w = jax.random.uniform(kw, (3, 3, cin, cout), jnp.float32, -bound, bound)  # HWIO
        b = jax.random.uniform(kb, (cout,), jnp.float32, -bound, bound)
        return w, b

    w1, b1 = conv_init(k1, k2, in_channels, mid_channels)
    w2, b2 = conv_init(k3, k4, mid_channels, out_channels)

    eps = 1e-5

    def fold_bn(conv_bias, c):
        gamma = jnp.ones((c,), jnp.float32)
        beta = jnp.zeros((c,), jnp.float32)
        mean = jnp.zeros((c,), jnp.float32)
        var = jnp.ones((c,), jnp.float32)
        scale = gamma / jnp.sqrt(var + eps)
        bias = beta + (conv_bias - mean) * scale
        return scale, bias

    s1, bb1 = fold_bn(b1, mid_channels)
    s2, bb2 = fold_bn(b2, out_channels)
    return dict(w1=w1, scale1=s1, bias1=bb1, w2=w2, scale2=s2, bias2=bb2)


def _reference_double_conv(x_nchw, params, compute_dtype=jnp.bfloat16):
    # Pure-JAX reference (XLA conv) mirroring the kernel's bf16-in / f32-accumulate scheme.
    x = jnp.transpose(x_nchw, (0, 2, 3, 1)).astype(compute_dtype)

    def block(x, w, s, b):
        y = lax.conv_general_dilated(
            x, w.astype(compute_dtype), window_strides=(1, 1), padding="SAME",
            dimension_numbers=("NHWC", "HWIO", "NHWC"),
            preferred_element_type=jnp.float32)
        y = y * s[None, None, None, :] + b[None, None, None, :]
        return jnp.maximum(y, 0.0)

    y = block(x, params["w1"], params["scale1"], params["bias1"]).astype(compute_dtype)
    y = block(y, params["w2"], params["scale2"], params["bias2"])
    return jnp.transpose(y, (0, 3, 1, 2))


if __name__ == "__main__":
    key = jax.random.PRNGKey(0)
    kx, kp = jax.random.split(key)

    N, Cin, H, W = 2, 4, 16, 16
    Cout = 8
    x = jax.random.normal(kx, (N, Cin, H, W), jnp.float32)

    params = init_double_conv_params(kp, Cin, Cout)

    out = jax.jit(double_conv)(x, params)
    out = jax.block_until_ready(out)

    ref = _reference_double_conv(x, params)
    assert out.shape == (N, Cout, H, W), out.shape
    assert jnp.allclose(out, ref, rtol=1e-2, atol=1e-2), "mismatch vs reference"

    print("KERNEL_OK")
</pallas_src>

<mosaic_0001>
module attributes {stable_mosaic.version = 11 : i64} {
  func.func @_double_conv_kernel(%arg0: i32, %arg1: memref<1x256x128xbf16, #tpu.memory_space<vmem>>, %arg2: memref<3x3x128x128xbf16, #tpu.memory_space<vmem>>, %arg3: memref<1x128xf32, #tpu.memory_space<vmem>>, %arg4: memref<1x128xf32, #tpu.memory_space<vmem>>, %arg5: memref<3x3x128x128xbf16, #tpu.memory_space<vmem>>, %arg6: memref<1x128xf32, #tpu.memory_space<vmem>>, %arg7: memref<1x128xf32, #tpu.memory_space<vmem>>, %arg8: memref<1x256x128xf32, #tpu.memory_space<vmem>>, %arg9: memref<320x128xbf16, #tpu.memory_space<vmem>>, %arg10: memref<320x128xbf16, #tpu.memory_space<vmem>>) attributes {dimension_semantics = [#tpu.dimension_semantics<parallel>], iteration_bounds = array<i64: 2>, scalar_prefetch = 0 : i64, scratch_operands = 2 : i64, tpu.core_type = #tpu.core_type<tc>, window_params = [{transform_indices = @transform_0, window_bounds = array<i64: 1, 256, 128>}, {pipeline_mode = #tpu.pipeline_mode<synchronous>, transform_indices = @transform_1, window_bounds = array<i64: 3, 3, 128, 128>}, {pipeline_mode = #tpu.pipeline_mode<synchronous>, transform_indices = @transform_2, window_bounds = array<i64: 1, 128>}, {pipeline_mode = #tpu.pipeline_mode<synchronous>, transform_indices = @transform_3, window_bounds = array<i64: 1, 128>}, {pipeline_mode = #tpu.pipeline_mode<synchronous>, transform_indices = @transform_4, window_bounds = array<i64: 3, 3, 128, 128>}, {pipeline_mode = #tpu.pipeline_mode<synchronous>, transform_indices = @transform_5, window_bounds = array<i64: 1, 128>}, {pipeline_mode = #tpu.pipeline_mode<synchronous>, transform_indices = @transform_6, window_bounds = array<i64: 1, 128>}, {transform_indices = @transform_7, window_bounds = array<i64: 1, 256, 128>}]} {
    %0 = tpu.iota {dimensions = array<i32: 0>} : vector<256x1xi32>
    %c15_i32 = arith.constant 15 : i32
    %1 = vector.broadcast %c15_i32 : i32 to vector<256x1xi32>
    %2 = arith.andi %0, %1 : vector<256x1xi32>
    %c0_i32 = arith.constant 0 : i32
    %3 = vector.broadcast %c0_i32 : i32 to vector<256x1xi32>
    %4 = arith.cmpi sgt, %2, %3 : vector<256x1xi32>
    %5 = arith.extui %4 : vector<256x1xi1> to vector<256x1xi32>
    %6 = arith.sitofp %5 : vector<256x1xi32> to vector<256x1xf32>
    %c15_i32_0 = arith.constant 15 : i32
    %7 = vector.broadcast %c15_i32_0 : i32 to vector<256x1xi32>
    %8 = arith.cmpi slt, %2, %7 : vector<256x1xi32>
    %9 = arith.extui %8 : vector<256x1xi1> to vector<256x1xi32>
    %10 = arith.sitofp %9 : vector<256x1xi32> to vector<256x1xf32>
    %c0 = arith.constant 0 : index
    %c0_1 = arith.constant 0 : index
    %c0_2 = arith.constant 0 : index
    %11 = vector.load %arg1[%c0, %c0_1, %c0_2] : memref<1x256x128xbf16, #tpu.memory_space<vmem>>, vector<1x256x128xbf16>
    %12 = vector.shape_cast %11 : vector<1x256x128xbf16> to vector<256x128xbf16>
    %cst = arith.constant 0.000000e+00 : bf16
    %13 = vector.broadcast %cst : bf16 to vector<32x128xbf16>
    %c0_3 = arith.constant 0 : index
    %c0_4 = arith.constant 0 : index
    %14 = vector.load %arg9[%c0_3, %c0_4] : memref<320x128xbf16, #tpu.memory_space<vmem>>, vector<32x128xbf16>
    tpu.vector_store %arg9[%c0_3, %c0_4], %13 {strides = array<i32>} : memref<320x128xbf16, #tpu.memory_space<vmem>>, vector<32x128xbf16>,
    %cst_5 = arith.constant 0.000000e+00 : bf16
    %15 = vector.broadcast %cst_5 : bf16 to vector<32x128xbf16>
    %c288 = arith.constant 288 : index
    %c0_6 = arith.constant 0 : index
    %16 = vector.load %arg9[%c288, %c0_6] : memref<320x128xbf16, #tpu.memory_space<vmem>>, vector<32x128xbf16>
    tpu.vector_store %arg9[%c288, %c0_6], %15 {strides = array<i32>} : memref<320x128xbf16, #tpu.memory_space<vmem>>, vector<32x128xbf16>,
    %c32 = arith.constant 32 : index
    %c0_7 = arith.constant 0 : index
    %17 = vector.load %arg9[%c32, %c0_7] : memref<320x128xbf16, #tpu.memory_space<vmem>>, vector<256x128xbf16>
    tpu.vector_store %arg9[%c32, %c0_7], %12 {strides = array<i32>} : memref<320x128xbf16, #tpu.memory_space<vmem>>, vector<256x128xbf16>,
    %c15 = arith.constant 15 : index
    %c0_8 = arith.constant 0 : index
    %18 = vector.load %arg9[%c15, %c0_8] : memref<320x128xbf16, #tpu.memory_space<vmem>>, vector<256x128xbf16>
    %c0_9 = arith.constant 0 : index
    %c0_10 = arith.constant 0 : index
    %c0_11 = arith.constant 0 : index
    %c0_12 = arith.constant 0 : index
    %19 = vector.load %arg2[%c0_9, %c0_10, %c0_11, %c0_12] : memref<3x3x128x128xbf16, #tpu.memory_space<vmem>>, vector<1x1x128x128xbf16>
    %20 = vector.shape_cast %19 : vector<1x1x128x128xbf16> to vector<128x128xbf16>
    %cst_13 = arith.constant dense<0.000000e+00> : vector<256x128xf32>
    %21 = tpu.matmul %18, %20, %cst_13 {dimension_numbers = #tpu.dot_dimension_numbers<[1], [0], [0], [1], [0, 0, 1, 1], [], []>} : vector<256x128xbf16>, vector<128x128xbf16>, vector<256x128xf32> -> vector<256x128xf32>
    %c31 = arith.constant 31 : index
    %c0_14 = arith.constant 0 : index
    %22 = vector.load %arg9[%c31, %c0_14] : memref<320x128xbf16, #tpu.memory_space<vmem>>, vector<256x128xbf16>
    %c1 = arith.constant 1 : index
    %c0_15 = arith.constant 0 : index
    %c0_16 = arith.constant 0 : index
    %c0_17 = arith.constant 0 : index
    %23 = vector.load %arg2[%c1, %c0_15, %c0_16, %c0_17] : memref<3x3x128x128xbf16, #tpu.memory_space<vmem>>, vector<1x1x128x128xbf16>
    %24 = vector.shape_cast %23 : vector<1x1x128x128xbf16> to vector<128x128xbf16>
    %cst_18 = arith.constant dense<0.000000e+00> : vector<256x128xf32>
    %25 = tpu.matmul %22, %24, %cst_18 {dimension_numbers = #tpu.dot_dimension_numbers<[1], [0], [0], [1], [0, 0, 1, 1], [], []>} : vector<256x128xbf16>, vector<128x128xbf16>, vector<256x128xf32> -> vector<256x128xf32>
    %26 = arith.addf %21, %25 : vector<256x128xf32>
    %c47 = arith.constant 47 : index
    %c0_19 = arith.constant 0 : index
    %27 = vector.load %arg9[%c47, %c0_19] : memref<320x128xbf16, #tpu.memory_space<vmem>>, vector<256x128xbf16>
    %c2 = arith.constant 2 : index
    %c0_20 = arith.constant 0 : index
    %c0_21 = arith.constant 0 : index
    %c0_22 = arith.constant 0 : index
    %28 = vector.load %arg2[%c2, %c0_20, %c0_21, %c0_22] : memref<3x3x128x128xbf16, #tpu.memory_space<vmem>>, vector<1x1x128x128xbf16>
    %29 = vector.shape_cast %28 : vector<1x1x128x128xbf16> to vector<128x128xbf16>
    %cst_23 = arith.constant dense<0.000000e+00> : vector<256x128xf32>
    %30 = tpu.matmul %27, %29, %cst_23 {dimension_numbers = #tpu.dot_dimension_numbers<[1], [0], [0], [1], [0, 0, 1, 1], [], []>} : vector<256x128xbf16>, vector<128x128xbf16>, vector<256x128xf32> -> vector<256x128xf32>
    %31 = arith.addf %26, %30 : vector<256x128xf32>
    %32 = vector.broadcast %6 : vector<256x1xf32> to vector<256x128xf32>
    %33 = arith.mulf %31, %32 : vector<256x128xf32>
    %c16 = arith.constant 16 : index
    %c0_24 = arith.constant 0 : index
    %34 = vector.load %arg9[%c16, %c0_24] : memref<320x128xbf16, #tpu.memory_space<vmem>>, vector<256x128xbf16>
    %c0_25 = arith.constant 0 : index
    %c1_26 = arith.constant 1 : index
    %c0_27 = arith.constant 0 : index
    %c0_28 = arith.constant 0 : index
    %35 = vector.load %arg2[%c0_25, %c1_26, %c0_27, %c0_28] : memref<3x3x128x128xbf16, #tpu.memory_space<vmem>>, vector<1x1x128x128xbf16>
    %36 = vector.shape_cast %35 : vector<1x1x128x128xbf16> to vector<128x128xbf16>
    %cst_29 = arith.constant dense<0.000000e+00> : vector<256x128xf32>
    %37 = tpu.matmul %34, %36, %cst_29 {dimension_numbers = #tpu.dot_dimension_numbers<[1], [0], [0], [1], [0, 0, 1, 1], [], []>} : vector<256x128xbf16>, vector<128x128xbf16>, vector<256x128xf32> -> vector<256x128xf32>
    %c32_30 = arith.constant 32 : index
    %c0_31 = arith.constant 0 : index
    %38 = vector.load %arg9[%c32_30, %c0_31] : memref<320x128xbf16, #tpu.memory_space<vmem>>, vector<256x128xbf16>
    %c1_32 = arith.constant 1 : index
    %c1_33 = arith.constant 1 : index
    %c0_34 = arith.constant 0 : index
    %c0_35 = arith.constant 0 : index
    %39 = vector.load %arg2[%c1_32, %c1_33, %c0_34, %c0_35] : memref<3x3x128x128xbf16, #tpu.memory_space<vmem>>, vector<1x1x128x128xbf16>
    %40 = vector.shape_cast %39 : vector<1x1x128x128xbf16> to vector<128x128xbf16>
    %cst_36 = arith.constant dense<0.000000e+00> : vector<256x128xf32>
    %41 = tpu.matmul %38, %40, %cst_36 {dimension_numbers = #tpu.dot_dimension_numbers<[1], [0], [0], [1], [0, 0, 1, 1], [], []>} : vector<256x128xbf16>, vector<128x128xbf16>, vector<256x128xf32> -> vector<256x128xf32>
    %42 = arith.addf %37, %41 : vector<256x128xf32>
    %c48 = arith.constant 48 : index
    %c0_37 = arith.constant 0 : index
    %43 = vector.load %arg9[%c48, %c0_37] : memref<320x128xbf16, #tpu.memory_space<vmem>>, vector<256x128xbf16>
    %c2_38 = arith.constant 2 : index
    %c1_39 = arith.constant 1 : index
    %c0_40 = arith.constant 0 : index
    %c0_41 = arith.constant 0 : index
    %44 = vector.load %arg2[%c2_38, %c1_39, %c0_40, %c0_41] : memref<3x3x128x128xbf16, #tpu.memory_space<vmem>>, vector<1x1x128x128xbf16>
    %45 = vector.shape_cast %44 : vector<1x1x128x128xbf16> to vector<128x128xbf16>
    %cst_42 = arith.constant dense<0.000000e+00> : vector<256x128xf32>
    %46 = tpu.matmul %43, %45, %cst_42 {dimension_numbers = #tpu.dot_dimension_numbers<[1], [0], [0], [1], [0, 0, 1, 1], [], []>} : vector<256x128xbf16>, vector<128x128xbf16>, vector<256x128xf32> -> vector<256x128xf32>
    %47 = arith.addf %42, %46 : vector<256x128xf32>
    %48 = arith.addf %33, %47 : vector<256x128xf32>
    %c17 = arith.constant 17 : index
    %c0_43 = arith.constant 0 : index
    %49 = vector.load %arg9[%c17, %c0_43] : memref<320x128xbf16, #tpu.memory_space<vmem>>, vector<256x128xbf16>
    %c0_44 = arith.constant 0 : index
    %c2_45 = arith.constant 2 : index
    %c0_46 = arith.constant 0 : index
    %c0_47 = arith.constant 0 : index
    %50 = vector.load %arg2[%c0_44, %c2_45, %c0_46, %c0_47] : memref<3x3x128x128xbf16, #tpu.memory_space<vmem>>, vector<1x1x128x128xbf16>
    %51 = vector.shape_cast %50 : vector<1x1x128x128xbf16> to vector<128x128xbf16>
    %cst_48 = arith.constant dense<0.000000e+00> : vector<256x128xf32>
    %52 = tpu.matmul %49, %51, %cst_48 {dimension_numbers = #tpu.dot_dimension_numbers<[1], [0], [0], [1], [0, 0, 1, 1], [], []>} : vector<256x128xbf16>, vector<128x128xbf16>, vector<256x128xf32> -> vector<256x128xf32>
    %c33 = arith.constant 33 : index
    %c0_49 = arith.constant 0 : index
    %53 = vector.load %arg9[%c33, %c0_49] : memref<320x128xbf16, #tpu.memory_space<vmem>>, vector<256x128xbf16>
    %c1_50 = arith.constant 1 : index
    %c2_51 = arith.constant 2 : index
    %c0_52 = arith.constant 0 : index
    %c0_53 = arith.constant 0 : index
    %54 = vector.load %arg2[%c1_50, %c2_51, %c0_52, %c0_53] : memref<3x3x128x128xbf16, #tpu.memory_space<vmem>>, vector<1x1x128x128xbf16>
    %55 = vector.shape_cast %54 : vector<1x1x128x128xbf16> to vector<128x128xbf16>
    %cst_54 = arith.constant dense<0.000000e+00> : vector<256x128xf32>
    %56 = tpu.matmul %53, %55, %cst_54 {dimension_numbers = #tpu.dot_dimension_numbers<[1], [0], [0], [1], [0, 0, 1, 1], [], []>} : vector<256x128xbf16>, vector<128x128xbf16>, vector<256x128xf32> -> vector<256x128xf32>
    %57 = arith.addf %52, %56 : vector<256x128xf32>
    %c49 = arith.constant 49 : index
    %c0_55 = arith.constant 0 : index
    %58 = vector.load %arg9[%c49, %c0_55] : memref<320x128xbf16, #tpu.memory_space<vmem>>, vector<256x128xbf16>
    %c2_56 = arith.constant 2 : index
    %c2_57 = arith.constant 2 : index
    %c0_58 = arith.constant 0 : index
    %c0_59 = arith.constant 0 : index
    %59 = vector.load %arg2[%c2_56, %c2_57, %c0_58, %c0_59] : memref<3x3x128x128xbf16, #tpu.memory_space<vmem>>, vector<1x1x128x128xbf16>
    %60 = vector.shape_cast %59 : vector<1x1x128x128xbf16> to vector<128x128xbf16>
    %cst_60 = arith.constant dense<0.000000e+00> : vector<256x128xf32>
    %61 = tpu.matmul %58, %60, %cst_60 {dimension_numbers = #tpu.dot_dimension_numbers<[1], [0], [0], [1], [0, 0, 1, 1], [], []>} : vector<256x128xbf16>, vector<128x128xbf16>, vector<256x128xf32> -> vector<256x128xf32>
    %62 = arith.addf %57, %61 : vector<256x128xf32>
    %63 = vector.broadcast %10 : vector<256x1xf32> to vector<256x128xf32>
    %64 = arith.mulf %62, %63 : vector<256x128xf32>
    %65 = arith.addf %48, %64 : vector<256x128xf32>
    %c0_61 = arith.constant 0 : index
    %c0_62 = arith.constant 0 : index
    %66 = vector.load %arg3[%c0_61, %c0_62] : memref<1x128xf32, #tpu.memory_space<vmem>>, vector<1x128xf32>
    %67 = vector.broadcast %66 : vector<1x128xf32> to vector<256x128xf32>
    %68 = arith.mulf %65, %67 : vector<256x128xf32>
    %c0_63 = arith.constant 0 : index
    %c0_64 = arith.constant 0 : index
    %69 = vector.load %arg4[%c0_63, %c0_64] : memref<1x128xf32, #tpu.memory_space<vmem>>, vector<1x128xf32>
    %70 = vector.broadcast %69 : vector<1x128xf32> to vector<256x128xf32>
    %71 = arith.addf %68, %70 : vector<256x128xf32>
    %cst_65 = arith.constant 0.000000e+00 : f32
    %72 = vector.broadcast %cst_65 : f32 to vector<256x128xf32>
    %73 = arith.maximumf %71, %72 : vector<256x128xf32>
    %74 = arith.truncf %73 : vector<256x128xf32> to vector<256x128xbf16>
    %cst_66 = arith.constant 0.000000e+00 : bf16
    %75 = vector.broadcast %cst_66 : bf16 to vector<32x128xbf16>
    %c0_67 = arith.constant 0 : index
    %c0_68 = arith.constant 0 : index
    %76 = vector.load %arg10[%c0_67, %c0_68] : memref<320x128xbf16, #tpu.memory_space<vmem>>, vector<32x128xbf16>
    tpu.vector_store %arg10[%c0_67, %c0_68], %75 {strides = array<i32>} : memref<320x128xbf16, #tpu.memory_space<vmem>>, vector<32x128xbf16>,
    %cst_69 = arith.constant 0.000000e+00 : bf16
    %77 = vector.broadcast %cst_69 : bf16 to vector<32x128xbf16>
    %c288_70 = arith.constant 288 : index
    %c0_71 = arith.constant 0 : index
    %78 = vector.load %arg10[%c288_70, %c0_71] : memref<320x128xbf16, #tpu.memory_space<vmem>>, vector<32x128xbf16>
    tpu.vector_store %arg10[%c288_70, %c0_71], %77 {strides = array<i32>} : memref<320x128xbf16, #tpu.memory_space<vmem>>, vector<32x128xbf16>,
    %c32_72 = arith.constant 32 : index
    %c0_73 = arith.constant 0 : index
    %79 = vector.load %arg10[%c32_72, %c0_73] : memref<320x128xbf16, #tpu.memory_space<vmem>>, vector<256x128xbf16>
    tpu.vector_store %arg10[%c32_72, %c0_73], %74 {strides = array<i32>} : memref<320x128xbf16, #tpu.memory_space<vmem>>, vector<256x128xbf16>,
    %c15_74 = arith.constant 15 : index
    %c0_75 = arith.constant 0 : index
    %80 = vector.load %arg10[%c15_74, %c0_75] : memref<320x128xbf16, #tpu.memory_space<vmem>>, vector<256x128xbf16>
    %c0_76 = arith.constant 0 : index
    %c0_77 = arith.constant 0 : index
    %c0_78 = arith.constant 0 : index
    %c0_79 = arith.constant 0 : index
    %81 = vector.load %arg5[%c0_76, %c0_77, %c0_78, %c0_79] : memref<3x3x128x128xbf16, #tpu.memory_space<vmem>>, vector<1x1x128x128xbf16>
    %82 = vector.shape_cast %81 : vector<1x1x128x128xbf16> to vector<128x128xbf16>
    %cst_80 = arith.constant dense<0.000000e+00> : vector<256x128xf32>
    %83 = tpu.matmul %80, %82, %cst_80 {dimension_numbers = #tpu.dot_dimension_numbers<[1], [0], [0], [1], [0, 0, 1, 1], [], []>} : vector<256x128xbf16>, vector<128x128xbf16>, vector<256x128xf32> -> vector<256x128xf32>
    %c31_81 = arith.constant 31 : index
    %c0_82 = arith.constant 0 : index
    %84 = vector.load %arg10[%c31_81, %c0_82] : memref<320x128xbf16, #tpu.memory_space<vmem>>, vector<256x128xbf16>
    %c1_83 = arith.constant 1 : index
    %c0_84 = arith.constant 0 : index
    %c0_85 = arith.constant 0 : index
    %c0_86 = arith.constant 0 : index
    %85 = vector.load %arg5[%c1_83, %c0_84, %c0_85, %c0_86] : memref<3x3x128x128xbf16, #tpu.memory_space<vmem>>, vector<1x1x128x128xbf16>
    %86 = vector.shape_cast %85 : vector<1x1x128x128xbf16> to vector<128x128xbf16>
    %cst_87 = arith.constant dense<0.000000e+00> : vector<256x128xf32>
    %87 = tpu.matmul %84, %86, %cst_87 {dimension_numbers = #tpu.dot_dimension_numbers<[1], [0], [0], [1], [0, 0, 1, 1], [], []>} : vector<256x128xbf16>, vector<128x128xbf16>, vector<256x128xf32> -> vector<256x128xf32>
    %88 = arith.addf %83, %87 : vector<256x128xf32>
    %c47_88 = arith.constant 47 : index
    %c0_89 = arith.constant 0 : index
    %89 = vector.load %arg10[%c47_88, %c0_89] : memref<320x128xbf16, #tpu.memory_space<vmem>>, vector<256x128xbf16>
    %c2_90 = arith.constant 2 : index
    %c0_91 = arith.constant 0 : index
    %c0_92 = arith.constant 0 : index
    %c0_93 = arith.constant 0 : index
    %90 = vector.load %arg5[%c2_90, %c0_91, %c0_92, %c0_93] : memref<3x3x128x128xbf16, #tpu.memory_space<vmem>>, vector<1x1x128x128xbf16>
    %91 = vector.shape_cast %90 : vector<1x1x128x128xbf16> to vector<128x128xbf16>
    %cst_94 = arith.constant dense<0.000000e+00> : vector<256x128xf32>
    %92 = tpu.matmul %89, %91, %cst_94 {dimension_numbers = #tpu.dot_dimension_numbers<[1], [0], [0], [1], [0, 0, 1, 1], [], []>} : vector<256x128xbf16>, vector<128x128xbf16>, vector<256x128xf32> -> vector<256x128xf32>
    %93 = arith.addf %88, %92 : vector<256x128xf32>
    %94 = vector.broadcast %6 : vector<256x1xf32> to vector<256x128xf32>
    %95 = arith.mulf %93, %94 : vector<256x128xf32>
    %c16_95 = arith.constant 16 : index
    %c0_96 = arith.constant 0 : index
    %96 = vector.load %arg10[%c16_95, %c0_96] : memref<320x128xbf16, #tpu.memory_space<vmem>>, vector<256x128xbf16>
    %c0_97 = arith.constant 0 : index
    %c1_98 = arith.constant 1 : index
    %c0_99 = arith.constant 0 : index
    %c0_100 = arith.constant 0 : index
    %97 = vector.load %arg5[%c0_97, %c1_98, %c0_99, %c0_100] : memref<3x3x128x128xbf16, #tpu.memory_space<vmem>>, vector<1x1x128x128xbf16>
    %98 = vector.shape_cast %97 : vector<1x1x128x128xbf16> to vector<128x128xbf16>
    %cst_101 = arith.constant dense<0.000000e+00> : vector<256x128xf32>
    %99 = tpu.matmul %96, %98, %cst_101 {dimension_numbers = #tpu.dot_dimension_numbers<[1], [0], [0], [1], [0, 0, 1, 1], [], []>} : vector<256x128xbf16>, vector<128x128xbf16>, vector<256x128xf32> -> vector<256x128xf32>
    %c32_102 = arith.constant 32 : index
    %c0_103 = arith.constant 0 : index
    %100 = vector.load %arg10[%c32_102, %c0_103] : memref<320x128xbf16, #tpu.memory_space<vmem>>, vector<256x128xbf16>
    %c1_104 = arith.constant 1 : index
    %c1_105 = arith.constant 1 : index
    %c0_106 = arith.constant 0 : index
    %c0_107 = arith.constant 0 : index
    %101 = vector.load %arg5[%c1_104, %c1_105, %c0_106, %c0_107] : memref<3x3x128x128xbf16, #tpu.memory_space<vmem>>, vector<1x1x128x128xbf16>
    %102 = vector.shape_cast %101 : vector<1x1x128x128xbf16> to vector<128x128xbf16>
    %cst_108 = arith.constant dense<0.000000e+00> : vector<256x128xf32>
    %103 = tpu.matmul %100, %102, %cst_108 {dimension_numbers = #tpu.dot_dimension_numbers<[1], [0], [0], [1], [0, 0, 1, 1], [], []>} : vector<256x128xbf16>, vector<128x128xbf16>, vector<256x128xf32> -> vector<256x128xf32>
    %104 = arith.addf %99, %103 : vector<256x128xf32>
    %c48_109 = arith.constant 48 : index
    %c0_110 = arith.constant 0 : index
    %105 = vector.load %arg10[%c48_109, %c0_110] : memref<320x128xbf16, #tpu.memory_space<vmem>>, vector<256x128xbf16>
    %c2_111 = arith.constant 2 : index
    %c1_112 = arith.constant 1 : index
    %c0_113 = arith.constant 0 : index
    %c0_114 = arith.constant 0 : index
    %106 = vector.load %arg5[%c2_111, %c1_112, %c0_113, %c0_114] : memref<3x3x128x128xbf16, #tpu.memory_space<vmem>>, vector<1x1x128x128xbf16>
    %107 = vector.shape_cast %106 : vector<1x1x128x128xbf16> to vector<128x128xbf16>
    %cst_115 = arith.constant dense<0.000000e+00> : vector<256x128xf32>
    %108 = tpu.matmul %105, %107, %cst_115 {dimension_numbers = #tpu.dot_dimension_numbers<[1], [0], [0], [1], [0, 0, 1, 1], [], []>} : vector<256x128xbf16>, vector<128x128xbf16>, vector<256x128xf32> -> vector<256x128xf32>
    %109 = arith.addf %104, %108 : vector<256x128xf32>
    %110 = arith.addf %95, %109 : vector<256x128xf32>
    %c17_116 = arith.constant 17 : index
    %c0_117 = arith.constant 0 : index
    %111 = vector.load %arg10[%c17_116, %c0_117] : memref<320x128xbf16, #tpu.memory_space<vmem>>, vector<256x128xbf16>
    %c0_118 = arith.constant 0 : index
    %c2_119 = arith.constant 2 : index
    %c0_120 = arith.constant 0 : index
    %c0_121 = arith.constant 0 : index
    %112 = vector.load %arg5[%c0_118, %c2_119, %c0_120, %c0_121] : memref<3x3x128x128xbf16, #tpu.memory_space<vmem>>, vector<1x1x128x128xbf16>
    %113 = vector.shape_cast %112 : vector<1x1x128x128xbf16> to vector<128x128xbf16>
    %cst_122 = arith.constant dense<0.000000e+00> : vector<256x128xf32>
    %114 = tpu.matmul %111, %113, %cst_122 {dimension_numbers = #tpu.dot_dimension_numbers<[1], [0], [0], [1], [0, 0, 1, 1], [], []>} : vector<256x128xbf16>, vector<128x128xbf16>, vector<256x128xf32> -> vector<256x128xf32>
    %c33_123 = arith.constant 33 : index
    %c0_124 = arith.constant 0 : index
    %115 = vector.load %arg10[%c33_123, %c0_124] : memref<320x128xbf16, #tpu.memory_space<vmem>>, vector<256x128xbf16>
    %c1_125 = arith.constant 1 : index
    %c2_126 = arith.constant 2 : index
    %c0_127 = arith.constant 0 : index
    %c0_128 = arith.constant 0 : index
    %116 = vector.load %arg5[%c1_125, %c2_126, %c0_127, %c0_128] : memref<3x3x128x128xbf16, #tpu.memory_space<vmem>>, vector<1x1x128x128xbf16>
    %117 = vector.shape_cast %116 : vector<1x1x128x128xbf16> to vector<128x128xbf16>
    %cst_129 = arith.constant dense<0.000000e+00> : vector<256x128xf32>
    %118 = tpu.matmul %115, %117, %cst_129 {dimension_numbers = #tpu.dot_dimension_numbers<[1], [0], [0], [1], [0, 0, 1, 1], [], []>} : vector<256x128xbf16>, vector<128x128xbf16>, vector<256x128xf32> -> vector<256x128xf32>
    %119 = arith.addf %114, %118 : vector<256x128xf32>
    %c49_130 = arith.constant 49 : index
    %c0_131 = arith.constant 0 : index
    %120 = vector.load %arg10[%c49_130, %c0_131] : memref<320x128xbf16, #tpu.memory_space<vmem>>, vector<256x128xbf16>
    %c2_132 = arith.constant 2 : index
    %c2_133 = arith.constant 2 : index
    %c0_134 = arith.constant 0 : index
    %c0_135 = arith.constant 0 : index
    %121 = vector.load %arg5[%c2_132, %c2_133, %c0_134, %c0_135] : memref<3x3x128x128xbf16, #tpu.memory_space<vmem>>, vector<1x1x128x128xbf16>
    %122 = vector.shape_cast %121 : vector<1x1x128x128xbf16> to vector<128x128xbf16>
    %cst_136 = arith.constant dense<0.000000e+00> : vector<256x128xf32>
    %123 = tpu.matmul %120, %122, %cst_136 {dimension_numbers = #tpu.dot_dimension_numbers<[1], [0], [0], [1], [0, 0, 1, 1], [], []>} : vector<256x128xbf16>, vector<128x128xbf16>, vector<256x128xf32> -> vector<256x128xf32>
    %124 = arith.addf %119, %123 : vector<256x128xf32>
    %125 = vector.broadcast %10 : vector<256x1xf32> to vector<256x128xf32>
    %126 = arith.mulf %124, %125 : vector<256x128xf32>
    %127 = arith.addf %110, %126 : vector<256x128xf32>
    %c0_137 = arith.constant 0 : index
    %c0_138 = arith.constant 0 : index
    %128 = vector.load %arg6[%c0_137, %c0_138] : memref<1x128xf32, #tpu.memory_space<vmem>>, vector<1x128xf32>
    %129 = vector.broadcast %128 : vector<1x128xf32> to vector<256x128xf32>
    %130 = arith.mulf %127, %129 : vector<256x128xf32>
    %c0_139 = arith.constant 0 : index
    %c0_140 = arith.constant 0 : index
    %131 = vector.load %arg7[%c0_139, %c0_140] : memref<1x128xf32, #tpu.memory_space<vmem>>, vector<1x128xf32>
    %132 = vector.broadcast %131 : vector<1x128xf32> to vector<256x128xf32>
    %133 = arith.addf %130, %132 : vector<256x128xf32>
    %cst_141 = arith.constant 0.000000e+00 : f32
    %134 = vector.broadcast %cst_141 : f32 to vector<256x128xf32>
    %135 = arith.maximumf %133, %134 : vector<256x128xf32>
    %c0_142 = arith.constant 0 : index
    %c0_143 = arith.constant 0 : index
    %c0_144 = arith.constant 0 : index
    %136 = vector.load %arg8[%c0_142, %c0_143, %c0_144] : memref<1x256x128xf32, #tpu.memory_space<vmem>>, vector<1x256x128xf32>
    %137 = vector.shape_cast %136 : vector<1x256x128xf32> to vector<256x128xf32>
    %138 = vector.shape_cast %135 : vector<256x128xf32> to vector<1x256x128xf32>
    tpu.vector_store %arg8[%c0_142, %c0_143, %c0_144], %138 {strides = array<i32>} : memref<1x256x128xf32, #tpu.memory_space<vmem>>, vector<1x256x128xf32>,
    return
  }
  func.func @transform_0(%arg0: i32) -> (i32, i32, i32) {
    %c0_i32 = arith.constant 0 : i32
    %c0_i32_0 = arith.constant 0 : i32
    %c0_i32_1 = arith.constant 0 : i32
    return %arg0, %c0_i32, %c0_i32_0 : i32, i32, i32
  }
  func.func @transform_1(%arg0: i32) -> (i32, i32, i32, i32) {
    %c0_i32 = arith.constant 0 : i32
    %c0_i32_0 = arith.constant 0 : i32
    %c0_i32_1 = arith.constant 0 : i32
    %c0_i32_2 = arith.constant 0 : i32
    %c0_i32_3 = arith.constant 0 : i32
    return %c0_i32, %c0_i32_0, %c0_i32_1, %c0_i32_2 : i32, i32, i32, i32
  }
  func.func @transform_2(%arg0: i32) -> (i32, i32) {
    %c0_i32 = arith.constant 0 : i32
    %c0_i32_0 = arith.constant 0 : i32
    %c0_i32_1 = arith.constant 0 : i32
    return %c0_i32, %c0_i32_0 : i32, i32
  }
  func.func @transform_3(%arg0: i32) -> (i32, i32) {
    %c0_i32 = arith.constant 0 : i32
    %c0_i32_0 = arith.constant 0 : i32
    %c0_i32_1 = arith.constant 0 : i32
    return %c0_i32, %c0_i32_0 : i32, i32
  }
  func.func @transform_4(%arg0: i32) -> (i32, i32, i32, i32) {
    %c0_i32 = arith.constant 0 : i32
    %c0_i32_0 = arith.constant 0 : i32
    %c0_i32_1 = arith.constant 0 : i32
    %c0_i32_2 = arith.constant 0 : i32
    %c0_i32_3 = arith.constant 0 : i32
    return %c0_i32, %c0_i32_0, %c0_i32_1, %c0_i32_2 : i32, i32, i32, i32
  }
  func.func @transform_5(%arg0: i32) -> (i32, i32) {
    %c0_i32 = arith.constant 0 : i32
    %c0_i32_0 = arith.constant 0 : i32
    %c0_i32_1 = arith.constant 0 : i32
    return %c0_i32, %c0_i32_0 : i32, i32
  }
  func.func @transform_6(%arg0: i32) -> (i32, i32) {
    %c0_i32 = arith.constant 0 : i32
    %c0_i32_0 = arith.constant 0 : i32
    %c0_i32_1 = arith.constant 0 : i32
    return %c0_i32, %c0_i32_0 : i32, i32
  }
  func.func @transform_7(%arg0: i32) -> (i32, i32, i32) {
    %c0_i32 = arith.constant 0 : i32
    %c0_i32_0 = arith.constant 0 : i32
    %c0_i32_1 = arith.constant 0 : i32
    return %arg0, %c0_i32, %c0_i32_0 : i32, i32, i32
  }
}

</mosaic_0001>

<llo_original>
// kernel: double_conv.1
$region0: #{double_conv.1}
  #allocation0 [shape = 'u32[]', space=smem, size = 0x4, offset = 0x4, fixed_abs, tag = 'smem constant byte address 0x4 - core index']
  #allocation1 [shape = 'u32[144,128]{1,0:T(1,128)}', space=vmem, size = 0x12000, scoped, tag = 'internal scratch']
  #allocation2 [shape = 'bf16[320,128]{1,0:T(8,128)(2,1)}', space=vmem, size = 0x14000, scoped, tag = 'scratch operand']
  #allocation3 [shape = 'bf16[320,128]{1,0:T(8,128)(2,1)}', space=vmem, size = 0x14000, scoped, tag = 'scratch operand']
  %s0 = inlined_call_operand.vmem [shape: bf16[2,256,128], index: 0, kind: input, shape index: {}]
  %s1 = inlined_call_operand.vmem [shape: bf16[3,3,128,128], index: 1, kind: input, shape index: {}]
  %s2 = inlined_call_operand.vmem [shape: f32[1,128], index: 2, kind: input, shape index: {}]
  %s3 = inlined_call_operand.vmem [shape: f32[1,128], index: 3, kind: input, shape index: {}]
  %s4 = inlined_call_operand.vmem [shape: bf16[3,3,128,128], index: 4, kind: input, shape index: {}]
  %s5 = inlined_call_operand.vmem [shape: f32[1,128], index: 5, kind: input, shape index: {}]
  %s6 = inlined_call_operand.vmem [shape: f32[1,128], index: 6, kind: input, shape index: {}]
  %s7 = inlined_call_operand.vmem [shape: f32[2,256,128], index: 7, kind: output, shape index: {}]
  %s8 = sld [smem:[#allocation0]]
  $region61: #{double_conv.1} parent=0
    _
  %s10 = ssub.s32 1, %s8
  %s11 = scalar_select 0, %s10, %s8
  loop: start=0, step=1, limit=4
  $region2: #{double_conv.1} parent=0 // loop_pre_header
    _
  $region3: #{double_conv.1} parent=0 // loop_header
    %s13 = sphi 0, %s17
    %p14 = scmp.ge.s32.totalorder %s13, 4
    %s23 = sphi 0, %s25
    %s26 = sphi 0, %s23
    %s27 = sphi 0, %s26
    %s43 = sphi 0, %s27
    %s47 = sphi 0, %s47
    %s49 = sphi 0, %s47
    %s50 = sphi 0, %s49
    %s64 = sphi 0, %s50
    %s68 = sphi 0, %s68
    %s70 = sphi 0, %s68
    %s71 = sphi 0, %s70
    %s85 = sphi 0, %s71
    %s89 = sphi 0, %s89
    %s91 = sphi 0, %s89
    %s92 = sphi 0, %s91
    %s106 = sphi 0, %s92
    %s110 = sphi 0, %s110
    %s112 = sphi 0, %s110
    %s113 = sphi 0, %s112
    %s127 = sphi 0, %s113
    %s131 = sphi 0, %s131
    %s133 = sphi 0, %s131
    %s134 = sphi 0, %s133
    %s148 = sphi 0, %s134
    %s152 = sphi 0, %s152
    %s154 = sphi 0, %s152
    %s155 = sphi 0, %s154
    %s169 = sphi 0, %s155
    %s175 = sphi 0, %s177
    %s178 = sphi 0, %s175
    %s179 = sphi 0, %s178
    %s195 = sphi 0, %s179
  $region4: #{double_conv.1} parent=0 // loop_header_branch
    %16 = sbr.rel (%p14) target = $region8
  $region5: #{double_conv.1} parent=0 // loop_body
    %s18 = ssub.s32 %s13, 1
    %s19 = ssub.s32 %s13, 2
    %s20 = sadd.s32 %s13, 1
    %s21 = ssub.s32 %s13, %s20
    %p22 = scmp.eq.s32.totalorder %s21, 0
    %s24 = sadd.s32 %s23, 1
    %s25 = scalar_select %p22, %s23, %s24
    %p28 = pneg %p22
    %p29 = scmp.eq.s32.totalorder %s13, 1
    %p30 = por %p28, %p29
    %p31 = scmp.ne.s32.totalorder %s23, %s26
    %p32 = scmp.eq.s32.totalorder %s13, 0
    %p33 = por %p31, %p32
    %p34 = scmp.ne.s32.totalorder %s23, %s26
    %p35 = scmp.eq.s32.totalorder %s18, 1
    %p36 = por %p34, %p35
    %p37 = scmp.ne.s32.totalorder %s26, %s27
    %p38 = scmp.eq.s32.totalorder %s18, 0
    %p39 = por %p37, %p38
    %p40 = scmp.ne.s32.totalorder %s26, %s27
    %p41 = scmp.eq.s32.totalorder %s19, 1
    %p42 = por %p40, %p41
    %p44 = scmp.ne.s32.totalorder %s27, %s43
    %p45 = scmp.eq.s32.totalorder %s19, 0
    %p46 = por %p44, %p45
    %s48 = sadd.s32 %s47, 1
    %p51 = scmp.eq.s32.totalorder %s13, 1
    %p52 = scmp.ne.s32.totalorder %s47, %s49
    %p53 = scmp.eq.s32.totalorder %s13, 0
    %p54 = por %p52, %p53
    %p55 = scmp.ne.s32.totalorder %s47, %s49
    %p56 = scmp.eq.s32.totalorder %s18, 1
    %p57 = por %p55, %p56
    %p58 = scmp.ne.s32.totalorder %s49, %s50
    %p59 = scmp.eq.s32.totalorder %s18, 0
    %p60 = por %p58, %p59
    %p61 = scmp.ne.s32.totalorder %s49, %s50
    %p62 = scmp.eq.s32.totalorder %s19, 1
    %p63 = por %p61, %p62
    %p65 = scmp.ne.s32.totalorder %s50, %s64
    %p66 = scmp.eq.s32.totalorder %s19, 0
    %p67 = por %p65, %p66
    %s69 = sadd.s32 %s68, 1
    %p72 = scmp.eq.s32.totalorder %s13, 1
    %p73 = scmp.ne.s32.totalorder %s68, %s70
    %p74 = scmp.eq.s32.totalorder %s13, 0
    %p75 = por %p73, %p74
    %p76 = scmp.ne.s32.totalorder %s68, %s70
    %p77 = scmp.eq.s32.totalorder %s18, 1
    %p78 = por %p76, %p77
    %p79 = scmp.ne.s32.totalorder %s70, %s71
    %p80 = scmp.eq.s32.totalorder %s18, 0
    %p81 = por %p79, %p80
    %p82 = scmp.ne.s32.totalorder %s70, %s71
    %p83 = scmp.eq.s32.totalorder %s19, 1
    %p84 = por %p82, %p83
    %p86 = scmp.ne.s32.totalorder %s71, %s85
    %p87 = scmp.eq.s32.totalorder %s19, 0
    %p88 = por %p86, %p87
    %s90 = sadd.s32 %s89, 1
    %p93 = scmp.eq.s32.totalorder %s13, 1
    %p94 = scmp.ne.s32.totalorder %s89, %s91
    %p95 = scmp.eq.s32.totalorder %s13, 0
    %p96 = por %p94, %p95
    %p97 = scmp.ne.s32.totalorder %s89, %s91
    %p98 = scmp.eq.s32.totalorder %s18, 1
    %p99 = por %p97, %p98
    %p100 = scmp.ne.s32.totalorder %s91, %s92
    %p101 = scmp.eq.s32.totalorder %s18, 0
    %p102 = por %p100, %p101
    %p103 = scmp.ne.s32.totalorder %s91, %s92
    %p104 = scmp.eq.s32.totalorder %s19, 1
    %p105 = por %p103, %p104
    %p107 = scmp.ne.s32.totalorder %s92, %s106
    %p108 = scmp.eq.s32.totalorder %s19, 0
    %p109 = por %p107, %p108
    %s111 = sadd.s32 %s110, 1
    %p114 = scmp.eq.s32.totalorder %s13, 1
    %p115 = scmp.ne.s32.totalorder %s110, %s112
    %p116 = scmp.eq.s32.totalorder %s13, 0
    %p117 = por %p115, %p116
    %p118 = scmp.ne.s32.totalorder %s110, %s112
    %p119 = scmp.eq.s32.totalorder %s18, 1
    %p120 = por %p118, %p119
    %p121 = scmp.ne.s32.totalorder %s112, %s113
    %p122 = scmp.eq.s32.totalorder %s18, 0
    %p123 = por %p121, %p122
    %p124 = scmp.ne.s32.totalorder %s112, %s113
    %p125 = scmp.eq.s32.totalorder %s19, 1
    %p126 = por %p124, %p125
    %p128 = scmp.ne.s32.totalorder %s113, %s127
    %p129 = scmp.eq.s32.totalorder %s19, 0
    %p130 = por %p128, %p129
    %s132 = sadd.s32 %s131, 1
    %p135 = scmp.eq.s32.totalorder %s13, 1
    %p136 = scmp.ne.s32.totalorder %s131, %s133
    %p137 = scmp.eq.s32.totalorder %s13, 0
    %p138 = por %p136, %p137
    %p139 = scmp.ne.s32.totalorder %s131, %s133
    %p140 = scmp.eq.s32.totalorder %s18, 1
    %p141 = por %p139, %p140
    %p142 = scmp.ne.s32.totalorder %s133, %s134
    %p143 = scmp.eq.s32.totalorder %s18, 0
    %p144 = por %p142, %p143
    %p145 = scmp.ne.s32.totalorder %s133, %s134
    %p146 = scmp.eq.s32.totalorder %s19, 1
    %p147 = por %p145, %p146
    %p149 = scmp.ne.s32.totalorder %s134, %s148
    %p150 = scmp.eq.s32.totalorder %s19, 0
    %p151 = por %p149, %p150
    %s153 = sadd.s32 %s152, 1
    %p156 = scmp.eq.s32.totalorder %s13, 1
    %p157 = scmp.ne.s32.totalorder %s152, %s154
    %p158 = scmp.eq.s32.totalorder %s13, 0
    %p159 = por %p157, %p158
    %p160 = scmp.ne.s32.totalorder %s152, %s154
    %p161 = scmp.eq.s32.totalorder %s18, 1
    %p162 = por %p160, %p161
    %p163 = scmp.ne.s32.totalorder %s154, %s155
    %p164 = scmp.eq.s32.totalorder %s18, 0
    %p165 = por %p163, %p164
    %p166 = scmp.ne.s32.totalorder %s154, %s155
    %p167 = scmp.eq.s32.totalorder %s19, 1
    %p168 = por %p166, %p167
    %p170 = scmp.ne.s32.totalorder %s155, %s169
    %p171 = scmp.eq.s32.totalorder %s19, 0
    %p172 = por %p170, %p171
    %s173 = ssub.s32 %s13, %s20
    %p174 = scmp.eq.s32.totalorder %s173, 0
    %s176 = sadd.s32 %s175, 1
    %s177 = scalar_select %p174, %s175, %s176
    %p180 = pneg %p174
    %p181 = scmp.eq.s32.totalorder %s13, 1
    %p182 = por %p180, %p181
    %p183 = scmp.ne.s32.totalorder %s175, %s178
    %p184 = scmp.eq.s32.totalorder %s13, 0
    %p185 = por %p183, %p184
    %p186 = scmp.ne.s32.totalorder %s175, %s178
    %p187 = scmp.eq.s32.totalorder %s18, 1
    %p188 = por %p186, %p187
    %p189 = scmp.ne.s32.totalorder %s178, %s179
    %p190 = scmp.eq.s32.totalorder %s18, 0
    %p191 = por %p189, %p190
    %p192 = scmp.ne.s32.totalorder %s178, %s179
    %p193 = scmp.eq.s32.totalorder %s19, 1
    %p194 = por %p192, %p193
    %p196 = scmp.ne.s32.totalorder %s179, %s195
    %p197 = scmp.eq.s32.totalorder %s19, 0
    %p198 = por %p196, %p197
    %p199 = scmp.le.s32.totalorder 1, %s13
    %p200 = scmp.lt.s32.totalorder %s13, 3
    %p201 = pnand %p199, %p200
    %p202 = pneg %p201
    // Predicated region
    $region9: #{double_conv.1} parent=5 // pred_check
      _
    $region10: #{double_conv.1} parent=5 // pred_check_branch
      %204 = sbr.rel (%p201) target = $region12
    $region11: #{double_conv.1} parent=5 // pred_region
      %s205 = ssub.s32 %s13, 1
      // Predicated region
      $region13: #{double_conv.1} parent=11 // pred_check
        %p206 = pneg %p60
      $region14: #{double_conv.1} parent=11 // pred_check_branch
        %208 = sbr.rel (%p206) target = $region16
      $region15: #{double_conv.1} parent=11 // pred_region
        _
      $region16: #{double_conv.1} parent=11 // pred_fallthru
        _
      // Predicated region
      $region17: #{double_conv.1} parent=11 // pred_check
        %p209 = pneg %p81
      $region18: #{double_conv.1} parent=11 // pred_check_branch
        %211 = sbr.rel (%p209) target = $region20
      $region19: #{double_conv.1} parent=11 // pred_region
        _
      $region20: #{double_conv.1} parent=11 // pred_fallthru
        _
      // Predicated region
      $region21: #{double_conv.1} parent=11 // pred_check
        %p212 = pneg %p102
      $region22: #{double_conv.1} parent=11 // pred_check_branch
        %214 = sbr.rel (%p212) target = $region24
      $region23: #{double_conv.1} parent=11 // pred_region
        _
      $region24: #{double_conv.1} parent=11 // pred_fallthru
        _
      // Predicated region
      $region25: #{double_conv.1} parent=11 // pred_check
        %p215 = pneg %p123
      $region26: #{double_conv.1} parent=11 // pred_check_branch
        %217 = sbr.rel (%p215) target = $region28
      $region27: #{double_conv.1} parent=11 // pred_region
        _
      $region28: #{double_conv.1} parent=11 // pred_fallthru
        _
      // Predicated region
      $region29: #{double_conv.1} parent=11 // pred_check
        %p218 = pneg %p144
      $region30: #{double_conv.1} parent=11 // pred_check_branch
        %220 = sbr.rel (%p218) target = $region32
      $region31: #{double_conv.1} parent=11 // pred_region
        _
      $region32: #{double_conv.1} parent=11 // pred_fallthru
        _
      // Predicated region
      $region33: #{double_conv.1} parent=11 // pred_check
        %p221 = pneg %p165
      $region34: #{double_conv.1} parent=11 // pred_check_branch
        %223 = sbr.rel (%p221) target = $region36
      $region35: #{double_conv.1} parent=11 // pred_region
        _
      $region36: #{double_conv.1} parent=11 // pred_fallthru
        _
    $region12: #{double_conv.1} parent=5 // pred_fallthru
      _
    %p224 = scmp.lt.s32.totalorder %s13, 2
    // Predicated region
    $region37: #{double_conv.1} parent=5 // pred_check
      %p225 = pneg %p224
    $region38: #{double_conv.1} parent=5 // pred_check_branch
      %227 = sbr.rel (%p225) target = $region40
    $region39: #{double_conv.1} parent=5 // pred_region
      // Predicated region
      $region41: #{double_conv.1} parent=39 // pred_check
        %p228 = pneg %p33
      $region42: #{double_conv.1} parent=39 // pred_check_branch
        %230 = sbr.rel (%p228) target = $region44
      $region43: #{double_conv.1} parent=39 // pred_region
        %p231 = scmp.lt.s32.totalorder %s13, 1
        %s232 = scalar_select %p231, %s13, 1
        %s233 = smul.addr %s232, 32
        %s234 = smul.addr %s233, 4
        %s235 = scalar_lea.vmem %s0, %s234
      $region44: #{double_conv.1} parent=39 // pred_fallthru
        _
    $region40: #{double_conv.1} parent=5 // pred_fallthru
      _
    %p236 = scmp.le.s32.totalorder 1, %s13
    %p237 = scmp.lt.s32.totalorder %s13, 3
    %p238 = pnand %p236, %p237
    %p239 = pneg %p238
    // Predicated region
    $region45: #{double_conv.1} parent=5 // pred_check
      _
    $region46: #{double_conv.1} parent=5 // pred_check_branch
      %241 = sbr.rel (%p238) target = $region48
    $region47: #{double_conv.1} parent=5 // pred_region
      %s242 = ssub.s32 %s13, 1
      %p243 = scmp.lt.s32.totalorder %s18, 1
      %s244 = scalar_select %p243, %s18, 1
      %s245 = smul.addr %s244, 32
      %s246 = smul.addr %s245, 4
      %s247 = scalar_lea.vmem %s0, %s246
      %p248 = pneg %p39
      %p249 = pneg %p36
      %p250 = pneg %p60
      %p251 = pneg %p57
      %p252 = pneg %p81
      %p253 = pneg %p78
      %p254 = pneg %p102
      %p255 = pneg %p99
      %p256 = pneg %p123
      %p257 = pneg %p120
      %p258 = pneg %p144
      %p259 = pneg %p141
      %p260 = pneg %p165
      %p261 = pneg %p162
      %p262 = pneg %p191
      %p263 = pneg %p188
      %p264 = scmp.lt.s32.totalorder %s18, 1
      %s265 = scalar_select %p264, %s18, 1
      %s266 = smul.addr %s265, 32
      %s267 = smul.addr %s266, 8
      %s268 = scalar_lea.vmem %s7, %s267
      %p269 = scmp.lt.s32.totalorder %s18, 1
      %s270 = scalar_select %p269, %s18, 1
      %s271 = smul.addr %s270, 32
      %s272 = smul.addr %s271, 4
      %s273 = scalar_lea.vmem %s0, %s272
      %p274 = scmp.lt.s32.totalorder %s18, 1
      %s275 = scalar_select %p274, %s18, 1
      %s276 = smul.addr %s275, 32
      %s277 = smul.addr %s276, 8
      %s278 = scalar_lea.vmem %s7, %s277
      %v280 = vlaneseq
      %v281 = vshrl.u32 %v280, 7
      %v282 = vadd.s32 %v281, 8
      %v283 = vadd.s32 %v281, 16
      %v284 = vadd.s32 %v281, 24
      %v285 = vadd.s32 %v281, 32
      %v286 = vadd.s32 %v281, 40
      %v287 = vadd.s32 %v281, 48
      %v288 = vadd.s32 %v281, 56
      %v289 = vadd.s32 %v281, 64
      %v290 = vadd.s32 %v281, 72
      %v291 = vadd.s32 %v281, 80
      %v292 = vadd.s32 %v281, 88
      %v293 = vadd.s32 %v281, 96
      %v294 = vadd.s32 %v281, 104
      %v295 = vadd.s32 %v281, 112
      %v296 = vadd.s32 %v281, 120
      %v297 = vadd.s32 %v281, 128
      %v298 = vadd.s32 %v281, 136
      %v299 = vadd.s32 %v281, 144
      %v300 = vadd.s32 %v281, 152
      %v301 = vadd.s32 %v281, 160
      %v302 = vadd.s32 %v281, 168
      %v303 = vadd.s32 %v281, 176
      %v304 = vadd.s32 %v281, 184
      %v305 = vadd.s32 %v281, 192
      %v306 = vadd.s32 %v281, 200
      %v307 = vadd.s32 %v281, 208
      %v308 = vadd.s32 %v281, 216
      %v309 = vadd.s32 %v281, 224
      %v310 = vadd.s32 %v281, 232
      %v311 = vadd.s32 %v281, 240
      %v312 = vadd.s32 %v281, 248
      %v313 = vand.u32 %v281, 15
      %v314 = vand.u32 %v282, 15
      %v315 = vand.u32 %v283, 15
      %v316 = vand.u32 %v284, 15
      %v317 = vand.u32 %v285, 15
      %v318 = vand.u32 %v286, 15
      %v319 = vand.u32 %v287, 15
      %v320 = vand.u32 %v288, 15
      %v321 = vand.u32 %v289, 15
      %v322 = vand.u32 %v290, 15
      %v323 = vand.u32 %v291, 15
      %v324 = vand.u32 %v292, 15
      %v325 = vand.u32 %v293, 15
      %v326 = vand.u32 %v294, 15
      %v327 = vand.u32 %v295, 15
      %v328 = vand.u32 %v296, 15
      %v329 = vand.u32 %v297, 15
      %v330 = vand.u32 %v298, 15
      %v331 = vand.u32 %v299, 15
      %v332 = vand.u32 %v300, 15
      %v333 = vand.u32 %v301, 15
      %v334 = vand.u32 %v302, 15
      %v335 = vand.u32 %v303, 15
      %v336 = vand.u32 %v304, 15
      %v337 = vand.u32 %v305, 15
      %v338 = vand.u32 %v306, 15
      %v339 = vand.u32 %v307, 15
      %v340 = vand.u32 %v308, 15
      %v341 = vand.u32 %v309, 15
      %v342 = vand.u32 %v310, 15
      %v343 = vand.u32 %v311, 15
      %v344 = vand.u32 %v312, 15
      %vm345 = vcmp.gt.s32.totalorder %v313, 0
      %vm346 = vcmp.gt.s32.totalorder %v314, 0
      %vm347 = vcmp.gt.s32.totalorder %v315, 0
      %vm348 = vcmp.gt.s32.totalorder %v316, 0
      %vm349 = vcmp.gt.s32.totalorder %v317, 0
      %vm350 = vcmp.gt.s32.totalorder %v318, 0
      %vm351 = vcmp.gt.s32.totalorder %v319, 0
      %vm352 = vcmp.gt.s32.totalorder %v320, 0
      %vm353 = vcmp.gt.s32.totalorder %v321, 0
      %vm354 = vcmp.gt.s32.totalorder %v322, 0
      %vm355 = vcmp.gt.s32.totalorder %v323, 0
      %vm356 = vcmp.gt.s32.totalorder %v324, 0
      %vm357 = vcmp.gt.s32.totalorder %v325, 0
      %vm358 = vcmp.gt.s32.totalorder %v326, 0
      %vm359 = vcmp.gt.s32.totalorder %v327, 0
      %vm360 = vcmp.gt.s32.totalorder %v328, 0
      %vm361 = vcmp.gt.s32.totalorder %v329, 0
      %vm362 = vcmp.gt.s32.totalorder %v330, 0
      %vm363 = vcmp.gt.s32.totalorder %v331, 0
      %vm364 = vcmp.gt.s32.totalorder %v332, 0
      %vm365 = vcmp.gt.s32.totalorder %v333, 0
      %vm366 = vcmp.gt.s32.totalorder %v334, 0
      %vm367 = vcmp.gt.s32.totalorder %v335, 0
      %vm368 = vcmp.gt.s32.totalorder %v336, 0
      %vm369 = vcmp.gt.s32.totalorder %v337, 0
      %vm370 = vcmp.gt.s32.totalorder %v338, 0
      %vm371 = vcmp.gt.s32.totalorder %v339, 0
      %vm372 = vcmp.gt.s32.totalorder %v340, 0
      %vm373 = vcmp.gt.s32.totalorder %v341, 0
      %vm374 = vcmp.gt.s32.totalorder %v342, 0
      %vm375 = vcmp.gt.s32.totalorder %v343, 0
      %vm376 = vcmp.gt.s32.totalorder %v344, 0
      %v377 = vsel %vm345, 1, 0
      %v378 = vsel %vm346, 1, 0
      %v379 = vsel %vm347, 1, 0
      %v380 = vsel %vm348, 1, 0
      %v381 = vsel %vm349, 1, 0
      %v382 = vsel %vm350, 1, 0
      %v383 = vsel %vm351, 1, 0
      %v384 = vsel %vm352, 1, 0
      %v385 = vsel %vm353, 1, 0
      %v386 = vsel %vm354, 1, 0
      %v387 = vsel %vm355, 1, 0
      %v388 = vsel %vm356, 1, 0
      %v389 = vsel %vm357, 1, 0
      %v390 = vsel %vm358, 1, 0
      %v391 = vsel %vm359, 1, 0
      %v392 = vsel %vm360, 1, 0
      %v393 = vsel %vm361, 1, 0
      %v394 = vsel %vm362, 1, 0
      %v395 = vsel %vm363, 1, 0
      %v396 = vsel %vm364, 1, 0
      %v397 = vsel %vm365, 1, 0
      %v398 = vsel %vm366, 1, 0
      %v399 = vsel %vm367, 1, 0
      %v400 = vsel %vm368, 1, 0
      %v401 = vsel %vm369, 1, 0
      %v402 = vsel %vm370, 1, 0
      %v403 = vsel %vm371, 1, 0
      %v404 = vsel %vm372, 1, 0
      %v405 = vsel %vm373, 1, 0
      %v406 = vsel %vm374, 1, 0
      %v407 = vsel %vm375, 1, 0
      %v408 = vsel %vm376, 1, 0
      %v409 = vcvt.s32.f32 %v377
      %v410 = vcvt.s32.f32 %v378
      %v411 = vcvt.s32.f32 %v379
      %v412 = vcvt.s32.f32 %v380
      %v413 = vcvt.s32.f32 %v381
      %v414 = vcvt.s32.f32 %v382
      %v415 = vcvt.s32.f32 %v383
      %v416 = vcvt.s32.f32 %v384
      %v417 = vcvt.s32.f32 %v385
      %v418 = vcvt.s32.f32 %v386
      %v419 = vcvt.s32.f32 %v387
      %v420 = vcvt.s32.f32 %v388
      %v421 = vcvt.s32.f32 %v389
      %v422 = vcvt.s32.f32 %v390
      %v423 = vcvt.s32.f32 %v391
      %v424 = vcvt.s32.f32 %v392
      %v425 = vcvt.s32.f32 %v393
      %v426 = vcvt.s32.f32 %v394
      %v427 = vcvt.s32.f32 %v395
      %v428 = vcvt.s32.f32 %v396
      %v429 = vcvt.s32.f32 %v397
      %v430 = vcvt.s32.f32 %v398
      %v431 = vcvt.s32.f32 %v399
      %v432 = vcvt.s32.f32 %v400
      %v433 = vcvt.s32.f32 %v401
      %v434 = vcvt.s32.f32 %v402
      %v435 = vcvt.s32.f32 %v403
      %v436 = vcvt.s32.f32 %v404
      %v437 = vcvt.s32.f32 %v405
      %v438 = vcvt.s32.f32 %v406
      %v439 = vcvt.s32.f32 %v407
      %v440 = vcvt.s32.f32 %v408
      %vm441 = vcmp.lt.s32.totalorder %v313, 15
      %vm442 = vcmp.lt.s32.totalorder %v314, 15
      %vm443 = vcmp.lt.s32.totalorder %v315, 15
      %vm444 = vcmp.lt.s32.totalorder %v316, 15
      %vm445 = vcmp.lt.s32.totalorder %v317, 15
      %vm446 = vcmp.lt.s32.totalorder %v318, 15
      %vm447 = vcmp.lt.s32.totalorder %v319, 15
      %vm448 = vcmp.lt.s32.totalorder %v320, 15
      %vm449 = vcmp.lt.s32.totalorder %v321, 15
      %vm450 = vcmp.lt.s32.totalorder %v322, 15
      %vm451 = vcmp.lt.s32.totalorder %v323, 15
      %vm452 = vcmp.lt.s32.totalorder %v324, 15
      %vm453 = vcmp.lt.s32.totalorder %v325, 15
      %vm454 = vcmp.lt.s32.totalorder %v326, 15
      %vm455 = vcmp.lt.s32.totalorder %v327, 15
      %vm456 = vcmp.lt.s32.totalorder %v328, 15
      %vm457 = vcmp.lt.s32.totalorder %v329, 15
      %vm458 = vcmp.lt.s32.totalorder %v330, 15
      %vm459 = vcmp.lt.s32.totalorder %v331, 15
      %vm460 = vcmp.lt.s32.totalorder %v332, 15
      %vm461 = vcmp.lt.s32.totalorder %v333, 15
      %vm462 = vcmp.lt.s32.totalorder %v334, 15
      %vm463 = vcmp.lt.s32.totalorder %v335, 15
      %vm464 = vcmp.lt.s32.totalorder %v336, 15
      %vm465 = vcmp.lt.s32.totalorder %v337, 15
      %vm466 = vcmp.lt.s32.totalorder %v338, 15
      %vm467 = vcmp.lt.s32.totalorder %v339, 15
      %vm468 = vcmp.lt.s32.totalorder %v340, 15
      %vm469 = vcmp.lt.s32.totalorder %v341, 15
      %vm470 = vcmp.lt.s32.totalorder %v342, 15
      %vm471 = vcmp.lt.s32.totalorder %v343, 15
      %vm472 = vcmp.lt.s32.totalorder %v344, 15
      %v473 = vsel %vm441, 1, 0
      %v474 = vsel %vm442, 1, 0
      %v475 = vsel %vm443, 1, 0
      %v476 = vsel %vm444, 1, 0
      %v477 = vsel %vm445, 1, 0
      %v478 = vsel %vm446, 1, 0
      %v479 = vsel %vm447, 1, 0
      %v480 = vsel %vm448, 1, 0
      %v481 = vsel %vm449, 1, 0
      %v482 = vsel %vm450, 1, 0
      %v483 = vsel %vm451, 1, 0
      %v484 = vsel %vm452, 1, 0
      %v485 = vsel %vm453, 1, 0
      %v486 = vsel %vm454, 1, 0
      %v487 = vsel %vm455, 1, 0
      %v488 = vsel %vm456, 1, 0
      %v489 = vsel %vm457, 1, 0
      %v490 = vsel %vm458, 1, 0
      %v491 = vsel %vm459, 1, 0
      %v492 = vsel %vm460, 1, 0
      %v493 = vsel %vm461, 1, 0
      %v494 = vsel %vm462, 1, 0
      %v495 = vsel %vm463, 1, 0
      %v496 = vsel %vm464, 1, 0
      %v497 = vsel %vm465, 1, 0
      %v498 = vsel %vm466, 1, 0
      %v499 = vsel %vm467, 1, 0
      %v500 = vsel %vm468, 1, 0
      %v501 = vsel %vm469, 1, 0
      %v502 = vsel %vm470, 1, 0
      %v503 = vsel %vm471, 1, 0
      %v504 = vsel %vm472, 1, 0
      %v505 = vcvt.s32.f32 %v473
      %v506 = vcvt.s32.f32 %v474
      %v507 = vcvt.s32.f32 %v475
      %v508 = vcvt.s32.f32 %v476
      %v509 = vcvt.s32.f32 %v477
      %v510 = vcvt.s32.f32 %v478
      %v511 = vcvt.s32.f32 %v479
      %v512 = vcvt.s32.f32 %v480
      %v513 = vcvt.s32.f32 %v481
      %v514 = vcvt.s32.f32 %v482
      %v515 = vcvt.s32.f32 %v483
      %v516 = vcvt.s32.f32 %v484
      %v517 = vcvt.s32.f32 %v485
      %v518 = vcvt.s32.f32 %v486
      %v519 = vcvt.s32.f32 %v487
      %v520 = vcvt.s32.f32 %v488
      %v521 = vcvt.s32.f32 %v489
      %v522 = vcvt.s32.f32 %v490
      %v523 = vcvt.s32.f32 %v491
      %v524 = vcvt.s32.f32 %v492
      %v525 = vcvt.s32.f32 %v493
      %v526 = vcvt.s32.f32 %v494
      %v527 = vcvt.s32.f32 %v495
      %v528 = vcvt.s32.f32 %v496
      %v529 = vcvt.s32.f32 %v497
      %v530 = vcvt.s32.f32 %v498
      %v531 = vcvt.s32.f32 %v499
      %v532 = vcvt.s32.f32 %v500
      %v533 = vcvt.s32.f32 %v501
      %v534 = vcvt.s32.f32 %v502
      %v535 = vcvt.s32.f32 %v503
      %v536 = vcvt.s32.f32 %v504
      %v537 = vld [vmem:[%s273] sm:$0xf]
      %v538 = vld [vmem:[%s273 + $0x4] sm:$0xf]
      %v539 = vld [vmem:[%s273 + $0x8] sm:$0xf]
      %v540 = vld [vmem:[%s273 + $0xc] sm:$0xf]
      %v541 = vld [vmem:[%s273 + $0x10] sm:$0xf]
      %v542 = vld [vmem:[%s273 + $0x14] sm:$0xf]
      %v543 = vld [vmem:[%s273 + $0x18] sm:$0xf]
      %v544 = vld [vmem:[%s273 + $0x1c] sm:$0xf]
      %v545 = vld [vmem:[%s273 + $0x20] sm:$0xf]
      %v546 = vld [vmem:[%s273 + $0x24] sm:$0xf]
      %v547 = vld [vmem:[%s273 + $0x28] sm:$0xf]
      %v548 = vld [vmem:[%s273 + $0x2c] sm:$0xf]
      %v549 = vld [vmem:[%s273 + $0x30] sm:$0xf]
      %v550 = vld [vmem:[%s273 + $0x34] sm:$0xf]
      %v551 = vld [vmem:[%s273 + $0x38] sm:$0xf]
      %v552 = vld [vmem:[%s273 + $0x3c] sm:$0xf]
      %v553 = vld [vmem:[%s273 + $0x40] sm:$0xf]
      %v554 = vld [vmem:[%s273 + $0x44] sm:$0xf]
      %v555 = vld [vmem:[%s273 + $0x48] sm:$0xf]
      %v556 = vld [vmem:[%s273 + $0x4c] sm:$0xf]
      %v557 = vld [vmem:[%s273 + $0x50] sm:$0xf]
      %v558 = vld [vmem:[%s273 + $0x54] sm:$0xf]
      %v559 = vld [vmem:[%s273 + $0x58] sm:$0xf]
      %v560 = vld [vmem:[%s273 + $0x5c] sm:$0xf]
      %v561 = vld [vmem:[%s273 + $0x60] sm:$0xf]
      %v562 = vld [vmem:[%s273 + $0x64] sm:$0xf]
      %v563 = vld [vmem:[%s273 + $0x68] sm:$0xf]
      %v564 = vld [vmem:[%s273 + $0x6c] sm:$0xf]
      %v565 = vld [vmem:[%s273 + $0x70] sm:$0xf]
      %v566 = vld [vmem:[%s273 + $0x74] sm:$0xf]
      %v567 = vld [vmem:[%s273 + $0x78] sm:$0xf]
      %v568 = vld [vmem:[%s273 + $0x7c] sm:$0xf]
      %569 = vst [vmem:[#allocation2] sm:$0xf] 0
      %570 = vst [vmem:[#allocation2 + $0x4] sm:$0xf] 0
      %571 = vst [vmem:[#allocation2 + $0x8] sm:$0xf] 0
      %572 = vst [vmem:[#allocation2 + $0xc] sm:$0xf] 0
      %573 = vst [vmem:[#allocation2 + $0x90] sm:$0xf] 0
      %574 = vst [vmem:[#allocation2 + $0x94] sm:$0xf] 0
      %575 = vst [vmem:[#allocation2 + $0x98] sm:$0xf] 0
      %576 = vst [vmem:[#allocation2 + $0x9c] sm:$0xf] 0
      %577 = vst [vmem:[#allocation2 + $0x10] sm:$0xf] %v537
      %578 = vst [vmem:[#allocation2 + $0x14] sm:$0xf] %v538
      %579 = vst [vmem:[#allocation2 + $0x18] sm:$0xf] %v539
      %580 = vst [vmem:[#allocation2 + $0x1c] sm:$0xf] %v540
      %581 = vst [vmem:[#allocation2 + $0x20] sm:$0xf] %v541
      %582 = vst [vmem:[#allocation2 + $0x24] sm:$0xf] %v542
      %583 = vst [vmem:[#allocation2 + $0x28] sm:$0xf] %v543
      %584 = vst [vmem:[#allocation2 + $0x2c] sm:$0xf] %v544
      %585 = vst [vmem:[#allocation2 + $0x30] sm:$0xf] %v545
      %586 = vst [vmem:[#allocation2 + $0x34] sm:$0xf] %v546
      %587 = vst [vmem:[#allocation2 + $0x38] sm:$0xf] %v547
      %588 = vst [vmem:[#allocation2 + $0x3c] sm:$0xf] %v548
      %589 = vst [vmem:[#allocation2 + $0x40] sm:$0xf] %v549
      %590 = vst [vmem:[#allocation2 + $0x44] sm:$0xf] %v550
      %591 = vst [vmem:[#allocation2 + $0x48] sm:$0xf] %v551
      %592 = vst [vmem:[#allocation2 + $0x4c] sm:$0xf] %v552
      %593 = vst [vmem:[#allocation2 + $0x50] sm:$0xf] %v553
      %594 = vst [vmem:[#allocation2 + $0x54] sm:$0xf] %v554
      %595 = vst [vmem:[#allocation2 + $0x58] sm:$0xf] %v555
      %596 = vst [vmem:[#allocation2 + $0x5c] sm:$0xf] %v556
      %597 = vst [vmem:[#allocation2 + $0x60] sm:$0xf] %v557
      %598 = vst [vmem:[#allocation2 + $0x64] sm:$0xf] %v558
      %599 = vst [vmem:[#allocation2 + $0x68] sm:$0xf] %v559
      %600 = vst [vmem:[#allocation2 + $0x6c] sm:$0xf] %v560
      %601 = vst [vmem:[#allocation2 + $0x70] sm:$0xf] %v561
      %602 = vst [vmem:[#allocation2 + $0x74] sm:$0xf] %v562
      %603 = vst [vmem:[#allocation2 + $0x78] sm:$0xf] %v563
      %604 = vst [vmem:[#allocation2 + $0x7c] sm:$0xf] %v564
      %605 = vst [vmem:[#allocation2 + $0x80] sm:$0xf] %v565
      %606 = vst [vmem:[#allocation2 + $0x84] sm:$0xf] %v566
      %607 = vst [vmem:[#allocation2 + $0x88] sm:$0xf] %v567
      %608 = vst [vmem:[#allocation2 + $0x8c] sm:$0xf] %v568
      %v609 = vld [vmem:[#allocation2 + $0x4] sm:$0x8]
      %v610 = vld [vmem:[#allocation2 + $0x8] sm:$0xf]
      %v611 = vld [vmem:[#allocation2 + $0xc] sm:$0xf]
      %v612 = vld [vmem:[#allocation2 + $0x10] sm:$0xf]
      %v613 = vld [vmem:[#allocation2 + $0x14] sm:$0xf]
      %v614 = vld [vmem:[#allocation2 + $0x18] sm:$0xf]
      %v615 = vld [vmem:[#allocation2 + $0x1c] sm:$0xf]
      %v616 = vld [vmem:[#allocation2 + $0x20] sm:$0xf]
      %v617 = vld [vmem:[#allocation2 + $0x24] sm:$0xf]
      %v618 = vld [vmem:[#allocation2 + $0x28] sm:$0xf]
      %v619 = vld [vmem:[#allocation2 + $0x2c] sm:$0xf]
      %v620 = vld [vmem:[#allocation2 + $0x30] sm:$0xf]
      %v621 = vld [vmem:[#allocation2 + $0x34] sm:$0xf]
      %v622 = vld [vmem:[#allocation2 + $0x38] sm:$0xf]
      %v623 = vld [vmem:[#allocation2 + $0x3c] sm:$0xf]
      %v624 = vld [vmem:[#allocation2 + $0x40] sm:$0xf]
      %v625 = vld [vmem:[#allocation2 + $0x44] sm:$0xf]
      %v626 = vld [vmem:[#allocation2 + $0x48] sm:$0xf]
      %v627 = vld [vmem:[#allocation2 + $0x4c] sm:$0xf]
      %v628 = vld [vmem:[#allocation2 + $0x50] sm:$0xf]
      %v629 = vld [vmem:[#allocation2 + $0x54] sm:$0xf]
      %v630 = vld [vmem:[#allocation2 + $0x58] sm:$0xf]
      %v631 = vld [vmem:[#allocation2 + $0x5c] sm:$0xf]
      %v632 = vld [vmem:[#allocation2 + $0x60] sm:$0xf]
      %v633 = vld [vmem:[#allocation2 + $0x64] sm:$0xf]
      %v634 = vld [vmem:[#allocation2 + $0x68] sm:$0xf]
      %v635 = vld [vmem:[#allocation2 + $0x6c] sm:$0xf]
      %v636 = vld [vmem:[#allocation2 + $0x70] sm:$0xf]
      %v637 = vld [vmem:[#allocation2 + $0x74] sm:$0xf]
      %v638 = vld [vmem:[#allocation2 + $0x78] sm:$0xf]
      %v639 = vld [vmem:[#allocation2 + $0x7c] sm:$0xf]
      %v640 = vld [vmem:[#allocation2 + $0x80] sm:$0xf]
      %v641 = vld [vmem:[#allocation2 + $0x84] sm:$0xf]
      %v642 = vld [vmem:[%s1] sm:$0xf]
      %v643 = vld [vmem:[%s1 + $0x4] sm:$0xf]
      %v644 = vld [vmem:[%s1 + $0x8] sm:$0xf]
      %v645 = vld [vmem:[%s1 + $0xc] sm:$0xf]
      %v646 = vld [vmem:[%s1 + $0x10] sm:$0xf]
      %v647 = vld [vmem:[%s1 + $0x14] sm:$0xf]
      %v648 = vld [vmem:[%s1 + $0x18] sm:$0xf]
      %v649 = vld [vmem:[%s1 + $0x1c] sm:$0xf]
      %v650 = vld [vmem:[%s1 + $0x20] sm:$0xf]
      %v651 = vld [vmem:[%s1 + $0x24] sm:$0xf]
      %v652 = vld [vmem:[%s1 + $0x28] sm:$0xf]
      %v653 = vld [vmem:[%s1 + $0x2c] sm:$0xf]
      %v654 = vld [vmem:[%s1 + $0x30] sm:$0xf]
      %v655 = vld [vmem:[%s1 + $0x34] sm:$0xf]
      %v656 = vld [vmem:[%s1 + $0x38] sm:$0xf]
      %v657 = vld [vmem:[%s1 + $0x3c] sm:$0xf]
      %v658 = vld [vmem:[#allocation2 + $0xc] sm:$0x8]
      %v659 = vld [vmem:[#allocation2 + $0x88] sm:$0xf]
      %v660 = vld [vmem:[#allocation2 + $0x8c] sm:$0xf]
      %s661 = scalar_lea.vmem %s1, 192
      %v662 = vld [vmem:[%s661] sm:$0xf]
      %v663 = vld [vmem:[%s661 + $0x4] sm:$0xf]
      %v664 = vld [vmem:[%s661 + $0x8] sm:$0xf]
      %v665 = vld [vmem:[%s661 + $0xc] sm:$0xf]
      %v666 = vld [vmem:[%s661 + $0x10] sm:$0xf]
      %v667 = vld [vmem:[%s661 + $0x14] sm:$0xf]
      %v668 = vld [vmem:[%s661 + $0x18] sm:$0xf]
      %v669 = vld [vmem:[%s661 + $0x1c] sm:$0xf]
      %v670 = vld [vmem:[%s661 + $0x20] sm:$0xf]
      %v671 = vld [vmem:[%s661 + $0x24] sm:$0xf]
      %v672 = vld [vmem:[%s661 + $0x28] sm:$0xf]
      %v673 = vld [vmem:[%s661 + $0x2c] sm:$0xf]
      %v674 = vld [vmem:[%s661 + $0x30] sm:$0xf]
      %v675 = vld [vmem:[%s661 + $0x34] sm:$0xf]
      %v676 = vld [vmem:[%s661 + $0x38] sm:$0xf]
      %v677 = vld [vmem:[%s661 + $0x3c] sm:$0xf]
      %v711 = vunpack.c.l.b16 %v658
      %v712 = vunpack.c.l.b16 %v612
      %v713 = vunpack.c.l.b16 %v613
      %v714 = vunpack.c.l.b16 %v614
      %v715 = vunpack.c.l.b16 %v615
      %v716 = vunpack.c.l.b16 %v616
      %v717 = vunpack.c.l.b16 %v617
      %v718 = vunpack.c.l.b16 %v618
      %v719 = vunpack.c.l.b16 %v619
      %v720 = vunpack.c.l.b16 %v620
      %v721 = vunpack.c.l.b16 %v621
      %v722 = vunpack.c.l.b16 %v622
      %v723 = vunpack.c.l.b16 %v623
      %v724 = vunpack.c.l.b16 %v624
      %v725 = vunpack.c.l.b16 %v625
      %v726 = vunpack.c.l.b16 %v626
      %v727 = vunpack.c.l.b16 %v627
      %v728 = vunpack.c.l.b16 %v628
      %v729 = vunpack.c.l.b16 %v629
      %v730 = vunpack.c.l.b16 %v630
      %v731 = vunpack.c.l.b16 %v631
      %v732 = vunpack.c.l.b16 %v632
      %v733 = vunpack.c.l.b16 %v633
      %v734 = vunpack.c.l.b16 %v634
      %v735 = vunpack.c.l.b16 %v635
      %v736 = vunpack.c.l.b16 %v636
      %v737 = vunpack.c.l.b16 %v637
      %v738 = vunpack.c.l.b16 %v638
      %v739 = vunpack.c.l.b16 %v639
      %v740 = vunpack.c.l.b16 %v640
      %v741 = vunpack.c.l.b16 %v641
      %v742 = vunpack.c.l.b16 %v659
      %v743 = vunpack.c.l.b16 %v660
      %v744 = vpack.c.b16 %v712, %v711
      %v745 = vpack.c.b16 %v714, %v713
      %v746 = vpack.c.b16 %v716, %v715
      %v747 = vpack.c.b16 %v718, %v717
      %v748 = vpack.c.b16 %v720, %v719
      %v749 = vpack.c.b16 %v722, %v721
      %v750 = vpack.c.b16 %v724, %v723
      %v751 = vpack.c.b16 %v726, %v725
      %v752 = vpack.c.b16 %v728, %v727
      %v753 = vpack.c.b16 %v730, %v729
      %v754 = vpack.c.b16 %v732, %v731
      %v755 = vpack.c.b16 %v734, %v733
      %v756 = vpack.c.b16 %v736, %v735
      %v757 = vpack.c.b16 %v738, %v737
      %v758 = vpack.c.b16 %v740, %v739
      %v759 = vpack.c.b16 %v742, %v741
      %v760 = vpack.c.b16 %v743, %v743
      %vm761 = vsmask.f32 4352
      %v763 = vshrl.u32 %v744, 16
      %v765 = vrot.slane %v763, 3
      %v766 = vshll.u32 %v744, 16
      %v768 = vrot.slane %v766, 4
      %v769 = vor.u32 %v765, %v768
      %v771 = vshrl.u32 %v745, 16
      %v773 = vrot.slane %v771, 3
      %v774 = vshll.u32 %v745, 16
      %v776 = vrot.slane %v774, 4
      %v777 = vor.u32 %v773, %v776
      %v778 = vsel %vm761, %v769, %v777
      %v780 = vshrl.u32 %v746, 16
      %v782 = vrot.slane %v780, 3
      %v783 = vshll.u32 %v746, 16
      %v785 = vrot.slane %v783, 4
      %v786 = vor.u32 %v782, %v785
      %v787 = vsel %vm761, %v777, %v786
      %v789 = vshrl.u32 %v747, 16
      %v791 = vrot.slane %v789, 3
      %v792 = vshll.u32 %v747, 16
      %v794 = vrot.slane %v792, 4
      %v795 = vor.u32 %v791, %v794
      %v796 = vsel %vm761, %v786, %v795
      %v798 = vshrl.u32 %v748, 16
      %v800 = vrot.slane %v798, 3
      %v801 = vshll.u32 %v748, 16
      %v803 = vrot.slane %v801, 4
      %v804 = vor.u32 %v800, %v803
      %v805 = vsel %vm761, %v795, %v804
      %v807 = vshrl.u32 %v749, 16
      %v809 = vrot.slane %v807, 3
      %v810 = vshll.u32 %v749, 16
      %v812 = vrot.slane %v810, 4
      %v813 = vor.u32 %v809, %v812
      %v814 = vsel %vm761, %v804, %v813
      %v816 = vshrl.u32 %v750, 16
      %v818 = vrot.slane %v816, 3
      %v819 = vshll.u32 %v750, 16
      %v821 = vrot.slane %v819, 4
      %v822 = vor.u32 %v818, %v821
      %v823 = vsel %vm761, %v813, %v822
      %v825 = vshrl.u32 %v751, 16
      %v827 = vrot.slane %v825, 3
      %v828 = vshll.u32 %v751, 16
      %v830 = vrot.slane %v828, 4
      %v831 = vor.u32 %v827, %v830
      %v832 = vsel %vm761, %v822, %v831
      %v834 = vshrl.u32 %v752, 16
      %v836 = vrot.slane %v834, 3
      %v837 = vshll.u32 %v752, 16
      %v839 = vrot.slane %v837, 4
      %v840 = vor.u32 %v836, %v839
      %v841 = vsel %vm761, %v831, %v840
      %v843 = vshrl.u32 %v753, 16
      %v845 = vrot.slane %v843, 3
      %v846 = vshll.u32 %v753, 16
      %v848 = vrot.slane %v846, 4
      %v849 = vor.u32 %v845, %v848
      %v850 = vsel %vm761, %v840, %v849
      %v852 = vshrl.u32 %v754, 16
      %v854 = vrot.slane %v852, 3
      %v855 = vshll.u32 %v754, 16
      %v857 = vrot.slane %v855, 4
      %v858 = vor.u32 %v854, %v857
      %v859 = vsel %vm761, %v849, %v858
      %v861 = vshrl.u32 %v755, 16
      %v863 = vrot.slane %v861, 3
      %v864 = vshll.u32 %v755, 16
      %v866 = vrot.slane %v864, 4
      %v867 = vor.u32 %v863, %v866
      %v868 = vsel %vm761, %v858, %v867
      %v870 = vshrl.u32 %v756, 16
      %v872 = vrot.slane %v870, 3
      %v873 = vshll.u32 %v756, 16
      %v875 = vrot.slane %v873, 4
      %v876 = vor.u32 %v872, %v875
      %v877 = vsel %vm761, %v867, %v876
      %v879 = vshrl.u32 %v757, 16
      %v881 = vrot.slane %v879, 3
      %v882 = vshll.u32 %v757, 16
      %v884 = vrot.slane %v882, 4
      %v885 = vor.u32 %v881, %v884
      %v886 = vsel %vm761, %v876, %v885
      %v888 = vshrl.u32 %v758, 16
      %v890 = vrot.slane %v888, 3
      %v891 = vshll.u32 %v758, 16
      %v893 = vrot.slane %v891, 4
      %v894 = vor.u32 %v890, %v893
      %v895 = vsel %vm761, %v885, %v894
      %v897 = vshrl.u32 %v759, 16
      %v899 = vrot.slane %v897, 3
      %v900 = vshll.u32 %v759, 16
      %v902 = vrot.slane %v900, 4
      %v903 = vor.u32 %v899, %v902
      %v904 = vsel %vm761, %v894, %v903
      %v906 = vshrl.u32 %v760, 16
      %v908 = vrot.slane %v906, 3
      %v909 = vshll.u32 %v760, 16
      %v911 = vrot.slane %v909, 4
      %v912 = vor.u32 %v908, %v911
      %v913 = vsel %vm761, %v903, %v912
      %v946 = vunpack.c.l.b16 %v662
      %v947 = vunpack.c.l.b16 %v663
      %v948 = vunpack.c.l.b16 %v664
      %v949 = vunpack.c.l.b16 %v665
      %v950 = vunpack.c.l.b16 %v666
      %v951 = vunpack.c.l.b16 %v667
      %v952 = vunpack.c.l.b16 %v668
      %v953 = vunpack.c.l.b16 %v669
      %v954 = vunpack.c.l.b16 %v670
      %v955 = vunpack.c.l.b16 %v671
      %v956 = vunpack.c.l.b16 %v672
      %v957 = vunpack.c.l.b16 %v673
      %v958 = vunpack.c.l.b16 %v674
      %v959 = vunpack.c.l.b16 %v675
      %v960 = vunpack.c.l.b16 %v676
      %v961 = vunpack.c.l.b16 %v677
      %v962 = vpack.c.b16 %v947, %v946
      %v963 = vpack.c.b16 %v949, %v948
      %v964 = vpack.c.b16 %v951, %v950
      %v965 = vpack.c.b16 %v953, %v952
      %v966 = vpack.c.b16 %v955, %v954
      %v967 = vpack.c.b16 %v957, %v956
      %v968 = vpack.c.b16 %v959, %v958
      %v969 = vpack.c.b16 %v961, %v960
      %978 = vmatprep.subr.bf16.mxu0 0
      %979 = vmatpush1.bf16.msra.mxu0 %v969
      %980 = vmatprep.subr.bf16.mxu0 0
      %981 = vmatpush1.bf16.msra.mxu0 %v968
      %982 = vmatprep.subr.bf16.mxu0 0
      %983 = vmatpush1.bf16.msra.mxu0 %v967
      %984 = vmatprep.subr.bf16.mxu0 0
      %985 = vmatpush1.bf16.msra.mxu0 %v966
      %986 = vmatprep.subr.bf16.mxu0 0
      %987 = vmatpush1.bf16.msra.mxu0 %v965
      %988 = vmatprep.subr.bf16.mxu0 0
      %989 = vmatpush1.bf16.msra.mxu0 %v964
      %990 = vmatprep.subr.bf16.mxu0 0
      %991 = vmatpush1.bf16.msra.mxu0 %v963
      %992 = vmatprep.subr.bf16.mxu0 0
      %993 = vmatpush1.bf16.msra.mxu0 %v962
      %994 = vmatprep.subr.bf16.mxu0 0
      %995 = vmatpush2.bf16.msra.mxu0 0
      %996 = vmatprep.subr.bf16.mxu0 0
      %997 = vmatpush2.bf16.msra.mxu0 0
      %998 = vmatprep.subr.bf16.mxu0 0
      %999 = vmatpush2.bf16.msra.mxu0 0
      %1000 = vmatprep.subr.bf16.mxu0 0
      %1001 = vmatpush2.bf16.msra.mxu0 0
      %1002 = vmatprep.subr.bf16.mxu0 0
      %1003 = vmatpush2.bf16.msra.mxu0 0
      %1004 = vmatprep.subr.bf16.mxu0 0
      %1005 = vmatpush2.bf16.msra.mxu0 0
      %1006 = vmatprep.subr.bf16.mxu0 0
      %1007 = vmatpush2.bf16.msra.mxu0 0
      %1008 = vmatprep.subr.bf16.mxu0 0
      %1009 = vmatpush2.bf16.msra.mxu0 0
      %1010 = vmatprep.mubr.bf16.mxu0 0
      %1011 = vmatmul.mubr.bf16.gmra.mxu0 %v778
      %v1012 = vpop.f32.mrf.mxu0
      %v1013 = vadd.f32 0.0, %v1012
      %v1014 = vpop.f32.mrf.mxu0
      %v1015 = vpop.f32.mrf.mxu0
      %v1016 = vadd.f32 0.0, %v1015
      %v1017 = vpop.f32.mrf.mxu0
      %1018 = vmatprep.mubr.bf16.mxu0 0
      %1019 = vmatmul.mubr.bf16.gmra.mxu0 %v787
      %v1020 = vpop.f32.mrf.mxu0
      %v1021 = vadd.f32 0.0, %v1020
      %v1022 = vpop.f32.mrf.mxu0
      %v1023 = vpop.f32.mrf.mxu0
      %v1024 = vadd.f32 0.0, %v1023
      %v1025 = vpop.f32.mrf.mxu0
      %1026 = vmatprep.mubr.bf16.mxu0 0
      %1027 = vmatmul.mubr.bf16.gmra.mxu0 %v796
      %v1028 = vpop.f32.mrf.mxu0
      %v1029 = vadd.f32 0.0, %v1028
      %v1030 = vpop.f32.mrf.mxu0
      %v1031 = vpop.f32.mrf.mxu0
      %v1032 = vadd.f32 0.0, %v1031
      %v1033 = vpop.f32.mrf.mxu0
      %1034 = vmatprep.mubr.bf16.mxu0 0
      %1035 = vmatmul.mubr.bf16.gmra.mxu0 %v805
      %v1036 = vpop.f32.mrf.mxu0
      %v1037 = vadd.f32 0.0, %v1036
      %v1038 = vpop.f32.mrf.mxu0
      %v1039 = vpop.f32.mrf.mxu0
      %v1040 = vadd.f32 0.0, %v1039
      %v1041 = vpop.f32.mrf.mxu0
      %1042 = vmatprep.mubr.bf16.mxu0 0
      %1043 = vmatmul.mubr.bf16.gmra.mxu0 %v814
      %v1044 = vpop.f32.mrf.mxu0
      %v1045 = vadd.f32 0.0, %v1044
      %v1046 = vpop.f32.mrf.mxu0
      %v1047 = vpop.f32.mrf.mxu0
      %v1048 = vadd.f32 0.0, %v1047
      %v1049 = vpop.f32.mrf.mxu0
      %1050 = vmatprep.mubr.bf16.mxu0 0
      %1051 = vmatmul.mubr.bf16.gmra.mxu0 %v823
      %v1052 = vpop.f32.mrf.mxu0
      %v1053 = vadd.f32 0.0, %v1052
      %v1054 = vpop.f32.mrf.mxu0
      %v1055 = vpop.f32.mrf.mxu0
      %v1056 = vadd.f32 0.0, %v1055
      %v1057 = vpop.f32.mrf.mxu0
      %1058 = vmatprep.mubr.bf16.mxu0 0
      %1059 = vmatmul.mubr.bf16.gmra.mxu0 %v832
      %v1060 = vpop.f32.mrf.mxu0
      %v1061 = vadd.f32 0.0, %v1060
      %v1062 = vpop.f32.mrf.mxu0
      %v1063 = vpop.f32.mrf.mxu0
      %v1064 = vadd.f32 0.0, %v1063
      %v1065 = vpop.f32.mrf.mxu0
      %1066 = vmatprep.mubr.bf16.mxu0 0
      %1067 = vmatmul.mubr.bf16.gmra.mxu0 %v841
      %v1068 = vpop.f32.mrf.mxu0
      %v1069 = vadd.f32 0.0, %v1068
      %v1070 = vpop.f32.mrf.mxu0
      %v1071 = vpop.f32.mrf.mxu0
      %v1072 = vadd.f32 0.0, %v1071
      %v1073 = vpop.f32.mrf.mxu0
      %1074 = vmatprep.mubr.bf16.mxu0 0
      %1075 = vmatmul.mubr.bf16.gmra.mxu0 %v850
      %v1076 = vpop.f32.mrf.mxu0
      %v1077 = vadd.f32 0.0, %v1076
      %v1078 = vpop.f32.mrf.mxu0
      %v1079 = vpop.f32.mrf.mxu0
      %v1080 = vadd.f32 0.0, %v1079
      %v1081 = vpop.f32.mrf.mxu0
      %1082 = vmatprep.mubr.bf16.mxu0 0
      %1083 = vmatmul.mubr.bf16.gmra.mxu0 %v859
      %v1084 = vpop.f32.mrf.mxu0
      %v1085 = vadd.f32 0.0, %v1084
      %v1086 = vpop.f32.mrf.mxu0
      %v1087 = vpop.f32.mrf.mxu0
      %v1088 = vadd.f32 0.0, %v1087
      %v1089 = vpop.f32.mrf.mxu0
      %1090 = vmatprep.mubr.bf16.mxu0 0
      %1091 = vmatmul.mubr.bf16.gmra.mxu0 %v868
      %v1092 = vpop.f32.mrf.mxu0
      %v1093 = vadd.f32 0.0, %v1092
      %v1094 = vpop.f32.mrf.mxu0
      %v1095 = vpop.f32.mrf.mxu0
      %v1096 = vadd.f32 0.0, %v1095
      %v1097 = vpop.f32.mrf.mxu0
      %1098 = vmatprep.mubr.bf16.mxu0 0
      %1099 = vmatmul.mubr.bf16.gmra.mxu0 %v877
      %v1100 = vpop.f32.mrf.mxu0
      %v1101 = vadd.f32 0.0, %v1100
      %v1102 = vpop.f32.mrf.mxu0
      %v1103 = vpop.f32.mrf.mxu0
      %v1104 = vadd.f32 0.0, %v1103
      %v1105 = vpop.f32.mrf.mxu0
      %1106 = vmatprep.mubr.bf16.mxu0 0
      %1107 = vmatmul.mubr.bf16.gmra.mxu0 %v886
      %v1108 = vpop.f32.mrf.mxu0
      %v1109 = vadd.f32 0.0, %v1108
      %v1110 = vpop.f32.mrf.mxu0
      %v1111 = vpop.f32.mrf.mxu0
      %v1112 = vadd.f32 0.0, %v1111
      %v1113 = vpop.f32.mrf.mxu0
      %1114 = vmatprep.mubr.bf16.mxu0 0
      %1115 = vmatmul.mubr.bf16.gmra.mxu0 %v895
      %v1116 = vpop.f32.mrf.mxu0
      %v1117 = vadd.f32 0.0, %v1116
      %v1118 = vpop.f32.mrf.mxu0
      %v1119 = vpop.f32.mrf.mxu0
      %v1120 = vadd.f32 0.0, %v1119
      %v1121 = vpop.f32.mrf.mxu0
      %1122 = vmatprep.mubr.bf16.mxu0 0
      %1123 = vmatmul.mubr.bf16.gmra.mxu0 %v904
      %v1124 = vpop.f32.mrf.mxu0
      %v1125 = vadd.f32 0.0, %v1124
      %v1126 = vpop.f32.mrf.mxu0
      %v1127 = vpop.f32.mrf.mxu0
      %v1128 = vadd.f32 0.0, %v1127
      %v1129 = vpop.f32.mrf.mxu0
      %1130 = vmatprep.mubr.bf16.mxu0 0
      %1131 = vmatmul.mubr.bf16.gmra.mxu0 %v913
      %v1132 = vpop.f32.mrf.mxu0
      %v1133 = vadd.f32 0.0, %v1132
      %v1134 = vpop.f32.mrf.mxu0
      %v1135 = vpop.f32.mrf.mxu0
      %v1136 = vadd.f32 0.0, %v1135
      %v1137 = vpop.f32.mrf.mxu0
      %1138 = vdwg.mxu0
      %v1142 = vunpack.c.l.b16 %v609
      %v1143 = vunpack.c.l.b16 %v610
      %v1144 = vunpack.c.l.b16 %v611
      %v1145 = vpack.c.b16 %v1143, %v1142
      %v1146 = vpack.c.b16 %v712, %v1144
      %v1147 = vpack.c.b16 %v741, %v741
      %v1149 = vshrl.u32 %v1145, 16
      %v1151 = vrot.slane %v1149, 3
      %v1152 = vshll.u32 %v1145, 16
      %v1154 = vrot.slane %v1152, 4
      %v1155 = vor.u32 %v1151, %v1154
      %v1157 = vshrl.u32 %v1146, 16
      %v1159 = vrot.slane %v1157, 3
      %v1160 = vshll.u32 %v1146, 16
      %v1162 = vrot.slane %v1160, 4
      %v1163 = vor.u32 %v1159, %v1162
      %v1164 = vsel %vm761, %v1155, %v1163
      %v1165 = vsel %vm761, %v1163, %v777
      %v1167 = vshrl.u32 %v1147, 16
      %v1169 = vrot.slane %v1167, 3
      %v1170 = vshll.u32 %v1147, 16
      %v1172 = vrot.slane %v1170, 4
      %v1173 = vor.u32 %v1169, %v1172
      %v1174 = vsel %vm761, %v894, %v1173
      %v1194 = vunpack.c.l.b16 %v642
      %v1195 = vunpack.c.l.b16 %v643
      %v1196 = vunpack.c.l.b16 %v644
      %v1197 = vunpack.c.l.b16 %v645
      %v1198 = vunpack.c.l.b16 %v646
      %v1199 = vunpack.c.l.b16 %v647
      %v1200 = vunpack.c.l.b16 %v648
      %v1201 = vunpack.c.l.b16 %v649
      %v1202 = vunpack.c.l.b16 %v650
      %v1203 = vunpack.c.l.b16 %v651
      %v1204 = vunpack.c.l.b16 %v652
      %v1205 = vunpack.c.l.b16 %v653
      %v1206 = vunpack.c.l.b16 %v654
      %v1207 = vunpack.c.l.b16 %v655
      %v1208 = vunpack.c.l.b16 %v656
      %v1209 = vunpack.c.l.b16 %v657
      %v1210 = vpack.c.b16 %v1195, %v1194
      %v1211 = vpack.c.b16 %v1197, %v1196
      %v1212 = vpack.c.b16 %v1199, %v1198
      %v1213 = vpack.c.b16 %v1201, %v1200
      %v1214 = vpack.c.b16 %v1203, %v1202
      %v1215 = vpack.c.b16 %v1205, %v1204
      %v1216 = vpack.c.b16 %v1207, %v1206
      %v1217 = vpack.c.b16 %v1209, %v1208
      %1226 = vmatprep.subr.bf16.mxu0 0
      %1227 = vmatpush1.bf16.msra.mxu0 %v1217
      %1228 = vmatprep.subr.bf16.mxu0 0
      %1229 = vmatpush1.bf16.msra.mxu0 %v1216
      %1230 = vmatprep.subr.bf16.mxu0 0
      %1231 = vmatpush1.bf16.msra.mxu0 %v1215
      %1232 = vmatprep.subr.bf16.mxu0 0
      %1233 = vmatpush1.bf16.msra.mxu0 %v1214
      %1234 = vmatprep.subr.bf16.mxu0 0
      %1235 = vmatpush1.bf16.msra.mxu0 %v1213
      %1236 = vmatprep.subr.bf16.mxu0 0
      %1237 = vmatpush1.bf16.msra.mxu0 %v1212
      %1238 = vmatprep.subr.bf16.mxu0 0
      %1239 = vmatpush1.bf16.msra.mxu0 %v1211
      %1240 = vmatprep.subr.bf16.mxu0 0
      %1241 = vmatpush1.bf16.msra.mxu0 %v1210
      %1242 = vmatprep.subr.bf16.mxu0 0
      %1243 = vmatpush2.bf16.msra.mxu0 0
      %1244 = vmatprep.subr.bf16.mxu0 0
      %1245 = vmatpush2.bf16.msra.mxu0 0
      %1246 = vmatprep.subr.bf16.mxu0 0
      %1247 = vmatpush2.bf16.msra.mxu0 0
      %1248 = vmatprep.subr.bf16.mxu0 0
      %1249 = vmatpush2.bf16.msra.mxu0 0
      %1250 = vmatprep.subr.bf16.mxu0 0
      %1251 = vmatpush2.bf16.msra.mxu0 0
      %1252 = vmatprep.subr.bf16.mxu0 0
      %1253 = vmatpush2.bf16.msra.mxu0 0
      %1254 = vmatprep.subr.bf16.mxu0 0
      %1255 = vmatpush2.bf16.msra.mxu0 0
      %1256 = vmatprep.subr.bf16.mxu0 0
      %1257 = vmatpush2.bf16.msra.mxu0 0
      %1258 = vmatprep.mubr.bf16.mxu0 0
      %1259 = vmatmul.mubr.bf16.gmra.mxu0 %v1164
      %v1260 = vpop.f32.mrf.mxu0
      %v1261 = vadd.f32 %v1013, %v1260
      %v1262 = vpop.f32.mrf.mxu0
      %v1263 = vpop.f32.mrf.mxu0
      %v1264 = vadd.f32 %v1016, %v1263
      %v1265 = vpop.f32.mrf.mxu0
      %1266 = vmatprep.mubr.bf16.mxu0 0
      %1267 = vmatmul.mubr.bf16.gmra.mxu0 %v1165
      %v1268 = vpop.f32.mrf.mxu0
      %v1269 = vadd.f32 %v1021, %v1268
      %v1270 = vpop.f32.mrf.mxu0
      %v1271 = vpop.f32.mrf.mxu0
      %v1272 = vadd.f32 %v1024, %v1271
      %v1273 = vpop.f32.mrf.mxu0
      %1274 = vmatprep.mubr.bf16.mxu0 0
      %1275 = vmatmul.mubr.bf16.gmra.mxu0 %v787
      %v1276 = vpop.f32.mrf.mxu0
      %v1277 = vadd.f32 %v1029, %v1276
      %v1278 = vpop.f32.mrf.mxu0
      %v1279 = vpop.f32.mrf.mxu0
      %v1280 = vadd.f32 %v1032, %v1279
      %v1281 = vpop.f32.mrf.mxu0
      %1282 = vmatprep.mubr.bf16.mxu0 0
      %1283 = vmatmul.mubr.bf16.gmra.mxu0 %v796
      %v1284 = vpop.f32.mrf.mxu0
      %v1285 = vadd.f32 %v1037, %v1284
      %v1286 = vpop.f32.mrf.mxu0
      %v1287 = vpop.f32.mrf.mxu0
      %v1288 = vadd.f32 %v1040, %v1287
      %v1289 = vpop.f32.mrf.mxu0
      %1290 = vmatprep.mubr.bf16.mxu0 0
      %1291 = vmatmul.mubr.bf16.gmra.mxu0 %v805
      %v1292 = vpop.f32.mrf.mxu0
      %v1293 = vadd.f32 %v1045, %v1292
      %v1294 = vpop.f32.mrf.mxu0
      %v1295 = vpop.f32.mrf.mxu0
      %v1296 = vadd.f32 %v1048, %v1295
      %v1297 = vpop.f32.mrf.mxu0
      %1298 = vmatprep.mubr.bf16.mxu0 0
      %1299 = vmatmul.mubr.bf16.gmra.mxu0 %v814
      %v1300 = vpop.f32.mrf.mxu0
      %v1301 = vadd.f32 %v1053, %v1300
      %v1302 = vpop.f32.mrf.mxu0
      %v1303 = vpop.f32.mrf.mxu0
      %v1304 = vadd.f32 %v1056, %v1303
      %v1305 = vpop.f32.mrf.mxu0
      %1306 = vmatprep.mubr.bf16.mxu0 0
      %1307 = vmatmul.mubr.bf16.gmra.mxu0 %v823
      %v1308 = vpop.f32.mrf.mxu0
      %v1309 = vadd.f32 %v1061, %v1308
      %v1310 = vpop.f32.mrf.mxu0
      %v1311 = vpop.f32.mrf.mxu0
      %v1312 = vadd.f32 %v1064, %v1311
      %v1313 = vpop.f32.mrf.mxu0
      %1314 = vmatprep.mubr.bf16.mxu0 0
      %1315 = vmatmul.mubr.bf16.gmra.mxu0 %v832
      %v1316 = vpop.f32.mrf.mxu0
      %v1317 = vadd.f32 %v1069, %v1316
      %v1318 = vpop.f32.mrf.mxu0
      %v1319 = vpop.f32.mrf.mxu0
      %v1320 = vadd.f32 %v1072, %v1319
      %v1321 = vpop.f32.mrf.mxu0
      %1322 = vmatprep.mubr.bf16.mxu0 0
      %1323 = vmatmul.mubr.bf16.gmra.mxu0 %v841
      %v1324 = vpop.f32.mrf.mxu0
      %v1325 = vadd.f32 %v1077, %v1324
      %v1326 = vpop.f32.mrf.mxu0
      %v1327 = vpop.f32.mrf.mxu0
      %v1328 = vadd.f32 %v1080, %v1327
      %v1329 = vpop.f32.mrf.mxu0
      %1330 = vmatprep.mubr.bf16.mxu0 0
      %1331 = vmatmul.mubr.bf16.gmra.mxu0 %v850
      %v1332 = vpop.f32.mrf.mxu0
      %v1333 = vadd.f32 %v1085, %v1332
      %v1334 = vpop.f32.mrf.mxu0
      %v1335 = vpop.f32.mrf.mxu0
      %v1336 = vadd.f32 %v1088, %v1335
      %v1337 = vpop.f32.mrf.mxu0
      %1338 = vmatprep.mubr.bf16.mxu0 0
      %1339 = vmatmul.mubr.bf16.gmra.mxu0 %v859
      %v1340 = vpop.f32.mrf.mxu0
      %v1341 = vadd.f32 %v1093, %v1340
      %v1342 = vpop.f32.mrf.mxu0
      %v1343 = vpop.f32.mrf.mxu0
      %v1344 = vadd.f32 %v1096, %v1343
      %v1345 = vpop.f32.mrf.mxu0
      %1346 = vmatprep.mubr.bf16.mxu0 0
      %1347 = vmatmul.mubr.bf16.gmra.mxu0 %v868
      %v1348 = vpop.f32.mrf.mxu0
      %v1349 = vadd.f32 %v1101, %v1348
      %v1350 = vpop.f32.mrf.mxu0
      %v1351 = vpop.f32.mrf.mxu0
      %v1352 = vadd.f32 %v1104, %v1351
      %v1353 = vpop.f32.mrf.mxu0
      %1354 = vmatprep.mubr.bf16.mxu0 0
      %1355 = vmatmul.mubr.bf16.gmra.mxu0 %v877
      %v1356 = vpop.f32.mrf.mxu0
      %v1357 = vadd.f32 %v1109, %v1356
      %v1358 = vpop.f32.mrf.mxu0
      %v1359 = vpop.f32.mrf.mxu0
      %v1360 = vadd.f32 %v1112, %v1359
      %v1361 = vpop.f32.mrf.mxu0
      %1362 = vmatprep.mubr.bf16.mxu0 0
      %1363 = vmatmul.mubr.bf16.gmra.mxu0 %v886
      %v1364 = vpop.f32.mrf.mxu0
      %v1365 = vadd.f32 %v1117, %v1364
      %v1366 = vpop.f32.mrf.mxu0
      %v1367 = vpop.f32.mrf.mxu0
      %v1368 = vadd.f32 %v1120, %v1367
      %v1369 = vpop.f32.mrf.mxu0
      %1370 = vmatprep.mubr.bf16.mxu0 0
      %1371 = vmatmul.mubr.bf16.gmra.mxu0 %v895
      %v1372 = vpop.f32.mrf.mxu0
      %v1373 = vadd.f32 %v1125, %v1372
      %v1374 = vpop.f32.mrf.mxu0
      %v1375 = vpop.f32.mrf.mxu0
      %v1376 = vadd.f32 %v1128, %v1375
      %v1377 = vpop.f32.mrf.mxu0
      %1378 = vmatprep.mubr.bf16.mxu0 0
      %1379 = vmatmul.mubr.bf16.gmra.mxu0 %v1174
      %v1380 = vpop.f32.mrf.mxu0
      %v1381 = vadd.f32 %v1133, %v1380
      %v1382 = vpop.f32.mrf.mxu0
      %v1383 = vpop.f32.mrf.mxu0
      %v1384 = vadd.f32 %v1136, %v1383
      %v1385 = vpop.f32.mrf.mxu0
      %1386 = vdwg.mxu0
      %v1387 = vld [vmem:[#allocation2 + $0x14] sm:$0x8]
      %v1388 = vld [vmem:[#allocation2 + $0x18] sm:$0xf]
      %v1389 = vld [vmem:[#allocation2 + $0x1c] sm:$0xf]
      %v1390 = vld [vmem:[#allocation2 + $0x20] sm:$0xf]
      %v1391 = vld [vmem:[#allocation2 + $0x24] sm:$0xf]
      %v1392 = vld [vmem:[#allocation2 + $0x28] sm:$0xf]
      %v1393 = vld [vmem:[#allocation2 + $0x2c] sm:$0xf]
      %v1394 = vld [vmem:[#allocation2 + $0x30] sm:$0xf]
      %v1395 = vld [vmem:[#allocation2 + $0x34] sm:$0xf]
      %v1396 = vld [vmem:[#allocation2 + $0x38] sm:$0xf]
      %v1397 = vld [vmem:[#allocation2 + $0x3c] sm:$0xf]
      %v1398 = vld [vmem:[#allocation2 + $0x40] sm:$0xf]
      %v1399 = vld [vmem:[#allocation2 + $0x44] sm:$0xf]
      %v1400 = vld [vmem:[#allocation2 + $0x48] sm:$0xf]
      %v1401 = vld [vmem:[#allocation2 + $0x4c] sm:$0xf]
      %v1402 = vld [vmem:[#allocation2 + $0x50] sm:$0xf]
      %v1403 = vld [vmem:[#allocation2 + $0x54] sm:$0xf]
      %v1404 = vld [vmem:[#allocation2 + $0x58] sm:$0xf]
      %v1405 = vld [vmem:[#allocation2 + $0x5c] sm:$0xf]
      %v1406 = vld [vmem:[#allocation2 + $0x60] sm:$0xf]
      %v1407 = vld [vmem:[#allocation2 + $0x64] sm:$0xf]
      %v1408 = vld [vmem:[#allocation2 + $0x68] sm:$0xf]
      %v1409 = vld [vmem:[#allocation2 + $0x6c] sm:$0xf]
      %v1410 = vld [vmem:[#allocation2 + $0x70] sm:$0xf]
      %v1411 = vld [vmem:[#allocation2 + $0x74] sm:$0xf]
      %v1412 = vld [vmem:[#allocation2 + $0x78] sm:$0xf]
      %v1413 = vld [vmem:[#allocation2 + $0x7c] sm:$0xf]
      %v1414 = vld [vmem:[#allocation2 + $0x80] sm:$0xf]
      %v1415 = vld [vmem:[#allocation2 + $0x84] sm:$0xf]
      %v1416 = vld [vmem:[#allocation2 + $0x88] sm:$0xf]
      %v1417 = vld [vmem:[#allocation2 + $0x8c] sm:$0xf]
      %v1418 = vld [vmem:[#allocation2 + $0x90] sm:$0xf]
      %v1419 = vld [vmem:[#allocation2 + $0x94] sm:$0xf]
      %s1420 = scalar_lea.vmem %s1, 384
      %v1421 = vld [vmem:[%s1420] sm:$0xf]
      %v1422 = vld [vmem:[%s1420 + $0x4] sm:$0xf]
      %v1423 = vld [vmem:[%s1420 + $0x8] sm:$0xf]
      %v1424 = vld [vmem:[%s1420 + $0xc] sm:$0xf]
      %v1425 = vld [vmem:[%s1420 + $0x10] sm:$0xf]
      %v1426 = vld [vmem:[%s1420 + $0x14] sm:$0xf]
      %v1427 = vld [vmem:[%s1420 + $0x18] sm:$0xf]
      %v1428 = vld [vmem:[%s1420 + $0x1c] sm:$0xf]
      %v1429 = vld [vmem:[%s1420 + $0x20] sm:$0xf]
      %v1430 = vld [vmem:[%s1420 + $0x24] sm:$0xf]
      %v1431 = vld [vmem:[%s1420 + $0x28] sm:$0xf]
      %v1432 = vld [vmem:[%s1420 + $0x2c] sm:$0xf]
      %v1433 = vld [vmem:[%s1420 + $0x30] sm:$0xf]
      %v1434 = vld [vmem:[%s1420 + $0x34] sm:$0xf]
      %v1435 = vld [vmem:[%s1420 + $0x38] sm:$0xf]
      %v1436 = vld [vmem:[%s1420 + $0x3c] sm:$0xf]
      %v1470 = vunpack.c.l.b16 %v1387
      %v1471 = vunpack.c.l.b16 %v1388
      %v1472 = vunpack.c.l.b16 %v1389
      %v1473 = vunpack.c.l.b16 %v1390
      %v1474 = vunpack.c.l.b16 %v1391
      %v1475 = vunpack.c.l.b16 %v1392
      %v1476 = vunpack.c.l.b16 %v1393
      %v1477 = vunpack.c.l.b16 %v1394
      %v1478 = vunpack.c.l.b16 %v1395
      %v1479 = vunpack.c.l.b16 %v1396
      %v1480 = vunpack.c.l.b16 %v1397
      %v1481 = vunpack.c.l.b16 %v1398
      %v1482 = vunpack.c.l.b16 %v1399
      %v1483 = vunpack.c.l.b16 %v1400
      %v1484 = vunpack.c.l.b16 %v1401
      %v1485 = vunpack.c.l.b16 %v1402
      %v1486 = vunpack.c.l.b16 %v1403
      %v1487 = vunpack.c.l.b16 %v1404
      %v1488 = vunpack.c.l.b16 %v1405
      %v1489 = vunpack.c.l.b16 %v1406
      %v1490 = vunpack.c.l.b16 %v1407
      %v1491 = vunpack.c.l.b16 %v1408
      %v1492 = vunpack.c.l.b16 %v1409
      %v1493 = vunpack.c.l.b16 %v1410
      %v1494 = vunpack.c.l.b16 %v1411
      %v1495 = vunpack.c.l.b16 %v1412
      %v1496 = vunpack.c.l.b16 %v1413
      %v1497 = vunpack.c.l.b16 %v1414
      %v1498 = vunpack.c.l.b16 %v1415
      %v1499 = vunpack.c.l.b16 %v1416
      %v1500 = vunpack.c.l.b16 %v1417
      %v1501 = vunpack.c.l.b16 %v1418
      %v1502 = vunpack.c.l.b16 %v1419
      %v1503 = vpack.c.b16 %v1471, %v1470
      %v1504 = vpack.c.b16 %v1473, %v1472
      %v1505 = vpack.c.b16 %v1475, %v1474
      %v1506 = vpack.c.b16 %v1477, %v1476
      %v1507 = vpack.c.b16 %v1479, %v1478
      %v1508 = vpack.c.b16 %v1481, %v1480
      %v1509 = vpack.c.b16 %v1483, %v1482
      %v1510 = vpack.c.b16 %v1485, %v1484
      %v1511 = vpack.c.b16 %v1487, %v1486
      %v1512 = vpack.c.b16 %v1489, %v1488
      %v1513 = vpack.c.b16 %v1491, %v1490
      %v1514 = vpack.c.b16 %v1493, %v1492
      %v1515 = vpack.c.b16 %v1495, %v1494
      %v1516 = vpack.c.b16 %v1497, %v1496
      %v1517 = vpack.c.b16 %v1499, %v1498
      %v1518 = vpack.c.b16 %v1501, %v1500
      %v1519 = vpack.c.b16 %v1502, %v1502
      %v1521 = vshrl.u32 %v1503, 16
      %v1523 = vrot.slane %v1521, 3
      %v1524 = vshll.u32 %v1503, 16
      %v1526 = vrot.slane %v1524, 4
      %v1527 = vor.u32 %v1523, %v1526
      %v1529 = vshrl.u32 %v1504, 16
      %v1531 = vrot.slane %v1529, 3
      %v1532 = vshll.u32 %v1504, 16
      %v1534 = vrot.slane %v1532, 4
      %v1535 = vor.u32 %v1531, %v1534
      %v1536 = vsel %vm761, %v1527, %v1535
      %v1538 = vshrl.u32 %v1505, 16
      %v1540 = vrot.slane %v1538, 3
      %v1541 = vshll.u32 %v1505, 16
      %v1543 = vrot.slane %v1541, 4
      %v1544 = vor.u32 %v1540, %v1543
      %v1545 = vsel %vm761, %v1535, %v1544
      %v1547 = vshrl.u32 %v1506, 16
      %v1549 = vrot.slane %v1547, 3
      %v1550 = vshll.u32 %v1506, 16
      %v1552 = vrot.slane %v1550, 4
      %v1553 = vor.u32 %v1549, %v1552
      %v1554 = vsel %vm761, %v1544, %v1553
      %v1556 = vshrl.u32 %v1507, 16
      %v1558 = vrot.slane %v1556, 3
      %v1559 = vshll.u32 %v1507, 16
      %v1561 = vrot.slane %v1559, 4
      %v1562 = vor.u32 %v1558, %v1561
      %v1563 = vsel %vm761, %v1553, %v1562
      %v1565 = vshrl.u32 %v1508, 16
      %v1567 = vrot.slane %v1565, 3
      %v1568 = vshll.u32 %v1508, 16
      %v1570 = vrot.slane %v1568, 4
      %v1571 = vor.u32 %v1567, %v1570
      %v1572 = vsel %vm761, %v1562, %v1571
      %v1574 = vshrl.u32 %v1509, 16
      %v1576 = vrot.slane %v1574, 3
      %v1577 = vshll.u32 %v1509, 16
      %v1579 = vrot.slane %v1577, 4
      %v1580 = vor.u32 %v1576, %v1579
      %v1581 = vsel %vm761, %v1571, %v1580
      %v1583 = vshrl.u32 %v1510, 16
      %v1585 = vrot.slane %v1583, 3
      %v1586 = vshll.u32 %v1510, 16
      %v1588 = vrot.slane %v1586, 4
      %v1589 = vor.u32 %v1585, %v1588
      %v1590 = vsel %vm761, %v1580, %v1589
      %v1592 = vshrl.u32 %v1511, 16
      %v1594 = vrot.slane %v1592, 3
      %v1595 = vshll.u32 %v1511, 16
      %v1597 = vrot.slane %v1595, 4
      %v1598 = vor.u32 %v1594, %v1597
      %v1599 = vsel %vm761, %v1589, %v1598
      %v1601 = vshrl.u32 %v1512, 16
      %v1603 = vrot.slane %v1601, 3
      %v1604 = vshll.u32 %v1512, 16
      %v1606 = vrot.slane %v1604, 4
      %v1607 = vor.u32 %v1603, %v1606
      %v1608 = vsel %vm761, %v1598, %v1607
      %v1610 = vshrl.u32 %v1513, 16
      %v1612 = vrot.slane %v1610, 3
      %v1613 = vshll.u32 %v1513, 16
      %v1615 = vrot.slane %v1613, 4
      %v1616 = vor.u32 %v1612, %v1615
      %v1617 = vsel %vm761, %v1607, %v1616
      %v1619 = vshrl.u32 %v1514, 16
      %v1621 = vrot.slane %v1619, 3
      %v1622 = vshll.u32 %v1514, 16
      %v1624 = vrot.slane %v1622, 4
      %v1625 = vor.u32 %v1621, %v1624
      %v1626 = vsel %vm761, %v1616, %v1625
      %v1628 = vshrl.u32 %v1515, 16
      %v1630 = vrot.slane %v1628, 3
      %v1631 = vshll.u32 %v1515, 16
      %v1633 = vrot.slane %v1631, 4
      %v1634 = vor.u32 %v1630, %v1633
      %v1635 = vsel %vm761, %v1625, %v1634
      %v1637 = vshrl.u32 %v1516, 16
      %v1639 = vrot.slane %v1637, 3
      %v1640 = vshll.u32 %v1516, 16
      %v1642 = vrot.slane %v1640, 4
      %v1643 = vor.u32 %v1639, %v1642
      %v1644 = vsel %vm761, %v1634, %v1643
      %v1646 = vshrl.u32 %v1517, 16
      %v1648 = vrot.slane %v1646, 3
      %v1649 = vshll.u32 %v1517, 16
      %v1651 = vrot.slane %v1649, 4
      %v1652 = vor.u32 %v1648, %v1651
      %v1653 = vsel %vm761, %v1643, %v1652
      %v1655 = vshrl.u32 %v1518, 16
      %v1657 = vrot.slane %v1655, 3
      %v1658 = vshll.u32 %v1518, 16
      %v1660 = vrot.slane %v1658, 4
      %v1661 = vor.u32 %v1657, %v1660
      %v1662 = vsel %vm761, %v1652, %v1661
      %v1664 = vshrl.u32 %v1519, 16
      %v1666 = vrot.slane %v1664, 3
      %v1667 = vshll.u32 %v1519, 16
      %v1669 = vrot.slane %v1667, 4
      %v1670 = vor.u32 %v1666, %v1669
      %v1671 = vsel %vm761, %v1661, %v1670
      %v1704 = vunpack.c.l.b16 %v1421
      %v1705 = vunpack.c.l.b16 %v1422
      %v1706 = vunpack.c.l.b16 %v1423
      %v1707 = vunpack.c.l.b16 %v1424
      %v1708 = vunpack.c.l.b16 %v1425
      %v1709 = vunpack.c.l.b16 %v1426
      %v1710 = vunpack.c.l.b16 %v1427
      %v1711 = vunpack.c.l.b16 %v1428
      %v1712 = vunpack.c.l.b16 %v1429
      %v1713 = vunpack.c.l.b16 %v1430
      %v1714 = vunpack.c.l.b16 %v1431
      %v1715 = vunpack.c.l.b16 %v1432
      %v1716 = vunpack.c.l.b16 %v1433
      %v1717 = vunpack.c.l.b16 %v1434
      %v1718 = vunpack.c.l.b16 %v1435
      %v1719 = vunpack.c.l.b16 %v1436
      %v1720 = vpack.c.b16 %v1705, %v1704
      %v1721 = vpack.c.b16 %v1707, %v1706
      %v1722 = vpack.c.b16 %v1709, %v1708
      %v1723 = vpack.c.b16 %v1711, %v1710
      %v1724 = vpack.c.b16 %v1713, %v1712
      %v1725 = vpack.c.b16 %v1715, %v1714
      %v1726 = vpack.c.b16 %v1717, %v1716
      %v1727 = vpack.c.b16 %v1719, %v1718
      %1736 = vmatprep.subr.bf16.mxu0 0
      %1737 = vmatpush1.bf16.msra.mxu0 %v1727
      %1738 = vmatprep.subr.bf16.mxu0 0
      %1739 = vmatpush1.bf16.msra.mxu0 %v1726
      %1740 = vmatprep.subr.bf16.mxu0 0
      %1741 = vmatpush1.bf16.msra.mxu0 %v1725
      %1742 = vmatprep.subr.bf16.mxu0 0
      %1743 = vmatpush1.bf16.msra.mxu0 %v1724
      %1744 = vmatprep.subr.bf16.mxu0 0
      %1745 = vmatpush1.bf16.msra.mxu0 %v1723
      %1746 = vmatprep.subr.bf16.mxu0 0
      %1747 = vmatpush1.bf16.msra.mxu0 %v1722
      %1748 = vmatprep.subr.bf16.mxu0 0
      %1749 = vmatpush1.bf16.msra.mxu0 %v1721
      %1750 = vmatprep.subr.bf16.mxu0 0
      %1751 = vmatpush1.bf16.msra.mxu0 %v1720
      %1752 = vmatprep.subr.bf16.mxu0 0
      %1753 = vmatpush2.bf16.msra.mxu0 0
      %1754 = vmatprep.subr.bf16.mxu0 0
      %1755 = vmatpush2.bf16.msra.mxu0 0
      %1756 = vmatprep.subr.bf16.mxu0 0
      %1757 = vmatpush2.bf16.msra.mxu0 0
      %1758 = vmatprep.subr.bf16.mxu0 0
      %1759 = vmatpush2.bf16.msra.mxu0 0
      %1760 = vmatprep.subr.bf16.mxu0 0
      %1761 = vmatpush2.bf16.msra.mxu0 0
      %1762 = vmatprep.subr.bf16.mxu0 0
      %1763 = vmatpush2.bf16.msra.mxu0 0
      %1764 = vmatprep.subr.bf16.mxu0 0
      %1765 = vmatpush2.bf16.msra.mxu0 0
      %1766 = vmatprep.subr.bf16.mxu0 0
      %1767 = vmatpush2.bf16.msra.mxu0 0
      %1768 = vmatprep.mubr.bf16.mxu0 0
      %1769 = vmatmul.mubr.bf16.gmra.mxu0 %v1536
      %v1770 = vpop.f32.mrf.mxu0
      %v1771 = vadd.f32 0.0, %v1770
      %v1772 = vpop.f32.mrf.mxu0
      %v1773 = vpop.f32.mrf.mxu0
      %v1774 = vadd.f32 0.0, %v1773
      %v1775 = vpop.f32.mrf.mxu0
      %1776 = vmatprep.mubr.bf16.mxu0 0
      %1777 = vmatmul.mubr.bf16.gmra.mxu0 %v1545
      %v1778 = vpop.f32.mrf.mxu0
      %v1779 = vadd.f32 0.0, %v1778
      %v1780 = vpop.f32.mrf.mxu0
      %v1781 = vpop.f32.mrf.mxu0
      %v1782 = vadd.f32 0.0, %v1781
      %v1783 = vpop.f32.mrf.mxu0
      %1784 = vmatprep.mubr.bf16.mxu0 0
      %1785 = vmatmul.mubr.bf16.gmra.mxu0 %v1554
      %v1786 = vpop.f32.mrf.mxu0
      %v1787 = vadd.f32 0.0, %v1786
      %v1788 = vpop.f32.mrf.mxu0
      %v1789 = vpop.f32.mrf.mxu0
      %v1790 = vadd.f32 0.0, %v1789
      %v1791 = vpop.f32.mrf.mxu0
      %1792 = vmatprep.mubr.bf16.mxu0 0
      %1793 = vmatmul.mubr.bf16.gmra.mxu0 %v1563
      %v1794 = vpop.f32.mrf.mxu0
      %v1795 = vadd.f32 0.0, %v1794
      %v1796 = vpop.f32.mrf.mxu0
      %v1797 = vpop.f32.mrf.mxu0
      %v1798 = vadd.f32 0.0, %v1797
      %v1799 = vpop.f32.mrf.mxu0
      %1800 = vmatprep.mubr.bf16.mxu0 0
      %1801 = vmatmul.mubr.bf16.gmra.mxu0 %v1572
      %v1802 = vpop.f32.mrf.mxu0
      %v1803 = vadd.f32 0.0, %v1802
      %v1804 = vpop.f32.mrf.mxu0
      %v1805 = vpop.f32.mrf.mxu0
      %v1806 = vadd.f32 0.0, %v1805
      %v1807 = vpop.f32.mrf.mxu0
      %1808 = vmatprep.mubr.bf16.mxu0 0
      %1809 = vmatmul.mubr.bf16.gmra.mxu0 %v1581
      %v1810 = vpop.f32.mrf.mxu0
      %v1811 = vadd.f32 0.0, %v1810
      %v1812 = vpop.f32.mrf.mxu0
      %v1813 = vpop.f32.mrf.mxu0
      %v1814 = vadd.f32 0.0, %v1813
      %v1815 = vpop.f32.mrf.mxu0
      %1816 = vmatprep.mubr.bf16.mxu0 0
      %1817 = vmatmul.mubr.bf16.gmra.mxu0 %v1590
      %v1818 = vpop.f32.mrf.mxu0
      %v1819 = vadd.f32 0.0, %v1818
      %v1820 = vpop.f32.mrf.mxu0
      %v1821 = vpop.f32.mrf.mxu0
      %v1822 = vadd.f32 0.0, %v1821
      %v1823 = vpop.f32.mrf.mxu0
      %1824 = vmatprep.mubr.bf16.mxu0 0
      %1825 = vmatmul.mubr.bf16.gmra.mxu0 %v1599
      %v1826 = vpop.f32.mrf.mxu0
      %v1827 = vadd.f32 0.0, %v1826
      %v1828 = vpop.f32.mrf.mxu0
      %v1829 = vpop.f32.mrf.mxu0
      %v1830 = vadd.f32 0.0, %v1829
      %v1831 = vpop.f32.mrf.mxu0
      %1832 = vmatprep.mubr.bf16.mxu0 0
      %1833 = vmatmul.mubr.bf16.gmra.mxu0 %v1608
      %v1834 = vpop.f32.mrf.mxu0
      %v1835 = vadd.f32 0.0, %v1834
      %v1836 = vpop.f32.mrf.mxu0
      %v1837 = vpop.f32.mrf.mxu0
      %v1838 = vadd.f32 0.0, %v1837
      %v1839 = vpop.f32.mrf.mxu0
      %1840 = vmatprep.mubr.bf16.mxu0 0
      %1841 = vmatmul.mubr.bf16.gmra.mxu0 %v1617
      %v1842 = vpop.f32.mrf.mxu0
      %v1843 = vadd.f32 0.0, %v1842
      %v1844 = vpop.f32.mrf.mxu0
      %v1845 = vpop.f32.mrf.mxu0
      %v1846 = vadd.f32 0.0, %v1845
      %v1847 = vpop.f32.mrf.mxu0
      %1848 = vmatprep.mubr.bf16.mxu0 0
      %1849 = vmatmul.mubr.bf16.gmra.mxu0 %v1626
      %v1850 = vpop.f32.mrf.mxu0
      %v1851 = vadd.f32 0.0, %v1850
      %v1852 = vpop.f32.mrf.mxu0
      %v1853 = vpop.f32.mrf.mxu0
      %v1854 = vadd.f32 0.0, %v1853
      %v1855 = vpop.f32.mrf.mxu0
      %1856 = vmatprep.mubr.bf16.mxu0 0
      %1857 = vmatmul.mubr.bf16.gmra.mxu0 %v1635
      %v1858 = vpop.f32.mrf.mxu0
      %v1859 = vadd.f32 0.0, %v1858
      %v1860 = vpop.f32.mrf.mxu0
      %v1861 = vpop.f32.mrf.mxu0
      %v1862 = vadd.f32 0.0, %v1861
      %v1863 = vpop.f32.mrf.mxu0
      %1864 = vmatprep.mubr.bf16.mxu0 0
      %1865 = vmatmul.mubr.bf16.gmra.mxu0 %v1644
      %v1866 = vpop.f32.mrf.mxu0
      %v1867 = vadd.f32 0.0, %v1866
      %v1868 = vpop.f32.mrf.mxu0
      %v1869 = vpop.f32.mrf.mxu0
      %v1870 = vadd.f32 0.0, %v1869
      %v1871 = vpop.f32.mrf.mxu0
      %1872 = vmatprep.mubr.bf16.mxu0 0
      %1873 = vmatmul.mubr.bf16.gmra.mxu0 %v1653
      %v1874 = vpop.f32.mrf.mxu0
      %v1875 = vadd.f32 0.0, %v1874
      %v1876 = vpop.f32.mrf.mxu0
      %v1877 = vpop.f32.mrf.mxu0
      %v1878 = vadd.f32 0.0, %v1877
      %v1879 = vpop.f32.mrf.mxu0
      %1880 = vmatprep.mubr.bf16.mxu0 0
      %1881 = vmatmul.mubr.bf16.gmra.mxu0 %v1662
      %v1882 = vpop.f32.mrf.mxu0
      %v1883 = vadd.f32 0.0, %v1882
      %v1884 = vpop.f32.mrf.mxu0
      %v1885 = vpop.f32.mrf.mxu0
      %v1886 = vadd.f32 0.0, %v1885
      %v1887 = vpop.f32.mrf.mxu0
      %1888 = vmatprep.mubr.bf16.mxu0 0
      %1889 = vmatmul.mubr.bf16.gmra.mxu0 %v1671
      %v1890 = vpop.f32.mrf.mxu0
      %v1891 = vadd.f32 0.0, %v1890
      %v1892 = vpop.f32.mrf.mxu0
      %v1893 = vpop.f32.mrf.mxu0
      %v1894 = vadd.f32 0.0, %v1893
      %v1895 = vpop.f32.mrf.mxu0
      %1896 = vdwg.mxu0
      %v1897 = vadd.f32 %v1261, %v1771
      %v1898 = vadd.f32 %v1264, %v1774
      %v1899 = vadd.f32 %v1269, %v1779
      %v1900 = vadd.f32 %v1272, %v1782
      %v1901 = vadd.f32 %v1277, %v1787
      %v1902 = vadd.f32 %v1280, %v1790
      %v1903 = vadd.f32 %v1285, %v1795
      %v1904 = vadd.f32 %v1288, %v1798
      %v1905 = vadd.f32 %v1293, %v1803
      %v1906 = vadd.f32 %v1296, %v1806
      %v1907 = vadd.f32 %v1301, %v1811
      %v1908 = vadd.f32 %v1304, %v1814
      %v1909 = vadd.f32 %v1309, %v1819
      %v1910 = vadd.f32 %v1312, %v1822
      %v1911 = vadd.f32 %v1317, %v1827
      %v1912 = vadd.f32 %v1320, %v1830
      %v1913 = vadd.f32 %v1325, %v1835
      %v1914 = vadd.f32 %v1328, %v1838
      %v1915 = vadd.f32 %v1333, %v1843
      %v1916 = vadd.f32 %v1336, %v1846
      %v1917 = vadd.f32 %v1341, %v1851
      %v1918 = vadd.f32 %v1344, %v1854
      %v1919 = vadd.f32 %v1349, %v1859
      %v1920 = vadd.f32 %v1352, %v1862
      %v1921 = vadd.f32 %v1357, %v1867
      %v1922 = vadd.f32 %v1360, %v1870
      %v1923 = vadd.f32 %v1365, %v1875
      %v1924 = vadd.f32 %v1368, %v1878
      %v1925 = vadd.f32 %v1373, %v1883
      %v1926 = vadd.f32 %v1376, %v1886
      %v1927 = vadd.f32 %v1381, %v1891
      %v1928 = vadd.f32 %v1384, %v1894
      %v1929 = vmul.f32 %v1897, %v409
      %v1930 = vmul.f32 %v1898, %v410
      %v1931 = vmul.f32 %v1899, %v411
      %v1932 = vmul.f32 %v1900, %v412
      %v1933 = vmul.f32 %v1901, %v413
      %v1934 = vmul.f32 %v1902, %v414
      %v1935 = vmul.f32 %v1903, %v415
      %v1936 = vmul.f32 %v1904, %v416
      %v1937 = vmul.f32 %v1905, %v417
      %v1938 = vmul.f32 %v1906, %v418
      %v1939 = vmul.f32 %v1907, %v419
      %v1940 = vmul.f32 %v1908, %v420
      %v1941 = vmul.f32 %v1909, %v421
      %v1942 = vmul.f32 %v1910, %v422
      %v1943 = vmul.f32 %v1911, %v423
      %v1944 = vmul.f32 %v1912, %v424
      %v1945 = vmul.f32 %v1913, %v425
      %v1946 = vmul.f32 %v1914, %v426
      %v1947 = vmul.f32 %v1915, %v427
      %v1948 = vmul.f32 %v1916, %v428
      %v1949 = vmul.f32 %v1917, %v429
      %v1950 = vmul.f32 %v1918, %v430
      %v1951 = vmul.f32 %v1919, %v431
      %v1952 = vmul.f32 %v1920, %v432
      %v1953 = vmul.f32 %v1921, %v433
      %v1954 = vmul.f32 %v1922, %v434
      %v1955 = vmul.f32 %v1923, %v435
      %v1956 = vmul.f32 %v1924, %v436
      %v1957 = vmul.f32 %v1925, %v437
      %v1958 = vmul.f32 %v1926, %v438
      %v1959 = vmul.f32 %v1927, %v439
      %v1960 = vmul.f32 %v1928, %v440
      %s1961 = scalar_lea.vmem %s1, 64
      %v1962 = vld [vmem:[%s1961] sm:$0xf]
      %v1963 = vld [vmem:[%s1961 + $0x4] sm:$0xf]
      %v1964 = vld [vmem:[%s1961 + $0x8] sm:$0xf]
      %v1965 = vld [vmem:[%s1961 + $0xc] sm:$0xf]
      %v1966 = vld [vmem:[%s1961 + $0x10] sm:$0xf]
      %v1967 = vld [vmem:[%s1961 + $0x14] sm:$0xf]
      %v1968 = vld [vmem:[%s1961 + $0x18] sm:$0xf]
      %v1969 = vld [vmem:[%s1961 + $0x1c] sm:$0xf]
      %v1970 = vld [vmem:[%s1961 + $0x20] sm:$0xf]
      %v1971 = vld [vmem:[%s1961 + $0x24] sm:$0xf]
      %v1972 = vld [vmem:[%s1961 + $0x28] sm:$0xf]
      %v1973 = vld [vmem:[%s1961 + $0x2c] sm:$0xf]
      %v1974 = vld [vmem:[%s1961 + $0x30] sm:$0xf]
      %v1975 = vld [vmem:[%s1961 + $0x34] sm:$0xf]
      %v1976 = vld [vmem:[%s1961 + $0x38] sm:$0xf]
      %v1977 = vld [vmem:[%s1961 + $0x3c] sm:$0xf]
      %s1978 = scalar_lea.vmem %s1, 256
      %v1979 = vld [vmem:[%s1978] sm:$0xf]
      %v1980 = vld [vmem:[%s1978 + $0x4] sm:$0xf]
      %v1981 = vld [vmem:[%s1978 + $0x8] sm:$0xf]
      %v1982 = vld [vmem:[%s1978 + $0xc] sm:$0xf]
      %v1983 = vld [vmem:[%s1978 + $0x10] sm:$0xf]
      %v1984 = vld [vmem:[%s1978 + $0x14] sm:$0xf]
      %v1985 = vld [vmem:[%s1978 + $0x18] sm:$0xf]
      %v1986 = vld [vmem:[%s1978 + $0x1c] sm:$0xf]
      %v1987 = vld [vmem:[%s1978 + $0x20] sm:$0xf]
      %v1988 = vld [vmem:[%s1978 + $0x24] sm:$0xf]
      %v1989 = vld [vmem:[%s1978 + $0x28] sm:$0xf]
      %v1990 = vld [vmem:[%s1978 + $0x2c] sm:$0xf]
      %v1991 = vld [vmem:[%s1978 + $0x30] sm:$0xf]
      %v1992 = vld [vmem:[%s1978 + $0x34] sm:$0xf]
      %v1993 = vld [vmem:[%s1978 + $0x38] sm:$0xf]
      %v1994 = vld [vmem:[%s1978 + $0x3c] sm:$0xf]
      %v1995 = vpack.c.b16 %v713, %v712
      %v1996 = vpack.c.b16 %v715, %v714
      %v1997 = vpack.c.b16 %v717, %v716
      %v1998 = vpack.c.b16 %v719, %v718
      %v1999 = vpack.c.b16 %v721, %v720
      %v2000 = vpack.c.b16 %v723, %v722
      %v2001 = vpack.c.b16 %v725, %v724
      %v2002 = vpack.c.b16 %v727, %v726
      %v2003 = vpack.c.b16 %v729, %v728
      %v2004 = vpack.c.b16 %v731, %v730
      %v2005 = vpack.c.b16 %v733, %v732
      %v2006 = vpack.c.b16 %v735, %v734
      %v2007 = vpack.c.b16 %v737, %v736
      %v2008 = vpack.c.b16 %v739, %v738
      %v2009 = vpack.c.b16 %v741, %v740
      %v2010 = vpack.c.b16 %v743, %v742
      %v2043 = vunpack.c.l.b16 %v1979
      %v2044 = vunpack.c.l.b16 %v1980
      %v2045 = vunpack.c.l.b16 %v1981
      %v2046 = vunpack.c.l.b16 %v1982
      %v2047 = vunpack.c.l.b16 %v1983
      %v2048 = vunpack.c.l.b16 %v1984
      %v2049 = vunpack.c.l.b16 %v1985
      %v2050 = vunpack.c.l.b16 %v1986
      %v2051 = vunpack.c.l.b16 %v1987
      %v2052 = vunpack.c.l.b16 %v1988
      %v2053 = vunpack.c.l.b16 %v1989
      %v2054 = vunpack.c.l.b16 %v1990
      %v2055 = vunpack.c.l.b16 %v1991
      %v2056 = vunpack.c.l.b16 %v1992
      %v2057 = vunpack.c.l.b16 %v1993
      %v2058 = vunpack.c.l.b16 %v1994
      %v2059 = vpack.c.b16 %v2044, %v2043
      %v2060 = vpack.c.b16 %v2046, %v2045
      %v2061 = vpack.c.b16 %v2048, %v2047
      %v2062 = vpack.c.b16 %v2050, %v2049
      %v2063 = vpack.c.b16 %v2052, %v2051
      %v2064 = vpack.c.b16 %v2054, %v2053
      %v2065 = vpack.c.b16 %v2056, %v2055
      %v2066 = vpack.c.b16 %v2058, %v2057
      %2075 = vmatprep.subr.bf16.mxu0 0
      %2076 = vmatpush1.bf16.msra.mxu0 %v2066
      %2077 = vmatprep.subr.bf16.mxu0 0
      %2078 = vmatpush1.bf16.msra.mxu0 %v2065
      %2079 = vmatprep.subr.bf16.mxu0 0
      %2080 = vmatpush1.bf16.msra.mxu0 %v2064
      %2081 = vmatprep.subr.bf16.mxu0 0
      %2082 = vmatpush1.bf16.msra.mxu0 %v2063
      %2083 = vmatprep.subr.bf16.mxu0 0
      %2084 = vmatpush1.bf16.msra.mxu0 %v2062
      %2085 = vmatprep.subr.bf16.mxu0 0
      %2086 = vmatpush1.bf16.msra.mxu0 %v2061
      %2087 = vmatprep.subr.bf16.mxu0 0
      %2088 = vmatpush1.bf16.msra.mxu0 %v2060
      %2089 = vmatprep.subr.bf16.mxu0 0
      %2090 = vmatpush1.bf16.msra.mxu0 %v2059
      %2091 = vmatprep.subr.bf16.mxu0 0
      %2092 = vmatpush2.bf16.msra.mxu0 0
      %2093 = vmatprep.subr.bf16.mxu0 0
      %2094 = vmatpush2.bf16.msra.mxu0 0
      %2095 = vmatprep.subr.bf16.mxu0 0
      %2096 = vmatpush2.bf16.msra.mxu0 0
      %2097 = vmatprep.subr.bf16.mxu0 0
      %2098 = vmatpush2.bf16.msra.mxu0 0
      %2099 = vmatprep.subr.bf16.mxu0 0
      %2100 = vmatpush2.bf16.msra.mxu0 0
      %2101 = vmatprep.subr.bf16.mxu0 0
      %2102 = vmatpush2.bf16.msra.mxu0 0
      %2103 = vmatprep.subr.bf16.mxu0 0
      %2104 = vmatpush2.bf16.msra.mxu0 0
      %2105 = vmatprep.subr.bf16.mxu0 0
      %2106 = vmatpush2.bf16.msra.mxu0 0
      %2107 = vmatprep.mubr.bf16.mxu0 0
      %2108 = vmatmul.mubr.bf16.gmra.mxu0 %v1995
      %v2109 = vpop.f32.mrf.mxu0
      %v2110 = vadd.f32 0.0, %v2109
      %v2111 = vpop.f32.mrf.mxu0
      %v2112 = vpop.f32.mrf.mxu0
      %v2113 = vadd.f32 0.0, %v2112
      %v2114 = vpop.f32.mrf.mxu0
      %2115 = vmatprep.mubr.bf16.mxu0 0
      %2116 = vmatmul.mubr.bf16.gmra.mxu0 %v1996
      %v2117 = vpop.f32.mrf.mxu0
      %v2118 = vadd.f32 0.0, %v2117
      %v2119 = vpop.f32.mrf.mxu0
      %v2120 = vpop.f32.mrf.mxu0
      %v2121 = vadd.f32 0.0, %v2120
      %v2122 = vpop.f32.mrf.mxu0
      %2123 = vmatprep.mubr.bf16.mxu0 0
      %2124 = vmatmul.mubr.bf16.gmra.mxu0 %v1997
      %v2125 = vpop.f32.mrf.mxu0
      %v2126 = vadd.f32 0.0, %v2125
      %v2127 = vpop.f32.mrf.mxu0
      %v2128 = vpop.f32.mrf.mxu0
      %v2129 = vadd.f32 0.0, %v2128
      %v2130 = vpop.f32.mrf.mxu0
      %2131 = vmatprep.mubr.bf16.mxu0 0
      %2132 = vmatmul.mubr.bf16.gmra.mxu0 %v1998
      %v2133 = vpop.f32.mrf.mxu0
      %v2134 = vadd.f32 0.0, %v2133
      %v2135 = vpop.f32.mrf.mxu0
      %v2136 = vpop.f32.mrf.mxu0
      %v2137 = vadd.f32 0.0, %v2136
      %v2138 = vpop.f32.mrf.mxu0
      %2139 = vmatprep.mubr.bf16.mxu0 0
      %2140 = vmatmul.mubr.bf16.gmra.mxu0 %v1999
      %v2141 = vpop.f32.mrf.mxu0
      %v2142 = vadd.f32 0.0, %v2141
      %v2143 = vpop.f32.mrf.mxu0
      %v2144 = vpop.f32.mrf.mxu0
      %v2145 = vadd.f32 0.0, %v2144
      %v2146 = vpop.f32.mrf.mxu0
      %2147 = vmatprep.mubr.bf16.mxu0 0
      %2148 = vmatmul.mubr.bf16.gmra.mxu0 %v2000
      %v2149 = vpop.f32.mrf.mxu0
      %v2150 = vadd.f32 0.0, %v2149
      %v2151 = vpop.f32.mrf.mxu0
      %v2152 = vpop.f32.mrf.mxu0
      %v2153 = vadd.f32 0.0, %v2152
      %v2154 = vpop.f32.mrf.mxu0
      %2155 = vmatprep.mubr.bf16.mxu0 0
      %2156 = vmatmul.mubr.bf16.gmra.mxu0 %v2001
      %v2157 = vpop.f32.mrf.mxu0
      %v2158 = vadd.f32 0.0, %v2157
      %v2159 = vpop.f32.mrf.mxu0
      %v2160 = vpop.f32.mrf.mxu0
      %v2161 = vadd.f32 0.0, %v2160
      %v2162 = vpop.f32.mrf.mxu0
      %2163 = vmatprep.mubr.bf16.mxu0 0
      %2164 = vmatmul.mubr.bf16.gmra.mxu0 %v2002
      %v2165 = vpop.f32.mrf.mxu0
      %v2166 = vadd.f32 0.0, %v2165
      %v2167 = vpop.f32.mrf.mxu0
      %v2168 = vpop.f32.mrf.mxu0
      %v2169 = vadd.f32 0.0, %v2168
      %v2170 = vpop.f32.mrf.mxu0
      %2171 = vmatprep.mubr.bf16.mxu0 0
      %2172 = vmatmul.mubr.bf16.gmra.mxu0 %v2003
      %v2173 = vpop.f32.mrf.mxu0
      %v2174 = vadd.f32 0.0, %v2173
      %v2175 = vpop.f32.mrf.mxu0
      %v2176 = vpop.f32.mrf.mxu0
      %v2177 = vadd.f32 0.0, %v2176
      %v2178 = vpop.f32.mrf.mxu0
      %2179 = vmatprep.mubr.bf16.mxu0 0
      %2180 = vmatmul.mubr.bf16.gmra.mxu0 %v2004
      %v2181 = vpop.f32.mrf.mxu0
      %v2182 = vadd.f32 0.0, %v2181
      %v2183 = vpop.f32.mrf.mxu0
      %v2184 = vpop.f32.mrf.mxu0
      %v2185 = vadd.f32 0.0, %v2184
      %v2186 = vpop.f32.mrf.mxu0
      %2187 = vmatprep.mubr.bf16.mxu0 0
      %2188 = vmatmul.mubr.bf16.gmra.mxu0 %v2005
      %v2189 = vpop.f32.mrf.mxu0
      %v2190 = vadd.f32 0.0, %v2189
      %v2191 = vpop.f32.mrf.mxu0
      %v2192 = vpop.f32.mrf.mxu0
      %v2193 = vadd.f32 0.0, %v2192
      %v2194 = vpop.f32.mrf.mxu0
      %2195 = vmatprep.mubr.bf16.mxu0 0
      %2196 = vmatmul.mubr.bf16.gmra.mxu0 %v2006
      %v2197 = vpop.f32.mrf.mxu0
      %v2198 = vadd.f32 0.0, %v2197
      %v2199 = vpop.f32.mrf.mxu0
      %v2200 = vpop.f32.mrf.mxu0
      %v2201 = vadd.f32 0.0, %v2200
      %v2202 = vpop.f32.mrf.mxu0
      %2203 = vmatprep.mubr.bf16.mxu0 0
      %2204 = vmatmul.mubr.bf16.gmra.mxu0 %v2007
      %v2205 = vpop.f32.mrf.mxu0
      %v2206 = vadd.f32 0.0, %v2205
      %v2207 = vpop.f32.mrf.mxu0
      %v2208 = vpop.f32.mrf.mxu0
      %v2209 = vadd.f32 0.0, %v2208
      %v2210 = vpop.f32.mrf.mxu0
      %2211 = vmatprep.mubr.bf16.mxu0 0
      %2212 = vmatmul.mubr.bf16.gmra.mxu0 %v2008
      %v2213 = vpop.f32.mrf.mxu0
      %v2214 = vadd.f32 0.0, %v2213
      %v2215 = vpop.f32.mrf.mxu0
      %v2216 = vpop.f32.mrf.mxu0
      %v2217 = vadd.f32 0.0, %v2216
      %v2218 = vpop.f32.mrf.mxu0
      %2219 = vmatprep.mubr.bf16.mxu0 0
      %2220 = vmatmul.mubr.bf16.gmra.mxu0 %v2009
      %v2221 = vpop.f32.mrf.mxu0
      %v2222 = vadd.f32 0.0, %v2221
      %v2223 = vpop.f32.mrf.mxu0
      %v2224 = vpop.f32.mrf.mxu0
      %v2225 = vadd.f32 0.0, %v2224
      %v2226 = vpop.f32.mrf.mxu0
      %2227 = vmatprep.mubr.bf16.mxu0 0
      %2228 = vmatmul.mubr.bf16.gmra.mxu0 %v2010
      %v2229 = vpop.f32.mrf.mxu0
      %v2230 = vadd.f32 0.0, %v2229
      %v2231 = vpop.f32.mrf.mxu0
      %v2232 = vpop.f32.mrf.mxu0
      %v2233 = vadd.f32 0.0, %v2232
      %v2234 = vpop.f32.mrf.mxu0
      %2235 = vdwg.mxu0
      %v2236 = vpack.c.b16 %v1144, %v1143
      %v2254 = vunpack.c.l.b16 %v1962
      %v2255 = vunpack.c.l.b16 %v1963
      %v2256 = vunpack.c.l.b16 %v1964
      %v2257 = vunpack.c.l.b16 %v1965
      %v2258 = vunpack.c.l.b16 %v1966
      %v2259 = vunpack.c.l.b16 %v1967
      %v2260 = vunpack.c.l.b16 %v1968
      %v2261 = vunpack.c.l.b16 %v1969
      %v2262 = vunpack.c.l.b16 %v1970
      %v2263 = vunpack.c.l.b16 %v1971
      %v2264 = vunpack.c.l.b16 %v1972
      %v2265 = vunpack.c.l.b16 %v1973
      %v2266 = vunpack.c.l.b16 %v1974
      %v2267 = vunpack.c.l.b16 %v1975
      %v2268 = vunpack.c.l.b16 %v1976
      %v2269 = vunpack.c.l.b16 %v1977
      %v2270 = vpack.c.b16 %v2255, %v2254
      %v2271 = vpack.c.b16 %v2257, %v2256
      %v2272 = vpack.c.b16 %v2259, %v2258
      %v2273 = vpack.c.b16 %v2261, %v2260
      %v2274 = vpack.c.b16 %v2263, %v2262
      %v2275 = vpack.c.b16 %v2265, %v2264
      %v2276 = vpack.c.b16 %v2267, %v2266
      %v2277 = vpack.c.b16 %v2269, %v2268
      %2286 = vmatprep.subr.bf16.mxu0 0
      %2287 = vmatpush1.bf16.msra.mxu0 %v2277
      %2288 = vmatprep.subr.bf16.mxu0 0
      %2289 = vmatpush1.bf16.msra.mxu0 %v2276
      %2290 = vmatprep.subr.bf16.mxu0 0
      %2291 = vmatpush1.bf16.msra.mxu0 %v2275
      %2292 = vmatprep.subr.bf16.mxu0 0
      %2293 = vmatpush1.bf16.msra.mxu0 %v2274
      %2294 = vmatprep.subr.bf16.mxu0 0
      %2295 = vmatpush1.bf16.msra.mxu0 %v2273
      %2296 = vmatprep.subr.bf16.mxu0 0
      %2297 = vmatpush1.bf16.msra.mxu0 %v2272
      %2298 = vmatprep.subr.bf16.mxu0 0
      %2299 = vmatpush1.bf16.msra.mxu0 %v2271
      %2300 = vmatprep.subr.bf16.mxu0 0
      %2301 = vmatpush1.bf16.msra.mxu0 %v2270
      %2302 = vmatprep.subr.bf16.mxu0 0
      %2303 = vmatpush2.bf16.msra.mxu0 0
      %2304 = vmatprep.subr.bf16.mxu0 0
      %2305 = vmatpush2.bf16.msra.mxu0 0
      %2306 = vmatprep.subr.bf16.mxu0 0
      %2307 = vmatpush2.bf16.msra.mxu0 0
      %2308 = vmatprep.subr.bf16.mxu0 0
      %2309 = vmatpush2.bf16.msra.mxu0 0
      %2310 = vmatprep.subr.bf16.mxu0 0
      %2311 = vmatpush2.bf16.msra.mxu0 0
      %2312 = vmatprep.subr.bf16.mxu0 0
      %2313 = vmatpush2.bf16.msra.mxu0 0
      %2314 = vmatprep.subr.bf16.mxu0 0
      %2315 = vmatpush2.bf16.msra.mxu0 0
      %2316 = vmatprep.subr.bf16.mxu0 0
      %2317 = vmatpush2.bf16.msra.mxu0 0
      %2318 = vmatprep.mubr.bf16.mxu0 0
      %2319 = vmatmul.mubr.bf16.gmra.mxu0 %v2236
      %v2320 = vpop.f32.mrf.mxu0
      %v2321 = vadd.f32 %v2110, %v2320
      %v2322 = vpop.f32.mrf.mxu0
      %v2323 = vpop.f32.mrf.mxu0
      %v2324 = vadd.f32 %v2113, %v2323
      %v2325 = vpop.f32.mrf.mxu0
      %2326 = vmatprep.mubr.bf16.mxu0 0
      %2327 = vmatmul.mubr.bf16.gmra.mxu0 %v1995
      %v2328 = vpop.f32.mrf.mxu0
      %v2329 = vadd.f32 %v2118, %v2328
      %v2330 = vpop.f32.mrf.mxu0
      %v2331 = vpop.f32.mrf.mxu0
      %v2332 = vadd.f32 %v2121, %v2331
      %v2333 = vpop.f32.mrf.mxu0
      %2334 = vmatprep.mubr.bf16.mxu0 0
      %2335 = vmatmul.mubr.bf16.gmra.mxu0 %v1996
      %v2336 = vpop.f32.mrf.mxu0
      %v2337 = vadd.f32 %v2126, %v2336
      %v2338 = vpop.f32.mrf.mxu0
      %v2339 = vpop.f32.mrf.mxu0
      %v2340 = vadd.f32 %v2129, %v2339
      %v2341 = vpop.f32.mrf.mxu0
      %2342 = vmatprep.mubr.bf16.mxu0 0
      %2343 = vmatmul.mubr.bf16.gmra.mxu0 %v1997
      %v2344 = vpop.f32.mrf.mxu0
      %v2345 = vadd.f32 %v2134, %v2344
      %v2346 = vpop.f32.mrf.mxu0
      %v2347 = vpop.f32.mrf.mxu0
      %v2348 = vadd.f32 %v2137, %v2347
      %v2349 = vpop.f32.mrf.mxu0
      %2350 = vmatprep.mubr.bf16.mxu0 0
      %2351 = vmatmul.mubr.bf16.gmra.mxu0 %v1998
      %v2352 = vpop.f32.mrf.mxu0
      %v2353 = vadd.f32 %v2142, %v2352
      %v2354 = vpop.f32.mrf.mxu0
      %v2355 = vpop.f32.mrf.mxu0
      %v2356 = vadd.f32 %v2145, %v2355
      %v2357 = vpop.f32.mrf.mxu0
      %2358 = vmatprep.mubr.bf16.mxu0 0
      %2359 = vmatmul.mubr.bf16.gmra.mxu0 %v1999
      %v2360 = vpop.f32.mrf.mxu0
      %v2361 = vadd.f32 %v2150, %v2360
      %v2362 = vpop.f32.mrf.mxu0
      %v2363 = vpop.f32.mrf.mxu0
      %v2364 = vadd.f32 %v2153, %v2363
      %v2365 = vpop.f32.mrf.mxu0
      %2366 = vmatprep.mubr.bf16.mxu0 0
      %2367 = vmatmul.mubr.bf16.gmra.mxu0 %v2000
      %v2368 = vpop.f32.mrf.mxu0
      %v2369 = vadd.f32 %v2158, %v2368
      %v2370 = vpop.f32.mrf.mxu0
      %v2371 = vpop.f32.mrf.mxu0
      %v2372 = vadd.f32 %v2161, %v2371
      %v2373 = vpop.f32.mrf.mxu0
      %2374 = vmatprep.mubr.bf16.mxu0 0
      %2375 = vmatmul.mubr.bf16.gmra.mxu0 %v2001
      %v2376 = vpop.f32.mrf.mxu0
      %v2377 = vadd.f32 %v2166, %v2376
      %v2378 = vpop.f32.mrf.mxu0
      %v2379 = vpop.f32.mrf.mxu0
      %v2380 = vadd.f32 %v2169, %v2379
      %v2381 = vpop.f32.mrf.mxu0
      %2382 = vmatprep.mubr.bf16.mxu0 0
      %2383 = vmatmul.mubr.bf16.gmra.mxu0 %v2002
      %v2384 = vpop.f32.mrf.mxu0
      %v2385 = vadd.f32 %v2174, %v2384
      %v2386 = vpop.f32.mrf.mxu0
      %v2387 = vpop.f32.mrf.mxu0
      %v2388 = vadd.f32 %v2177, %v2387
      %v2389 = vpop.f32.mrf.mxu0
      %2390 = vmatprep.mubr.bf16.mxu0 0
      %2391 = vmatmul.mubr.bf16.gmra.mxu0 %v2003
      %v2392 = vpop.f32.mrf.mxu0
      %v2393 = vadd.f32 %v2182, %v2392
      %v2394 = vpop.f32.mrf.mxu0
      %v2395 = vpop.f32.mrf.mxu0
      %v2396 = vadd.f32 %v2185, %v2395
      %v2397 = vpop.f32.mrf.mxu0
      %2398 = vmatprep.mubr.bf16.mxu0 0
      %2399 = vmatmul.mubr.bf16.gmra.mxu0 %v2004
      %v2400 = vpop.f32.mrf.mxu0
      %v2401 = vadd.f32 %v2190, %v2400
      %v2402 = vpop.f32.mrf.mxu0
      %v2403 = vpop.f32.mrf.mxu0
      %v2404 = vadd.f32 %v2193, %v2403
      %v2405 = vpop.f32.mrf.mxu0
      %2406 = vmatprep.mubr.bf16.mxu0 0
      %2407 = vmatmul.mubr.bf16.gmra.mxu0 %v2005
      %v2408 = vpop.f32.mrf.mxu0
      %v2409 = vadd.f32 %v2198, %v2408
      %v2410 = vpop.f32.mrf.mxu0
      %v2411 = vpop.f32.mrf.mxu0
      %v2412 = vadd.f32 %v2201, %v2411
      %v2413 = vpop.f32.mrf.mxu0
      %2414 = vmatprep.mubr.bf16.mxu0 0
      %2415 = vmatmul.mubr.bf16.gmra.mxu0 %v2006
      %v2416 = vpop.f32.mrf.mxu0
      %v2417 = vadd.f32 %v2206, %v2416
      %v2418 = vpop.f32.mrf.mxu0
      %v2419 = vpop.f32.mrf.mxu0
      %v2420 = vadd.f32 %v2209, %v2419
      %v2421 = vpop.f32.mrf.mxu0
      %2422 = vmatprep.mubr.bf16.mxu0 0
      %2423 = vmatmul.mubr.bf16.gmra.mxu0 %v2007
      %v2424 = vpop.f32.mrf.mxu0
      %v2425 = vadd.f32 %v2214, %v2424
      %v2426 = vpop.f32.mrf.mxu0
      %v2427 = vpop.f32.mrf.mxu0
      %v2428 = vadd.f32 %v2217, %v2427
      %v2429 = vpop.f32.mrf.mxu0
      %2430 = vmatprep.mubr.bf16.mxu0 0
      %2431 = vmatmul.mubr.bf16.gmra.mxu0 %v2008
      %v2432 = vpop.f32.mrf.mxu0
      %v2433 = vadd.f32 %v2222, %v2432
      %v2434 = vpop.f32.mrf.mxu0
      %v2435 = vpop.f32.mrf.mxu0
      %v2436 = vadd.f32 %v2225, %v2435
      %v2437 = vpop.f32.mrf.mxu0
      %2438 = vmatprep.mubr.bf16.mxu0 0
      %2439 = vmatmul.mubr.bf16.gmra.mxu0 %v2009
      %v2440 = vpop.f32.mrf.mxu0
      %v2441 = vadd.f32 %v2230, %v2440
      %v2442 = vpop.f32.mrf.mxu0
      %v2443 = vpop.f32.mrf.mxu0
      %v2444 = vadd.f32 %v2233, %v2443
      %v2445 = vpop.f32.mrf.mxu0
      %2446 = vdwg.mxu0
      %s2447 = scalar_lea.vmem %s1, 448
      %v2448 = vld [vmem:[%s2447] sm:$0xf]
      %v2449 = vld [vmem:[%s2447 + $0x4] sm:$0xf]
      %v2450 = vld [vmem:[%s2447 + $0x8] sm:$0xf]
      %v2451 = vld [vmem:[%s2447 + $0xc] sm:$0xf]
      %v2452 = vld [vmem:[%s2447 + $0x10] sm:$0xf]
      %v2453 = vld [vmem:[%s2447 + $0x14] sm:$0xf]
      %v2454 = vld [vmem:[%s2447 + $0x18] sm:$0xf]
      %v2455 = vld [vmem:[%s2447 + $0x1c] sm:$0xf]
      %v2456 = vld [vmem:[%s2447 + $0x20] sm:$0xf]
      %v2457 = vld [vmem:[%s2447 + $0x24] sm:$0xf]
      %v2458 = vld [vmem:[%s2447 + $0x28] sm:$0xf]
      %v2459 = vld [vmem:[%s2447 + $0x2c] sm:$0xf]
      %v2460 = vld [vmem:[%s2447 + $0x30] sm:$0xf]
      %v2461 = vld [vmem:[%s2447 + $0x34] sm:$0xf]
      %v2462 = vld [vmem:[%s2447 + $0x38] sm:$0xf]
      %v2463 = vld [vmem:[%s2447 + $0x3c] sm:$0xf]
      %v2464 = vpack.c.b16 %v1472, %v1471
      %v2465 = vpack.c.b16 %v1474, %v1473
      %v2466 = vpack.c.b16 %v1476, %v1475
      %v2467 = vpack.c.b16 %v1478, %v1477
      %v2468 = vpack.c.b16 %v1480, %v1479
      %v2469 = vpack.c.b16 %v1482, %v1481
      %v2470 = vpack.c.b16 %v1484, %v1483
      %v2471 = vpack.c.b16 %v1486, %v1485
      %v2472 = vpack.c.b16 %v1488, %v1487
      %v2473 = vpack.c.b16 %v1490, %v1489
      %v2474 = vpack.c.b16 %v1492, %v1491
      %v2475 = vpack.c.b16 %v1494, %v1493
      %v2476 = vpack.c.b16 %v1496, %v1495
      %v2477 = vpack.c.b16 %v1498, %v1497
      %v2478 = vpack.c.b16 %v1500, %v1499
      %v2479 = vpack.c.b16 %v1502, %v1501
      %v2512 = vunpack.c.l.b16 %v2448
      %v2513 = vunpack.c.l.b16 %v2449
      %v2514 = vunpack.c.l.b16 %v2450
      %v2515 = vunpack.c.l.b16 %v2451
      %v2516 = vunpack.c.l.b16 %v2452
      %v2517 = vunpack.c.l.b16 %v2453
      %v2518 = vunpack.c.l.b16 %v2454
      %v2519 = vunpack.c.l.b16 %v2455
      %v2520 = vunpack.c.l.b16 %v2456
      %v2521 = vunpack.c.l.b16 %v2457
      %v2522 = vunpack.c.l.b16 %v2458
      %v2523 = vunpack.c.l.b16 %v2459
      %v2524 = vunpack.c.l.b16 %v2460
      %v2525 = vunpack.c.l.b16 %v2461
      %v2526 = vunpack.c.l.b16 %v2462
      %v2527 = vunpack.c.l.b16 %v2463
      %v2528 = vpack.c.b16 %v2513, %v2512
      %v2529 = vpack.c.b16 %v2515, %v2514
      %v2530 = vpack.c.b16 %v2517, %v2516
      %v2531 = vpack.c.b16 %v2519, %v2518
      %v2532 = vpack.c.b16 %v2521, %v2520
      %v2533 = vpack.c.b16 %v2523, %v2522
      %v2534 = vpack.c.b16 %v2525, %v2524
      %v2535 = vpack.c.b16 %v2527, %v2526
      %2544 = vmatprep.subr.bf16.mxu0 0
      %2545 = vmatpush1.bf16.msra.mxu0 %v2535
      %2546 = vmatprep.subr.bf16.mxu0 0
      %2547 = vmatpush1.bf16.msra.mxu0 %v2534
      %2548 = vmatprep.subr.bf16.mxu0 0
      %2549 = vmatpush1.bf16.msra.mxu0 %v2533
      %2550 = vmatprep.subr.bf16.mxu0 0
      %2551 = vmatpush1.bf16.msra.mxu0 %v2532
      %2552 = vmatprep.subr.bf16.mxu0 0
      %2553 = vmatpush1.bf16.msra.mxu0 %v2531
      %2554 = vmatprep.subr.bf16.mxu0 0
      %2555 = vmatpush1.bf16.msra.mxu0 %v2530
      %2556 = vmatprep.subr.bf16.mxu0 0
      %2557 = vmatpush1.bf16.msra.mxu0 %v2529
      %2558 = vmatprep.subr.bf16.mxu0 0
      %2559 = vmatpush1.bf16.msra.mxu0 %v2528
      %2560 = vmatprep.subr.bf16.mxu0 0
      %2561 = vmatpush2.bf16.msra.mxu0 0
      %2562 = vmatprep.subr.bf16.mxu0 0
      %2563 = vmatpush2.bf16.msra.mxu0 0
      %2564 = vmatprep.subr.bf16.mxu0 0
      %2565 = vmatpush2.bf16.msra.mxu0 0
      %2566 = vmatprep.subr.bf16.mxu0 0
      %2567 = vmatpush2.bf16.msra.mxu0 0
      %2568 = vmatprep.subr.bf16.mxu0 0
      %2569 = vmatpush2.bf16.msra.mxu0 0
      %2570 = vmatprep.subr.bf16.mxu0 0
      %2571 = vmatpush2.bf16.msra.mxu0 0
      %2572 = vmatprep.subr.bf16.mxu0 0
      %2573 = vmatpush2.bf16.msra.mxu0 0
      %2574 = vmatprep.subr.bf16.mxu0 0
      %2575 = vmatpush2.bf16.msra.mxu0 0
      %2576 = vmatprep.mubr.bf16.mxu0 0
      %2577 = vmatmul.mubr.bf16.gmra.mxu0 %v2464
      %v2578 = vpop.f32.mrf.mxu0
      %v2579 = vadd.f32 0.0, %v2578
      %v2580 = vpop.f32.mrf.mxu0
      %v2581 = vpop.f32.mrf.mxu0
      %v2582 = vadd.f32 0.0, %v2581
      %v2583 = vpop.f32.mrf.mxu0
      %2584 = vmatprep.mubr.bf16.mxu0 0
      %2585 = vmatmul.mubr.bf16.gmra.mxu0 %v2465
      %v2586 = vpop.f32.mrf.mxu0
      %v2587 = vadd.f32 0.0, %v2586
      %v2588 = vpop.f32.mrf.mxu0
      %v2589 = vpop.f32.mrf.mxu0
      %v2590 = vadd.f32 0.0, %v2589
      %v2591 = vpop.f32.mrf.mxu0
      %2592 = vmatprep.mubr.bf16.mxu0 0
      %2593 = vmatmul.mubr.bf16.gmra.mxu0 %v2466
      %v2594 = vpop.f32.mrf.mxu0
      %v2595 = vadd.f32 0.0, %v2594
      %v2596 = vpop.f32.mrf.mxu0
      %v2597 = vpop.f32.mrf.mxu0
      %v2598 = vadd.f32 0.0, %v2597
      %v2599 = vpop.f32.mrf.mxu0
      %2600 = vmatprep.mubr.bf16.mxu0 0
      %2601 = vmatmul.mubr.bf16.gmra.mxu0 %v2467
      %v2602 = vpop.f32.mrf.mxu0
      %v2603 = vadd.f32 0.0, %v2602
      %v2604 = vpop.f32.mrf.mxu0
      %v2605 = vpop.f32.mrf.mxu0
      %v2606 = vadd.f32 0.0, %v2605
      %v2607 = vpop.f32.mrf.mxu0
      %2608 = vmatprep.mubr.bf16.mxu0 0
      %2609 = vmatmul.mubr.bf16.gmra.mxu0 %v2468
      %v2610 = vpop.f32.mrf.mxu0
      %v2611 = vadd.f32 0.0, %v2610
      %v2612 = vpop.f32.mrf.mxu0
      %v2613 = vpop.f32.mrf.mxu0
      %v2614 = vadd.f32 0.0, %v2613
      %v2615 = vpop.f32.mrf.mxu0
      %2616 = vmatprep.mubr.bf16.mxu0 0
      %2617 = vmatmul.mubr.bf16.gmra.mxu0 %v2469
      %v2618 = vpop.f32.mrf.mxu0
      %v2619 = vadd.f32 0.0, %v2618
      %v2620 = vpop.f32.mrf.mxu0
      %v2621 = vpop.f32.mrf.mxu0
      %v2622 = vadd.f32 0.0, %v2621
      %v2623 = vpop.f32.mrf.mxu0
      %2624 = vmatprep.mubr.bf16.mxu0 0
      %2625 = vmatmul.mubr.bf16.gmra.mxu0 %v2470
      %v2626 = vpop.f32.mrf.mxu0
      %v2627 = vadd.f32 0.0, %v2626
      %v2628 = vpop.f32.mrf.mxu0
      %v2629 = vpop.f32.mrf.mxu0
      %v2630 = vadd.f32 0.0, %v2629
      %v2631 = vpop.f32.mrf.mxu0
      %2632 = vmatprep.mubr.bf16.mxu0 0
      %2633 = vmatmul.mubr.bf16.gmra.mxu0 %v2471
      %v2634 = vpop.f32.mrf.mxu0
      %v2635 = vadd.f32 0.0, %v2634
      %v2636 = vpop.f32.mrf.mxu0
      %v2637 = vpop.f32.mrf.mxu0
      %v2638 = vadd.f32 0.0, %v2637
      %v2639 = vpop.f32.mrf.mxu0
      %2640 = vmatprep.mubr.bf16.mxu0 0
      %2641 = vmatmul.mubr.bf16.gmra.mxu0 %v2472
      %v2642 = vpop.f32.mrf.mxu0
      %v2643 = vadd.f32 0.0, %v2642
      %v2644 = vpop.f32.mrf.mxu0
      %v2645 = vpop.f32.mrf.mxu0
      %v2646 = vadd.f32 0.0, %v2645
      %v2647 = vpop.f32.mrf.mxu0
      %2648 = vmatprep.mubr.bf16.mxu0 0
      %2649 = vmatmul.mubr.bf16.gmra.mxu0 %v2473
      %v2650 = vpop.f32.mrf.mxu0
      %v2651 = vadd.f32 0.0, %v2650
      %v2652 = vpop.f32.mrf.mxu0
      %v2653 = vpop.f32.mrf.mxu0
      %v2654 = vadd.f32 0.0, %v2653
      %v2655 = vpop.f32.mrf.mxu0
      %2656 = vmatprep.mubr.bf16.mxu0 0
      %2657 = vmatmul.mubr.bf16.gmra.mxu0 %v2474
      %v2658 = vpop.f32.mrf.mxu0
      %v2659 = vadd.f32 0.0, %v2658
      %v2660 = vpop.f32.mrf.mxu0
      %v2661 = vpop.f32.mrf.mxu0
      %v2662 = vadd.f32 0.0, %v2661
      %v2663 = vpop.f32.mrf.mxu0
      %2664 = vmatprep.mubr.bf16.mxu0 0
      %2665 = vmatmul.mubr.bf16.gmra.mxu0 %v2475
      %v2666 = vpop.f32.mrf.mxu0
      %v2667 = vadd.f32 0.0, %v2666
      %v2668 = vpop.f32.mrf.mxu0
      %v2669 = vpop.f32.mrf.mxu0
      %v2670 = vadd.f32 0.0, %v2669
      %v2671 = vpop.f32.mrf.mxu0
      %2672 = vmatprep.mubr.bf16.mxu0 0
      %2673 = vmatmul.mubr.bf16.gmra.mxu0 %v2476
      %v2674 = vpop.f32.mrf.mxu0
      %v2675 = vadd.f32 0.0, %v2674
      %v2676 = vpop.f32.mrf.mxu0
      %v2677 = vpop.f32.mrf.mxu0
      %v2678 = vadd.f32 0.0, %v2677
      %v2679 = vpop.f32.mrf.mxu0
      %2680 = vmatprep.mubr.bf16.mxu0 0
      %2681 = vmatmul.mubr.bf16.gmra.mxu0 %v2477
      %v2682 = vpop.f32.mrf.mxu0
      %v2683 = vadd.f32 0.0, %v2682
      %v2684 = vpop.f32.mrf.mxu0
      %v2685 = vpop.f32.mrf.mxu0
      %v2686 = vadd.f32 0.0, %v2685
      %v2687 = vpop.f32.mrf.mxu0
      %2688 = vmatprep.mubr.bf16.mxu0 0
      %2689 = vmatmul.mubr.bf16.gmra.mxu0 %v2478
      %v2690 = vpop.f32.mrf.mxu0
      %v2691 = vadd.f32 0.0, %v2690
      %v2692 = vpop.f32.mrf.mxu0
      %v2693 = vpop.f32.mrf.mxu0
      %v2694 = vadd.f32 0.0, %v2693
      %v2695 = vpop.f32.mrf.mxu0
      %2696 = vmatprep.mubr.bf16.mxu0 0
      %2697 = vmatmul.mubr.bf16.gmra.mxu0 %v2479
      %v2698 = vpop.f32.mrf.mxu0
      %v2699 = vadd.f32 0.0, %v2698
      %v2700 = vpop.f32.mrf.mxu0
      %v2701 = vpop.f32.mrf.mxu0
      %v2702 = vadd.f32 0.0, %v2701
      %v2703 = vpop.f32.mrf.mxu0
      %2704 = vdwg.mxu0
      %v2705 = vadd.f32 %v2321, %v2579
      %v2706 = vadd.f32 %v2324, %v2582
      %v2707 = vadd.f32 %v2329, %v2587
      %v2708 = vadd.f32 %v2332, %v2590
      %v2709 = vadd.f32 %v2337, %v2595
      %v2710 = vadd.f32 %v2340, %v2598
      %v2711 = vadd.f32 %v2345, %v2603
      %v2712 = vadd.f32 %v2348, %v2606
      %v2713 = vadd.f32 %v2353, %v2611
      %v2714 = vadd.f32 %v2356, %v2614
      %v2715 = vadd.f32 %v2361, %v2619
      %v2716 = vadd.f32 %v2364, %v2622
      %v2717 = vadd.f32 %v2369, %v2627
      %v2718 = vadd.f32 %v2372, %v2630
      %v2719 = vadd.f32 %v2377, %v2635
      %v2720 = vadd.f32 %v2380, %v2638
      %v2721 = vadd.f32 %v2385, %v2643
      %v2722 = vadd.f32 %v2388, %v2646
      %v2723 = vadd.f32 %v2393, %v2651
      %v2724 = vadd.f32 %v2396, %v2654
      %v2725 = vadd.f32 %v2401, %v2659
      %v2726 = vadd.f32 %v2404, %v2662
      %v2727 = vadd.f32 %v2409, %v2667
      %v2728 = vadd.f32 %v2412, %v2670
      %v2729 = vadd.f32 %v2417, %v2675
      %v2730 = vadd.f32 %v2420, %v2678
      %v2731 = vadd.f32 %v2425, %v2683
      %v2732 = vadd.f32 %v2428, %v2686
      %v2733 = vadd.f32 %v2433, %v2691
      %v2734 = vadd.f32 %v2436, %v2694
      %v2735 = vadd.f32 %v2441, %v2699
      %v2736 = vadd.f32 %v2444, %v2702
      %v2737 = vadd.f32 %v1929, %v2705
      %v2738 = vadd.f32 %v1930, %v2706
      %v2739 = vadd.f32 %v1931, %v2707
      %v2740 = vadd.f32 %v1932, %v2708
      %v2741 = vadd.f32 %v1933, %v2709
      %v2742 = vadd.f32 %v1934, %v2710
      %v2743 = vadd.f32 %v1935, %v2711
      %v2744 = vadd.f32 %v1936, %v2712
      %v2745 = vadd.f32 %v1937, %v2713
      %v2746 = vadd.f32 %v1938, %v2714
      %v2747 = vadd.f32 %v1939, %v2715
      %v2748 = vadd.f32 %v1940, %v2716
      %v2749 = vadd.f32 %v1941, %v2717
      %v2750 = vadd.f32 %v1942, %v2718
      %v2751 = vadd.f32 %v1943, %v2719
      %v2752 = vadd.f32 %v1944, %v2720
      %v2753 = vadd.f32 %v1945, %v2721
      %v2754 = vadd.f32 %v1946, %v2722
      %v2755 = vadd.f32 %v1947, %v2723
      %v2756 = vadd.f32 %v1948, %v2724
      %v2757 = vadd.f32 %v1949, %v2725
      %v2758 = vadd.f32 %v1950, %v2726
      %v2759 = vadd.f32 %v1951, %v2727
      %v2760 = vadd.f32 %v1952, %v2728
      %v2761 = vadd.f32 %v1953, %v2729
      %v2762 = vadd.f32 %v1954, %v2730
      %v2763 = vadd.f32 %v1955, %v2731
      %v2764 = vadd.f32 %v1956, %v2732
      %v2765 = vadd.f32 %v1957, %v2733
      %v2766 = vadd.f32 %v1958, %v2734
      %v2767 = vadd.f32 %v1959, %v2735
      %v2768 = vadd.f32 %v1960, %v2736
      %v2769 = vld [vmem:[#allocation2 + $0x8] sm:$0xf]
      %v2770 = vld [vmem:[#allocation2 + $0xc] sm:$0xf]
      %v2771 = vld [vmem:[#allocation2 + $0x10] sm:$0xf]
      %v2772 = vld [vmem:[#allocation2 + $0x14] sm:$0xf]
      %v2773 = vld [vmem:[#allocation2 + $0x18] sm:$0xf]
      %v2774 = vld [vmem:[#allocation2 + $0x1c] sm:$0xf]
      %v2775 = vld [vmem:[#allocation2 + $0x20] sm:$0xf]
      %v2776 = vld [vmem:[#allocation2 + $0x24] sm:$0xf]
      %v2777 = vld [vmem:[#allocation2 + $0x28] sm:$0xf]
      %v2778 = vld [vmem:[#allocation2 + $0x2c] sm:$0xf]
      %v2779 = vld [vmem:[#allocation2 + $0x30] sm:$0xf]
      %v2780 = vld [vmem:[#allocation2 + $0x34] sm:$0xf]
      %v2781 = vld [vmem:[#allocation2 + $0x38] sm:$0xf]
      %v2782 = vld [vmem:[#allocation2 + $0x3c] sm:$0xf]
      %v2783 = vld [vmem:[#allocation2 + $0x40] sm:$0xf]
      %v2784 = vld [vmem:[#allocation2 + $0x44] sm:$0xf]
      %v2785 = vld [vmem:[#allocation2 + $0x48] sm:$0xf]
      %v2786 = vld [vmem:[#allocation2 + $0x4c] sm:$0xf]
      %v2787 = vld [vmem:[#allocation2 + $0x50] sm:$0xf]
      %v2788 = vld [vmem:[#allocation2 + $0x54] sm:$0xf]
      %v2789 = vld [vmem:[#allocation2 + $0x58] sm:$0xf]
      %v2790 = vld [vmem:[#allocation2 + $0x5c] sm:$0xf]
      %v2791 = vld [vmem:[#allocation2 + $0x60] sm:$0xf]
      %v2792 = vld [vmem:[#allocation2 + $0x64] sm:$0xf]
      %v2793 = vld [vmem:[#allocation2 + $0x68] sm:$0xf]
      %v2794 = vld [vmem:[#allocation2 + $0x6c] sm:$0xf]
      %v2795 = vld [vmem:[#allocation2 + $0x70] sm:$0xf]
      %v2796 = vld [vmem:[#allocation2 + $0x74] sm:$0xf]
      %v2797 = vld [vmem:[#allocation2 + $0x78] sm:$0xf]
      %v2798 = vld [vmem:[#allocation2 + $0x7c] sm:$0xf]
      %v2799 = vld [vmem:[#allocation2 + $0x80] sm:$0xf]
      %v2800 = vld [vmem:[#allocation2 + $0x84] sm:$0xf]
      %v2801 = vld [vmem:[#allocation2 + $0x88] sm:$0x1]
      %s2802 = scalar_lea.vmem %s1, 128
      %v2803 = vld [vmem:[%s2802] sm:$0xf]
      %v2804 = vld [vmem:[%s2802 + $0x4] sm:$0xf]
      %v2805 = vld [vmem:[%s2802 + $0x8] sm:$0xf]
      %v2806 = vld [vmem:[%s2802 + $0xc] sm:$0xf]
      %v2807 = vld [vmem:[%s2802 + $0x10] sm:$0xf]
      %v2808 = vld [vmem:[%s2802 + $0x14] sm:$0xf]
      %v2809 = vld [vmem:[%s2802 + $0x18] sm:$0xf]
      %v2810 = vld [vmem:[%s2802 + $0x1c] sm:$0xf]
      %v2811 = vld [vmem:[%s2802 + $0x20] sm:$0xf]
      %v2812 = vld [vmem:[%s2802 + $0x24] sm:$0xf]
      %v2813 = vld [vmem:[%s2802 + $0x28] sm:$0xf]
      %v2814 = vld [vmem:[%s2802 + $0x2c] sm:$0xf]
      %v2815 = vld [vmem:[%s2802 + $0x30] sm:$0xf]
      %v2816 = vld [vmem:[%s2802 + $0x34] sm:$0xf]
      %v2817 = vld [vmem:[%s2802 + $0x38] sm:$0xf]
      %v2818 = vld [vmem:[%s2802 + $0x3c] sm:$0xf]
      %v2819 = vld [vmem:[#allocation2 + $0x88] sm:$0xf]
      %v2820 = vld [vmem:[#allocation2 + $0x8c] sm:$0xf]
      %v2821 = vld [vmem:[#allocation2 + $0x90] sm:$0x1]
      %s2822 = scalar_lea.vmem %s1, 320
      %v2823 = vld [vmem:[%s2822] sm:$0xf]
      %v2824 = vld [vmem:[%s2822 + $0x4] sm:$0xf]
      %v2825 = vld [vmem:[%s2822 + $0x8] sm:$0xf]
      %v2826 = vld [vmem:[%s2822 + $0xc] sm:$0xf]
      %v2827 = vld [vmem:[%s2822 + $0x10] sm:$0xf]
      %v2828 = vld [vmem:[%s2822 + $0x14] sm:$0xf]
      %v2829 = vld [vmem:[%s2822 + $0x18] sm:$0xf]
      %v2830 = vld [vmem:[%s2822 + $0x1c] sm:$0xf]
      %v2831 = vld [vmem:[%s2822 + $0x20] sm:$0xf]
      %v2832 = vld [vmem:[%s2822 + $0x24] sm:$0xf]
      %v2833 = vld [vmem:[%s2822 + $0x28] sm:$0xf]
      %v2834 = vld [vmem:[%s2822 + $0x2c] sm:$0xf]
      %v2835 = vld [vmem:[%s2822 + $0x30] sm:$0xf]
      %v2836 = vld [vmem:[%s2822 + $0x34] sm:$0xf]
      %v2837 = vld [vmem:[%s2822 + $0x38] sm:$0xf]
      %v2838 = vld [vmem:[%s2822 + $0x3c] sm:$0xf]
      %v2872 = vunpack.c.l.b16 %v2771
      %v2873 = vunpack.c.l.b16 %v2772
      %v2874 = vunpack.c.l.b16 %v2773
      %v2875 = vunpack.c.l.b16 %v2774
      %v2876 = vunpack.c.l.b16 %v2775
      %v2877 = vunpack.c.l.b16 %v2776
      %v2878 = vunpack.c.l.b16 %v2777
      %v2879 = vunpack.c.l.b16 %v2778
      %v2880 = vunpack.c.l.b16 %v2779
      %v2881 = vunpack.c.l.b16 %v2780
      %v2882 = vunpack.c.l.b16 %v2781
      %v2883 = vunpack.c.l.b16 %v2782
      %v2884 = vunpack.c.l.b16 %v2783
      %v2885 = vunpack.c.l.b16 %v2784
      %v2886 = vunpack.c.l.b16 %v2785
      %v2887 = vunpack.c.l.b16 %v2786
      %v2888 = vunpack.c.l.b16 %v2787
      %v2889 = vunpack.c.l.b16 %v2788
      %v2890 = vunpack.c.l.b16 %v2789
      %v2891 = vunpack.c.l.b16 %v2790
      %v2892 = vunpack.c.l.b16 %v2791
      %v2893 = vunpack.c.l.b16 %v2792
      %v2894 = vunpack.c.l.b16 %v2793
      %v2895 = vunpack.c.l.b16 %v2794
      %v2896 = vunpack.c.l.b16 %v2795
      %v2897 = vunpack.c.l.b16 %v2796
      %v2898 = vunpack.c.l.b16 %v2797
      %v2899 = vunpack.c.l.b16 %v2798
      %v2900 = vunpack.c.l.b16 %v2799
      %v2901 = vunpack.c.l.b16 %v2800
      %v2902 = vunpack.c.l.b16 %v2819
      %v2903 = vunpack.c.l.b16 %v2820
      %v2904 = vunpack.c.l.b16 %v2821
      %v2905 = vpack.c.b16 %v2873, %v2872
      %v2906 = vpack.c.b16 %v2875, %v2874
      %v2907 = vpack.c.b16 %v2877, %v2876
      %v2908 = vpack.c.b16 %v2879, %v2878
      %v2909 = vpack.c.b16 %v2881, %v2880
      %v2910 = vpack.c.b16 %v2883, %v2882
      %v2911 = vpack.c.b16 %v2885, %v2884
      %v2912 = vpack.c.b16 %v2887, %v2886
      %v2913 = vpack.c.b16 %v2889, %v2888
      %v2914 = vpack.c.b16 %v2891, %v2890
      %v2915 = vpack.c.b16 %v2893, %v2892
      %v2916 = vpack.c.b16 %v2895, %v2894
      %v2917 = vpack.c.b16 %v2897, %v2896
      %v2918 = vpack.c.b16 %v2899, %v2898
      %v2919 = vpack.c.b16 %v2901, %v2900
      %v2920 = vpack.c.b16 %v2903, %v2902
      %v2921 = vpack.c.b16 %v2904, %v2904
      %vm2922 = vsmask.f32 7424
      %v2924 = vshrl.u32 %v2905, 16
      %v2926 = vshll.u32 %v2905, 16
      %v2928 = vrot.slane %v2926, 1
      %v2929 = vor.u32 %v2924, %v2928
      %v2931 = vshll.u32 %v2906, 16
      %v2933 = vrot.slane %v2931, 1
      %v2934 = vsel %vm2922, %v2929, %v2933
      %v2935 = vshrl.u32 %v2906, 16
      %v2937 = vor.u32 %v2935, %v2933
      %v2939 = vshll.u32 %v2907, 16
      %v2941 = vrot.slane %v2939, 1
      %v2942 = vsel %vm2922, %v2937, %v2941
      %v2943 = vshrl.u32 %v2907, 16
      %v2945 = vor.u32 %v2943, %v2941
      %v2947 = vshll.u32 %v2908, 16
      %v2949 = vrot.slane %v2947, 1
      %v2950 = vsel %vm2922, %v2945, %v2949
      %v2951 = vshrl.u32 %v2908, 16
      %v2953 = vor.u32 %v2951, %v2949
      %v2955 = vshll.u32 %v2909, 16
      %v2957 = vrot.slane %v2955, 1
      %v2958 = vsel %vm2922, %v2953, %v2957
      %v2959 = vshrl.u32 %v2909, 16
      %v2961 = vor.u32 %v2959, %v2957
      %v2963 = vshll.u32 %v2910, 16
      %v2965 = vrot.slane %v2963, 1
      %v2966 = vsel %vm2922, %v2961, %v2965
      %v2967 = vshrl.u32 %v2910, 16
      %v2969 = vor.u32 %v2967, %v2965
      %v2971 = vshll.u32 %v2911, 16
      %v2973 = vrot.slane %v2971, 1
      %v2974 = vsel %vm2922, %v2969, %v2973
      %v2975 = vshrl.u32 %v2911, 16
      %v2977 = vor.u32 %v2975, %v2973
      %v2979 = vshll.u32 %v2912, 16
      %v2981 = vrot.slane %v2979, 1
      %v2982 = vsel %vm2922, %v2977, %v2981
      %v2983 = vshrl.u32 %v2912, 16
      %v2985 = vor.u32 %v2983, %v2981
      %v2987 = vshll.u32 %v2913, 16
      %v2989 = vrot.slane %v2987, 1
      %v2990 = vsel %vm2922, %v2985, %v2989
      %v2991 = vshrl.u32 %v2913, 16
      %v2993 = vor.u32 %v2991, %v2989
      %v2995 = vshll.u32 %v2914, 16
      %v2997 = vrot.slane %v2995, 1
      %v2998 = vsel %vm2922, %v2993, %v2997
      %v2999 = vshrl.u32 %v2914, 16
      %v3001 = vor.u32 %v2999, %v2997
      %v3003 = vshll.u32 %v2915, 16
      %v3005 = vrot.slane %v3003, 1
      %v3006 = vsel %vm2922, %v3001, %v3005
      %v3007 = vshrl.u32 %v2915, 16
      %v3009 = vor.u32 %v3007, %v3005
      %v3011 = vshll.u32 %v2916, 16
      %v3013 = vrot.slane %v3011, 1
      %v3014 = vsel %vm2922, %v3009, %v3013
      %v3015 = vshrl.u32 %v2916, 16
      %v3017 = vor.u32 %v3015, %v3013
      %v3019 = vshll.u32 %v2917, 16
      %v3021 = vrot.slane %v3019, 1
      %v3022 = vsel %vm2922, %v3017, %v3021
      %v3023 = vshrl.u32 %v2917, 16
      %v3025 = vor.u32 %v3023, %v3021
      %v3027 = vshll.u32 %v2918, 16
      %v3029 = vrot.slane %v3027, 1
      %v3030 = vsel %vm2922, %v3025, %v3029
      %v3031 = vshrl.u32 %v2918, 16
      %v3033 = vor.u32 %v3031, %v3029
      %v3035 = vshll.u32 %v2919, 16
      %v3037 = vrot.slane %v3035, 1
      %v3038 = vsel %vm2922, %v3033, %v3037
      %v3039 = vshrl.u32 %v2919, 16
      %v3041 = vor.u32 %v3039, %v3037
      %v3043 = vshll.u32 %v2920, 16
      %v3045 = vrot.slane %v3043, 1
      %v3046 = vsel %vm2922, %v3041, %v3045
      %v3047 = vshrl.u32 %v2920, 16
      %v3049 = vor.u32 %v3047, %v3045
      %v3051 = vshll.u32 %v2921, 16
      %v3053 = vrot.slane %v3051, 1
      %v3054 = vsel %vm2922, %v3049, %v3053
      %v3087 = vunpack.c.l.b16 %v2823
      %v3088 = vunpack.c.l.b16 %v2824
      %v3089 = vunpack.c.l.b16 %v2825
      %v3090 = vunpack.c.l.b16 %v2826
      %v3091 = vunpack.c.l.b16 %v2827
      %v3092 = vunpack.c.l.b16 %v2828
      %v3093 = vunpack.c.l.b16 %v2829
      %v3094 = vunpack.c.l.b16 %v2830
      %v3095 = vunpack.c.l.b16 %v2831
      %v3096 = vunpack.c.l.b16 %v2832
      %v3097 = vunpack.c.l.b16 %v2833
      %v3098 = vunpack.c.l.b16 %v2834
      %v3099 = vunpack.c.l.b16 %v2835
      %v3100 = vunpack.c.l.b16 %v2836
      %v3101 = vunpack.c.l.b16 %v2837
      %v3102 = vunpack.c.l.b16 %v2838
      %v3103 = vpack.c.b16 %v3088, %v3087
      %v3104 = vpack.c.b16 %v3090, %v3089
      %v3105 = vpack.c.b16 %v3092, %v3091
      %v3106 = vpack.c.b16 %v3094, %v3093
      %v3107 = vpack.c.b16 %v3096, %v3095
      %v3108 = vpack.c.b16 %v3098, %v3097
      %v3109 = vpack.c.b16 %v3100, %v3099
      %v3110 = vpack.c.b16 %v3102, %v3101
      %3119 = vmatprep.subr.bf16.mxu0 0
      %3120 = vmatpush1.bf16.msra.mxu0 %v3110
      %3121 = vmatprep.subr.bf16.mxu0 0
      %3122 = vmatpush1.bf16.msra.mxu0 %v3109
      %3123 = vmatprep.subr.bf16.mxu0 0
      %3124 = vmatpush1.bf16.msra.mxu0 %v3108
      %3125 = vmatprep.subr.bf16.mxu0 0
      %3126 = vmatpush1.bf16.msra.mxu0 %v3107
      %3127 = vmatprep.subr.bf16.mxu0 0
      %3128 = vmatpush1.bf16.msra.mxu0 %v3106
      %3129 = vmatprep.subr.bf16.mxu0 0
      %3130 = vmatpush1.bf16.msra.mxu0 %v3105
      %3131 = vmatprep.subr.bf16.mxu0 0
      %3132 = vmatpush1.bf16.msra.mxu0 %v3104
      %3133 = vmatprep.subr.bf16.mxu0 0
      %3134 = vmatpush1.bf16.msra.mxu0 %v3103
      %3135 = vmatprep.subr.bf16.mxu0 0
      %3136 = vmatpush2.bf16.msra.mxu0 0
      %3137 = vmatprep.subr.bf16.mxu0 0
      %3138 = vmatpush2.bf16.msra.mxu0 0
      %3139 = vmatprep.subr.bf16.mxu0 0
      %3140 = vmatpush2.bf16.msra.mxu0 0
      %3141 = vmatprep.subr.bf16.mxu0 0
      %3142 = vmatpush2.bf16.msra.mxu0 0
      %3143 = vmatprep.subr.bf16.mxu0 0
      %3144 = vmatpush2.bf16.msra.mxu0 0
      %3145 = vmatprep.subr.bf16.mxu0 0
      %3146 = vmatpush2.bf16.msra.mxu0 0
      %3147 = vmatprep.subr.bf16.mxu0 0
      %3148 = vmatpush2.bf16.msra.mxu0 0
      %3149 = vmatprep.subr.bf16.mxu0 0
      %3150 = vmatpush2.bf16.msra.mxu0 0
      %3151 = vmatprep.mubr.bf16.mxu0 0
      %3152 = vmatmul.mubr.bf16.gmra.mxu0 %v2934
      %v3153 = vpop.f32.mrf.mxu0
      %v3154 = vadd.f32 0.0, %v3153
      %v3155 = vpop.f32.mrf.mxu0
      %v3156 = vpop.f32.mrf.mxu0
      %v3157 = vadd.f32 0.0, %v3156
      %v3158 = vpop.f32.mrf.mxu0
      %3159 = vmatprep.mubr.bf16.mxu0 0
      %3160 = vmatmul.mubr.bf16.gmra.mxu0 %v2942
      %v3161 = vpop.f32.mrf.mxu0
      %v3162 = vadd.f32 0.0, %v3161
      %v3163 = vpop.f32.mrf.mxu0
      %v3164 = vpop.f32.mrf.mxu0
      %v3165 = vadd.f32 0.0, %v3164
      %v3166 = vpop.f32.mrf.mxu0
      %3167 = vmatprep.mubr.bf16.mxu0 0
      %3168 = vmatmul.mubr.bf16.gmra.mxu0 %v2950
      %v3169 = vpop.f32.mrf.mxu0
      %v3170 = vadd.f32 0.0, %v3169
      %v3171 = vpop.f32.mrf.mxu0
      %v3172 = vpop.f32.mrf.mxu0
      %v3173 = vadd.f32 0.0, %v3172
      %v3174 = vpop.f32.mrf.mxu0
      %3175 = vmatprep.mubr.bf16.mxu0 0
      %3176 = vmatmul.mubr.bf16.gmra.mxu0 %v2958
      %v3177 = vpop.f32.mrf.mxu0
      %v3178 = vadd.f32 0.0, %v3177
      %v3179 = vpop.f32.mrf.mxu0
      %v3180 = vpop.f32.mrf.mxu0
      %v3181 = vadd.f32 0.0, %v3180
      %v3182 = vpop.f32.mrf.mxu0
      %3183 = vmatprep.mubr.bf16.mxu0 0
      %3184 = vmatmul.mubr.bf16.gmra.mxu0 %v2966
      %v3185 = vpop.f32.mrf.mxu0
      %v3186 = vadd.f32 0.0, %v3185
      %v3187 = vpop.f32.mrf.mxu0
      %v3188 = vpop.f32.mrf.mxu0
      %v3189 = vadd.f32 0.0, %v3188
      %v3190 = vpop.f32.mrf.mxu0
      %3191 = vmatprep.mubr.bf16.mxu0 0
      %3192 = vmatmul.mubr.bf16.gmra.mxu0 %v2974
      %v3193 = vpop.f32.mrf.mxu0
      %v3194 = vadd.f32 0.0, %v3193
      %v3195 = vpop.f32.mrf.mxu0
      %v3196 = vpop.f32.mrf.mxu0
      %v3197 = vadd.f32 0.0, %v3196
      %v3198 = vpop.f32.mrf.mxu0
      %3199 = vmatprep.mubr.bf16.mxu0 0
      %3200 = vmatmul.mubr.bf16.gmra.mxu0 %v2982
      %v3201 = vpop.f32.mrf.mxu0
      %v3202 = vadd.f32 0.0, %v3201
      %v3203 = vpop.f32.mrf.mxu0
      %v3204 = vpop.f32.mrf.mxu0
      %v3205 = vadd.f32 0.0, %v3204
      %v3206 = vpop.f32.mrf.mxu0
      %3207 = vmatprep.mubr.bf16.mxu0 0
      %3208 = vmatmul.mubr.bf16.gmra.mxu0 %v2990
      %v3209 = vpop.f32.mrf.mxu0
      %v3210 = vadd.f32 0.0, %v3209
      %v3211 = vpop.f32.mrf.mxu0
      %v3212 = vpop.f32.mrf.mxu0
      %v3213 = vadd.f32 0.0, %v3212
      %v3214 = vpop.f32.mrf.mxu0
      %3215 = vmatprep.mubr.bf16.mxu0 0
      %3216 = vmatmul.mubr.bf16.gmra.mxu0 %v2998
      %v3217 = vpop.f32.mrf.mxu0
      %v3218 = vadd.f32 0.0, %v3217
      %v3219 = vpop.f32.mrf.mxu0
      %v3220 = vpop.f32.mrf.mxu0
      %v3221 = vadd.f32 0.0, %v3220
      %v3222 = vpop.f32.mrf.mxu0
      %3223 = vmatprep.mubr.bf16.mxu0 0
      %3224 = vmatmul.mubr.bf16.gmra.mxu0 %v3006
      %v3225 = vpop.f32.mrf.mxu0
      %v3226 = vadd.f32 0.0, %v3225
      %v3227 = vpop.f32.mrf.mxu0
      %v3228 = vpop.f32.mrf.mxu0
      %v3229 = vadd.f32 0.0, %v3228
      %v3230 = vpop.f32.mrf.mxu0
      %3231 = vmatprep.mubr.bf16.mxu0 0
      %3232 = vmatmul.mubr.bf16.gmra.mxu0 %v3014
      %v3233 = vpop.f32.mrf.mxu0
      %v3234 = vadd.f32 0.0, %v3233
      %v3235 = vpop.f32.mrf.mxu0
      %v3236 = vpop.f32.mrf.mxu0
      %v3237 = vadd.f32 0.0, %v3236
      %v3238 = vpop.f32.mrf.mxu0
      %3239 = vmatprep.mubr.bf16.mxu0 0
      %3240 = vmatmul.mubr.bf16.gmra.mxu0 %v3022
      %v3241 = vpop.f32.mrf.mxu0
      %v3242 = vadd.f32 0.0, %v3241
      %v3243 = vpop.f32.mrf.mxu0
      %v3244 = vpop.f32.mrf.mxu0
      %v3245 = vadd.f32 0.0, %v3244
      %v3246 = vpop.f32.mrf.mxu0
      %3247 = vmatprep.mubr.bf16.mxu0 0
      %3248 = vmatmul.mubr.bf16.gmra.mxu0 %v3030
      %v3249 = vpop.f32.mrf.mxu0
      %v3250 = vadd.f32 0.0, %v3249
      %v3251 = vpop.f32.mrf.mxu0
      %v3252 = vpop.f32.mrf.mxu0
      %v3253 = vadd.f32 0.0, %v3252
      %v3254 = vpop.f32.mrf.mxu0
      %3255 = vmatprep.mubr.bf16.mxu0 0
      %3256 = vmatmul.mubr.bf16.gmra.mxu0 %v3038
      %v3257 = vpop.f32.mrf.mxu0
      %v3258 = vadd.f32 0.0, %v3257
      %v3259 = vpop.f32.mrf.mxu0
      %v3260 = vpop.f32.mrf.mxu0
      %v3261 = vadd.f32 0.0, %v3260
      %v3262 = vpop.f32.mrf.mxu0
      %3263 = vmatprep.mubr.bf16.mxu0 0
      %3264 = vmatmul.mubr.bf16.gmra.mxu0 %v3046
      %v3265 = vpop.f32.mrf.mxu0
      %v3266 = vadd.f32 0.0, %v3265
      %v3267 = vpop.f32.mrf.mxu0
      %v3268 = vpop.f32.mrf.mxu0
      %v3269 = vadd.f32 0.0, %v3268
      %v3270 = vpop.f32.mrf.mxu0
      %3271 = vmatprep.mubr.bf16.mxu0 0
      %3272 = vmatmul.mubr.bf16.gmra.mxu0 %v3054
      %v3273 = vpop.f32.mrf.mxu0
      %v3274 = vadd.f32 0.0, %v3273
      %v3275 = vpop.f32.mrf.mxu0
      %v3276 = vpop.f32.mrf.mxu0
      %v3277 = vadd.f32 0.0, %v3276
      %v3278 = vpop.f32.mrf.mxu0
      %3279 = vdwg.mxu0
      %v3283 = vunpack.c.l.b16 %v2769
      %v3284 = vunpack.c.l.b16 %v2770
      %v3285 = vunpack.c.l.b16 %v2801
      %v3286 = vpack.c.b16 %v3284, %v3283
      %v3287 = vpack.c.b16 %v3285, %v3285
      %v3289 = vshrl.u32 %v3286, 16
      %v3291 = vshll.u32 %v3286, 16
      %v3293 = vrot.slane %v3291, 1
      %v3294 = vor.u32 %v3289, %v3293
      %v3295 = vsel %vm2922, %v3294, %v2928
      %v3297 = vshll.u32 %v3287, 16
      %v3299 = vrot.slane %v3297, 1
      %v3300 = vsel %vm2922, %v3041, %v3299
      %v3319 = vunpack.c.l.b16 %v2803
      %v3320 = vunpack.c.l.b16 %v2804
      %v3321 = vunpack.c.l.b16 %v2805
      %v3322 = vunpack.c.l.b16 %v2806
      %v3323 = vunpack.c.l.b16 %v2807
      %v3324 = vunpack.c.l.b16 %v2808
      %v3325 = vunpack.c.l.b16 %v2809
      %v3326 = vunpack.c.l.b16 %v2810
      %v3327 = vunpack.c.l.b16 %v2811
      %v3328 = vunpack.c.l.b16 %v2812
      %v3329 = vunpack.c.l.b16 %v2813
      %v3330 = vunpack.c.l.b16 %v2814
      %v3331 = vunpack.c.l.b16 %v2815
      %v3332 = vunpack.c.l.b16 %v2816
      %v3333 = vunpack.c.l.b16 %v2817
      %v3334 = vunpack.c.l.b16 %v2818
      %v3335 = vpack.c.b16 %v3320, %v3319
      %v3336 = vpack.c.b16 %v3322, %v3321
      %v3337 = vpack.c.b16 %v3324, %v3323
      %v3338 = vpack.c.b16 %v3326, %v3325
      %v3339 = vpack.c.b16 %v3328, %v3327
      %v3340 = vpack.c.b16 %v3330, %v3329
      %v3341 = vpack.c.b16 %v3332, %v3331
      %v3342 = vpack.c.b16 %v3334, %v3333
      %3351 = vmatprep.subr.bf16.mxu0 0
      %3352 = vmatpush1.bf16.msra.mxu0 %v3342
      %3353 = vmatprep.subr.bf16.mxu0 0
      %3354 = vmatpush1.bf16.msra.mxu0 %v3341
      %3355 = vmatprep.subr.bf16.mxu0 0
      %3356 = vmatpush1.bf16.msra.mxu0 %v3340
      %3357 = vmatprep.subr.bf16.mxu0 0
      %3358 = vmatpush1.bf16.msra.mxu0 %v3339
      %3359 = vmatprep.subr.bf16.mxu0 0
      %3360 = vmatpush1.bf16.msra.mxu0 %v3338
      %3361 = vmatprep.subr.bf16.mxu0 0
      %3362 = vmatpush1.bf16.msra.mxu0 %v3337
      %3363 = vmatprep.subr.bf16.mxu0 0
      %3364 = vmatpush1.bf16.msra.mxu0 %v3336
      %3365 = vmatprep.subr.bf16.mxu0 0
      %3366 = vmatpush1.bf16.msra.mxu0 %v3335
      %3367 = vmatprep.subr.bf16.mxu0 0
      %3368 = vmatpush2.bf16.msra.mxu0 0
      %3369 = vmatprep.subr.bf16.mxu0 0
      %3370 = vmatpush2.bf16.msra.mxu0 0
      %3371 = vmatprep.subr.bf16.mxu0 0
      %3372 = vmatpush2.bf16.msra.mxu0 0
      %3373 = vmatprep.subr.bf16.mxu0 0
      %3374 = vmatpush2.bf16.msra.mxu0 0
      %3375 = vmatprep.subr.bf16.mxu0 0
      %3376 = vmatpush2.bf16.msra.mxu0 0
      %3377 = vmatprep.subr.bf16.mxu0 0
      %3378 = vmatpush2.bf16.msra.mxu0 0
      %3379 = vmatprep.subr.bf16.mxu0 0
      %3380 = vmatpush2.bf16.msra.mxu0 0
      %3381 = vmatprep.subr.bf16.mxu0 0
      %3382 = vmatpush2.bf16.msra.mxu0 0
      %3383 = vmatprep.mubr.bf16.mxu0 0
      %3384 = vmatmul.mubr.bf16.gmra.mxu0 %v3295
      %v3385 = vpop.f32.mrf.mxu0
      %v3386 = vadd.f32 %v3154, %v3385
      %v3387 = vpop.f32.mrf.mxu0
      %v3388 = vpop.f32.mrf.mxu0
      %v3389 = vadd.f32 %v3157, %v3388
      %v3390 = vpop.f32.mrf.mxu0
      %3391 = vmatprep.mubr.bf16.mxu0 0
      %3392 = vmatmul.mubr.bf16.gmra.mxu0 %v2934
      %v3393 = vpop.f32.mrf.mxu0
      %v3394 = vadd.f32 %v3162, %v3393
      %v3395 = vpop.f32.mrf.mxu0
      %v3396 = vpop.f32.mrf.mxu0
      %v3397 = vadd.f32 %v3165, %v3396
      %v3398 = vpop.f32.mrf.mxu0
      %3399 = vmatprep.mubr.bf16.mxu0 0
      %3400 = vmatmul.mubr.bf16.gmra.mxu0 %v2942
      %v3401 = vpop.f32.mrf.mxu0
      %v3402 = vadd.f32 %v3170, %v3401
      %v3403 = vpop.f32.mrf.mxu0
      %v3404 = vpop.f32.mrf.mxu0
      %v3405 = vadd.f32 %v3173, %v3404
      %v3406 = vpop.f32.mrf.mxu0
      %3407 = vmatprep.mubr.bf16.mxu0 0
      %3408 = vmatmul.mubr.bf16.gmra.mxu0 %v2950
      %v3409 = vpop.f32.mrf.mxu0
      %v3410 = vadd.f32 %v3178, %v3409
      %v3411 = vpop.f32.mrf.mxu0
      %v3412 = vpop.f32.mrf.mxu0
      %v3413 = vadd.f32 %v3181, %v3412
      %v3414 = vpop.f32.mrf.mxu0
      %3415 = vmatprep.mubr.bf16.mxu0 0
      %3416 = vmatmul.mubr.bf16.gmra.mxu0 %v2958
      %v3417 = vpop.f32.mrf.mxu0
      %v3418 = vadd.f32 %v3186, %v3417
      %v3419 = vpop.f32.mrf.mxu0
      %v3420 = vpop.f32.mrf.mxu0
      %v3421 = vadd.f32 %v3189, %v3420
      %v3422 = vpop.f32.mrf.mxu0
      %3423 = vmatprep.mubr.bf16.mxu0 0
      %3424 = vmatmul.mubr.bf16.gmra.mxu0 %v2966
      %v3425 = vpop.f32.mrf.mxu0
      %v3426 = vadd.f32 %v3194, %v3425
      %v3427 = vpop.f32.mrf.mxu0
      %v3428 = vpop.f32.mrf.mxu0
      %v3429 = vadd.f32 %v3197, %v3428
      %v3430 = vpop.f32.mrf.mxu0
      %3431 = vmatprep.mubr.bf16.mxu0 0
      %3432 = vmatmul.mubr.bf16.gmra.mxu0 %v2974
      %v3433 = vpop.f32.mrf.mxu0
      %v3434 = vadd.f32 %v3202, %v3433
      %v3435 = vpop.f32.mrf.mxu0
      %v3436 = vpop.f32.mrf.mxu0
      %v3437 = vadd.f32 %v3205, %v3436
      %v3438 = vpop.f32.mrf.mxu0
      %3439 = vmatprep.mubr.bf16.mxu0 0
      %3440 = vmatmul.mubr.bf16.gmra.mxu0 %v2982
      %v3441 = vpop.f32.mrf.mxu0
      %v3442 = vadd.f32 %v3210, %v3441
      %v3443 = vpop.f32.mrf.mxu0
      %v3444 = vpop.f32.mrf.mxu0
      %v3445 = vadd.f32 %v3213, %v3444
      %v3446 = vpop.f32.mrf.mxu0
      %3447 = vmatprep.mubr.bf16.mxu0 0
      %3448 = vmatmul.mubr.bf16.gmra.mxu0 %v2990
      %v3449 = vpop.f32.mrf.mxu0
      %v3450 = vadd.f32 %v3218, %v3449
      %v3451 = vpop.f32.mrf.mxu0
      %v3452 = vpop.f32.mrf.mxu0
      %v3453 = vadd.f32 %v3221, %v3452
      %v3454 = vpop.f32.mrf.mxu0
      %3455 = vmatprep.mubr.bf16.mxu0 0
      %3456 = vmatmul.mubr.bf16.gmra.mxu0 %v2998
      %v3457 = vpop.f32.mrf.mxu0
      %v3458 = vadd.f32 %v3226, %v3457
      %v3459 = vpop.f32.mrf.mxu0
      %v3460 = vpop.f32.mrf.mxu0
      %v3461 = vadd.f32 %v3229, %v3460
      %v3462 = vpop.f32.mrf.mxu0
      %3463 = vmatprep.mubr.bf16.mxu0 0
      %3464 = vmatmul.mubr.bf16.gmra.mxu0 %v3006
      %v3465 = vpop.f32.mrf.mxu0
      %v3466 = vadd.f32 %v3234, %v3465
      %v3467 = vpop.f32.mrf.mxu0
      %v3468 = vpop.f32.mrf.mxu0
      %v3469 = vadd.f32 %v3237, %v3468
      %v3470 = vpop.f32.mrf.mxu0
      %3471 = vmatprep.mubr.bf16.mxu0 0
      %3472 = vmatmul.mubr.bf16.gmra.mxu0 %v3014
      %v3473 = vpop.f32.mrf.mxu0
      %v3474 = vadd.f32 %v3242, %v3473
      %v3475 = vpop.f32.mrf.mxu0
      %v3476 = vpop.f32.mrf.mxu0
      %v3477 = vadd.f32 %v3245, %v3476
      %v3478 = vpop.f32.mrf.mxu0
      %3479 = vmatprep.mubr.bf16.mxu0 0
      %3480 = vmatmul.mubr.bf16.gmra.mxu0 %v3022
      %v3481 = vpop.f32.mrf.mxu0
      %v3482 = vadd.f32 %v3250, %v3481
      %v3483 = vpop.f32.mrf.mxu0
      %v3484 = vpop.f32.mrf.mxu0
      %v3485 = vadd.f32 %v3253, %v3484
      %v3486 = vpop.f32.mrf.mxu0
      %3487 = vmatprep.mubr.bf16.mxu0 0
      %3488 = vmatmul.mubr.bf16.gmra.mxu0 %v3030
      %v3489 = vpop.f32.mrf.mxu0
      %v3490 = vadd.f32 %v3258, %v3489
      %v3491 = vpop.f32.mrf.mxu0
      %v3492 = vpop.f32.mrf.mxu0
      %v3493 = vadd.f32 %v3261, %v3492
      %v3494 = vpop.f32.mrf.mxu0
      %3495 = vmatprep.mubr.bf16.mxu0 0
      %3496 = vmatmul.mubr.bf16.gmra.mxu0 %v3038
      %v3497 = vpop.f32.mrf.mxu0
      %v3498 = vadd.f32 %v3266, %v3497
      %v3499 = vpop.f32.mrf.mxu0
      %v3500 = vpop.f32.mrf.mxu0
      %v3501 = vadd.f32 %v3269, %v3500
      %v3502 = vpop.f32.mrf.mxu0
      %3503 = vmatprep.mubr.bf16.mxu0 0
      %3504 = vmatmul.mubr.bf16.gmra.mxu0 %v3300
      %v3505 = vpop.f32.mrf.mxu0
      %v3506 = vadd.f32 %v3274, %v3505
      %v3507 = vpop.f32.mrf.mxu0
      %v3508 = vpop.f32.mrf.mxu0
      %v3509 = vadd.f32 %v3277, %v3508
      %v3510 = vpop.f32.mrf.mxu0
      %3511 = vdwg.mxu0
      %v3512 = vld [vmem:[#allocation2 + $0x18] sm:$0xf]
      %v3513 = vld [vmem:[#allocation2 + $0x1c] sm:$0xf]
      %v3514 = vld [vmem:[#allocation2 + $0x20] sm:$0xf]
      %v3515 = vld [vmem:[#allocation2 + $0x24] sm:$0xf]
      %v3516 = vld [vmem:[#allocation2 + $0x28] sm:$0xf]
      %v3517 = vld [vmem:[#allocation2 + $0x2c] sm:$0xf]
      %v3518 = vld [vmem:[#allocation2 + $0x30] sm:$0xf]
      %v3519 = vld [vmem:[#allocation2 + $0x34] sm:$0xf]
      %v3520 = vld [vmem:[#allocation2 + $0x38] sm:$0xf]
      %v3521 = vld [vmem:[#allocation2 + $0x3c] sm:$0xf]
      %v3522 = vld [vmem:[#allocation2 + $0x40] sm:$0xf]
      %v3523 = vld [vmem:[#allocation2 + $0x44] sm:$0xf]
      %v3524 = vld [vmem:[#allocation2 + $0x48] sm:$0xf]
      %v3525 = vld [vmem:[#allocation2 + $0x4c] sm:$0xf]
      %v3526 = vld [vmem:[#allocation2 + $0x50] sm:$0xf]
      %v3527 = vld [vmem:[#allocation2 + $0x54] sm:$0xf]
      %v3528 = vld [vmem:[#allocation2 + $0x58] sm:$0xf]
      %v3529 = vld [vmem:[#allocation2 + $0x5c] sm:$0xf]
      %v3530 = vld [vmem:[#allocation2 + $0x60] sm:$0xf]
      %v3531 = vld [vmem:[#allocation2 + $0x64] sm:$0xf]
      %v3532 = vld [vmem:[#allocation2 + $0x68] sm:$0xf]
      %v3533 = vld [vmem:[#allocation2 + $0x6c] sm:$0xf]
      %v3534 = vld [vmem:[#allocation2 + $0x70] sm:$0xf]
      %v3535 = vld [vmem:[#allocation2 + $0x74] sm:$0xf]
      %v3536 = vld [vmem:[#allocation2 + $0x78] sm:$0xf]
      %v3537 = vld [vmem:[#allocation2 + $0x7c] sm:$0xf]
      %v3538 = vld [vmem:[#allocation2 + $0x80] sm:$0xf]
      %v3539 = vld [vmem:[#allocation2 + $0x84] sm:$0xf]
      %v3540 = vld [vmem:[#allocation2 + $0x88] sm:$0xf]
      %v3541 = vld [vmem:[#allocation2 + $0x8c] sm:$0xf]
      %v3542 = vld [vmem:[#allocation2 + $0x90] sm:$0xf]
      %v3543 = vld [vmem:[#allocation2 + $0x94] sm:$0xf]
      %v3544 = vld [vmem:[#allocation2 + $0x98] sm:$0x1]
      %s3545 = scalar_lea.vmem %s1, 512
      %v3546 = vld [vmem:[%s3545] sm:$0xf]
      %v3547 = vld [vmem:[%s3545 + $0x4] sm:$0xf]
      %v3548 = vld [vmem:[%s3545 + $0x8] sm:$0xf]
      %v3549 = vld [vmem:[%s3545 + $0xc] sm:$0xf]
      %v3550 = vld [vmem:[%s3545 + $0x10] sm:$0xf]
      %v3551 = vld [vmem:[%s3545 + $0x14] sm:$0xf]
      %v3552 = vld [vmem:[%s3545 + $0x18] sm:$0xf]
      %v3553 = vld [vmem:[%s3545 + $0x1c] sm:$0xf]
      %v3554 = vld [vmem:[%s3545 + $0x20] sm:$0xf]
      %v3555 = vld [vmem:[%s3545 + $0x24] sm:$0xf]
      %v3556 = vld [vmem:[%s3545 + $0x28] sm:$0xf]
      %v3557 = vld [vmem:[%s3545 + $0x2c] sm:$0xf]
      %v3558 = vld [vmem:[%s3545 + $0x30] sm:$0xf]
      %v3559 = vld [vmem:[%s3545 + $0x34] sm:$0xf]
      %v3560 = vld [vmem:[%s3545 + $0x38] sm:$0xf]
      %v3561 = vld [vmem:[%s3545 + $0x3c] sm:$0xf]
      %v3595 = vunpack.c.l.b16 %v3512
      %v3596 = vunpack.c.l.b16 %v3513
      %v3597 = vunpack.c.l.b16 %v3514
      %v3598 = vunpack.c.l.b16 %v3515
      %v3599 = vunpack.c.l.b16 %v3516
      %v3600 = vunpack.c.l.b16 %v3517
      %v3601 = vunpack.c.l.b16 %v3518
      %v3602 = vunpack.c.l.b16 %v3519
      %v3603 = vunpack.c.l.b16 %v3520
      %v3604 = vunpack.c.l.b16 %v3521
      %v3605 = vunpack.c.l.b16 %v3522
      %v3606 = vunpack.c.l.b16 %v3523
      %v3607 = vunpack.c.l.b16 %v3524
      %v3608 = vunpack.c.l.b16 %v3525
      %v3609 = vunpack.c.l.b16 %v3526
      %v3610 = vunpack.c.l.b16 %v3527
      %v3611 = vunpack.c.l.b16 %v3528
      %v3612 = vunpack.c.l.b16 %v3529
      %v3613 = vunpack.c.l.b16 %v3530
      %v3614 = vunpack.c.l.b16 %v3531
      %v3615 = vunpack.c.l.b16 %v3532
      %v3616 = vunpack.c.l.b16 %v3533
      %v3617 = vunpack.c.l.b16 %v3534
      %v3618 = vunpack.c.l.b16 %v3535
      %v3619 = vunpack.c.l.b16 %v3536
      %v3620 = vunpack.c.l.b16 %v3537
      %v3621 = vunpack.c.l.b16 %v3538
      %v3622 = vunpack.c.l.b16 %v3539
      %v3623 = vunpack.c.l.b16 %v3540
      %v3624 = vunpack.c.l.b16 %v3541
      %v3625 = vunpack.c.l.b16 %v3542
      %v3626 = vunpack.c.l.b16 %v3543
      %v3627 = vunpack.c.l.b16 %v3544
      %v3628 = vpack.c.b16 %v3596, %v3595
      %v3629 = vpack.c.b16 %v3598, %v3597
      %v3630 = vpack.c.b16 %v3600, %v3599
      %v3631 = vpack.c.b16 %v3602, %v3601
      %v3632 = vpack.c.b16 %v3604, %v3603
      %v3633 = vpack.c.b16 %v3606, %v3605
      %v3634 = vpack.c.b16 %v3608, %v3607
      %v3635 = vpack.c.b16 %v3610, %v3609
      %v3636 = vpack.c.b16 %v3612, %v3611
      %v3637 = vpack.c.b16 %v3614, %v3613
      %v3638 = vpack.c.b16 %v3616, %v3615
      %v3639 = vpack.c.b16 %v3618, %v3617
      %v3640 = vpack.c.b16 %v3620, %v3619
      %v3641 = vpack.c.b16 %v3622, %v3621
      %v3642 = vpack.c.b16 %v3624, %v3623
      %v3643 = vpack.c.b16 %v3626, %v3625
      %v3644 = vpack.c.b16 %v3627, %v3627
      %v3646 = vshrl.u32 %v3628, 16
      %v3648 = vshll.u32 %v3628, 16
      %v3650 = vrot.slane %v3648, 1
      %v3651 = vor.u32 %v3646, %v3650
      %v3653 = vshll.u32 %v3629, 16
      %v3655 = vrot.slane %v3653, 1
      %v3656 = vsel %vm2922, %v3651, %v3655
      %v3657 = vshrl.u32 %v3629, 16
      %v3659 = vor.u32 %v3657, %v3655
      %v3661 = vshll.u32 %v3630, 16
      %v3663 = vrot.slane %v3661, 1
      %v3664 = vsel %vm2922, %v3659, %v3663
      %v3665 = vshrl.u32 %v3630, 16
      %v3667 = vor.u32 %v3665, %v3663
      %v3669 = vshll.u32 %v3631, 16
      %v3671 = vrot.slane %v3669, 1
      %v3672 = vsel %vm2922, %v3667, %v3671
      %v3673 = vshrl.u32 %v3631, 16
      %v3675 = vor.u32 %v3673, %v3671
      %v3677 = vshll.u32 %v3632, 16
      %v3679 = vrot.slane %v3677, 1
      %v3680 = vsel %vm2922, %v3675, %v3679
      %v3681 = vshrl.u32 %v3632, 16
      %v3683 = vor.u32 %v3681, %v3679
      %v3685 = vshll.u32 %v3633, 16
      %v3687 = vrot.slane %v3685, 1
      %v3688 = vsel %vm2922, %v3683, %v3687
      %v3689 = vshrl.u32 %v3633, 16
      %v3691 = vor.u32 %v3689, %v3687
      %v3693 = vshll.u32 %v3634, 16
      %v3695 = vrot.slane %v3693, 1
      %v3696 = vsel %vm2922, %v3691, %v3695
      %v3697 = vshrl.u32 %v3634, 16
      %v3699 = vor.u32 %v3697, %v3695
      %v3701 = vshll.u32 %v3635, 16
      %v3703 = vrot.slane %v3701, 1
      %v3704 = vsel %vm2922, %v3699, %v3703
      %v3705 = vshrl.u32 %v3635, 16
      %v3707 = vor.u32 %v3705, %v3703
      %v3709 = vshll.u32 %v3636, 16
      %v3711 = vrot.slane %v3709, 1
      %v3712 = vsel %vm2922, %v3707, %v3711
      %v3713 = vshrl.u32 %v3636, 16
      %v3715 = vor.u32 %v3713, %v3711
      %v3717 = vshll.u32 %v3637, 16
      %v3719 = vrot.slane %v3717, 1
      %v3720 = vsel %vm2922, %v3715, %v3719
      %v3721 = vshrl.u32 %v3637, 16
      %v3723 = vor.u32 %v3721, %v3719
      %v3725 = vshll.u32 %v3638, 16
      %v3727 = vrot.slane %v3725, 1
      %v3728 = vsel %vm2922, %v3723, %v3727
      %v3729 = vshrl.u32 %v3638, 16
      %v3731 = vor.u32 %v3729, %v3727
      %v3733 = vshll.u32 %v3639, 16
      %v3735 = vrot.slane %v3733, 1
      %v3736 = vsel %vm2922, %v3731, %v3735
      %v3737 = vshrl.u32 %v3639, 16
      %v3739 = vor.u32 %v3737, %v3735
      %v3741 = vshll.u32 %v3640, 16
      %v3743 = vrot.slane %v3741, 1
      %v3744 = vsel %vm2922, %v3739, %v3743
      %v3745 = vshrl.u32 %v3640, 16
      %v3747 = vor.u32 %v3745, %v3743
      %v3749 = vshll.u32 %v3641, 16
      %v3751 = vrot.slane %v3749, 1
      %v3752 = vsel %vm2922, %v3747, %v3751
      %v3753 = vshrl.u32 %v3641, 16
      %v3755 = vor.u32 %v3753, %v3751
      %v3757 = vshll.u32 %v3642, 16
      %v3759 = vrot.slane %v3757, 1
      %v3760 = vsel %vm2922, %v3755, %v3759
      %v3761 = vshrl.u32 %v3642, 16
      %v3763 = vor.u32 %v3761, %v3759
      %v3765 = vshll.u32 %v3643, 16
      %v3767 = vrot.slane %v3765, 1
      %v3768 = vsel %vm2922, %v3763, %v3767
      %v3769 = vshrl.u32 %v3643, 16
      %v3771 = vor.u32 %v3769, %v3767
      %v3773 = vshll.u32 %v3644, 16
      %v3775 = vrot.slane %v3773, 1
      %v3776 = vsel %vm2922, %v3771, %v3775
      %v3809 = vunpack.c.l.b16 %v3546
      %v3810 = vunpack.c.l.b16 %v3547
      %v3811 = vunpack.c.l.b16 %v3548
      %v3812 = vunpack.c.l.b16 %v3549
      %v3813 = vunpack.c.l.b16 %v3550
      %v3814 = vunpack.c.l.b16 %v3551
      %v3815 = vunpack.c.l.b16 %v3552
      %v3816 = vunpack.c.l.b16 %v3553
      %v3817 = vunpack.c.l.b16 %v3554
      %v3818 = vunpack.c.l.b16 %v3555
      %v3819 = vunpack.c.l.b16 %v3556
      %v3820 = vunpack.c.l.b16 %v3557
      %v3821 = vunpack.c.l.b16 %v3558
      %v3822 = vunpack.c.l.b16 %v3559
      %v3823 = vunpack.c.l.b16 %v3560
      %v3824 = vunpack.c.l.b16 %v3561
      %v3825 = vpack.c.b16 %v3810, %v3809
      %v3826 = vpack.c.b16 %v3812, %v3811
      %v3827 = vpack.c.b16 %v3814, %v3813
      %v3828 = vpack.c.b16 %v3816, %v3815
      %v3829 = vpack.c.b16 %v3818, %v3817
      %v3830 = vpack.c.b16 %v3820, %v3819
      %v3831 = vpack.c.b16 %v3822, %v3821
      %v3832 = vpack.c.b16 %v3824, %v3823
      %3841 = vmatprep.subr.bf16.mxu0 0
      %3842 = vmatpush1.bf16.msra.mxu0 %v3832
      %3843 = vmatprep.subr.bf16.mxu0 0
      %3844 = vmatpush1.bf16.msra.mxu0 %v3831
      %3845 = vmatprep.subr.bf16.mxu0 0
      %3846 = vmatpush1.bf16.msra.mxu0 %v3830
      %3847 = vmatprep.subr.bf16.mxu0 0
      %3848 = vmatpush1.bf16.msra.mxu0 %v3829
      %3849 = vmatprep.subr.bf16.mxu0 0
      %3850 = vmatpush1.bf16.msra.mxu0 %v3828
      %3851 = vmatprep.subr.bf16.mxu0 0
      %3852 = vmatpush1.bf16.msra.mxu0 %v3827
      %3853 = vmatprep.subr.bf16.mxu0 0
      %3854 = vmatpush1.bf16.msra.mxu0 %v3826
      %3855 = vmatprep.subr.bf16.mxu0 0
      %3856 = vmatpush1.bf16.msra.mxu0 %v3825
      %3857 = vmatprep.subr.bf16.mxu0 0
      %3858 = vmatpush2.bf16.msra.mxu0 0
      %3859 = vmatprep.subr.bf16.mxu0 0
      %3860 = vmatpush2.bf16.msra.mxu0 0
      %3861 = vmatprep.subr.bf16.mxu0 0
      %3862 = vmatpush2.bf16.msra.mxu0 0
      %3863 = vmatprep.subr.bf16.mxu0 0
      %3864 = vmatpush2.bf16.msra.mxu0 0
      %3865 = vmatprep.subr.bf16.mxu0 0
      %3866 = vmatpush2.bf16.msra.mxu0 0
      %3867 = vmatprep.subr.bf16.mxu0 0
      %3868 = vmatpush2.bf16.msra.mxu0 0
      %3869 = vmatprep.subr.bf16.mxu0 0
      %3870 = vmatpush2.bf16.msra.mxu0 0
      %3871 = vmatprep.subr.bf16.mxu0 0
      %3872 = vmatpush2.bf16.msra.mxu0 0
      %3873 = vmatprep.mubr.bf16.mxu0 0
      %3874 = vmatmul.mubr.bf16.gmra.mxu0 %v3656
      %v3875 = vpop.f32.mrf.mxu0
      %v3876 = vadd.f32 0.0, %v3875
      %v3877 = vpop.f32.mrf.mxu0
      %v3878 = vpop.f32.mrf.mxu0
      %v3879 = vadd.f32 0.0, %v3878
      %v3880 = vpop.f32.mrf.mxu0
      %3881 = vmatprep.mubr.bf16.mxu0 0
      %3882 = vmatmul.mubr.bf16.gmra.mxu0 %v3664
      %v3883 = vpop.f32.mrf.mxu0
      %v3884 = vadd.f32 0.0, %v3883
      %v3885 = vpop.f32.mrf.mxu0
      %v3886 = vpop.f32.mrf.mxu0
      %v3887 = vadd.f32 0.0, %v3886
      %v3888 = vpop.f32.mrf.mxu0
      %3889 = vmatprep.mubr.bf16.mxu0 0
      %3890 = vmatmul.mubr.bf16.gmra.mxu0 %v3672
      %v3891 = vpop.f32.mrf.mxu0
      %v3892 = vadd.f32 0.0, %v3891
      %v3893 = vpop.f32.mrf.mxu0
      %v3894 = vpop.f32.mrf.mxu0
      %v3895 = vadd.f32 0.0, %v3894
      %v3896 = vpop.f32.mrf.mxu0
      %3897 = vmatprep.mubr.bf16.mxu0 0
      %3898 = vmatmul.mubr.bf16.gmra.mxu0 %v3680
      %v3899 = vpop.f32.mrf.mxu0
      %v3900 = vadd.f32 0.0, %v3899
      %v3901 = vpop.f32.mrf.mxu0
      %v3902 = vpop.f32.mrf.mxu0
      %v3903 = vadd.f32 0.0, %v3902
      %v3904 = vpop.f32.mrf.mxu0
      %3905 = vmatprep.mubr.bf16.mxu0 0
      %3906 = vmatmul.mubr.bf16.gmra.mxu0 %v3688
      %v3907 = vpop.f32.mrf.mxu0
      %v3908 = vadd.f32 0.0, %v3907
      %v3909 = vpop.f32.mrf.mxu0
      %v3910 = vpop.f32.mrf.mxu0
      %v3911 = vadd.f32 0.0, %v3910
      %v3912 = vpop.f32.mrf.mxu0
      %3913 = vmatprep.mubr.bf16.mxu0 0
      %3914 = vmatmul.mubr.bf16.gmra.mxu0 %v3696
      %v3915 = vpop.f32.mrf.mxu0
      %v3916 = vadd.f32 0.0, %v3915
      %v3917 = vpop.f32.mrf.mxu0
      %v3918 = vpop.f32.mrf.mxu0
      %v3919 = vadd.f32 0.0, %v3918
      %v3920 = vpop.f32.mrf.mxu0
      %3921 = vmatprep.mubr.bf16.mxu0 0
      %3922 = vmatmul.mubr.bf16.gmra.mxu0 %v3704
      %v3923 = vpop.f32.mrf.mxu0
      %v3924 = vadd.f32 0.0, %v3923
      %v3925 = vpop.f32.mrf.mxu0
      %v3926 = vpop.f32.mrf.mxu0
      %v3927 = vadd.f32 0.0, %v3926
      %v3928 = vpop.f32.mrf.mxu0
      %3929 = vmatprep.mubr.bf16.mxu0 0
      %3930 = vmatmul.mubr.bf16.gmra.mxu0 %v3712
      %v3931 = vpop.f32.mrf.mxu0
      %v3932 = vadd.f32 0.0, %v3931
      %v3933 = vpop.f32.mrf.mxu0
      %v3934 = vpop.f32.mrf.mxu0
      %v3935 = vadd.f32 0.0, %v3934
      %v3936 = vpop.f32.mrf.mxu0
      %3937 = vmatprep.mubr.bf16.mxu0 0
      %3938 = vmatmul.mubr.bf16.gmra.mxu0 %v3720
      %v3939 = vpop.f32.mrf.mxu0
      %v3940 = vadd.f32 0.0, %v3939
      %v3941 = vpop.f32.mrf.mxu0
      %v3942 = vpop.f32.mrf.mxu0
      %v3943 = vadd.f32 0.0, %v3942
      %v3944 = vpop.f32.mrf.mxu0
      %3945 = vmatprep.mubr.bf16.mxu0 0
      %3946 = vmatmul.mubr.bf16.gmra.mxu0 %v3728
      %v3947 = vpop.f32.mrf.mxu0
      %v3948 = vadd.f32 0.0, %v3947
      %v3949 = vpop.f32.mrf.mxu0
      %v3950 = vpop.f32.mrf.mxu0
      %v3951 = vadd.f32 0.0, %v3950
      %v3952 = vpop.f32.mrf.mxu0
      %3953 = vmatprep.mubr.bf16.mxu0 0
      %3954 = vmatmul.mubr.bf16.gmra.mxu0 %v3736
      %v3955 = vpop.f32.mrf.mxu0
      %v3956 = vadd.f32 0.0, %v3955
      %v3957 = vpop.f32.mrf.mxu0
      %v3958 = vpop.f32.mrf.mxu0
      %v3959 = vadd.f32 0.0, %v3958
      %v3960 = vpop.f32.mrf.mxu0
      %3961 = vmatprep.mubr.bf16.mxu0 0
      %3962 = vmatmul.mubr.bf16.gmra.mxu0 %v3744
      %v3963 = vpop.f32.mrf.mxu0
      %v3964 = vadd.f32 0.0, %v3963
      %v3965 = vpop.f32.mrf.mxu0
      %v3966 = vpop.f32.mrf.mxu0
      %v3967 = vadd.f32 0.0, %v3966
      %v3968 = vpop.f32.mrf.mxu0
      %3969 = vmatprep.mubr.bf16.mxu0 0
      %3970 = vmatmul.mubr.bf16.gmra.mxu0 %v3752
      %v3971 = vpop.f32.mrf.mxu0
      %v3972 = vadd.f32 0.0, %v3971
      %v3973 = vpop.f32.mrf.mxu0
      %v3974 = vpop.f32.mrf.mxu0
      %v3975 = vadd.f32 0.0, %v3974
      %v3976 = vpop.f32.mrf.mxu0
      %3977 = vmatprep.mubr.bf16.mxu0 0
      %3978 = vmatmul.mubr.bf16.gmra.mxu0 %v3760
      %v3979 = vpop.f32.mrf.mxu0
      %v3980 = vadd.f32 0.0, %v3979
      %v3981 = vpop.f32.mrf.mxu0
      %v3982 = vpop.f32.mrf.mxu0
      %v3983 = vadd.f32 0.0, %v3982
      %v3984 = vpop.f32.mrf.mxu0
      %3985 = vmatprep.mubr.bf16.mxu0 0
      %3986 = vmatmul.mubr.bf16.gmra.mxu0 %v3768
      %v3987 = vpop.f32.mrf.mxu0
      %v3988 = vadd.f32 0.0, %v3987
      %v3989 = vpop.f32.mrf.mxu0
      %v3990 = vpop.f32.mrf.mxu0
      %v3991 = vadd.f32 0.0, %v3990
      %v3992 = vpop.f32.mrf.mxu0
      %3993 = vmatprep.mubr.bf16.mxu0 0
      %3994 = vmatmul.mubr.bf16.gmra.mxu0 %v3776
      %v3995 = vpop.f32.mrf.mxu0
      %v3996 = vadd.f32 0.0, %v3995
      %v3997 = vpop.f32.mrf.mxu0
      %v3998 = vpop.f32.mrf.mxu0
      %v3999 = vadd.f32 0.0, %v3998
      %v4000 = vpop.f32.mrf.mxu0
      %4001 = vdwg.mxu0
      %v4002 = vadd.f32 %v3386, %v3876
      %v4003 = vadd.f32 %v3389, %v3879
      %v4004 = vadd.f32 %v3394, %v3884
      %v4005 = vadd.f32 %v3397, %v3887
      %v4006 = vadd.f32 %v3402, %v3892
      %v4007 = vadd.f32 %v3405, %v3895
      %v4008 = vadd.f32 %v3410, %v3900
      %v4009 = vadd.f32 %v3413, %v3903
      %v4010 = vadd.f32 %v3418, %v3908
      %v4011 = vadd.f32 %v3421, %v3911
      %v4012 = vadd.f32 %v3426, %v3916
      %v4013 = vadd.f32 %v3429, %v3919
      %v4014 = vadd.f32 %v3434, %v3924
      %v4015 = vadd.f32 %v3437, %v3927
      %v4016 = vadd.f32 %v3442, %v3932
      %v4017 = vadd.f32 %v3445, %v3935
      %v4018 = vadd.f32 %v3450, %v3940
      %v4019 = vadd.f32 %v3453, %v3943
      %v4020 = vadd.f32 %v3458, %v3948
      %v4021 = vadd.f32 %v3461, %v3951
      %v4022 = vadd.f32 %v3466, %v3956
      %v4023 = vadd.f32 %v3469, %v3959
      %v4024 = vadd.f32 %v3474, %v3964
      %v4025 = vadd.f32 %v3477, %v3967
      %v4026 = vadd.f32 %v3482, %v3972
      %v4027 = vadd.f32 %v3485, %v3975
      %v4028 = vadd.f32 %v3490, %v3980
      %v4029 = vadd.f32 %v3493, %v3983
      %v4030 = vadd.f32 %v3498, %v3988
      %v4031 = vadd.f32 %v3501, %v3991
      %v4032 = vadd.f32 %v3506, %v3996
      %v4033 = vadd.f32 %v3509, %v3999
      %v4034 = vmul.f32 %v4002, %v505
      %v4035 = vmul.f32 %v4003, %v506
      %v4036 = vmul.f32 %v4004, %v507
      %v4037 = vmul.f32 %v4005, %v508
      %v4038 = vmul.f32 %v4006, %v509
      %v4039 = vmul.f32 %v4007, %v510
      %v4040 = vmul.f32 %v4008, %v511
      %v4041 = vmul.f32 %v4009, %v512
      %v4042 = vmul.f32 %v4010, %v513
      %v4043 = vmul.f32 %v4011, %v514
      %v4044 = vmul.f32 %v4012, %v515
      %v4045 = vmul.f32 %v4013, %v516
      %v4046 = vmul.f32 %v4014, %v517
      %v4047 = vmul.f32 %v4015, %v518
      %v4048 = vmul.f32 %v4016, %v519
      %v4049 = vmul.f32 %v4017, %v520
      %v4050 = vmul.f32 %v4018, %v521
      %v4051 = vmul.f32 %v4019, %v522
      %v4052 = vmul.f32 %v4020, %v523
      %v4053 = vmul.f32 %v4021, %v524
      %v4054 = vmul.f32 %v4022, %v525
      %v4055 = vmul.f32 %v4023, %v526
      %v4056 = vmul.f32 %v4024, %v527
      %v4057 = vmul.f32 %v4025, %v528
      %v4058 = vmul.f32 %v4026, %v529
      %v4059 = vmul.f32 %v4027, %v530
      %v4060 = vmul.f32 %v4028, %v531
      %v4061 = vmul.f32 %v4029, %v532
      %v4062 = vmul.f32 %v4030, %v533
      %v4063 = vmul.f32 %v4031, %v534
      %v4064 = vmul.f32 %v4032, %v535
      %v4065 = vmul.f32 %v4033, %v536
      %v4066 = vadd.f32 %v2737, %v4034
      %v4067 = vadd.f32 %v2738, %v4035
      %v4068 = vadd.f32 %v2739, %v4036
      %v4069 = vadd.f32 %v2740, %v4037
      %v4070 = vadd.f32 %v2741, %v4038
      %v4071 = vadd.f32 %v2742, %v4039
      %v4072 = vadd.f32 %v2743, %v4040
      %v4073 = vadd.f32 %v2744, %v4041
      %v4074 = vadd.f32 %v2745, %v4042
      %v4075 = vadd.f32 %v2746, %v4043
      %v4076 = vadd.f32 %v2747, %v4044
      %v4077 = vadd.f32 %v2748, %v4045
      %v4078 = vadd.f32 %v2749, %v4046
      %v4079 = vadd.f32 %v2750, %v4047
      %v4080 = vadd.f32 %v2751, %v4048
      %v4081 = vadd.f32 %v2752, %v4049
      %v4082 = vadd.f32 %v2753, %v4050
      %v4083 = vadd.f32 %v2754, %v4051
      %v4084 = vadd.f32 %v2755, %v4052
      %v4085 = vadd.f32 %v2756, %v4053
      %v4086 = vadd.f32 %v2757, %v4054
      %v4087 = vadd.f32 %v2758, %v4055
      %v4088 = vadd.f32 %v2759, %v4056
      %v4089 = vadd.f32 %v2760, %v4057
      %v4090 = vadd.f32 %v2761, %v4058
      %v4091 = vadd.f32 %v2762, %v4059
      %v4092 = vadd.f32 %v2763, %v4060
      %v4093 = vadd.f32 %v2764, %v4061
      %v4094 = vadd.f32 %v2765, %v4062
      %v4095 = vadd.f32 %v2766, %v4063
      %v4096 = vadd.f32 %v2767, %v4064
      %v4097 = vadd.f32 %v2768, %v4065
      %v4098 = vld [vmem:[%s2] sm:$0x1]
      %v4100 = vlaneseq
      %v4101 = vshrl.u32 %v4100, 7
      %v4102 = vsub.s32 0, %v4101
      %v4103 = vrot.slane %v4098, %v4102
      %v4105 = vmul.f32 %v4066, %v4103
      %v4106 = vmul.f32 %v4067, %v4103
      %v4107 = vmul.f32 %v4068, %v4103
      %v4108 = vmul.f32 %v4069, %v4103
      %v4109 = vmul.f32 %v4070, %v4103
      %v4110 = vmul.f32 %v4071, %v4103
      %v4111 = vmul.f32 %v4072, %v4103
      %v4112 = vmul.f32 %v4073, %v4103
      %v4113 = vmul.f32 %v4074, %v4103
      %v4114 = vmul.f32 %v4075, %v4103
      %v4115 = vmul.f32 %v4076, %v4103
      %v4116 = vmul.f32 %v4077, %v4103
      %v4117 = vmul.f32 %v4078, %v4103
      %v4118 = vmul.f32 %v4079, %v4103
      %v4119 = vmul.f32 %v4080, %v4103
      %v4120 = vmul.f32 %v4081, %v4103
      %v4121 = vmul.f32 %v4082, %v4103
      %v4122 = vmul.f32 %v4083, %v4103
      %v4123 = vmul.f32 %v4084, %v4103
      %v4124 = vmul.f32 %v4085, %v4103
      %v4125 = vmul.f32 %v4086, %v4103
      %v4126 = vmul.f32 %v4087, %v4103
      %v4127 = vmul.f32 %v4088, %v4103
      %v4128 = vmul.f32 %v4089, %v4103
      %v4129 = vmul.f32 %v4090, %v4103
      %v4130 = vmul.f32 %v4091, %v4103
      %v4131 = vmul.f32 %v4092, %v4103
      %v4132 = vmul.f32 %v4093, %v4103
      %v4133 = vmul.f32 %v4094, %v4103
      %v4134 = vmul.f32 %v4095, %v4103
      %v4135 = vmul.f32 %v4096, %v4103
      %v4136 = vmul.f32 %v4097, %v4103
      %v4137 = vld [vmem:[%s3] sm:$0x1]
      %v4139 = vlaneseq
      %v4140 = vshrl.u32 %v4139, 7
      %v4141 = vsub.s32 0, %v4140
      %v4142 = vrot.slane %v4137, %v4141
      %v4144 = vadd.f32 %v4105, %v4142
      %v4145 = vadd.f32 %v4106, %v4142
      %v4146 = vadd.f32 %v4107, %v4142
      %v4147 = vadd.f32 %v4108, %v4142
      %v4148 = vadd.f32 %v4109, %v4142
      %v4149 = vadd.f32 %v4110, %v4142
      %v4150 = vadd.f32 %v4111, %v4142
      %v4151 = vadd.f32 %v4112, %v4142
      %v4152 = vadd.f32 %v4113, %v4142
      %v4153 = vadd.f32 %v4114, %v4142
      %v4154 = vadd.f32 %v4115, %v4142
      %v4155 = vadd.f32 %v4116, %v4142
      %v4156 = vadd.f32 %v4117, %v4142
      %v4157 = vadd.f32 %v4118, %v4142
      %v4158 = vadd.f32 %v4119, %v4142
      %v4159 = vadd.f32 %v4120, %v4142
      %v4160 = vadd.f32 %v4121, %v4142
      %v4161 = vadd.f32 %v4122, %v4142
      %v4162 = vadd.f32 %v4123, %v4142
      %v4163 = vadd.f32 %v4124, %v4142
      %v4164 = vadd.f32 %v4125, %v4142
      %v4165 = vadd.f32 %v4126, %v4142
      %v4166 = vadd.f32 %v4127, %v4142
      %v4167 = vadd.f32 %v4128, %v4142
      %v4168 = vadd.f32 %v4129, %v4142
      %v4169 = vadd.f32 %v4130, %v4142
      %v4170 = vadd.f32 %v4131, %v4142
      %v4171 = vadd.f32 %v4132, %v4142
      %v4172 = vadd.f32 %v4133, %v4142
      %v4173 = vadd.f32 %v4134, %v4142
      %v4174 = vadd.f32 %v4135, %v4142
      %v4175 = vadd.f32 %v4136, %v4142
      %v4176 = vmax.f32 %v4144, 0.0
      %v4177 = vmax.f32 %v4145, 0.0
      %v4178 = vmax.f32 %v4146, 0.0
      %v4179 = vmax.f32 %v4147, 0.0
      %v4180 = vmax.f32 %v4148, 0.0
      %v4181 = vmax.f32 %v4149, 0.0
      %v4182 = vmax.f32 %v4150, 0.0
      %v4183 = vmax.f32 %v4151, 0.0
      %v4184 = vmax.f32 %v4152, 0.0
      %v4185 = vmax.f32 %v4153, 0.0
      %v4186 = vmax.f32 %v4154, 0.0
      %v4187 = vmax.f32 %v4155, 0.0
      %v4188 = vmax.f32 %v4156, 0.0
      %v4189 = vmax.f32 %v4157, 0.0
      %v4190 = vmax.f32 %v4158, 0.0
      %v4191 = vmax.f32 %v4159, 0.0
      %v4192 = vmax.f32 %v4160, 0.0
      %v4193 = vmax.f32 %v4161, 0.0
      %v4194 = vmax.f32 %v4162, 0.0
      %v4195 = vmax.f32 %v4163, 0.0
      %v4196 = vmax.f32 %v4164, 0.0
      %v4197 = vmax.f32 %v4165, 0.0
      %v4198 = vmax.f32 %v4166, 0.0
      %v4199 = vmax.f32 %v4167, 0.0
      %v4200 = vmax.f32 %v4168, 0.0
      %v4201 = vmax.f32 %v4169, 0.0
      %v4202 = vmax.f32 %v4170, 0.0
      %v4203 = vmax.f32 %v4171, 0.0
      %v4204 = vmax.f32 %v4172, 0.0
      %v4205 = vmax.f32 %v4173, 0.0
      %v4206 = vmax.f32 %v4174, 0.0
      %v4207 = vmax.f32 %v4175, 0.0
      %v4208 = vpack.c.bf16 %v4177, %v4176
      %v4209 = vpack.c.bf16 %v4179, %v4178
      %v4210 = vpack.c.bf16 %v4181, %v4180
      %v4211 = vpack.c.bf16 %v4183, %v4182
      %v4212 = vpack.c.bf16 %v4185, %v4184
      %v4213 = vpack.c.bf16 %v4187, %v4186
      %v4214 = vpack.c.bf16 %v4189, %v4188
      %v4215 = vpack.c.bf16 %v4191, %v4190
      %v4216 = vpack.c.bf16 %v4193, %v4192
      %v4217 = vpack.c.bf16 %v4195, %v4194
      %v4218 = vpack.c.bf16 %v4197, %v4196
      %v4219 = vpack.c.bf16 %v4199, %v4198
      %v4220 = vpack.c.bf16 %v4201, %v4200
      %v4221 = vpack.c.bf16 %v4203, %v4202
      %v4222 = vpack.c.bf16 %v4205, %v4204
      %v4223 = vpack.c.bf16 %v4207, %v4206
      %4224 = vst [vmem:[#allocation3] sm:$0xf] 0
      %4225 = vst [vmem:[#allocation3 + $0x4] sm:$0xf] 0
      %4226 = vst [vmem:[#allocation3 + $0x8] sm:$0xf] 0
      %4227 = vst [vmem:[#allocation3 + $0xc] sm:$0xf] 0
      %4228 = vst [vmem:[#allocation3 + $0x90] sm:$0xf] 0
      %4229 = vst [vmem:[#allocation3 + $0x94] sm:$0xf] 0
      %4230 = vst [vmem:[#allocation3 + $0x98] sm:$0xf] 0
      %4231 = vst [vmem:[#allocation3 + $0x9c] sm:$0xf] 0
      %v4248 = vunpack.c.l.b16 %v4208
      %v4249 = vunpack.c.h.b16 %v4208
      %v4250 = vunpack.c.l.b16 %v4209
      %v4251 = vunpack.c.h.b16 %v4209
      %v4252 = vunpack.c.l.b16 %v4210
      %v4253 = vunpack.c.h.b16 %v4210
      %v4254 = vunpack.c.l.b16 %v4211
      %v4255 = vunpack.c.h.b16 %v4211
      %v4256 = vunpack.c.l.b16 %v4212
      %v4257 = vunpack.c.h.b16 %v4212
      %v4258 = vunpack.c.l.b16 %v4213
      %v4259 = vunpack.c.h.b16 %v4213
      %v4260 = vunpack.c.l.b16 %v4214
      %v4261 = vunpack.c.h.b16 %v4214
      %v4262 = vunpack.c.l.b16 %v4215
      %v4263 = vunpack.c.h.b16 %v4215
      %v4264 = vunpack.c.l.b16 %v4216
      %v4265 = vunpack.c.h.b16 %v4216
      %v4266 = vunpack.c.l.b16 %v4217
      %v4267 = vunpack.c.h.b16 %v4217
      %v4268 = vunpack.c.l.b16 %v4218
      %v4269 = vunpack.c.h.b16 %v4218
      %v4270 = vunpack.c.l.b16 %v4219
      %v4271 = vunpack.c.h.b16 %v4219
      %v4272 = vunpack.c.l.b16 %v4220
      %v4273 = vunpack.c.h.b16 %v4220
      %v4274 = vunpack.c.l.b16 %v4221
      %v4275 = vunpack.c.h.b16 %v4221
      %v4276 = vunpack.c.l.b16 %v4222
      %v4277 = vunpack.c.h.b16 %v4222
      %v4278 = vunpack.c.l.b16 %v4223
      %v4279 = vunpack.c.h.b16 %v4223
      %v4280 = vpack.c.b16 %v4248, %v4248
      %v4281 = vpack.c.b16 %v4249, %v4249
      %v4282 = vpack.c.b16 %v4250, %v4250
      %v4283 = vpack.c.b16 %v4251, %v4251
      %v4284 = vpack.c.b16 %v4252, %v4252
      %v4285 = vpack.c.b16 %v4253, %v4253
      %v4286 = vpack.c.b16 %v4254, %v4254
      %v4287 = vpack.c.b16 %v4255, %v4255
      %v4288 = vpack.c.b16 %v4256, %v4256
      %v4289 = vpack.c.b16 %v4257, %v4257
      %v4290 = vpack.c.b16 %v4258, %v4258
      %v4291 = vpack.c.b16 %v4259, %v4259
      %v4292 = vpack.c.b16 %v4260, %v4260
      %v4293 = vpack.c.b16 %v4261, %v4261
      %v4294 = vpack.c.b16 %v4262, %v4262
      %v4295 = vpack.c.b16 %v4263, %v4263
      %v4296 = vpack.c.b16 %v4264, %v4264
      %v4297 = vpack.c.b16 %v4265, %v4265
      %v4298 = vpack.c.b16 %v4266, %v4266
      %v4299 = vpack.c.b16 %v4267, %v4267
      %v4300 = vpack.c.b16 %v4268, %v4268
      %v4301 = vpack.c.b16 %v4269, %v4269
      %v4302 = vpack.c.b16 %v4270, %v4270
      %v4303 = vpack.c.b16 %v4271, %v4271
      %v4304 = vpack.c.b16 %v4272, %v4272
      %v4305 = vpack.c.b16 %v4273, %v4273
      %v4306 = vpack.c.b16 %v4274, %v4274
      %v4307 = vpack.c.b16 %v4275, %v4275
      %v4308 = vpack.c.b16 %v4276, %v4276
      %v4309 = vpack.c.b16 %v4277, %v4277
      %v4310 = vpack.c.b16 %v4278, %v4278
      %v4311 = vpack.c.b16 %v4279, %v4279
      %4344 = vst [vmem:[#allocation3 + $0x10] sm:$0xf] %v4280
      %4345 = vst [vmem:[#allocation3 + $0x14] sm:$0xf] %v4281
      %4346 = vst [vmem:[#allocation3 + $0x18] sm:$0xf] %v4282
      %4347 = vst [vmem:[#allocation3 + $0x1c] sm:$0xf] %v4283
      %4348 = vst [vmem:[#allocation3 + $0x20] sm:$0xf] %v4284
      %4349 = vst [vmem:[#allocation3 + $0x24] sm:$0xf] %v4285
      %4350 = vst [vmem:[#allocation3 + $0x28] sm:$0xf] %v4286
      %4351 = vst [vmem:[#allocation3 + $0x2c] sm:$0xf] %v4287
      %4352 = vst [vmem:[#allocation3 + $0x30] sm:$0xf] %v4288
      %4353 = vst [vmem:[#allocation3 + $0x34] sm:$0xf] %v4289
      %4354 = vst [vmem:[#allocation3 + $0x38] sm:$0xf] %v4290
      %4355 = vst [vmem:[#allocation3 + $0x3c] sm:$0xf] %v4291
      %4356 = vst [vmem:[#allocation3 + $0x40] sm:$0xf] %v4292
      %4357 = vst [vmem:[#allocation3 + $0x44] sm:$0xf] %v4293
      %4358 = vst [vmem:[#allocation3 + $0x48] sm:$0xf] %v4294
      %4359 = vst [vmem:[#allocation3 + $0x4c] sm:$0xf] %v4295
      %4360 = vst [vmem:[#allocation3 + $0x50] sm:$0xf] %v4296
      %4361 = vst [vmem:[#allocation3 + $0x54] sm:$0xf] %v4297
      %4362 = vst [vmem:[#allocation3 + $0x58] sm:$0xf] %v4298
      %4363 = vst [vmem:[#allocation3 + $0x5c] sm:$0xf] %v4299
      %4364 = vst [vmem:[#allocation3 + $0x60] sm:$0xf] %v4300
      %4365 = vst [vmem:[#allocation3 + $0x64] sm:$0xf] %v4301
      %4366 = vst [vmem:[#allocation3 + $0x68] sm:$0xf] %v4302
      %4367 = vst [vmem:[#allocation3 + $0x6c] sm:$0xf] %v4303
      %4368 = vst [vmem:[#allocation3 + $0x70] sm:$0xf] %v4304
      %4369 = vst [vmem:[#allocation3 + $0x74] sm:$0xf] %v4305
      %4370 = vst [vmem:[#allocation3 + $0x78] sm:$0xf] %v4306
      %4371 = vst [vmem:[#allocation3 + $0x7c] sm:$0xf] %v4307
      %4372 = vst [vmem:[#allocation3 + $0x80] sm:$0xf] %v4308
      %4373 = vst [vmem:[#allocation3 + $0x84] sm:$0xf] %v4309
      %4374 = vst [vmem:[#allocation3 + $0x88] sm:$0xf] %v4310
      %4375 = vst [vmem:[#allocation3 + $0x8c] sm:$0xf] %v4311
      %v4376 = vld [vmem:[#allocation3 + $0x4] sm:$0x8]
      %v4377 = vld [vmem:[#allocation3 + $0x8] sm:$0xf]
      %v4378 = vld [vmem:[#allocation3 + $0xc] sm:$0xf]
      %v4379 = vld [vmem:[#allocation3 + $0x10] sm:$0xf]
      %v4380 = vld [vmem:[#allocation3 + $0x14] sm:$0xf]
      %v4381 = vld [vmem:[#allocation3 + $0x18] sm:$0xf]
      %v4382 = vld [vmem:[#allocation3 + $0x1c] sm:$0xf]
      %v4383 = vld [vmem:[#allocation3 + $0x20] sm:$0xf]
      %v4384 = vld [vmem:[#allocation3 + $0x24] sm:$0xf]
      %v4385 = vld [vmem:[#allocation3 + $0x28] sm:$0xf]
      %v4386 = vld [vmem:[#allocation3 + $0x2c] sm:$0xf]
      %v4387 = vld [vmem:[#allocation3 + $0x30] sm:$0xf]
      %v4388 = vld [vmem:[#allocation3 + $0x34] sm:$0xf]
      %v4389 = vld [vmem:[#allocation3 + $0x38] sm:$0xf]
      %v4390 = vld [vmem:[#allocation3 + $0x3c] sm:$0xf]
      %v4391 = vld [vmem:[#allocation3 + $0x40] sm:$0xf]
      %v4392 = vld [vmem:[#allocation3 + $0x44] sm:$0xf]
      %v4393 = vld [vmem:[#allocation3 + $0x48] sm:$0xf]
      %v4394 = vld [vmem:[#allocation3 + $0x4c] sm:$0xf]
      %v4395 = vld [vmem:[#allocation3 + $0x50] sm:$0xf]
      %v4396 = vld [vmem:[#allocation3 + $0x54] sm:$0xf]
      %v4397 = vld [vmem:[#allocation3 + $0x58] sm:$0xf]
      %v4398 = vld [vmem:[#allocation3 + $0x5c] sm:$0xf]
      %v4399 = vld [vmem:[#allocation3 + $0x60] sm:$0xf]
      %v4400 = vld [vmem:[#allocation3 + $0x64] sm:$0xf]
      %v4401 = vld [vmem:[#allocation3 + $0x68] sm:$0xf]
      %v4402 = vld [vmem:[#allocation3 + $0x6c] sm:$0xf]
      %v4403 = vld [vmem:[#allocation3 + $0x70] sm:$0xf]
      %v4404 = vld [vmem:[#allocation3 + $0x74] sm:$0xf]
      %v4405 = vld [vmem:[#allocation3 + $0x78] sm:$0xf]
      %v4406 = vld [vmem:[#allocation3 + $0x7c] sm:$0xf]
      %v4407 = vld [vmem:[#allocation3 + $0x80] sm:$0xf]
      %v4408 = vld [vmem:[#allocation3 + $0x84] sm:$0xf]
      %v4409 = vld [vmem:[%s4] sm:$0xf]
      %v4410 = vld [vmem:[%s4 + $0x4] sm:$0xf]
      %v4411 = vld [vmem:[%s4 + $0x8] sm:$0xf]
      %v4412 = vld [vmem:[%s4 + $0xc] sm:$0xf]
      %v4413 = vld [vmem:[%s4 + $0x10] sm:$0xf]
      %v4414 = vld [vmem:[%s4 + $0x14] sm:$0xf]
      %v4415 = vld [vmem:[%s4 + $0x18] sm:$0xf]
      %v4416 = vld [vmem:[%s4 + $0x1c] sm:$0xf]
      %v4417 = vld [vmem:[%s4 + $0x20] sm:$0xf]
      %v4418 = vld [vmem:[%s4 + $0x24] sm:$0xf]
      %v4419 = vld [vmem:[%s4 + $0x28] sm:$0xf]
      %v4420 = vld [vmem:[%s4 + $0x2c] sm:$0xf]
      %v4421 = vld [vmem:[%s4 + $0x30] sm:$0xf]
      %v4422 = vld [vmem:[%s4 + $0x34] sm:$0xf]
      %v4423 = vld [vmem:[%s4 + $0x38] sm:$0xf]
      %v4424 = vld [vmem:[%s4 + $0x3c] sm:$0xf]
      %v4425 = vld [vmem:[#allocation3 + $0xc] sm:$0x8]
      %v4426 = vld [vmem:[#allocation3 + $0x88] sm:$0xf]
      %v4427 = vld [vmem:[#allocation3 + $0x8c] sm:$0xf]
      %s4428 = scalar_lea.vmem %s4, 192
      %v4429 = vld [vmem:[%s4428] sm:$0xf]
      %v4430 = vld [vmem:[%s4428 + $0x4] sm:$0xf]
      %v4431 = vld [vmem:[%s4428 + $0x8] sm:$0xf]
      %v4432 = vld [vmem:[%s4428 + $0xc] sm:$0xf]
      %v4433 = vld [vmem:[%s4428 + $0x10] sm:$0xf]
      %v4434 = vld [vmem:[%s4428 + $0x14] sm:$0xf]
      %v4435 = vld [vmem:[%s4428 + $0x18] sm:$0xf]
      %v4436 = vld [vmem:[%s4428 + $0x1c] sm:$0xf]
      %v4437 = vld [vmem:[%s4428 + $0x20] sm:$0xf]
      %v4438 = vld [vmem:[%s4428 + $0x24] sm:$0xf]
      %v4439 = vld [vmem:[%s4428 + $0x28] sm:$0xf]
      %v4440 = vld [vmem:[%s4428 + $0x2c] sm:$0xf]
      %v4441 = vld [vmem:[%s4428 + $0x30] sm:$0xf]
      %v4442 = vld [vmem:[%s4428 + $0x34] sm:$0xf]
      %v4443 = vld [vmem:[%s4428 + $0x38] sm:$0xf]
      %v4444 = vld [vmem:[%s4428 + $0x3c] sm:$0xf]
      %v4478 = vunpack.c.l.b16 %v4425
      %v4479 = vunpack.c.l.b16 %v4379
      %v4480 = vunpack.c.l.b16 %v4380
      %v4481 = vunpack.c.l.b16 %v4381
      %v4482 = vunpack.c.l.b16 %v4382
      %v4483 = vunpack.c.l.b16 %v4383
      %v4484 = vunpack.c.l.b16 %v4384
      %v4485 = vunpack.c.l.b16 %v4385
      %v4486 = vunpack.c.l.b16 %v4386
      %v4487 = vunpack.c.l.b16 %v4387
      %v4488 = vunpack.c.l.b16 %v4388
      %v4489 = vunpack.c.l.b16 %v4389
      %v4490 = vunpack.c.l.b16 %v4390
      %v4491 = vunpack.c.l.b16 %v4391
      %v4492 = vunpack.c.l.b16 %v4392
      %v4493 = vunpack.c.l.b16 %v4393
      %v4494 = vunpack.c.l.b16 %v4394
      %v4495 = vunpack.c.l.b16 %v4395
      %v4496 = vunpack.c.l.b16 %v4396
      %v4497 = vunpack.c.l.b16 %v4397
      %v4498 = vunpack.c.l.b16 %v4398
      %v4499 = vunpack.c.l.b16 %v4399
      %v4500 = vunpack.c.l.b16 %v4400
      %v4501 = vunpack.c.l.b16 %v4401
      %v4502 = vunpack.c.l.b16 %v4402
      %v4503 = vunpack.c.l.b16 %v4403
      %v4504 = vunpack.c.l.b16 %v4404
      %v4505 = vunpack.c.l.b16 %v4405
      %v4506 = vunpack.c.l.b16 %v4406
      %v4507 = vunpack.c.l.b16 %v4407
      %v4508 = vunpack.c.l.b16 %v4408
      %v4509 = vunpack.c.l.b16 %v4426
      %v4510 = vunpack.c.l.b16 %v4427
      %v4511 = vpack.c.b16 %v4479, %v4478
      %v4512 = vpack.c.b16 %v4481, %v4480
      %v4513 = vpack.c.b16 %v4483, %v4482
      %v4514 = vpack.c.b16 %v4485, %v4484
      %v4515 = vpack.c.b16 %v4487, %v4486
      %v4516 = vpack.c.b16 %v4489, %v4488
      %v4517 = vpack.c.b16 %v4491, %v4490
      %v4518 = vpack.c.b16 %v4493, %v4492
      %v4519 = vpack.c.b16 %v4495, %v4494
      %v4520 = vpack.c.b16 %v4497, %v4496
      %v4521 = vpack.c.b16 %v4499, %v4498
      %v4522 = vpack.c.b16 %v4501, %v4500
      %v4523 = vpack.c.b16 %v4503, %v4502
      %v4524 = vpack.c.b16 %v4505, %v4504
      %v4525 = vpack.c.b16 %v4507, %v4506
      %v4526 = vpack.c.b16 %v4509, %v4508
      %v4527 = vpack.c.b16 %v4510, %v4510
      %v4529 = vshrl.u32 %v4511, 16
      %v4531 = vrot.slane %v4529, 3
      %v4532 = vshll.u32 %v4511, 16
      %v4534 = vrot.slane %v4532, 4
      %v4535 = vor.u32 %v4531, %v4534
      %v4537 = vshrl.u32 %v4512, 16
      %v4539 = vrot.slane %v4537, 3
      %v4540 = vshll.u32 %v4512, 16
      %v4542 = vrot.slane %v4540, 4
      %v4543 = vor.u32 %v4539, %v4542
      %v4544 = vsel %vm761, %v4535, %v4543
      %v4546 = vshrl.u32 %v4513, 16
      %v4548 = vrot.slane %v4546, 3
      %v4549 = vshll.u32 %v4513, 16
      %v4551 = vrot.slane %v4549, 4
      %v4552 = vor.u32 %v4548, %v4551
      %v4553 = vsel %vm761, %v4543, %v4552
      %v4555 = vshrl.u32 %v4514, 16
      %v4557 = vrot.slane %v4555, 3
      %v4558 = vshll.u32 %v4514, 16
      %v4560 = vrot.slane %v4558, 4
      %v4561 = vor.u32 %v4557, %v4560
      %v4562 = vsel %vm761, %v4552, %v4561
      %v4564 = vshrl.u32 %v4515, 16
      %v4566 = vrot.slane %v4564, 3
      %v4567 = vshll.u32 %v4515, 16
      %v4569 = vrot.slane %v4567, 4
      %v4570 = vor.u32 %v4566, %v4569
      %v4571 = vsel %vm761, %v4561, %v4570
      %v4573 = vshrl.u32 %v4516, 16
      %v4575 = vrot.slane %v4573, 3
      %v4576 = vshll.u32 %v4516, 16
      %v4578 = vrot.slane %v4576, 4
      %v4579 = vor.u32 %v4575, %v4578
      %v4580 = vsel %vm761, %v4570, %v4579
      %v4582 = vshrl.u32 %v4517, 16
      %v4584 = vrot.slane %v4582, 3
      %v4585 = vshll.u32 %v4517, 16
      %v4587 = vrot.slane %v4585, 4
      %v4588 = vor.u32 %v4584, %v4587
      %v4589 = vsel %vm761, %v4579, %v4588
      %v4591 = vshrl.u32 %v4518, 16
      %v4593 = vrot.slane %v4591, 3
      %v4594 = vshll.u32 %v4518, 16
      %v4596 = vrot.slane %v4594, 4
      %v4597 = vor.u32 %v4593, %v4596
      %v4598 = vsel %vm761, %v4588, %v4597
      %v4600 = vshrl.u32 %v4519, 16
      %v4602 = vrot.slane %v4600, 3
      %v4603 = vshll.u32 %v4519, 16
      %v4605 = vrot.slane %v4603, 4
      %v4606 = vor.u32 %v4602, %v4605
      %v4607 = vsel %vm761, %v4597, %v4606
      %v4609 = vshrl.u32 %v4520, 16
      %v4611 = vrot.slane %v4609, 3
      %v4612 = vshll.u32 %v4520, 16
      %v4614 = vrot.slane %v4612, 4
      %v4615 = vor.u32 %v4611, %v4614
      %v4616 = vsel %vm761, %v4606, %v4615
      %v4618 = vshrl.u32 %v4521, 16
      %v4620 = vrot.slane %v4618, 3
      %v4621 = vshll.u32 %v4521, 16
      %v4623 = vrot.slane %v4621, 4
      %v4624 = vor.u32 %v4620, %v4623
      %v4625 = vsel %vm761, %v4615, %v4624
      %v4627 = vshrl.u32 %v4522, 16
      %v4629 = vrot.slane %v4627, 3
      %v4630 = vshll.u32 %v4522, 16
      %v4632 = vrot.slane %v4630, 4
      %v4633 = vor.u32 %v4629, %v4632
      %v4634 = vsel %vm761, %v4624, %v4633
      %v4636 = vshrl.u32 %v4523, 16
      %v4638 = vrot.slane %v4636, 3
      %v4639 = vshll.u32 %v4523, 16
      %v4641 = vrot.slane %v4639, 4
      %v4642 = vor.u32 %v4638, %v4641
      %v4643 = vsel %vm761, %v4633, %v4642
      %v4645 = vshrl.u32 %v4524, 16
      %v4647 = vrot.slane %v4645, 3
      %v4648 = vshll.u32 %v4524, 16
      %v4650 = vrot.slane %v4648, 4
      %v4651 = vor.u32 %v4647, %v4650
      %v4652 = vsel %vm761, %v4642, %v4651
      %v4654 = vshrl.u32 %v4525, 16
      %v4656 = vrot.slane %v4654, 3
      %v4657 = vshll.u32 %v4525, 16
      %v4659 = vrot.slane %v4657, 4
      %v4660 = vor.u32 %v4656, %v4659
      %v4661 = vsel %vm761, %v4651, %v4660
      %v4663 = vshrl.u32 %v4526, 16
      %v4665 = vrot.slane %v4663, 3
      %v4666 = vshll.u32 %v4526, 16
      %v4668 = vrot.slane %v4666, 4
      %v4669 = vor.u32 %v4665, %v4668
      %v4670 = vsel %vm761, %v4660, %v4669
      %v4672 = vshrl.u32 %v4527, 16
      %v4674 = vrot.slane %v4672, 3
      %v4675 = vshll.u32 %v4527, 16
      %v4677 = vrot.slane %v4675, 4
      %v4678 = vor.u32 %v4674, %v4677
      %v4679 = vsel %vm761, %v4669, %v4678
      %v4712 = vunpack.c.l.b16 %v4429
      %v4713 = vunpack.c.l.b16 %v4430
      %v4714 = vunpack.c.l.b16 %v4431
      %v4715 = vunpack.c.l.b16 %v4432
      %v4716 = vunpack.c.l.b16 %v4433
      %v4717 = vunpack.c.l.b16 %v4434
      %v4718 = vunpack.c.l.b16 %v4435
      %v4719 = vunpack.c.l.b16 %v4436
      %v4720 = vunpack.c.l.b16 %v4437
      %v4721 = vunpack.c.l.b16 %v4438
      %v4722 = vunpack.c.l.b16 %v4439
      %v4723 = vunpack.c.l.b16 %v4440
      %v4724 = vunpack.c.l.b16 %v4441
      %v4725 = vunpack.c.l.b16 %v4442
      %v4726 = vunpack.c.l.b16 %v4443
      %v4727 = vunpack.c.l.b16 %v4444
      %v4728 = vpack.c.b16 %v4713, %v4712
      %v4729 = vpack.c.b16 %v4715, %v4714
      %v4730 = vpack.c.b16 %v4717, %v4716
      %v4731 = vpack.c.b16 %v4719, %v4718
      %v4732 = vpack.c.b16 %v4721, %v4720
      %v4733 = vpack.c.b16 %v4723, %v4722
      %v4734 = vpack.c.b16 %v4725, %v4724
      %v4735 = vpack.c.b16 %v4727, %v4726
      %4744 = vmatprep.subr.bf16.mxu0 0
      %4745 = vmatpush1.bf16.msra.mxu0 %v4735
      %4746 = vmatprep.subr.bf16.mxu0 0
      %4747 = vmatpush1.bf16.msra.mxu0 %v4734
      %4748 = vmatprep.subr.bf16.mxu0 0
      %4749 = vmatpush1.bf16.msra.mxu0 %v4733
      %4750 = vmatprep.subr.bf16.mxu0 0
      %4751 = vmatpush1.bf16.msra.mxu0 %v4732
      %4752 = vmatprep.subr.bf16.mxu0 0
      %4753 = vmatpush1.bf16.msra.mxu0 %v4731
      %4754 = vmatprep.subr.bf16.mxu0 0
      %4755 = vmatpush1.bf16.msra.mxu0 %v4730
      %4756 = vmatprep.subr.bf16.mxu0 0
      %4757 = vmatpush1.bf16.msra.mxu0 %v4729
      %4758 = vmatprep.subr.bf16.mxu0 0
      %4759 = vmatpush1.bf16.msra.mxu0 %v4728
      %4760 = vmatprep.subr.bf16.mxu0 0
      %4761 = vmatpush2.bf16.msra.mxu0 0
      %4762 = vmatprep.subr.bf16.mxu0 0
      %4763 = vmatpush2.bf16.msra.mxu0 0
      %4764 = vmatprep.subr.bf16.mxu0 0
      %4765 = vmatpush2.bf16.msra.mxu0 0
      %4766 = vmatprep.subr.bf16.mxu0 0
      %4767 = vmatpush2.bf16.msra.mxu0 0
      %4768 = vmatprep.subr.bf16.mxu0 0
      %4769 = vmatpush2.bf16.msra.mxu0 0
      %4770 = vmatprep.subr.bf16.mxu0 0
      %4771 = vmatpush2.bf16.msra.mxu0 0
      %4772 = vmatprep.subr.bf16.mxu0 0
      %4773 = vmatpush2.bf16.msra.mxu0 0
      %4774 = vmatprep.subr.bf16.mxu0 0
      %4775 = vmatpush2.bf16.msra.mxu0 0
      %4776 = vmatprep.mubr.bf16.mxu0 0
      %4777 = vmatmul.mubr.bf16.gmra.mxu0 %v4544
      %v4778 = vpop.f32.mrf.mxu0
      %v4779 = vadd.f32 0.0, %v4778
      %v4780 = vpop.f32.mrf.mxu0
      %v4781 = vpop.f32.mrf.mxu0
      %v4782 = vadd.f32 0.0, %v4781
      %v4783 = vpop.f32.mrf.mxu0
      %4784 = vmatprep.mubr.bf16.mxu0 0
      %4785 = vmatmul.mubr.bf16.gmra.mxu0 %v4553
      %v4786 = vpop.f32.mrf.mxu0
      %v4787 = vadd.f32 0.0, %v4786
      %v4788 = vpop.f32.mrf.mxu0
      %v4789 = vpop.f32.mrf.mxu0
      %v4790 = vadd.f32 0.0, %v4789
      %v4791 = vpop.f32.mrf.mxu0
      %4792 = vmatprep.mubr.bf16.mxu0 0
      %4793 = vmatmul.mubr.bf16.gmra.mxu0 %v4562
      %v4794 = vpop.f32.mrf.mxu0
      %v4795 = vadd.f32 0.0, %v4794
      %v4796 = vpop.f32.mrf.mxu0
      %v4797 = vpop.f32.mrf.mxu0
      %v4798 = vadd.f32 0.0, %v4797
      %v4799 = vpop.f32.mrf.mxu0
      %4800 = vmatprep.mubr.bf16.mxu0 0
      %4801 = vmatmul.mubr.bf16.gmra.mxu0 %v4571
      %v4802 = vpop.f32.mrf.mxu0
      %v4803 = vadd.f32 0.0, %v4802
      %v4804 = vpop.f32.mrf.mxu0
      %v4805 = vpop.f32.mrf.mxu0
      %v4806 = vadd.f32 0.0, %v4805
      %v4807 = vpop.f32.mrf.mxu0
      %4808 = vmatprep.mubr.bf16.mxu0 0
      %4809 = vmatmul.mubr.bf16.gmra.mxu0 %v4580
      %v4810 = vpop.f32.mrf.mxu0
      %v4811 = vadd.f32 0.0, %v4810
      %v4812 = vpop.f32.mrf.mxu0
      %v4813 = vpop.f32.mrf.mxu0
      %v4814 = vadd.f32 0.0, %v4813
      %v4815 = vpop.f32.mrf.mxu0
      %4816 = vmatprep.mubr.bf16.mxu0 0
      %4817 = vmatmul.mubr.bf16.gmra.mxu0 %v4589
      %v4818 = vpop.f32.mrf.mxu0
      %v4819 = vadd.f32 0.0, %v4818
      %v4820 = vpop.f32.mrf.mxu0
      %v4821 = vpop.f32.mrf.mxu0
      %v4822 = vadd.f32 0.0, %v4821
      %v4823 = vpop.f32.mrf.mxu0
      %4824 = vmatprep.mubr.bf16.mxu0 0
      %4825 = vmatmul.mubr.bf16.gmra.mxu0 %v4598
      %v4826 = vpop.f32.mrf.mxu0
      %v4827 = vadd.f32 0.0, %v4826
      %v4828 = vpop.f32.mrf.mxu0
      %v4829 = vpop.f32.mrf.mxu0
      %v4830 = vadd.f32 0.0, %v4829
      %v4831 = vpop.f32.mrf.mxu0
      %4832 = vmatprep.mubr.bf16.mxu0 0
      %4833 = vmatmul.mubr.bf16.gmra.mxu0 %v4607
      %v4834 = vpop.f32.mrf.mxu0
      %v4835 = vadd.f32 0.0, %v4834
      %v4836 = vpop.f32.mrf.mxu0
      %v4837 = vpop.f32.mrf.mxu0
      %v4838 = vadd.f32 0.0, %v4837
      %v4839 = vpop.f32.mrf.mxu0
      %4840 = vmatprep.mubr.bf16.mxu0 0
      %4841 = vmatmul.mubr.bf16.gmra.mxu0 %v4616
      %v4842 = vpop.f32.mrf.mxu0
      %v4843 = vadd.f32 0.0, %v4842
      %v4844 = vpop.f32.mrf.mxu0
      %v4845 = vpop.f32.mrf.mxu0
      %v4846 = vadd.f32 0.0, %v4845
      %v4847 = vpop.f32.mrf.mxu0
      %4848 = vmatprep.mubr.bf16.mxu0 0
      %4849 = vmatmul.mubr.bf16.gmra.mxu0 %v4625
      %v4850 = vpop.f32.mrf.mxu0
      %v4851 = vadd.f32 0.0, %v4850
      %v4852 = vpop.f32.mrf.mxu0
      %v4853 = vpop.f32.mrf.mxu0
      %v4854 = vadd.f32 0.0, %v4853
      %v4855 = vpop.f32.mrf.mxu0
      %4856 = vmatprep.mubr.bf16.mxu0 0
      %4857 = vmatmul.mubr.bf16.gmra.mxu0 %v4634
      %v4858 = vpop.f32.mrf.mxu0
      %v4859 = vadd.f32 0.0, %v4858
      %v4860 = vpop.f32.mrf.mxu0
      %v4861 = vpop.f32.mrf.mxu0
      %v4862 = vadd.f32 0.0, %v4861
      %v4863 = vpop.f32.mrf.mxu0
      %4864 = vmatprep.mubr.bf16.mxu0 0
      %4865 = vmatmul.mubr.bf16.gmra.mxu0 %v4643
      %v4866 = vpop.f32.mrf.mxu0
      %v4867 = vadd.f32 0.0, %v4866
      %v4868 = vpop.f32.mrf.mxu0
      %v4869 = vpop.f32.mrf.mxu0
      %v4870 = vadd.f32 0.0, %v4869
      %v4871 = vpop.f32.mrf.mxu0
      %4872 = vmatprep.mubr.bf16.mxu0 0
      %4873 = vmatmul.mubr.bf16.gmra.mxu0 %v4652
      %v4874 = vpop.f32.mrf.mxu0
      %v4875 = vadd.f32 0.0, %v4874
      %v4876 = vpop.f32.mrf.mxu0
      %v4877 = vpop.f32.mrf.mxu0
      %v4878 = vadd.f32 0.0, %v4877
      %v4879 = vpop.f32.mrf.mxu0
      %4880 = vmatprep.mubr.bf16.mxu0 0
      %4881 = vmatmul.mubr.bf16.gmra.mxu0 %v4661
      %v4882 = vpop.f32.mrf.mxu0
      %v4883 = vadd.f32 0.0, %v4882
      %v4884 = vpop.f32.mrf.mxu0
      %v4885 = vpop.f32.mrf.mxu0
      %v4886 = vadd.f32 0.0, %v4885
      %v4887 = vpop.f32.mrf.mxu0
      %4888 = vmatprep.mubr.bf16.mxu0 0
      %4889 = vmatmul.mubr.bf16.gmra.mxu0 %v4670
      %v4890 = vpop.f32.mrf.mxu0
      %v4891 = vadd.f32 0.0, %v4890
      %v4892 = vpop.f32.mrf.mxu0
      %v4893 = vpop.f32.mrf.mxu0
      %v4894 = vadd.f32 0.0, %v4893
      %v4895 = vpop.f32.mrf.mxu0
      %4896 = vmatprep.mubr.bf16.mxu0 0
      %4897 = vmatmul.mubr.bf16.gmra.mxu0 %v4679
      %v4898 = vpop.f32.mrf.mxu0
      %v4899 = vadd.f32 0.0, %v4898
      %v4900 = vpop.f32.mrf.mxu0
      %v4901 = vpop.f32.mrf.mxu0
      %v4902 = vadd.f32 0.0, %v4901
      %v4903 = vpop.f32.mrf.mxu0
      %4904 = vdwg.mxu0
      %v4908 = vunpack.c.l.b16 %v4376
      %v4909 = vunpack.c.l.b16 %v4377
      %v4910 = vunpack.c.l.b16 %v4378
      %v4911 = vpack.c.b16 %v4909, %v4908
      %v4912 = vpack.c.b16 %v4479, %v4910
      %v4913 = vpack.c.b16 %v4508, %v4508
      %v4915 = vshrl.u32 %v4911, 16
      %v4917 = vrot.slane %v4915, 3
      %v4918 = vshll.u32 %v4911, 16
      %v4920 = vrot.slane %v4918, 4
      %v4921 = vor.u32 %v4917, %v4920
      %v4923 = vshrl.u32 %v4912, 16
      %v4925 = vrot.slane %v4923, 3
      %v4926 = vshll.u32 %v4912, 16
      %v4928 = vrot.slane %v4926, 4
      %v4929 = vor.u32 %v4925, %v4928
      %v4930 = vsel %vm761, %v4921, %v4929
      %v4931 = vsel %vm761, %v4929, %v4543
      %v4933 = vshrl.u32 %v4913, 16
      %v4935 = vrot.slane %v4933, 3
      %v4936 = vshll.u32 %v4913, 16
      %v4938 = vrot.slane %v4936, 4
      %v4939 = vor.u32 %v4935, %v4938
      %v4940 = vsel %vm761, %v4660, %v4939
      %v4960 = vunpack.c.l.b16 %v4409
      %v4961 = vunpack.c.l.b16 %v4410
      %v4962 = vunpack.c.l.b16 %v4411
      %v4963 = vunpack.c.l.b16 %v4412
      %v4964 = vunpack.c.l.b16 %v4413
      %v4965 = vunpack.c.l.b16 %v4414
      %v4966 = vunpack.c.l.b16 %v4415
      %v4967 = vunpack.c.l.b16 %v4416
      %v4968 = vunpack.c.l.b16 %v4417
      %v4969 = vunpack.c.l.b16 %v4418
      %v4970 = vunpack.c.l.b16 %v4419
      %v4971 = vunpack.c.l.b16 %v4420
      %v4972 = vunpack.c.l.b16 %v4421
      %v4973 = vunpack.c.l.b16 %v4422
      %v4974 = vunpack.c.l.b16 %v4423
      %v4975 = vunpack.c.l.b16 %v4424
      %v4976 = vpack.c.b16 %v4961, %v4960
      %v4977 = vpack.c.b16 %v4963, %v4962
      %v4978 = vpack.c.b16 %v4965, %v4964
      %v4979 = vpack.c.b16 %v4967, %v4966
      %v4980 = vpack.c.b16 %v4969, %v4968
      %v4981 = vpack.c.b16 %v4971, %v4970
      %v4982 = vpack.c.b16 %v4973, %v4972
      %v4983 = vpack.c.b16 %v4975, %v4974
      %4992 = vmatprep.subr.bf16.mxu0 0
      %4993 = vmatpush1.bf16.msra.mxu0 %v4983
      %4994 = vmatprep.subr.bf16.mxu0 0
      %4995 = vmatpush1.bf16.msra.mxu0 %v4982
      %4996 = vmatprep.subr.bf16.mxu0 0
      %4997 = vmatpush1.bf16.msra.mxu0 %v4981
      %4998 = vmatprep.subr.bf16.mxu0 0
      %4999 = vmatpush1.bf16.msra.mxu0 %v4980
      %5000 = vmatprep.subr.bf16.mxu0 0
      %5001 = vmatpush1.bf16.msra.mxu0 %v4979
      %5002 = vmatprep.subr.bf16.mxu0 0
      %5003 = vmatpush1.bf16.msra.mxu0 %v4978
      %5004 = vmatprep.subr.bf16.mxu0 0
      %5005 = vmatpush1.bf16.msra.mxu0 %v4977
      %5006 = vmatprep.subr.bf16.mxu0 0
      %5007 = vmatpush1.bf16.msra.mxu0 %v4976
      %5008 = vmatprep.subr.bf16.mxu0 0
      %5009 = vmatpush2.bf16.msra.mxu0 0
      %5010 = vmatprep.subr.bf16.mxu0 0
      %5011 = vmatpush2.bf16.msra.mxu0 0
      %5012 = vmatprep.subr.bf16.mxu0 0
      %5013 = vmatpush2.bf16.msra.mxu0 0
      %5014 = vmatprep.subr.bf16.mxu0 0
      %5015 = vmatpush2.bf16.msra.mxu0 0
      %5016 = vmatprep.subr.bf16.mxu0 0
      %5017 = vmatpush2.bf16.msra.mxu0 0
      %5018 = vmatprep.subr.bf16.mxu0 0
      %5019 = vmatpush2.bf16.msra.mxu0 0
      %5020 = vmatprep.subr.bf16.mxu0 0
      %5021 = vmatpush2.bf16.msra.mxu0 0
      %5022 = vmatprep.subr.bf16.mxu0 0
      %5023 = vmatpush2.bf16.msra.mxu0 0
      %5024 = vmatprep.mubr.bf16.mxu0 0
      %5025 = vmatmul.mubr.bf16.gmra.mxu0 %v4930
      %v5026 = vpop.f32.mrf.mxu0
      %v5027 = vadd.f32 %v4779, %v5026
      %v5028 = vpop.f32.mrf.mxu0
      %v5029 = vpop.f32.mrf.mxu0
      %v5030 = vadd.f32 %v4782, %v5029
      %v5031 = vpop.f32.mrf.mxu0
      %5032 = vmatprep.mubr.bf16.mxu0 0
      %5033 = vmatmul.mubr.bf16.gmra.mxu0 %v4931
      %v5034 = vpop.f32.mrf.mxu0
      %v5035 = vadd.f32 %v4787, %v5034
      %v5036 = vpop.f32.mrf.mxu0
      %v5037 = vpop.f32.mrf.mxu0
      %v5038 = vadd.f32 %v4790, %v5037
      %v5039 = vpop.f32.mrf.mxu0
      %5040 = vmatprep.mubr.bf16.mxu0 0
      %5041 = vmatmul.mubr.bf16.gmra.mxu0 %v4553
      %v5042 = vpop.f32.mrf.mxu0
      %v5043 = vadd.f32 %v4795, %v5042
      %v5044 = vpop.f32.mrf.mxu0
      %v5045 = vpop.f32.mrf.mxu0
      %v5046 = vadd.f32 %v4798, %v5045
      %v5047 = vpop.f32.mrf.mxu0
      %5048 = vmatprep.mubr.bf16.mxu0 0
      %5049 = vmatmul.mubr.bf16.gmra.mxu0 %v4562
      %v5050 = vpop.f32.mrf.mxu0
      %v5051 = vadd.f32 %v4803, %v5050
      %v5052 = vpop.f32.mrf.mxu0
      %v5053 = vpop.f32.mrf.mxu0
      %v5054 = vadd.f32 %v4806, %v5053
      %v5055 = vpop.f32.mrf.mxu0
      %5056 = vmatprep.mubr.bf16.mxu0 0
      %5057 = vmatmul.mubr.bf16.gmra.mxu0 %v4571
      %v5058 = vpop.f32.mrf.mxu0
      %v5059 = vadd.f32 %v4811, %v5058
      %v5060 = vpop.f32.mrf.mxu0
      %v5061 = vpop.f32.mrf.mxu0
      %v5062 = vadd.f32 %v4814, %v5061
      %v5063 = vpop.f32.mrf.mxu0
      %5064 = vmatprep.mubr.bf16.mxu0 0
      %5065 = vmatmul.mubr.bf16.gmra.mxu0 %v4580
      %v5066 = vpop.f32.mrf.mxu0
      %v5067 = vadd.f32 %v4819, %v5066
      %v5068 = vpop.f32.mrf.mxu0
      %v5069 = vpop.f32.mrf.mxu0
      %v5070 = vadd.f32 %v4822, %v5069
      %v5071 = vpop.f32.mrf.mxu0
      %5072 = vmatprep.mubr.bf16.mxu0 0
      %5073 = vmatmul.mubr.bf16.gmra.mxu0 %v4589
      %v5074 = vpop.f32.mrf.mxu0
      %v5075 = vadd.f32 %v4827, %v5074
      %v5076 = vpop.f32.mrf.mxu0
      %v5077 = vpop.f32.mrf.mxu0
      %v5078 = vadd.f32 %v4830, %v5077
      %v5079 = vpop.f32.mrf.mxu0
      %5080 = vmatprep.mubr.bf16.mxu0 0
      %5081 = vmatmul.mubr.bf16.gmra.mxu0 %v4598
      %v5082 = vpop.f32.mrf.mxu0
      %v5083 = vadd.f32 %v4835, %v5082
      %v5084 = vpop.f32.mrf.mxu0
      %v5085 = vpop.f32.mrf.mxu0
      %v5086 = vadd.f32 %v4838, %v5085
      %v5087 = vpop.f32.mrf.mxu0
      %5088 = vmatprep.mubr.bf16.mxu0 0
      %5089 = vmatmul.mubr.bf16.gmra.mxu0 %v4607
      %v5090 = vpop.f32.mrf.mxu0
      %v5091 = vadd.f32 %v4843, %v5090
      %v5092 = vpop.f32.mrf.mxu0
      %v5093 = vpop.f32.mrf.mxu0
      %v5094 = vadd.f32 %v4846, %v5093
      %v5095 = vpop.f32.mrf.mxu0
      %5096 = vmatprep.mubr.bf16.mxu0 0
      %5097 = vmatmul.mubr.bf16.gmra.mxu0 %v4616
      %v5098 = vpop.f32.mrf.mxu0
      %v5099 = vadd.f32 %v4851, %v5098
      %v5100 = vpop.f32.mrf.mxu0
      %v5101 = vpop.f32.mrf.mxu0
      %v5102 = vadd.f32 %v4854, %v5101
      %v5103 = vpop.f32.mrf.mxu0
      %5104 = vmatprep.mubr.bf16.mxu0 0
      %5105 = vmatmul.mubr.bf16.gmra.mxu0 %v4625
      %v5106 = vpop.f32.mrf.mxu0
      %v5107 = vadd.f32 %v4859, %v5106
      %v5108 = vpop.f32.mrf.mxu0
      %v5109 = vpop.f32.mrf.mxu0
      %v5110 = vadd.f32 %v4862, %v5109
      %v5111 = vpop.f32.mrf.mxu0
      %5112 = vmatprep.mubr.bf16.mxu0 0
      %5113 = vmatmul.mubr.bf16.gmra.mxu0 %v4634
      %v5114 = vpop.f32.mrf.mxu0
      %v5115 = vadd.f32 %v4867, %v5114
      %v5116 = vpop.f32.mrf.mxu0
      %v5117 = vpop.f32.mrf.mxu0
      %v5118 = vadd.f32 %v4870, %v5117
      %v5119 = vpop.f32.mrf.mxu0
      %5120 = vmatprep.mubr.bf16.mxu0 0
      %5121 = vmatmul.mubr.bf16.gmra.mxu0 %v4643
      %v5122 = vpop.f32.mrf.mxu0
      %v5123 = vadd.f32 %v4875, %v5122
      %v5124 = vpop.f32.mrf.mxu0
      %v5125 = vpop.f32.mrf.mxu0
      %v5126 = vadd.f32 %v4878, %v5125
      %v5127 = vpop.f32.mrf.mxu0
      %5128 = vmatprep.mubr.bf16.mxu0 0
      %5129 = vmatmul.mubr.bf16.gmra.mxu0 %v4652
      %v5130 = vpop.f32.mrf.mxu0
      %v5131 = vadd.f32 %v4883, %v5130
      %v5132 = vpop.f32.mrf.mxu0
      %v5133 = vpop.f32.mrf.mxu0
      %v5134 = vadd.f32 %v4886, %v5133
      %v5135 = vpop.f32.mrf.mxu0
      %5136 = vmatprep.mubr.bf16.mxu0 0
      %5137 = vmatmul.mubr.bf16.gmra.mxu0 %v4661
      %v5138 = vpop.f32.mrf.mxu0
      %v5139 = vadd.f32 %v4891, %v5138
      %v5140 = vpop.f32.mrf.mxu0
      %v5141 = vpop.f32.mrf.mxu0
      %v5142 = vadd.f32 %v4894, %v5141
      %v5143 = vpop.f32.mrf.mxu0
      %5144 = vmatprep.mubr.bf16.mxu0 0
      %5145 = vmatmul.mubr.bf16.gmra.mxu0 %v4940
      %v5146 = vpop.f32.mrf.mxu0
      %v5147 = vadd.f32 %v4899, %v5146
      %v5148 = vpop.f32.mrf.mxu0
      %v5149 = vpop.f32.mrf.mxu0
      %v5150 = vadd.f32 %v4902, %v5149
      %v5151 = vpop.f32.mrf.mxu0
      %5152 = vdwg.mxu0
      %v5153 = vld [vmem:[#allocation3 + $0x14] sm:$0x8]
      %v5154 = vld [vmem:[#allocation3 + $0x18] sm:$0xf]
      %v5155 = vld [vmem:[#allocation3 + $0x1c] sm:$0xf]
      %v5156 = vld [vmem:[#allocation3 + $0x20] sm:$0xf]
      %v5157 = vld [vmem:[#allocation3 + $0x24] sm:$0xf]
      %v5158 = vld [vmem:[#allocation3 + $0x28] sm:$0xf]
      %v5159 = vld [vmem:[#allocation3 + $0x2c] sm:$0xf]
      %v5160 = vld [vmem:[#allocation3 + $0x30] sm:$0xf]
      %v5161 = vld [vmem:[#allocation3 + $0x34] sm:$0xf]
      %v5162 = vld [vmem:[#allocation3 + $0x38] sm:$0xf]
      %v5163 = vld [vmem:[#allocation3 + $0x3c] sm:$0xf]
      %v5164 = vld [vmem:[#allocation3 + $0x40] sm:$0xf]
      %v5165 = vld [vmem:[#allocation3 + $0x44] sm:$0xf]
      %v5166 = vld [vmem:[#allocation3 + $0x48] sm:$0xf]
      %v5167 = vld [vmem:[#allocation3 + $0x4c] sm:$0xf]
      %v5168 = vld [vmem:[#allocation3 + $0x50] sm:$0xf]
      %v5169 = vld [vmem:[#allocation3 + $0x54] sm:$0xf]
      %v5170 = vld [vmem:[#allocation3 + $0x58] sm:$0xf]
      %v5171 = vld [vmem:[#allocation3 + $0x5c] sm:$0xf]
      %v5172 = vld [vmem:[#allocation3 + $0x60] sm:$0xf]
      %v5173 = vld [vmem:[#allocation3 + $0x64] sm:$0xf]
      %v5174 = vld [vmem:[#allocation3 + $0x68] sm:$0xf]
      %v5175 = vld [vmem:[#allocation3 + $0x6c] sm:$0xf]
      %v5176 = vld [vmem:[#allocation3 + $0x70] sm:$0xf]
      %v5177 = vld [vmem:[#allocation3 + $0x74] sm:$0xf]
      %v5178 = vld [vmem:[#allocation3 + $0x78] sm:$0xf]
      %v5179 = vld [vmem:[#allocation3 + $0x7c] sm:$0xf]
      %v5180 = vld [vmem:[#allocation3 + $0x80] sm:$0xf]
      %v5181 = vld [vmem:[#allocation3 + $0x84] sm:$0xf]
      %v5182 = vld [vmem:[#allocation3 + $0x88] sm:$0xf]
      %v5183 = vld [vmem:[#allocation3 + $0x8c] sm:$0xf]
      %v5184 = vld [vmem:[#allocation3 + $0x90] sm:$0xf]
      %v5185 = vld [vmem:[#allocation3 + $0x94] sm:$0xf]
      %s5186 = scalar_lea.vmem %s4, 384
      %v5187 = vld [vmem:[%s5186] sm:$0xf]
      %v5188 = vld [vmem:[%s5186 + $0x4] sm:$0xf]
      %v5189 = vld [vmem:[%s5186 + $0x8] sm:$0xf]
      %v5190 = vld [vmem:[%s5186 + $0xc] sm:$0xf]
      %v5191 = vld [vmem:[%s5186 + $0x10] sm:$0xf]
      %v5192 = vld [vmem:[%s5186 + $0x14] sm:$0xf]
      %v5193 = vld [vmem:[%s5186 + $0x18] sm:$0xf]
      %v5194 = vld [vmem:[%s5186 + $0x1c] sm:$0xf]
      %v5195 = vld [vmem:[%s5186 + $0x20] sm:$0xf]
      %v5196 = vld [vmem:[%s5186 + $0x24] sm:$0xf]
      %v5197 = vld [vmem:[%s5186 + $0x28] sm:$0xf]
      %v5198 = vld [vmem:[%s5186 + $0x2c] sm:$0xf]
      %v5199 = vld [vmem:[%s5186 + $0x30] sm:$0xf]
      %v5200 = vld [vmem:[%s5186 + $0x34] sm:$0xf]
      %v5201 = vld [vmem:[%s5186 + $0x38] sm:$0xf]
      %v5202 = vld [vmem:[%s5186 + $0x3c] sm:$0xf]
      %v5236 = vunpack.c.l.b16 %v5153
      %v5237 = vunpack.c.l.b16 %v5154
      %v5238 = vunpack.c.l.b16 %v5155
      %v5239 = vunpack.c.l.b16 %v5156
      %v5240 = vunpack.c.l.b16 %v5157
      %v5241 = vunpack.c.l.b16 %v5158
      %v5242 = vunpack.c.l.b16 %v5159
      %v5243 = vunpack.c.l.b16 %v5160
      %v5244 = vunpack.c.l.b16 %v5161
      %v5245 = vunpack.c.l.b16 %v5162
      %v5246 = vunpack.c.l.b16 %v5163
      %v5247 = vunpack.c.l.b16 %v5164
      %v5248 = vunpack.c.l.b16 %v5165
      %v5249 = vunpack.c.l.b16 %v5166
      %v5250 = vunpack.c.l.b16 %v5167
      %v5251 = vunpack.c.l.b16 %v5168
      %v5252 = vunpack.c.l.b16 %v5169
      %v5253 = vunpack.c.l.b16 %v5170
      %v5254 = vunpack.c.l.b16 %v5171
      %v5255 = vunpack.c.l.b16 %v5172
      %v5256 = vunpack.c.l.b16 %v5173
      %v5257 = vunpack.c.l.b16 %v5174
      %v5258 = vunpack.c.l.b16 %v5175
      %v5259 = vunpack.c.l.b16 %v5176
      %v5260 = vunpack.c.l.b16 %v5177
      %v5261 = vunpack.c.l.b16 %v5178
      %v5262 = vunpack.c.l.b16 %v5179
      %v5263 = vunpack.c.l.b16 %v5180
      %v5264 = vunpack.c.l.b16 %v5181
      %v5265 = vunpack.c.l.b16 %v5182
      %v5266 = vunpack.c.l.b16 %v5183
      %v5267 = vunpack.c.l.b16 %v5184
      %v5268 = vunpack.c.l.b16 %v5185
      %v5269 = vpack.c.b16 %v5237, %v5236
      %v5270 = vpack.c.b16 %v5239, %v5238
      %v5271 = vpack.c.b16 %v5241, %v5240
      %v5272 = vpack.c.b16 %v5243, %v5242
      %v5273 = vpack.c.b16 %v5245, %v5244
      %v5274 = vpack.c.b16 %v5247, %v5246
      %v5275 = vpack.c.b16 %v5249, %v5248
      %v5276 = vpack.c.b16 %v5251, %v5250
      %v5277 = vpack.c.b16 %v5253, %v5252
      %v5278 = vpack.c.b16 %v5255, %v5254
      %v5279 = vpack.c.b16 %v5257, %v5256
      %v5280 = vpack.c.b16 %v5259, %v5258
      %v5281 = vpack.c.b16 %v5261, %v5260
      %v5282 = vpack.c.b16 %v5263, %v5262
      %v5283 = vpack.c.b16 %v5265, %v5264
      %v5284 = vpack.c.b16 %v5267, %v5266
      %v5285 = vpack.c.b16 %v5268, %v5268
      %v5287 = vshrl.u32 %v5269, 16
      %v5289 = vrot.slane %v5287, 3
      %v5290 = vshll.u32 %v5269, 16
      %v5292 = vrot.slane %v5290, 4
      %v5293 = vor.u32 %v5289, %v5292
      %v5295 = vshrl.u32 %v5270, 16
      %v5297 = vrot.slane %v5295, 3
      %v5298 = vshll.u32 %v5270, 16
      %v5300 = vrot.slane %v5298, 4
      %v5301 = vor.u32 %v5297, %v5300
      %v5302 = vsel %vm761, %v5293, %v5301
      %v5304 = vshrl.u32 %v5271, 16
      %v5306 = vrot.slane %v5304, 3
      %v5307 = vshll.u32 %v5271, 16
      %v5309 = vrot.slane %v5307, 4
      %v5310 = vor.u32 %v5306, %v5309
      %v5311 = vsel %vm761, %v5301, %v5310
      %v5313 = vshrl.u32 %v5272, 16
      %v5315 = vrot.slane %v5313, 3
      %v5316 = vshll.u32 %v5272, 16
      %v5318 = vrot.slane %v5316, 4
      %v5319 = vor.u32 %v5315, %v5318
      %v5320 = vsel %vm761, %v5310, %v5319
      %v5322 = vshrl.u32 %v5273, 16
      %v5324 = vrot.slane %v5322, 3
      %v5325 = vshll.u32 %v5273, 16
      %v5327 = vrot.slane %v5325, 4
      %v5328 = vor.u32 %v5324, %v5327
      %v5329 = vsel %vm761, %v5319, %v5328
      %v5331 = vshrl.u32 %v5274, 16
      %v5333 = vrot.slane %v5331, 3
      %v5334 = vshll.u32 %v5274, 16
      %v5336 = vrot.slane %v5334, 4
      %v5337 = vor.u32 %v5333, %v5336
      %v5338 = vsel %vm761, %v5328, %v5337
      %v5340 = vshrl.u32 %v5275, 16
      %v5342 = vrot.slane %v5340, 3
      %v5343 = vshll.u32 %v5275, 16
      %v5345 = vrot.slane %v5343, 4
      %v5346 = vor.u32 %v5342, %v5345
      %v5347 = vsel %vm761, %v5337, %v5346
      %v5349 = vshrl.u32 %v5276, 16
      %v5351 = vrot.slane %v5349, 3
      %v5352 = vshll.u32 %v5276, 16
      %v5354 = vrot.slane %v5352, 4
      %v5355 = vor.u32 %v5351, %v5354
      %v5356 = vsel %vm761, %v5346, %v5355
      %v5358 = vshrl.u32 %v5277, 16
      %v5360 = vrot.slane %v5358, 3
      %v5361 = vshll.u32 %v5277, 16
      %v5363 = vrot.slane %v5361, 4
      %v5364 = vor.u32 %v5360, %v5363
      %v5365 = vsel %vm761, %v5355, %v5364
      %v5367 = vshrl.u32 %v5278, 16
      %v5369 = vrot.slane %v5367, 3
      %v5370 = vshll.u32 %v5278, 16
      %v5372 = vrot.slane %v5370, 4
      %v5373 = vor.u32 %v5369, %v5372
      %v5374 = vsel %vm761, %v5364, %v5373
      %v5376 = vshrl.u32 %v5279, 16
      %v5378 = vrot.slane %v5376, 3
      %v5379 = vshll.u32 %v5279, 16
      %v5381 = vrot.slane %v5379, 4
      %v5382 = vor.u32 %v5378, %v5381
      %v5383 = vsel %vm761, %v5373, %v5382
      %v5385 = vshrl.u32 %v5280, 16
      %v5387 = vrot.slane %v5385, 3
      %v5388 = vshll.u32 %v5280, 16
      %v5390 = vrot.slane %v5388, 4
      %v5391 = vor.u32 %v5387, %v5390
      %v5392 = vsel %vm761, %v5382, %v5391
      %v5394 = vshrl.u32 %v5281, 16
      %v5396 = vrot.slane %v5394, 3
      %v5397 = vshll.u32 %v5281, 16
      %v5399 = vrot.slane %v5397, 4
      %v5400 = vor.u32 %v5396, %v5399
      %v5401 = vsel %vm761, %v5391, %v5400
      %v5403 = vshrl.u32 %v5282, 16
      %v5405 = vrot.slane %v5403, 3
      %v5406 = vshll.u32 %v5282, 16
      %v5408 = vrot.slane %v5406, 4
      %v5409 = vor.u32 %v5405, %v5408
      %v5410 = vsel %vm761, %v5400, %v5409
      %v5412 = vshrl.u32 %v5283, 16
      %v5414 = vrot.slane %v5412, 3
      %v5415 = vshll.u32 %v5283, 16
      %v5417 = vrot.slane %v5415, 4
      %v5418 = vor.u32 %v5414, %v5417
      %v5419 = vsel %vm761, %v5409, %v5418
      %v5421 = vshrl.u32 %v5284, 16
      %v5423 = vrot.slane %v5421, 3
      %v5424 = vshll.u32 %v5284, 16
      %v5426 = vrot.slane %v5424, 4
      %v5427 = vor.u32 %v5423, %v5426
      %v5428 = vsel %vm761, %v5418, %v5427
      %v5430 = vshrl.u32 %v5285, 16
      %v5432 = vrot.slane %v5430, 3
      %v5433 = vshll.u32 %v5285, 16
      %v5435 = vrot.slane %v5433, 4
      %v5436 = vor.u32 %v5432, %v5435
      %v5437 = vsel %vm761, %v5427, %v5436
      %v5470 = vunpack.c.l.b16 %v5187
      %v5471 = vunpack.c.l.b16 %v5188
      %v5472 = vunpack.c.l.b16 %v5189
      %v5473 = vunpack.c.l.b16 %v5190
      %v5474 = vunpack.c.l.b16 %v5191
      %v5475 = vunpack.c.l.b16 %v5192
      %v5476 = vunpack.c.l.b16 %v5193
      %v5477 = vunpack.c.l.b16 %v5194
      %v5478 = vunpack.c.l.b16 %v5195
      %v5479 = vunpack.c.l.b16 %v5196
      %v5480 = vunpack.c.l.b16 %v5197
      %v5481 = vunpack.c.l.b16 %v5198
      %v5482 = vunpack.c.l.b16 %v5199
      %v5483 = vunpack.c.l.b16 %v5200
      %v5484 = vunpack.c.l.b16 %v5201
      %v5485 = vunpack.c.l.b16 %v5202
      %v5486 = vpack.c.b16 %v5471, %v5470
      %v5487 = vpack.c.b16 %v5473, %v5472
      %v5488 = vpack.c.b16 %v5475, %v5474
      %v5489 = vpack.c.b16 %v5477, %v5476
      %v5490 = vpack.c.b16 %v5479, %v5478
      %v5491 = vpack.c.b16 %v5481, %v5480
      %v5492 = vpack.c.b16 %v5483, %v5482
      %v5493 = vpack.c.b16 %v5485, %v5484
      %5502 = vmatprep.subr.bf16.mxu0 0
      %5503 = vmatpush1.bf16.msra.mxu0 %v5493
      %5504 = vmatprep.subr.bf16.mxu0 0
      %5505 = vmatpush1.bf16.msra.mxu0 %v5492
      %5506 = vmatprep.subr.bf16.mxu0 0
      %5507 = vmatpush1.bf16.msra.mxu0 %v5491
      %5508 = vmatprep.subr.bf16.mxu0 0
      %5509 = vmatpush1.bf16.msra.mxu0 %v5490
      %5510 = vmatprep.subr.bf16.mxu0 0
      %5511 = vmatpush1.bf16.msra.mxu0 %v5489
      %5512 = vmatprep.subr.bf16.mxu0 0
      %5513 = vmatpush1.bf16.msra.mxu0 %v5488
      %5514 = vmatprep.subr.bf16.mxu0 0
      %5515 = vmatpush1.bf16.msra.mxu0 %v5487
      %5516 = vmatprep.subr.bf16.mxu0 0
      %5517 = vmatpush1.bf16.msra.mxu0 %v5486
      %5518 = vmatprep.subr.bf16.mxu0 0
      %5519 = vmatpush2.bf16.msra.mxu0 0
      %5520 = vmatprep.subr.bf16.mxu0 0
      %5521 = vmatpush2.bf16.msra.mxu0 0
      %5522 = vmatprep.subr.bf16.mxu0 0
      %5523 = vmatpush2.bf16.msra.mxu0 0
      %5524 = vmatprep.subr.bf16.mxu0 0
      %5525 = vmatpush2.bf16.msra.mxu0 0
      %5526 = vmatprep.subr.bf16.mxu0 0
      %5527 = vmatpush2.bf16.msra.mxu0 0
      %5528 = vmatprep.subr.bf16.mxu0 0
      %5529 = vmatpush2.bf16.msra.mxu0 0
      %5530 = vmatprep.subr.bf16.mxu0 0
      %5531 = vmatpush2.bf16.msra.mxu0 0
      %5532 = vmatprep.subr.bf16.mxu0 0
      %5533 = vmatpush2.bf16.msra.mxu0 0
      %5534 = vmatprep.mubr.bf16.mxu0 0
      %5535 = vmatmul.mubr.bf16.gmra.mxu0 %v5302
      %v5536 = vpop.f32.mrf.mxu0
      %v5537 = vadd.f32 0.0, %v5536
      %v5538 = vpop.f32.mrf.mxu0
      %v5539 = vpop.f32.mrf.mxu0
      %v5540 = vadd.f32 0.0, %v5539
      %v5541 = vpop.f32.mrf.mxu0
      %5542 = vmatprep.mubr.bf16.mxu0 0
      %5543 = vmatmul.mubr.bf16.gmra.mxu0 %v5311
      %v5544 = vpop.f32.mrf.mxu0
      %v5545 = vadd.f32 0.0, %v5544
      %v5546 = vpop.f32.mrf.mxu0
      %v5547 = vpop.f32.mrf.mxu0
      %v5548 = vadd.f32 0.0, %v5547
      %v5549 = vpop.f32.mrf.mxu0
      %5550 = vmatprep.mubr.bf16.mxu0 0
      %5551 = vmatmul.mubr.bf16.gmra.mxu0 %v5320
      %v5552 = vpop.f32.mrf.mxu0
      %v5553 = vadd.f32 0.0, %v5552
      %v5554 = vpop.f32.mrf.mxu0
      %v5555 = vpop.f32.mrf.mxu0
      %v5556 = vadd.f32 0.0, %v5555
      %v5557 = vpop.f32.mrf.mxu0
      %5558 = vmatprep.mubr.bf16.mxu0 0
      %5559 = vmatmul.mubr.bf16.gmra.mxu0 %v5329
      %v5560 = vpop.f32.mrf.mxu0
      %v5561 = vadd.f32 0.0, %v5560
      %v5562 = vpop.f32.mrf.mxu0
      %v5563 = vpop.f32.mrf.mxu0
      %v5564 = vadd.f32 0.0, %v5563
      %v5565 = vpop.f32.mrf.mxu0
      %5566 = vmatprep.mubr.bf16.mxu0 0
      %5567 = vmatmul.mubr.bf16.gmra.mxu0 %v5338
      %v5568 = vpop.f32.mrf.mxu0
      %v5569 = vadd.f32 0.0, %v5568
      %v5570 = vpop.f32.mrf.mxu0
      %v5571 = vpop.f32.mrf.mxu0
      %v5572 = vadd.f32 0.0, %v5571
      %v5573 = vpop.f32.mrf.mxu0
      %5574 = vmatprep.mubr.bf16.mxu0 0
      %5575 = vmatmul.mubr.bf16.gmra.mxu0 %v5347
      %v5576 = vpop.f32.mrf.mxu0
      %v5577 = vadd.f32 0.0, %v5576
      %v5578 = vpop.f32.mrf.mxu0
      %v5579 = vpop.f32.mrf.mxu0
      %v5580 = vadd.f32 0.0, %v5579
      %v5581 = vpop.f32.mrf.mxu0
      %5582 = vmatprep.mubr.bf16.mxu0 0
      %5583 = vmatmul.mubr.bf16.gmra.mxu0 %v5356
      %v5584 = vpop.f32.mrf.mxu0
      %v5585 = vadd.f32 0.0, %v5584
      %v5586 = vpop.f32.mrf.mxu0
      %v5587 = vpop.f32.mrf.mxu0
      %v5588 = vadd.f32 0.0, %v5587
      %v5589 = vpop.f32.mrf.mxu0
      %5590 = vmatprep.mubr.bf16.mxu0 0
      %5591 = vmatmul.mubr.bf16.gmra.mxu0 %v5365
      %v5592 = vpop.f32.mrf.mxu0
      %v5593 = vadd.f32 0.0, %v5592
      %v5594 = vpop.f32.mrf.mxu0
      %v5595 = vpop.f32.mrf.mxu0
      %v5596 = vadd.f32 0.0, %v5595
      %v5597 = vpop.f32.mrf.mxu0
      %5598 = vmatprep.mubr.bf16.mxu0 0
      %5599 = vmatmul.mubr.bf16.gmra.mxu0 %v5374
      %v5600 = vpop.f32.mrf.mxu0
      %v5601 = vadd.f32 0.0, %v5600
      %v5602 = vpop.f32.mrf.mxu0
      %v5603 = vpop.f32.mrf.mxu0
      %v5604 = vadd.f32 0.0, %v5603
      %v5605 = vpop.f32.mrf.mxu0
      %5606 = vmatprep.mubr.bf16.mxu0 0
      %5607 = vmatmul.mubr.bf16.gmra.mxu0 %v5383
      %v5608 = vpop.f32.mrf.mxu0
      %v5609 = vadd.f32 0.0, %v5608
      %v5610 = vpop.f32.mrf.mxu0
      %v5611 = vpop.f32.mrf.mxu0
      %v5612 = vadd.f32 0.0, %v5611
      %v5613 = vpop.f32.mrf.mxu0
      %5614 = vmatprep.mubr.bf16.mxu0 0
      %5615 = vmatmul.mubr.bf16.gmra.mxu0 %v5392
      %v5616 = vpop.f32.mrf.mxu0
      %v5617 = vadd.f32 0.0, %v5616
      %v5618 = vpop.f32.mrf.mxu0
      %v5619 = vpop.f32.mrf.mxu0
      %v5620 = vadd.f32 0.0, %v5619
      %v5621 = vpop.f32.mrf.mxu0
      %5622 = vmatprep.mubr.bf16.mxu0 0
      %5623 = vmatmul.mubr.bf16.gmra.mxu0 %v5401
      %v5624 = vpop.f32.mrf.mxu0
      %v5625 = vadd.f32 0.0, %v5624
      %v5626 = vpop.f32.mrf.mxu0
      %v5627 = vpop.f32.mrf.mxu0
      %v5628 = vadd.f32 0.0, %v5627
      %v5629 = vpop.f32.mrf.mxu0
      %5630 = vmatprep.mubr.bf16.mxu0 0
      %5631 = vmatmul.mubr.bf16.gmra.mxu0 %v5410
      %v5632 = vpop.f32.mrf.mxu0
      %v5633 = vadd.f32 0.0, %v5632
      %v5634 = vpop.f32.mrf.mxu0
      %v5635 = vpop.f32.mrf.mxu0
      %v5636 = vadd.f32 0.0, %v5635
      %v5637 = vpop.f32.mrf.mxu0
      %5638 = vmatprep.mubr.bf16.mxu0 0
      %5639 = vmatmul.mubr.bf16.gmra.mxu0 %v5419
      %v5640 = vpop.f32.mrf.mxu0
      %v5641 = vadd.f32 0.0, %v5640
      %v5642 = vpop.f32.mrf.mxu0
      %v5643 = vpop.f32.mrf.mxu0
      %v5644 = vadd.f32 0.0, %v5643
      %v5645 = vpop.f32.mrf.mxu0
      %5646 = vmatprep.mubr.bf16.mxu0 0
      %5647 = vmatmul.mubr.bf16.gmra.mxu0 %v5428
      %v5648 = vpop.f32.mrf.mxu0
      %v5649 = vadd.f32 0.0, %v5648
      %v5650 = vpop.f32.mrf.mxu0
      %v5651 = vpop.f32.mrf.mxu0
      %v5652 = vadd.f32 0.0, %v5651
      %v5653 = vpop.f32.mrf.mxu0
      %5654 = vmatprep.mubr.bf16.mxu0 0
      %5655 = vmatmul.mubr.bf16.gmra.mxu0 %v5437
      %v5656 = vpop.f32.mrf.mxu0
      %v5657 = vadd.f32 0.0, %v5656
      %v5658 = vpop.f32.mrf.mxu0
      %v5659 = vpop.f32.mrf.mxu0
      %v5660 = vadd.f32 0.0, %v5659
      %v5661 = vpop.f32.mrf.mxu0
      %5662 = vdwg.mxu0
      %v5663 = vadd.f32 %v5027, %v5537
      %v5664 = vadd.f32 %v5030, %v5540
      %v5665 = vadd.f32 %v5035, %v5545
      %v5666 = vadd.f32 %v5038, %v5548
      %v5667 = vadd.f32 %v5043, %v5553
      %v5668 = vadd.f32 %v5046, %v5556
      %v5669 = vadd.f32 %v5051, %v5561
      %v5670 = vadd.f32 %v5054, %v5564
      %v5671 = vadd.f32 %v5059, %v5569
      %v5672 = vadd.f32 %v5062, %v5572
      %v5673 = vadd.f32 %v5067, %v5577
      %v5674 = vadd.f32 %v5070, %v5580
      %v5675 = vadd.f32 %v5075, %v5585
      %v5676 = vadd.f32 %v5078, %v5588
      %v5677 = vadd.f32 %v5083, %v5593
      %v5678 = vadd.f32 %v5086, %v5596
      %v5679 = vadd.f32 %v5091, %v5601
      %v5680 = vadd.f32 %v5094, %v5604
      %v5681 = vadd.f32 %v5099, %v5609
      %v5682 = vadd.f32 %v5102, %v5612
      %v5683 = vadd.f32 %v5107, %v5617
      %v5684 = vadd.f32 %v5110, %v5620
      %v5685 = vadd.f32 %v5115, %v5625
      %v5686 = vadd.f32 %v5118, %v5628
      %v5687 = vadd.f32 %v5123, %v5633
      %v5688 = vadd.f32 %v5126, %v5636
      %v5689 = vadd.f32 %v5131, %v5641
      %v5690 = vadd.f32 %v5134, %v5644
      %v5691 = vadd.f32 %v5139, %v5649
      %v5692 = vadd.f32 %v5142, %v5652
      %v5693 = vadd.f32 %v5147, %v5657
      %v5694 = vadd.f32 %v5150, %v5660
      %v5695 = vmul.f32 %v5663, %v409
      %v5696 = vmul.f32 %v5664, %v410
      %v5697 = vmul.f32 %v5665, %v411
      %v5698 = vmul.f32 %v5666, %v412
      %v5699 = vmul.f32 %v5667, %v413
      %v5700 = vmul.f32 %v5668, %v414
      %v5701 = vmul.f32 %v5669, %v415
      %v5702 = vmul.f32 %v5670, %v416
      %v5703 = vmul.f32 %v5671, %v417
      %v5704 = vmul.f32 %v5672, %v418
      %v5705 = vmul.f32 %v5673, %v419
      %v5706 = vmul.f32 %v5674, %v420
      %v5707 = vmul.f32 %v5675, %v421
      %v5708 = vmul.f32 %v5676, %v422
      %v5709 = vmul.f32 %v5677, %v423
      %v5710 = vmul.f32 %v5678, %v424
      %v5711 = vmul.f32 %v5679, %v425
      %v5712 = vmul.f32 %v5680, %v426
      %v5713 = vmul.f32 %v5681, %v427
      %v5714 = vmul.f32 %v5682, %v428
      %v5715 = vmul.f32 %v5683, %v429
      %v5716 = vmul.f32 %v5684, %v430
      %v5717 = vmul.f32 %v5685, %v431
      %v5718 = vmul.f32 %v5686, %v432
      %v5719 = vmul.f32 %v5687, %v433
      %v5720 = vmul.f32 %v5688, %v434
      %v5721 = vmul.f32 %v5689, %v435
      %v5722 = vmul.f32 %v5690, %v436
      %v5723 = vmul.f32 %v5691, %v437
      %v5724 = vmul.f32 %v5692, %v438
      %v5725 = vmul.f32 %v5693, %v439
      %v5726 = vmul.f32 %v5694, %v440
      %s5727 = scalar_lea.vmem %s4, 64
      %v5728 = vld [vmem:[%s5727] sm:$0xf]
      %v5729 = vld [vmem:[%s5727 + $0x4] sm:$0xf]
      %v5730 = vld [vmem:[%s5727 + $0x8] sm:$0xf]
      %v5731 = vld [vmem:[%s5727 + $0xc] sm:$0xf]
      %v5732 = vld [vmem:[%s5727 + $0x10] sm:$0xf]
      %v5733 = vld [vmem:[%s5727 + $0x14] sm:$0xf]
      %v5734 = vld [vmem:[%s5727 + $0x18] sm:$0xf]
      %v5735 = vld [vmem:[%s5727 + $0x1c] sm:$0xf]
      %v5736 = vld [vmem:[%s5727 + $0x20] sm:$0xf]
      %v5737 = vld [vmem:[%s5727 + $0x24] sm:$0xf]
      %v5738 = vld [vmem:[%s5727 + $0x28] sm:$0xf]
      %v5739 = vld [vmem:[%s5727 + $0x2c] sm:$0xf]
      %v5740 = vld [vmem:[%s5727 + $0x30] sm:$0xf]
      %v5741 = vld [vmem:[%s5727 + $0x34] sm:$0xf]
      %v5742 = vld [vmem:[%s5727 + $0x38] sm:$0xf]
      %v5743 = vld [vmem:[%s5727 + $0x3c] sm:$0xf]
      %s5744 = scalar_lea.vmem %s4, 256
      %v5745 = vld [vmem:[%s5744] sm:$0xf]
      %v5746 = vld [vmem:[%s5744 + $0x4] sm:$0xf]
      %v5747 = vld [vmem:[%s5744 + $0x8] sm:$0xf]
      %v5748 = vld [vmem:[%s5744 + $0xc] sm:$0xf]
      %v5749 = vld [vmem:[%s5744 + $0x10] sm:$0xf]
      %v5750 = vld [vmem:[%s5744 + $0x14] sm:$0xf]
      %v5751 = vld [vmem:[%s5744 + $0x18] sm:$0xf]
      %v5752 = vld [vmem:[%s5744 + $0x1c] sm:$0xf]
      %v5753 = vld [vmem:[%s5744 + $0x20] sm:$0xf]
      %v5754 = vld [vmem:[%s5744 + $0x24] sm:$0xf]
      %v5755 = vld [vmem:[%s5744 + $0x28] sm:$0xf]
      %v5756 = vld [vmem:[%s5744 + $0x2c] sm:$0xf]
      %v5757 = vld [vmem:[%s5744 + $0x30] sm:$0xf]
      %v5758 = vld [vmem:[%s5744 + $0x34] sm:$0xf]
      %v5759 = vld [vmem:[%s5744 + $0x38] sm:$0xf]
      %v5760 = vld [vmem:[%s5744 + $0x3c] sm:$0xf]
      %v5761 = vpack.c.b16 %v4480, %v4479
      %v5762 = vpack.c.b16 %v4482, %v4481
      %v5763 = vpack.c.b16 %v4484, %v4483
      %v5764 = vpack.c.b16 %v4486, %v4485
      %v5765 = vpack.c.b16 %v4488, %v4487
      %v5766 = vpack.c.b16 %v4490, %v4489
      %v5767 = vpack.c.b16 %v4492, %v4491
      %v5768 = vpack.c.b16 %v4494, %v4493
      %v5769 = vpack.c.b16 %v4496, %v4495
      %v5770 = vpack.c.b16 %v4498, %v4497
      %v5771 = vpack.c.b16 %v4500, %v4499
      %v5772 = vpack.c.b16 %v4502, %v4501
      %v5773 = vpack.c.b16 %v4504, %v4503
      %v5774 = vpack.c.b16 %v4506, %v4505
      %v5775 = vpack.c.b16 %v4508, %v4507
      %v5776 = vpack.c.b16 %v4510, %v4509
      %v5809 = vunpack.c.l.b16 %v5745
      %v5810 = vunpack.c.l.b16 %v5746
      %v5811 = vunpack.c.l.b16 %v5747
      %v5812 = vunpack.c.l.b16 %v5748
      %v5813 = vunpack.c.l.b16 %v5749
      %v5814 = vunpack.c.l.b16 %v5750
      %v5815 = vunpack.c.l.b16 %v5751
      %v5816 = vunpack.c.l.b16 %v5752
      %v5817 = vunpack.c.l.b16 %v5753
      %v5818 = vunpack.c.l.b16 %v5754
      %v5819 = vunpack.c.l.b16 %v5755
      %v5820 = vunpack.c.l.b16 %v5756
      %v5821 = vunpack.c.l.b16 %v5757
      %v5822 = vunpack.c.l.b16 %v5758
      %v5823 = vunpack.c.l.b16 %v5759
      %v5824 = vunpack.c.l.b16 %v5760
      %v5825 = vpack.c.b16 %v5810, %v5809
      %v5826 = vpack.c.b16 %v5812, %v5811
      %v5827 = vpack.c.b16 %v5814, %v5813
      %v5828 = vpack.c.b16 %v5816, %v5815
      %v5829 = vpack.c.b16 %v5818, %v5817
      %v5830 = vpack.c.b16 %v5820, %v5819
      %v5831 = vpack.c.b16 %v5822, %v5821
      %v5832 = vpack.c.b16 %v5824, %v5823
      %5841 = vmatprep.subr.bf16.mxu0 0
      %5842 = vmatpush1.bf16.msra.mxu0 %v5832
      %5843 = vmatprep.subr.bf16.mxu0 0
      %5844 = vmatpush1.bf16.msra.mxu0 %v5831
      %5845 = vmatprep.subr.bf16.mxu0 0
      %5846 = vmatpush1.bf16.msra.mxu0 %v5830
      %5847 = vmatprep.subr.bf16.mxu0 0
      %5848 = vmatpush1.bf16.msra.mxu0 %v5829
      %5849 = vmatprep.subr.bf16.mxu0 0
      %5850 = vmatpush1.bf16.msra.mxu0 %v5828
      %5851 = vmatprep.subr.bf16.mxu0 0
      %5852 = vmatpush1.bf16.msra.mxu0 %v5827
      %5853 = vmatprep.subr.bf16.mxu0 0
      %5854 = vmatpush1.bf16.msra.mxu0 %v5826
      %5855 = vmatprep.subr.bf16.mxu0 0
      %5856 = vmatpush1.bf16.msra.mxu0 %v5825
      %5857 = vmatprep.subr.bf16.mxu0 0
      %5858 = vmatpush2.bf16.msra.mxu0 0
      %5859 = vmatprep.subr.bf16.mxu0 0
      %5860 = vmatpush2.bf16.msra.mxu0 0
      %5861 = vmatprep.subr.bf16.mxu0 0
      %5862 = vmatpush2.bf16.msra.mxu0 0
      %5863 = vmatprep.subr.bf16.mxu0 0
      %5864 = vmatpush2.bf16.msra.mxu0 0
      %5865 = vmatprep.subr.bf16.mxu0 0
      %5866 = vmatpush2.bf16.msra.mxu0 0
      %5867 = vmatprep.subr.bf16.mxu0 0
      %5868 = vmatpush2.bf16.msra.mxu0 0
      %5869 = vmatprep.subr.bf16.mxu0 0
      %5870 = vmatpush2.bf16.msra.mxu0 0
      %5871 = vmatprep.subr.bf16.mxu0 0
      %5872 = vmatpush2.bf16.msra.mxu0 0
      %5873 = vmatprep.mubr.bf16.mxu0 0
      %5874 = vmatmul.mubr.bf16.gmra.mxu0 %v5761
      %v5875 = vpop.f32.mrf.mxu0
      %v5876 = vadd.f32 0.0, %v5875
      %v5877 = vpop.f32.mrf.mxu0
      %v5878 = vpop.f32.mrf.mxu0
      %v5879 = vadd.f32 0.0, %v5878
      %v5880 = vpop.f32.mrf.mxu0
      %5881 = vmatprep.mubr.bf16.mxu0 0
      %5882 = vmatmul.mubr.bf16.gmra.mxu0 %v5762
      %v5883 = vpop.f32.mrf.mxu0
      %v5884 = vadd.f32 0.0, %v5883
      %v5885 = vpop.f32.mrf.mxu0
      %v5886 = vpop.f32.mrf.mxu0
      %v5887 = vadd.f32 0.0, %v5886
      %v5888 = vpop.f32.mrf.mxu0
      %5889 = vmatprep.mubr.bf16.mxu0 0
      %5890 = vmatmul.mubr.bf16.gmra.mxu0 %v5763
      %v5891 = vpop.f32.mrf.mxu0
      %v5892 = vadd.f32 0.0, %v5891
      %v5893 = vpop.f32.mrf.mxu0
      %v5894 = vpop.f32.mrf.mxu0
      %v5895 = vadd.f32 0.0, %v5894
      %v5896 = vpop.f32.mrf.mxu0
      %5897 = vmatprep.mubr.bf16.mxu0 0
      %5898 = vmatmul.mubr.bf16.gmra.mxu0 %v5764
      %v5899 = vpop.f32.mrf.mxu0
      %v5900 = vadd.f32 0.0, %v5899
      %v5901 = vpop.f32.mrf.mxu0
      %v5902 = vpop.f32.mrf.mxu0
      %v5903 = vadd.f32 0.0, %v5902
      %v5904 = vpop.f32.mrf.mxu0
      %5905 = vmatprep.mubr.bf16.mxu0 0
      %5906 = vmatmul.mubr.bf16.gmra.mxu0 %v5765
      %v5907 = vpop.f32.mrf.mxu0
      %v5908 = vadd.f32 0.0, %v5907
      %v5909 = vpop.f32.mrf.mxu0
      %v5910 = vpop.f32.mrf.mxu0
      %v5911 = vadd.f32 0.0, %v5910
      %v5912 = vpop.f32.mrf.mxu0
      %5913 = vmatprep.mubr.bf16.mxu0 0
      %5914 = vmatmul.mubr.bf16.gmra.mxu0 %v5766
      %v5915 = vpop.f32.mrf.mxu0
      %v5916 = vadd.f32 0.0, %v5915
      %v5917 = vpop.f32.mrf.mxu0
      %v5918 = vpop.f32.mrf.mxu0
      %v5919 = vadd.f32 0.0, %v5918
      %v5920 = vpop.f32.mrf.mxu0
      %5921 = vmatprep.mubr.bf16.mxu0 0
      %5922 = vmatmul.mubr.bf16.gmra.mxu0 %v5767
      %v5923 = vpop.f32.mrf.mxu0
      %v5924 = vadd.f32 0.0, %v5923
      %v5925 = vpop.f32.mrf.mxu0
      %v5926 = vpop.f32.mrf.mxu0
      %v5927 = vadd.f32 0.0, %v5926
      %v5928 = vpop.f32.mrf.mxu0
      %5929 = vmatprep.mubr.bf16.mxu0 0
      %5930 = vmatmul.mubr.bf16.gmra.mxu0 %v5768
      %v5931 = vpop.f32.mrf.mxu0
      %v5932 = vadd.f32 0.0, %v5931
      %v5933 = vpop.f32.mrf.mxu0
      %v5934 = vpop.f32.mrf.mxu0
      %v5935 = vadd.f32 0.0, %v5934
      %v5936 = vpop.f32.mrf.mxu0
      %5937 = vmatprep.mubr.bf16.mxu0 0
      %5938 = vmatmul.mubr.bf16.gmra.mxu0 %v5769
      %v5939 = vpop.f32.mrf.mxu0
      %v5940 = vadd.f32 0.0, %v5939
      %v5941 = vpop.f32.mrf.mxu0
      %v5942 = vpop.f32.mrf.mxu0
      %v5943 = vadd.f32 0.0, %v5942
      %v5944 = vpop.f32.mrf.mxu0
      %5945 = vmatprep.mubr.bf16.mxu0 0
      %5946 = vmatmul.mubr.bf16.gmra.mxu0 %v5770
      %v5947 = vpop.f32.mrf.mxu0
      %v5948 = vadd.f32 0.0, %v5947
      %v5949 = vpop.f32.mrf.mxu0
      %v5950 = vpop.f32.mrf.mxu0
      %v5951 = vadd.f32 0.0, %v5950
      %v5952 = vpop.f32.mrf.mxu0
      %5953 = vmatprep.mubr.bf16.mxu0 0
      %5954 = vmatmul.mubr.bf16.gmra.mxu0 %v5771
      %v5955 = vpop.f32.mrf.mxu0
      %v5956 = vadd.f32 0.0, %v5955
      %v5957 = vpop.f32.mrf.mxu0
      %v5958 = vpop.f32.mrf.mxu0
      %v5959 = vadd.f32 0.0, %v5958
      %v5960 = vpop.f32.mrf.mxu0
      %5961 = vmatprep.mubr.bf16.mxu0 0
      %5962 = vmatmul.mubr.bf16.gmra.mxu0 %v5772
      %v5963 = vpop.f32.mrf.mxu0
      %v5964 = vadd.f32 0.0, %v5963
      %v5965 = vpop.f32.mrf.mxu0
      %v5966 = vpop.f32.mrf.mxu0
      %v5967 = vadd.f32 0.0, %v5966
      %v5968 = vpop.f32.mrf.mxu0
      %5969 = vmatprep.mubr.bf16.mxu0 0
      %5970 = vmatmul.mubr.bf16.gmra.mxu0 %v5773
      %v5971 = vpop.f32.mrf.mxu0
      %v5972 = vadd.f32 0.0, %v5971
      %v5973 = vpop.f32.mrf.mxu0
      %v5974 = vpop.f32.mrf.mxu0
      %v5975 = vadd.f32 0.0, %v5974
      %v5976 = vpop.f32.mrf.mxu0
      %5977 = vmatprep.mubr.bf16.mxu0 0
      %5978 = vmatmul.mubr.bf16.gmra.mxu0 %v5774
      %v5979 = vpop.f32.mrf.mxu0
      %v5980 = vadd.f32 0.0, %v5979
      %v5981 = vpop.f32.mrf.mxu0
      %v5982 = vpop.f32.mrf.mxu0
      %v5983 = vadd.f32 0.0, %v5982
      %v5984 = vpop.f32.mrf.mxu0
      %5985 = vmatprep.mubr.bf16.mxu0 0
      %5986 = vmatmul.mubr.bf16.gmra.mxu0 %v5775
      %v5987 = vpop.f32.mrf.mxu0
      %v5988 = vadd.f32 0.0, %v5987
      %v5989 = vpop.f32.mrf.mxu0
      %v5990 = vpop.f32.mrf.mxu0
      %v5991 = vadd.f32 0.0, %v5990
      %v5992 = vpop.f32.mrf.mxu0
      %5993 = vmatprep.mubr.bf16.mxu0 0
      %5994 = vmatmul.mubr.bf16.gmra.mxu0 %v5776
      %v5995 = vpop.f32.mrf.mxu0
      %v5996 = vadd.f32 0.0, %v5995
      %v5997 = vpop.f32.mrf.mxu0
      %v5998 = vpop.f32.mrf.mxu0
      %v5999 = vadd.f32 0.0, %v5998
      %v6000 = vpop.f32.mrf.mxu0
      %6001 = vdwg.mxu0
      %v6002 = vpack.c.b16 %v4910, %v4909
      %v6020 = vunpack.c.l.b16 %v5728
      %v6021 = vunpack.c.l.b16 %v5729
      %v6022 = vunpack.c.l.b16 %v5730
      %v6023 = vunpack.c.l.b16 %v5731
      %v6024 = vunpack.c.l.b16 %v5732
      %v6025 = vunpack.c.l.b16 %v5733
      %v6026 = vunpack.c.l.b16 %v5734
      %v6027 = vunpack.c.l.b16 %v5735
      %v6028 = vunpack.c.l.b16 %v5736
      %v6029 = vunpack.c.l.b16 %v5737
      %v6030 = vunpack.c.l.b16 %v5738
      %v6031 = vunpack.c.l.b16 %v5739
      %v6032 = vunpack.c.l.b16 %v5740
      %v6033 = vunpack.c.l.b16 %v5741
      %v6034 = vunpack.c.l.b16 %v5742
      %v6035 = vunpack.c.l.b16 %v5743
      %v6036 = vpack.c.b16 %v6021, %v6020
      %v6037 = vpack.c.b16 %v6023, %v6022
      %v6038 = vpack.c.b16 %v6025, %v6024
      %v6039 = vpack.c.b16 %v6027, %v6026
      %v6040 = vpack.c.b16 %v6029, %v6028
      %v6041 = vpack.c.b16 %v6031, %v6030
      %v6042 = vpack.c.b16 %v6033, %v6032
      %v6043 = vpack.c.b16 %v6035, %v6034
      %6052 = vmatprep.subr.bf16.mxu0 0
      %6053 = vmatpush1.bf16.msra.mxu0 %v6043
      %6054 = vmatprep.subr.bf16.mxu0 0
      %6055 = vmatpush1.bf16.msra.mxu0 %v6042
      %6056 = vmatprep.subr.bf16.mxu0 0
      %6057 = vmatpush1.bf16.msra.mxu0 %v6041
      %6058 = vmatprep.subr.bf16.mxu0 0
      %6059 = vmatpush1.bf16.msra.mxu0 %v6040
      %6060 = vmatprep.subr.bf16.mxu0 0
      %6061 = vmatpush1.bf16.msra.mxu0 %v6039
      %6062 = vmatprep.subr.bf16.mxu0 0
      %6063 = vmatpush1.bf16.msra.mxu0 %v6038
      %6064 = vmatprep.subr.bf16.mxu0 0
      %6065 = vmatpush1.bf16.msra.mxu0 %v6037
      %6066 = vmatprep.subr.bf16.mxu0 0
      %6067 = vmatpush1.bf16.msra.mxu0 %v6036
      %6068 = vmatprep.subr.bf16.mxu0 0
      %6069 = vmatpush2.bf16.msra.mxu0 0
      %6070 = vmatprep.subr.bf16.mxu0 0
      %6071 = vmatpush2.bf16.msra.mxu0 0
      %6072 = vmatprep.subr.bf16.mxu0 0
      %6073 = vmatpush2.bf16.msra.mxu0 0
      %6074 = vmatprep.subr.bf16.mxu0 0
      %6075 = vmatpush2.bf16.msra.mxu0 0
      %6076 = vmatprep.subr.bf16.mxu0 0
      %6077 = vmatpush2.bf16.msra.mxu0 0
      %6078 = vmatprep.subr.bf16.mxu0 0
      %6079 = vmatpush2.bf16.msra.mxu0 0
      %6080 = vmatprep.subr.bf16.mxu0 0
      %6081 = vmatpush2.bf16.msra.mxu0 0
      %6082 = vmatprep.subr.bf16.mxu0 0
      %6083 = vmatpush2.bf16.msra.mxu0 0
      %6084 = vmatprep.mubr.bf16.mxu0 0
      %6085 = vmatmul.mubr.bf16.gmra.mxu0 %v6002
      %v6086 = vpop.f32.mrf.mxu0
      %v6087 = vadd.f32 %v5876, %v6086
      %v6088 = vpop.f32.mrf.mxu0
      %v6089 = vpop.f32.mrf.mxu0
      %v6090 = vadd.f32 %v5879, %v6089
      %v6091 = vpop.f32.mrf.mxu0
      %6092 = vmatprep.mubr.bf16.mxu0 0
      %6093 = vmatmul.mubr.bf16.gmra.mxu0 %v5761
      %v6094 = vpop.f32.mrf.mxu0
      %v6095 = vadd.f32 %v5884, %v6094
      %v6096 = vpop.f32.mrf.mxu0
      %v6097 = vpop.f32.mrf.mxu0
      %v6098 = vadd.f32 %v5887, %v6097
      %v6099 = vpop.f32.mrf.mxu0
      %6100 = vmatprep.mubr.bf16.mxu0 0
      %6101 = vmatmul.mubr.bf16.gmra.mxu0 %v5762
      %v6102 = vpop.f32.mrf.mxu0
      %v6103 = vadd.f32 %v5892, %v6102
      %v6104 = vpop.f32.mrf.mxu0
      %v6105 = vpop.f32.mrf.mxu0
      %v6106 = vadd.f32 %v5895, %v6105
      %v6107 = vpop.f32.mrf.mxu0
      %6108 = vmatprep.mubr.bf16.mxu0 0
      %6109 = vmatmul.mubr.bf16.gmra.mxu0 %v5763
      %v6110 = vpop.f32.mrf.mxu0
      %v6111 = vadd.f32 %v5900, %v6110
      %v6112 = vpop.f32.mrf.mxu0
      %v6113 = vpop.f32.mrf.mxu0
      %v6114 = vadd.f32 %v5903, %v6113
      %v6115 = vpop.f32.mrf.mxu0
      %6116 = vmatprep.mubr.bf16.mxu0 0
      %6117 = vmatmul.mubr.bf16.gmra.mxu0 %v5764
      %v6118 = vpop.f32.mrf.mxu0
      %v6119 = vadd.f32 %v5908, %v6118
      %v6120 = vpop.f32.mrf.mxu0
      %v6121 = vpop.f32.mrf.mxu0
      %v6122 = vadd.f32 %v5911, %v6121
      %v6123 = vpop.f32.mrf.mxu0
      %6124 = vmatprep.mubr.bf16.mxu0 0
      %6125 = vmatmul.mubr.bf16.gmra.mxu0 %v5765
      %v6126 = vpop.f32.mrf.mxu0
      %v6127 = vadd.f32 %v5916, %v6126
      %v6128 = vpop.f32.mrf.mxu0
      %v6129 = vpop.f32.mrf.mxu0
      %v6130 = vadd.f32 %v5919, %v6129
      %v6131 = vpop.f32.mrf.mxu0
      %6132 = vmatprep.mubr.bf16.mxu0 0
      %6133 = vmatmul.mubr.bf16.gmra.mxu0 %v5766
      %v6134 = vpop.f32.mrf.mxu0
      %v6135 = vadd.f32 %v5924, %v6134
      %v6136 = vpop.f32.mrf.mxu0
      %v6137 = vpop.f32.mrf.mxu0
      %v6138 = vadd.f32 %v5927, %v6137
      %v6139 = vpop.f32.mrf.mxu0
      %6140 = vmatprep.mubr.bf16.mxu0 0
      %6141 = vmatmul.mubr.bf16.gmra.mxu0 %v5767
      %v6142 = vpop.f32.mrf.mxu0
      %v6143 = vadd.f32 %v5932, %v6142
      %v6144 = vpop.f32.mrf.mxu0
      %v6145 = vpop.f32.mrf.mxu0
      %v6146 = vadd.f32 %v5935, %v6145
      %v6147 = vpop.f32.mrf.mxu0
      %6148 = vmatprep.mubr.bf16.mxu0 0
      %6149 = vmatmul.mubr.bf16.gmra.mxu0 %v5768
      %v6150 = vpop.f32.mrf.mxu0
      %v6151 = vadd.f32 %v5940, %v6150
      %v6152 = vpop.f32.mrf.mxu0
      %v6153 = vpop.f32.mrf.mxu0
      %v6154 = vadd.f32 %v5943, %v6153
      %v6155 = vpop.f32.mrf.mxu0
      %6156 = vmatprep.mubr.bf16.mxu0 0
      %6157 = vmatmul.mubr.bf16.gmra.mxu0 %v5769
      %v6158 = vpop.f32.mrf.mxu0
      %v6159 = vadd.f32 %v5948, %v6158
      %v6160 = vpop.f32.mrf.mxu0
      %v6161 = vpop.f32.mrf.mxu0
      %v6162 = vadd.f32 %v5951, %v6161
      %v6163 = vpop.f32.mrf.mxu0
      %6164 = vmatprep.mubr.bf16.mxu0 0
      %6165 = vmatmul.mubr.bf16.gmra.mxu0 %v5770
      %v6166 = vpop.f32.mrf.mxu0
      %v6167 = vadd.f32 %v5956, %v6166
      %v6168 = vpop.f32.mrf.mxu0
      %v6169 = vpop.f32.mrf.mxu0
      %v6170 = vadd.f32 %v5959, %v6169
      %v6171 = vpop.f32.mrf.mxu0
      %6172 = vmatprep.mubr.bf16.mxu0 0
      %6173 = vmatmul.mubr.bf16.gmra.mxu0 %v5771
      %v6174 = vpop.f32.mrf.mxu0
      %v6175 = vadd.f32 %v5964, %v6174
      %v6176 = vpop.f32.mrf.mxu0
      %v6177 = vpop.f32.mrf.mxu0
      %v6178 = vadd.f32 %v5967, %v6177
      %v6179 = vpop.f32.mrf.mxu0
      %6180 = vmatprep.mubr.bf16.mxu0 0
      %6181 = vmatmul.mubr.bf16.gmra.mxu0 %v5772
      %v6182 = vpop.f32.mrf.mxu0
      %v6183 = vadd.f32 %v5972, %v6182
      %v6184 = vpop.f32.mrf.mxu0
      %v6185 = vpop.f32.mrf.mxu0
      %v6186 = vadd.f32 %v5975, %v6185
      %v6187 = vpop.f32.mrf.mxu0
      %6188 = vmatprep.mubr.bf16.mxu0 0
      %6189 = vmatmul.mubr.bf16.gmra.mxu0 %v5773
      %v6190 = vpop.f32.mrf.mxu0
      %v6191 = vadd.f32 %v5980, %v6190
      %v6192 = vpop.f32.mrf.mxu0
      %v6193 = vpop.f32.mrf.mxu0
      %v6194 = vadd.f32 %v5983, %v6193
      %v6195 = vpop.f32.mrf.mxu0
      %6196 = vmatprep.mubr.bf16.mxu0 0
      %6197 = vmatmul.mubr.bf16.gmra.mxu0 %v5774
      %v6198 = vpop.f32.mrf.mxu0
      %v6199 = vadd.f32 %v5988, %v6198
      %v6200 = vpop.f32.mrf.mxu0
      %v6201 = vpop.f32.mrf.mxu0
      %v6202 = vadd.f32 %v5991, %v6201
      %v6203 = vpop.f32.mrf.mxu0
      %6204 = vmatprep.mubr.bf16.mxu0 0
      %6205 = vmatmul.mubr.bf16.gmra.mxu0 %v5775
      %v6206 = vpop.f32.mrf.mxu0
      %v6207 = vadd.f32 %v5996, %v6206
      %v6208 = vpop.f32.mrf.mxu0
      %v6209 = vpop.f32.mrf.mxu0
      %v6210 = vadd.f32 %v5999, %v6209
      %v6211 = vpop.f32.mrf.mxu0
      %6212 = vdwg.mxu0
      %s6213 = scalar_lea.vmem %s4, 448
      %v6214 = vld [vmem:[%s6213] sm:$0xf]
      %v6215 = vld [vmem:[%s6213 + $0x4] sm:$0xf]
      %v6216 = vld [vmem:[%s6213 + $0x8] sm:$0xf]
      %v6217 = vld [vmem:[%s6213 + $0xc] sm:$0xf]
      %v6218 = vld [vmem:[%s6213 + $0x10] sm:$0xf]
      %v6219 = vld [vmem:[%s6213 + $0x14] sm:$0xf]
      %v6220 = vld [vmem:[%s6213 + $0x18] sm:$0xf]
      %v6221 = vld [vmem:[%s6213 + $0x1c] sm:$0xf]
      %v6222 = vld [vmem:[%s6213 + $0x20] sm:$0xf]
      %v6223 = vld [vmem:[%s6213 + $0x24] sm:$0xf]
      %v6224 = vld [vmem:[%s6213 + $0x28] sm:$0xf]
      %v6225 = vld [vmem:[%s6213 + $0x2c] sm:$0xf]
      %v6226 = vld [vmem:[%s6213 + $0x30] sm:$0xf]
      %v6227 = vld [vmem:[%s6213 + $0x34] sm:$0xf]
      %v6228 = vld [vmem:[%s6213 + $0x38] sm:$0xf]
      %v6229 = vld [vmem:[%s6213 + $0x3c] sm:$0xf]
      %v6230 = vpack.c.b16 %v5238, %v5237
      %v6231 = vpack.c.b16 %v5240, %v5239
      %v6232 = vpack.c.b16 %v5242, %v5241
      %v6233 = vpack.c.b16 %v5244, %v5243
      %v6234 = vpack.c.b16 %v5246, %v5245
      %v6235 = vpack.c.b16 %v5248, %v5247
      %v6236 = vpack.c.b16 %v5250, %v5249
      %v6237 = vpack.c.b16 %v5252, %v5251
      %v6238 = vpack.c.b16 %v5254, %v5253
      %v6239 = vpack.c.b16 %v5256, %v5255
      %v6240 = vpack.c.b16 %v5258, %v5257
      %v6241 = vpack.c.b16 %v5260, %v5259
      %v6242 = vpack.c.b16 %v5262, %v5261
      %v6243 = vpack.c.b16 %v5264, %v5263
      %v6244 = vpack.c.b16 %v5266, %v5265
      %v6245 = vpack.c.b16 %v5268, %v5267
      %v6278 = vunpack.c.l.b16 %v6214
      %v6279 = vunpack.c.l.b16 %v6215
      %v6280 = vunpack.c.l.b16 %v6216
      %v6281 = vunpack.c.l.b16 %v6217
      %v6282 = vunpack.c.l.b16 %v6218
      %v6283 = vunpack.c.l.b16 %v6219
      %v6284 = vunpack.c.l.b16 %v6220
      %v6285 = vunpack.c.l.b16 %v6221
      %v6286 = vunpack.c.l.b16 %v6222
      %v6287 = vunpack.c.l.b16 %v6223
      %v6288 = vunpack.c.l.b16 %v6224
      %v6289 = vunpack.c.l.b16 %v6225
      %v6290 = vunpack.c.l.b16 %v6226
      %v6291 = vunpack.c.l.b16 %v6227
      %v6292 = vunpack.c.l.b16 %v6228
      %v6293 = vunpack.c.l.b16 %v6229
      %v6294 = vpack.c.b16 %v6279, %v6278
      %v6295 = vpack.c.b16 %v6281, %v6280
      %v6296 = vpack.c.b16 %v6283, %v6282
      %v6297 = vpack.c.b16 %v6285, %v6284
      %v6298 = vpack.c.b16 %v6287, %v6286
      %v6299 = vpack.c.b16 %v6289, %v6288
      %v6300 = vpack.c.b16 %v6291, %v6290
      %v6301 = vpack.c.b16 %v6293, %v6292
      %6310 = vmatprep.subr.bf16.mxu0 0
      %6311 = vmatpush1.bf16.msra.mxu0 %v6301
      %6312 = vmatprep.subr.bf16.mxu0 0
      %6313 = vmatpush1.bf16.msra.mxu0 %v6300
      %6314 = vmatprep.subr.bf16.mxu0 0
      %6315 = vmatpush1.bf16.msra.mxu0 %v6299
      %6316 = vmatprep.subr.bf16.mxu0 0
      %6317 = vmatpush1.bf16.msra.mxu0 %v6298
      %6318 = vmatprep.subr.bf16.mxu0 0
      %6319 = vmatpush1.bf16.msra.mxu0 %v6297
      %6320 = vmatprep.subr.bf16.mxu0 0
      %6321 = vmatpush1.bf16.msra.mxu0 %v6296
      %6322 = vmatprep.subr.bf16.mxu0 0
      %6323 = vmatpush1.bf16.msra.mxu0 %v6295
      %6324 = vmatprep.subr.bf16.mxu0 0
      %6325 = vmatpush1.bf16.msra.mxu0 %v6294
      %6326 = vmatprep.subr.bf16.mxu0 0
      %6327 = vmatpush2.bf16.msra.mxu0 0
      %6328 = vmatprep.subr.bf16.mxu0 0
      %6329 = vmatpush2.bf16.msra.mxu0 0
      %6330 = vmatprep.subr.bf16.mxu0 0
      %6331 = vmatpush2.bf16.msra.mxu0 0
      %6332 = vmatprep.subr.bf16.mxu0 0
      %6333 = vmatpush2.bf16.msra.mxu0 0
      %6334 = vmatprep.subr.bf16.mxu0 0
      %6335 = vmatpush2.bf16.msra.mxu0 0
      %6336 = vmatprep.subr.bf16.mxu0 0
      %6337 = vmatpush2.bf16.msra.mxu0 0
      %6338 = vmatprep.subr.bf16.mxu0 0
      %6339 = vmatpush2.bf16.msra.mxu0 0
      %6340 = vmatprep.subr.bf16.mxu0 0
      %6341 = vmatpush2.bf16.msra.mxu0 0
      %6342 = vmatprep.mubr.bf16.mxu0 0
      %6343 = vmatmul.mubr.bf16.gmra.mxu0 %v6230
      %v6344 = vpop.f32.mrf.mxu0
      %v6345 = vadd.f32 0.0, %v6344
      %v6346 = vpop.f32.mrf.mxu0
      %v6347 = vpop.f32.mrf.mxu0
      %v6348 = vadd.f32 0.0, %v6347
      %v6349 = vpop.f32.mrf.mxu0
      %6350 = vmatprep.mubr.bf16.mxu0 0
      %6351 = vmatmul.mubr.bf16.gmra.mxu0 %v6231
      %v6352 = vpop.f32.mrf.mxu0
      %v6353 = vadd.f32 0.0, %v6352
      %v6354 = vpop.f32.mrf.mxu0
      %v6355 = vpop.f32.mrf.mxu0
      %v6356 = vadd.f32 0.0, %v6355
      %v6357 = vpop.f32.mrf.mxu0
      %6358 = vmatprep.mubr.bf16.mxu0 0
      %6359 = vmatmul.mubr.bf16.gmra.mxu0 %v6232
      %v6360 = vpop.f32.mrf.mxu0
      %v6361 = vadd.f32 0.0, %v6360
      %v6362 = vpop.f32.mrf.mxu0
      %v6363 = vpop.f32.mrf.mxu0
      %v6364 = vadd.f32 0.0, %v6363
      %v6365 = vpop.f32.mrf.mxu0
      %6366 = vmatprep.mubr.bf16.mxu0 0
      %6367 = vmatmul.mubr.bf16.gmra.mxu0 %v6233
      %v6368 = vpop.f32.mrf.mxu0
      %v6369 = vadd.f32 0.0, %v6368
      %v6370 = vpop.f32.mrf.mxu0
      %v6371 = vpop.f32.mrf.mxu0
      %v6372 = vadd.f32 0.0, %v6371
      %v6373 = vpop.f32.mrf.mxu0
      %6374 = vmatprep.mubr.bf16.mxu0 0
      %6375 = vmatmul.mubr.bf16.gmra.mxu0 %v6234
      %v6376 = vpop.f32.mrf.mxu0
      %v6377 = vadd.f32 0.0, %v6376
      %v6378 = vpop.f32.mrf.mxu0
      %v6379 = vpop.f32.mrf.mxu0
      %v6380 = vadd.f32 0.0, %v6379
      %v6381 = vpop.f32.mrf.mxu0
      %6382 = vmatprep.mubr.bf16.mxu0 0
      %6383 = vmatmul.mubr.bf16.gmra.mxu0 %v6235
      %v6384 = vpop.f32.mrf.mxu0
      %v6385 = vadd.f32 0.0, %v6384
      %v6386 = vpop.f32.mrf.mxu0
      %v6387 = vpop.f32.mrf.mxu0
      %v6388 = vadd.f32 0.0, %v6387
      %v6389 = vpop.f32.mrf.mxu0
      %6390 = vmatprep.mubr.bf16.mxu0 0
      %6391 = vmatmul.mubr.bf16.gmra.mxu0 %v6236
      %v6392 = vpop.f32.mrf.mxu0
      %v6393 = vadd.f32 0.0, %v6392
      %v6394 = vpop.f32.mrf.mxu0
      %v6395 = vpop.f32.mrf.mxu0
      %v6396 = vadd.f32 0.0, %v6395
      %v6397 = vpop.f32.mrf.mxu0
      %6398 = vmatprep.mubr.bf16.mxu0 0
      %6399 = vmatmul.mubr.bf16.gmra.mxu0 %v6237
      %v6400 = vpop.f32.mrf.mxu0
      %v6401 = vadd.f32 0.0, %v6400
      %v6402 = vpop.f32.mrf.mxu0
      %v6403 = vpop.f32.mrf.mxu0
      %v6404 = vadd.f32 0.0, %v6403
      %v6405 = vpop.f32.mrf.mxu0
      %6406 = vmatprep.mubr.bf16.mxu0 0
      %6407 = vmatmul.mubr.bf16.gmra.mxu0 %v6238
      %v6408 = vpop.f32.mrf.mxu0
      %v6409 = vadd.f32 0.0, %v6408
      %v6410 = vpop.f32.mrf.mxu0
      %v6411 = vpop.f32.mrf.mxu0
      %v6412 = vadd.f32 0.0, %v6411
      %v6413 = vpop.f32.mrf.mxu0
      %6414 = vmatprep.mubr.bf16.mxu0 0
      %6415 = vmatmul.mubr.bf16.gmra.mxu0 %v6239
      %v6416 = vpop.f32.mrf.mxu0
      %v6417 = vadd.f32 0.0, %v6416
      %v6418 = vpop.f32.mrf.mxu0
      %v6419 = vpop.f32.mrf.mxu0
      %v6420 = vadd.f32 0.0, %v6419
      %v6421 = vpop.f32.mrf.mxu0
      %6422 = vmatprep.mubr.bf16.mxu0 0
      %6423 = vmatmul.mubr.bf16.gmra.mxu0 %v6240
      %v6424 = vpop.f32.mrf.mxu0
      %v6425 = vadd.f32 0.0, %v6424
      %v6426 = vpop.f32.mrf.mxu0
      %v6427 = vpop.f32.mrf.mxu0
      %v6428 = vadd.f32 0.0, %v6427
      %v6429 = vpop.f32.mrf.mxu0
      %6430 = vmatprep.mubr.bf16.mxu0 0
      %6431 = vmatmul.mubr.bf16.gmra.mxu0 %v6241
      %v6432 = vpop.f32.mrf.mxu0
      %v6433 = vadd.f32 0.0, %v6432
      %v6434 = vpop.f32.mrf.mxu0
      %v6435 = vpop.f32.mrf.mxu0
      %v6436 = vadd.f32 0.0, %v6435
      %v6437 = vpop.f32.mrf.mxu0
      %6438 = vmatprep.mubr.bf16.mxu0 0
      %6439 = vmatmul.mubr.bf16.gmra.mxu0 %v6242
      %v6440 = vpop.f32.mrf.mxu0
      %v6441 = vadd.f32 0.0, %v6440
      %v6442 = vpop.f32.mrf.mxu0
      %v6443 = vpop.f32.mrf.mxu0
      %v6444 = vadd.f32 0.0, %v6443
      %v6445 = vpop.f32.mrf.mxu0
      %6446 = vmatprep.mubr.bf16.mxu0 0
      %6447 = vmatmul.mubr.bf16.gmra.mxu0 %v6243
      %v6448 = vpop.f32.mrf.mxu0
      %v6449 = vadd.f32 0.0, %v6448
      %v6450 = vpop.f32.mrf.mxu0
      %v6451 = vpop.f32.mrf.mxu0
      %v6452 = vadd.f32 0.0, %v6451
      %v6453 = vpop.f32.mrf.mxu0
      %6454 = vmatprep.mubr.bf16.mxu0 0
      %6455 = vmatmul.mubr.bf16.gmra.mxu0 %v6244
      %v6456 = vpop.f32.mrf.mxu0
      %v6457 = vadd.f32 0.0, %v6456
      %v6458 = vpop.f32.mrf.mxu0
      %v6459 = vpop.f32.mrf.mxu0
      %v6460 = vadd.f32 0.0, %v6459
      %v6461 = vpop.f32.mrf.mxu0
      %6462 = vmatprep.mubr.bf16.mxu0 0
      %6463 = vmatmul.mubr.bf16.gmra.mxu0 %v6245
      %v6464 = vpop.f32.mrf.mxu0
      %v6465 = vadd.f32 0.0, %v6464
      %v6466 = vpop.f32.mrf.mxu0
      %v6467 = vpop.f32.mrf.mxu0
      %v6468 = vadd.f32 0.0, %v6467
      %v6469 = vpop.f32.mrf.mxu0
      %6470 = vdwg.mxu0
      %v6471 = vadd.f32 %v6087, %v6345
      %v6472 = vadd.f32 %v6090, %v6348
      %v6473 = vadd.f32 %v6095, %v6353
      %v6474 = vadd.f32 %v6098, %v6356
      %v6475 = vadd.f32 %v6103, %v6361
      %v6476 = vadd.f32 %v6106, %v6364
      %v6477 = vadd.f32 %v6111, %v6369
      %v6478 = vadd.f32 %v6114, %v6372
      %v6479 = vadd.f32 %v6119, %v6377
      %v6480 = vadd.f32 %v6122, %v6380
      %v6481 = vadd.f32 %v6127, %v6385
      %v6482 = vadd.f32 %v6130, %v6388
      %v6483 = vadd.f32 %v6135, %v6393
      %v6484 = vadd.f32 %v6138, %v6396
      %v6485 = vadd.f32 %v6143, %v6401
      %v6486 = vadd.f32 %v6146, %v6404
      %v6487 = vadd.f32 %v6151, %v6409
      %v6488 = vadd.f32 %v6154, %v6412
      %v6489 = vadd.f32 %v6159, %v6417
      %v6490 = vadd.f32 %v6162, %v6420
      %v6491 = vadd.f32 %v6167, %v6425
      %v6492 = vadd.f32 %v6170, %v6428
      %v6493 = vadd.f32 %v6175, %v6433
      %v6494 = vadd.f32 %v6178, %v6436
      %v6495 = vadd.f32 %v6183, %v6441
      %v6496 = vadd.f32 %v6186, %v6444
      %v6497 = vadd.f32 %v6191, %v6449
      %v6498 = vadd.f32 %v6194, %v6452
      %v6499 = vadd.f32 %v6199, %v6457
      %v6500 = vadd.f32 %v6202, %v6460
      %v6501 = vadd.f32 %v6207, %v6465
      %v6502 = vadd.f32 %v6210, %v6468
      %v6503 = vadd.f32 %v5695, %v6471
      %v6504 = vadd.f32 %v5696, %v6472
      %v6505 = vadd.f32 %v5697, %v6473
      %v6506 = vadd.f32 %v5698, %v6474
      %v6507 = vadd.f32 %v5699, %v6475
      %v6508 = vadd.f32 %v5700, %v6476
      %v6509 = vadd.f32 %v5701, %v6477
      %v6510 = vadd.f32 %v5702, %v6478
      %v6511 = vadd.f32 %v5703, %v6479
      %v6512 = vadd.f32 %v5704, %v6480
      %v6513 = vadd.f32 %v5705, %v6481
      %v6514 = vadd.f32 %v5706, %v6482
      %v6515 = vadd.f32 %v5707, %v6483
      %v6516 = vadd.f32 %v5708, %v6484
      %v6517 = vadd.f32 %v5709, %v6485
      %v6518 = vadd.f32 %v5710, %v6486
      %v6519 = vadd.f32 %v5711, %v6487
      %v6520 = vadd.f32 %v5712, %v6488
      %v6521 = vadd.f32 %v5713, %v6489
      %v6522 = vadd.f32 %v5714, %v6490
      %v6523 = vadd.f32 %v5715, %v6491
      %v6524 = vadd.f32 %v5716, %v6492
      %v6525 = vadd.f32 %v5717, %v6493
      %v6526 = vadd.f32 %v5718, %v6494
      %v6527 = vadd.f32 %v5719, %v6495
      %v6528 = vadd.f32 %v5720, %v6496
      %v6529 = vadd.f32 %v5721, %v6497
      %v6530 = vadd.f32 %v5722, %v6498
      %v6531 = vadd.f32 %v5723, %v6499
      %v6532 = vadd.f32 %v5724, %v6500
      %v6533 = vadd.f32 %v5725, %v6501
      %v6534 = vadd.f32 %v5726, %v6502
      %v6535 = vld [vmem:[#allocation3 + $0x8] sm:$0xf]
      %v6536 = vld [vmem:[#allocation3 + $0xc] sm:$0xf]
      %v6537 = vld [vmem:[#allocation3 + $0x10] sm:$0xf]
      %v6538 = vld [vmem:[#allocation3 + $0x14] sm:$0xf]
      %v6539 = vld [vmem:[#allocation3 + $0x18] sm:$0xf]
      %v6540 = vld [vmem:[#allocation3 + $0x1c] sm:$0xf]
      %v6541 = vld [vmem:[#allocation3 + $0x20] sm:$0xf]
      %v6542 = vld [vmem:[#allocation3 + $0x24] sm:$0xf]
      %v6543 = vld [vmem:[#allocation3 + $0x28] sm:$0xf]
      %v6544 = vld [vmem:[#allocation3 + $0x2c] sm:$0xf]
      %v6545 = vld [vmem:[#allocation3 + $0x30] sm:$0xf]
      %v6546 = vld [vmem:[#allocation3 + $0x34] sm:$0xf]
      %v6547 = vld [vmem:[#allocation3 + $0x38] sm:$0xf]
      %v6548 = vld [vmem:[#allocation3 + $0x3c] sm:$0xf]
      %v6549 = vld [vmem:[#allocation3 + $0x40] sm:$0xf]
      %v6550 = vld [vmem:[#allocation3 + $0x44] sm:$0xf]
      %v6551 = vld [vmem:[#allocation3 + $0x48] sm:$0xf]
      %v6552 = vld [vmem:[#allocation3 + $0x4c] sm:$0xf]
      %v6553 = vld [vmem:[#allocation3 + $0x50] sm:$0xf]
      %v6554 = vld [vmem:[#allocation3 + $0x54] sm:$0xf]
      %v6555 = vld [vmem:[#allocation3 + $0x58] sm:$0xf]
      %v6556 = vld [vmem:[#allocation3 + $0x5c] sm:$0xf]
      %v6557 = vld [vmem:[#allocation3 + $0x60] sm:$0xf]
      %v6558 = vld [vmem:[#allocation3 + $0x64] sm:$0xf]
      %v6559 = vld [vmem:[#allocation3 + $0x68] sm:$0xf]
      %v6560 = vld [vmem:[#allocation3 + $0x6c] sm:$0xf]
      %v6561 = vld [vmem:[#allocation3 + $0x70] sm:$0xf]
      %v6562 = vld [vmem:[#allocation3 + $0x74] sm:$0xf]
      %v6563 = vld [vmem:[#allocation3 + $0x78] sm:$0xf]
      %v6564 = vld [vmem:[#allocation3 + $0x7c] sm:$0xf]
      %v6565 = vld [vmem:[#allocation3 + $0x80] sm:$0xf]
      %v6566 = vld [vmem:[#allocation3 + $0x84] sm:$0xf]
      %v6567 = vld [vmem:[#allocation3 + $0x88] sm:$0x1]
      %s6568 = scalar_lea.vmem %s4, 128
      %v6569 = vld [vmem:[%s6568] sm:$0xf]
      %v6570 = vld [vmem:[%s6568 + $0x4] sm:$0xf]
      %v6571 = vld [vmem:[%s6568 + $0x8] sm:$0xf]
      %v6572 = vld [vmem:[%s6568 + $0xc] sm:$0xf]
      %v6573 = vld [vmem:[%s6568 + $0x10] sm:$0xf]
      %v6574 = vld [vmem:[%s6568 + $0x14] sm:$0xf]
      %v6575 = vld [vmem:[%s6568 + $0x18] sm:$0xf]
      %v6576 = vld [vmem:[%s6568 + $0x1c] sm:$0xf]
      %v6577 = vld [vmem:[%s6568 + $0x20] sm:$0xf]
      %v6578 = vld [vmem:[%s6568 + $0x24] sm:$0xf]
      %v6579 = vld [vmem:[%s6568 + $0x28] sm:$0xf]
      %v6580 = vld [vmem:[%s6568 + $0x2c] sm:$0xf]
      %v6581 = vld [vmem:[%s6568 + $0x30] sm:$0xf]
      %v6582 = vld [vmem:[%s6568 + $0x34] sm:$0xf]
      %v6583 = vld [vmem:[%s6568 + $0x38] sm:$0xf]
      %v6584 = vld [vmem:[%s6568 + $0x3c] sm:$0xf]
      %v6585 = vld [vmem:[#allocation3 + $0x88] sm:$0xf]
      %v6586 = vld [vmem:[#allocation3 + $0x8c] sm:$0xf]
      %v6587 = vld [vmem:[#allocation3 + $0x90] sm:$0x1]
      %s6588 = scalar_lea.vmem %s4, 320
      %v6589 = vld [vmem:[%s6588] sm:$0xf]
      %v6590 = vld [vmem:[%s6588 + $0x4] sm:$0xf]
      %v6591 = vld [vmem:[%s6588 + $0x8] sm:$0xf]
      %v6592 = vld [vmem:[%s6588 + $0xc] sm:$0xf]
      %v6593 = vld [vmem:[%s6588 + $0x10] sm:$0xf]
      %v6594 = vld [vmem:[%s6588 + $0x14] sm:$0xf]
      %v6595 = vld [vmem:[%s6588 + $0x18] sm:$0xf]
      %v6596 = vld [vmem:[%s6588 + $0x1c] sm:$0xf]
      %v6597 = vld [vmem:[%s6588 + $0x20] sm:$0xf]
      %v6598 = vld [vmem:[%s6588 + $0x24] sm:$0xf]
      %v6599 = vld [vmem:[%s6588 + $0x28] sm:$0xf]
      %v6600 = vld [vmem:[%s6588 + $0x2c] sm:$0xf]
      %v6601 = vld [vmem:[%s6588 + $0x30] sm:$0xf]
      %v6602 = vld [vmem:[%s6588 + $0x34] sm:$0xf]
      %v6603 = vld [vmem:[%s6588 + $0x38] sm:$0xf]
      %v6604 = vld [vmem:[%s6588 + $0x3c] sm:$0xf]
      %v6638 = vunpack.c.l.b16 %v6537
      %v6639 = vunpack.c.l.b16 %v6538
      %v6640 = vunpack.c.l.b16 %v6539
      %v6641 = vunpack.c.l.b16 %v6540
      %v6642 = vunpack.c.l.b16 %v6541
      %v6643 = vunpack.c.l.b16 %v6542
      %v6644 = vunpack.c.l.b16 %v6543
      %v6645 = vunpack.c.l.b16 %v6544
      %v6646 = vunpack.c.l.b16 %v6545
      %v6647 = vunpack.c.l.b16 %v6546
      %v6648 = vunpack.c.l.b16 %v6547
      %v6649 = vunpack.c.l.b16 %v6548
      %v6650 = vunpack.c.l.b16 %v6549
      %v6651 = vunpack.c.l.b16 %v6550
      %v6652 = vunpack.c.l.b16 %v6551
      %v6653 = vunpack.c.l.b16 %v6552
      %v6654 = vunpack.c.l.b16 %v6553
      %v6655 = vunpack.c.l.b16 %v6554
      %v6656 = vunpack.c.l.b16 %v6555
      %v6657 = vunpack.c.l.b16 %v6556
      %v6658 = vunpack.c.l.b16 %v6557
      %v6659 = vunpack.c.l.b16 %v6558
      %v6660 = vunpack.c.l.b16 %v6559
      %v6661 = vunpack.c.l.b16 %v6560
      %v6662 = vunpack.c.l.b16 %v6561
      %v6663 = vunpack.c.l.b16 %v6562
      %v6664 = vunpack.c.l.b16 %v6563
      %v6665 = vunpack.c.l.b16 %v6564
      %v6666 = vunpack.c.l.b16 %v6565
      %v6667 = vunpack.c.l.b16 %v6566
      %v6668 = vunpack.c.l.b16 %v6585
      %v6669 = vunpack.c.l.b16 %v6586
      %v6670 = vunpack.c.l.b16 %v6587
      %v6671 = vpack.c.b16 %v6639, %v6638
      %v6672 = vpack.c.b16 %v6641, %v6640
      %v6673 = vpack.c.b16 %v6643, %v6642
      %v6674 = vpack.c.b16 %v6645, %v6644
      %v6675 = vpack.c.b16 %v6647, %v6646
      %v6676 = vpack.c.b16 %v6649, %v6648
      %v6677 = vpack.c.b16 %v6651, %v6650
      %v6678 = vpack.c.b16 %v6653, %v6652
      %v6679 = vpack.c.b16 %v6655, %v6654
      %v6680 = vpack.c.b16 %v6657, %v6656
      %v6681 = vpack.c.b16 %v6659, %v6658
      %v6682 = vpack.c.b16 %v6661, %v6660
      %v6683 = vpack.c.b16 %v6663, %v6662
      %v6684 = vpack.c.b16 %v6665, %v6664
      %v6685 = vpack.c.b16 %v6667, %v6666
      %v6686 = vpack.c.b16 %v6669, %v6668
      %v6687 = vpack.c.b16 %v6670, %v6670
      %v6689 = vshrl.u32 %v6671, 16
      %v6691 = vshll.u32 %v6671, 16
      %v6693 = vrot.slane %v6691, 1
      %v6694 = vor.u32 %v6689, %v6693
      %v6696 = vshll.u32 %v6672, 16
      %v6698 = vrot.slane %v6696, 1
      %v6699 = vsel %vm2922, %v6694, %v6698
      %v6700 = vshrl.u32 %v6672, 16
      %v6702 = vor.u32 %v6700, %v6698
      %v6704 = vshll.u32 %v6673, 16
      %v6706 = vrot.slane %v6704, 1
      %v6707 = vsel %vm2922, %v6702, %v6706
      %v6708 = vshrl.u32 %v6673, 16
      %v6710 = vor.u32 %v6708, %v6706
      %v6712 = vshll.u32 %v6674, 16
      %v6714 = vrot.slane %v6712, 1
      %v6715 = vsel %vm2922, %v6710, %v6714
      %v6716 = vshrl.u32 %v6674, 16
      %v6718 = vor.u32 %v6716, %v6714
      %v6720 = vshll.u32 %v6675, 16
      %v6722 = vrot.slane %v6720, 1
      %v6723 = vsel %vm2922, %v6718, %v6722
      %v6724 = vshrl.u32 %v6675, 16
      %v6726 = vor.u32 %v6724, %v6722
      %v6728 = vshll.u32 %v6676, 16
      %v6730 = vrot.slane %v6728, 1
      %v6731 = vsel %vm2922, %v6726, %v6730
      %v6732 = vshrl.u32 %v6676, 16
      %v6734 = vor.u32 %v6732, %v6730
      %v6736 = vshll.u32 %v6677, 16
      %v6738 = vrot.slane %v6736, 1
      %v6739 = vsel %vm2922, %v6734, %v6738
      %v6740 = vshrl.u32 %v6677, 16
      %v6742 = vor.u32 %v6740, %v6738
      %v6744 = vshll.u32 %v6678, 16
      %v6746 = vrot.slane %v6744, 1
      %v6747 = vsel %vm2922, %v6742, %v6746
      %v6748 = vshrl.u32 %v6678, 16
      %v6750 = vor.u32 %v6748, %v6746
      %v6752 = vshll.u32 %v6679, 16
      %v6754 = vrot.slane %v6752, 1
      %v6755 = vsel %vm2922, %v6750, %v6754
      %v6756 = vshrl.u32 %v6679, 16
      %v6758 = vor.u32 %v6756, %v6754
      %v6760 = vshll.u32 %v6680, 16
      %v6762 = vrot.slane %v6760, 1
      %v6763 = vsel %vm2922, %v6758, %v6762
      %v6764 = vshrl.u32 %v6680, 16
      %v6766 = vor.u32 %v6764, %v6762
      %v6768 = vshll.u32 %v6681, 16
      %v6770 = vrot.slane %v6768, 1
      %v6771 = vsel %vm2922, %v6766, %v6770
      %v6772 = vshrl.u32 %v6681, 16
      %v6774 = vor.u32 %v6772, %v6770
      %v6776 = vshll.u32 %v6682, 16
      %v6778 = vrot.slane %v6776, 1
      %v6779 = vsel %vm2922, %v6774, %v6778
      %v6780 = vshrl.u32 %v6682, 16
      %v6782 = vor.u32 %v6780, %v6778
      %v6784 = vshll.u32 %v6683, 16
      %v6786 = vrot.slane %v6784, 1
      %v6787 = vsel %vm2922, %v6782, %v6786
      %v6788 = vshrl.u32 %v6683, 16
      %v6790 = vor.u32 %v6788, %v6786
      %v6792 = vshll.u32 %v6684, 16
      %v6794 = vrot.slane %v6792, 1
      %v6795 = vsel %vm2922, %v6790, %v6794
      %v6796 = vshrl.u32 %v6684, 16
      %v6798 = vor.u32 %v6796, %v6794
      %v6800 = vshll.u32 %v6685, 16
      %v6802 = vrot.slane %v6800, 1
      %v6803 = vsel %vm2922, %v6798, %v6802
      %v6804 = vshrl.u32 %v6685, 16
      %v6806 = vor.u32 %v6804, %v6802
      %v6808 = vshll.u32 %v6686, 16
      %v6810 = vrot.slane %v6808, 1
      %v6811 = vsel %vm2922, %v6806, %v6810
      %v6812 = vshrl.u32 %v6686, 16
      %v6814 = vor.u32 %v6812, %v6810
      %v6816 = vshll.u32 %v6687, 16
      %v6818 = vrot.slane %v6816, 1
      %v6819 = vsel %vm2922, %v6814, %v6818
      %v6852 = vunpack.c.l.b16 %v6589
      %v6853 = vunpack.c.l.b16 %v6590
      %v6854 = vunpack.c.l.b16 %v6591
      %v6855 = vunpack.c.l.b16 %v6592
      %v6856 = vunpack.c.l.b16 %v6593
      %v6857 = vunpack.c.l.b16 %v6594
      %v6858 = vunpack.c.l.b16 %v6595
      %v6859 = vunpack.c.l.b16 %v6596
      %v6860 = vunpack.c.l.b16 %v6597
      %v6861 = vunpack.c.l.b16 %v6598
      %v6862 = vunpack.c.l.b16 %v6599
      %v6863 = vunpack.c.l.b16 %v6600
      %v6864 = vunpack.c.l.b16 %v6601
      %v6865 = vunpack.c.l.b16 %v6602
      %v6866 = vunpack.c.l.b16 %v6603
      %v6867 = vunpack.c.l.b16 %v6604
      %v6868 = vpack.c.b16 %v6853, %v6852
      %v6869 = vpack.c.b16 %v6855, %v6854
      %v6870 = vpack.c.b16 %v6857, %v6856
      %v6871 = vpack.c.b16 %v6859, %v6858
      %v6872 = vpack.c.b16 %v6861, %v6860
      %v6873 = vpack.c.b16 %v6863, %v6862
      %v6874 = vpack.c.b16 %v6865, %v6864
      %v6875 = vpack.c.b16 %v6867, %v6866
      %6884 = vmatprep.subr.bf16.mxu0 0
      %6885 = vmatpush1.bf16.msra.mxu0 %v6875
      %6886 = vmatprep.subr.bf16.mxu0 0
      %6887 = vmatpush1.bf16.msra.mxu0 %v6874
      %6888 = vmatprep.subr.bf16.mxu0 0
      %6889 = vmatpush1.bf16.msra.mxu0 %v6873
      %6890 = vmatprep.subr.bf16.mxu0 0
      %6891 = vmatpush1.bf16.msra.mxu0 %v6872
      %6892 = vmatprep.subr.bf16.mxu0 0
      %6893 = vmatpush1.bf16.msra.mxu0 %v6871
      %6894 = vmatprep.subr.bf16.mxu0 0
      %6895 = vmatpush1.bf16.msra.mxu0 %v6870
      %6896 = vmatprep.subr.bf16.mxu0 0
      %6897 = vmatpush1.bf16.msra.mxu0 %v6869
      %6898 = vmatprep.subr.bf16.mxu0 0
      %6899 = vmatpush1.bf16.msra.mxu0 %v6868
      %6900 = vmatprep.subr.bf16.mxu0 0
      %6901 = vmatpush2.bf16.msra.mxu0 0
      %6902 = vmatprep.subr.bf16.mxu0 0
      %6903 = vmatpush2.bf16.msra.mxu0 0
      %6904 = vmatprep.subr.bf16.mxu0 0
      %6905 = vmatpush2.bf16.msra.mxu0 0
      %6906 = vmatprep.subr.bf16.mxu0 0
      %6907 = vmatpush2.bf16.msra.mxu0 0
      %6908 = vmatprep.subr.bf16.mxu0 0
      %6909 = vmatpush2.bf16.msra.mxu0 0
      %6910 = vmatprep.subr.bf16.mxu0 0
      %6911 = vmatpush2.bf16.msra.mxu0 0
      %6912 = vmatprep.subr.bf16.mxu0 0
      %6913 = vmatpush2.bf16.msra.mxu0 0
      %6914 = vmatprep.subr.bf16.mxu0 0
      %6915 = vmatpush2.bf16.msra.mxu0 0
      %6916 = vmatprep.mubr.bf16.mxu0 0
      %6917 = vmatmul.mubr.bf16.gmra.mxu0 %v6699
      %v6918 = vpop.f32.mrf.mxu0
      %v6919 = vadd.f32 0.0, %v6918
      %v6920 = vpop.f32.mrf.mxu0
      %v6921 = vpop.f32.mrf.mxu0
      %v6922 = vadd.f32 0.0, %v6921
      %v6923 = vpop.f32.mrf.mxu0
      %6924 = vmatprep.mubr.bf16.mxu0 0
      %6925 = vmatmul.mubr.bf16.gmra.mxu0 %v6707
      %v6926 = vpop.f32.mrf.mxu0
      %v6927 = vadd.f32 0.0, %v6926
      %v6928 = vpop.f32.mrf.mxu0
      %v6929 = vpop.f32.mrf.mxu0
      %v6930 = vadd.f32 0.0, %v6929
      %v6931 = vpop.f32.mrf.mxu0
      %6932 = vmatprep.mubr.bf16.mxu0 0
      %6933 = vmatmul.mubr.bf16.gmra.mxu0 %v6715
      %v6934 = vpop.f32.mrf.mxu0
      %v6935 = vadd.f32 0.0, %v6934
      %v6936 = vpop.f32.mrf.mxu0
      %v6937 = vpop.f32.mrf.mxu0
      %v6938 = vadd.f32 0.0, %v6937
      %v6939 = vpop.f32.mrf.mxu0
      %6940 = vmatprep.mubr.bf16.mxu0 0
      %6941 = vmatmul.mubr.bf16.gmra.mxu0 %v6723
      %v6942 = vpop.f32.mrf.mxu0
      %v6943 = vadd.f32 0.0, %v6942
      %v6944 = vpop.f32.mrf.mxu0
      %v6945 = vpop.f32.mrf.mxu0
      %v6946 = vadd.f32 0.0, %v6945
      %v6947 = vpop.f32.mrf.mxu0
      %6948 = vmatprep.mubr.bf16.mxu0 0
      %6949 = vmatmul.mubr.bf16.gmra.mxu0 %v6731
      %v6950 = vpop.f32.mrf.mxu0
      %v6951 = vadd.f32 0.0, %v6950
      %v6952 = vpop.f32.mrf.mxu0
      %v6953 = vpop.f32.mrf.mxu0
      %v6954 = vadd.f32 0.0, %v6953
      %v6955 = vpop.f32.mrf.mxu0
      %6956 = vmatprep.mubr.bf16.mxu0 0
      %6957 = vmatmul.mubr.bf16.gmra.mxu0 %v6739
      %v6958 = vpop.f32.mrf.mxu0
      %v6959 = vadd.f32 0.0, %v6958
      %v6960 = vpop.f32.mrf.mxu0
      %v6961 = vpop.f32.mrf.mxu0
      %v6962 = vadd.f32 0.0, %v6961
      %v6963 = vpop.f32.mrf.mxu0
      %6964 = vmatprep.mubr.bf16.mxu0 0
      %6965 = vmatmul.mubr.bf16.gmra.mxu0 %v6747
      %v6966 = vpop.f32.mrf.mxu0
      %v6967 = vadd.f32 0.0, %v6966
      %v6968 = vpop.f32.mrf.mxu0
      %v6969 = vpop.f32.mrf.mxu0
      %v6970 = vadd.f32 0.0, %v6969
      %v6971 = vpop.f32.mrf.mxu0
      %6972 = vmatprep.mubr.bf16.mxu0 0
      %6973 = vmatmul.mubr.bf16.gmra.mxu0 %v6755
      %v6974 = vpop.f32.mrf.mxu0
      %v6975 = vadd.f32 0.0, %v6974
      %v6976 = vpop.f32.mrf.mxu0
      %v6977 = vpop.f32.mrf.mxu0
      %v6978 = vadd.f32 0.0, %v6977
      %v6979 = vpop.f32.mrf.mxu0
      %6980 = vmatprep.mubr.bf16.mxu0 0
      %6981 = vmatmul.mubr.bf16.gmra.mxu0 %v6763
      %v6982 = vpop.f32.mrf.mxu0
      %v6983 = vadd.f32 0.0, %v6982
      %v6984 = vpop.f32.mrf.mxu0
      %v6985 = vpop.f32.mrf.mxu0
      %v6986 = vadd.f32 0.0, %v6985
      %v6987 = vpop.f32.mrf.mxu0
      %6988 = vmatprep.mubr.bf16.mxu0 0
      %6989 = vmatmul.mubr.bf16.gmra.mxu0 %v6771
      %v6990 = vpop.f32.mrf.mxu0
      %v6991 = vadd.f32 0.0, %v6990
      %v6992 = vpop.f32.mrf.mxu0
      %v6993 = vpop.f32.mrf.mxu0
      %v6994 = vadd.f32 0.0, %v6993
      %v6995 = vpop.f32.mrf.mxu0
      %6996 = vmatprep.mubr.bf16.mxu0 0
      %6997 = vmatmul.mubr.bf16.gmra.mxu0 %v6779
      %v6998 = vpop.f32.mrf.mxu0
      %v6999 = vadd.f32 0.0, %v6998
      %v7000 = vpop.f32.mrf.mxu0
      %v7001 = vpop.f32.mrf.mxu0
      %v7002 = vadd.f32 0.0, %v7001
      %v7003 = vpop.f32.mrf.mxu0
      %7004 = vmatprep.mubr.bf16.mxu0 0
      %7005 = vmatmul.mubr.bf16.gmra.mxu0 %v6787
      %v7006 = vpop.f32.mrf.mxu0
      %v7007 = vadd.f32 0.0, %v7006
      %v7008 = vpop.f32.mrf.mxu0
      %v7009 = vpop.f32.mrf.mxu0
      %v7010 = vadd.f32 0.0, %v7009
      %v7011 = vpop.f32.mrf.mxu0
      %7012 = vmatprep.mubr.bf16.mxu0 0
      %7013 = vmatmul.mubr.bf16.gmra.mxu0 %v6795
      %v7014 = vpop.f32.mrf.mxu0
      %v7015 = vadd.f32 0.0, %v7014
      %v7016 = vpop.f32.mrf.mxu0
      %v7017 = vpop.f32.mrf.mxu0
      %v7018 = vadd.f32 0.0, %v7017
      %v7019 = vpop.f32.mrf.mxu0
      %7020 = vmatprep.mubr.bf16.mxu0 0
      %7021 = vmatmul.mubr.bf16.gmra.mxu0 %v6803
      %v7022 = vpop.f32.mrf.mxu0
      %v7023 = vadd.f32 0.0, %v7022
      %v7024 = vpop.f32.mrf.mxu0
      %v7025 = vpop.f32.mrf.mxu0
      %v7026 = vadd.f32 0.0, %v7025
      %v7027 = vpop.f32.mrf.mxu0
      %7028 = vmatprep.mubr.bf16.mxu0 0
      %7029 = vmatmul.mubr.bf16.gmra.mxu0 %v6811
      %v7030 = vpop.f32.mrf.mxu0
      %v7031 = vadd.f32 0.0, %v7030
      %v7032 = vpop.f32.mrf.mxu0
      %v7033 = vpop.f32.mrf.mxu0
      %v7034 = vadd.f32 0.0, %v7033
      %v7035 = vpop.f32.mrf.mxu0
      %7036 = vmatprep.mubr.bf16.mxu0 0
      %7037 = vmatmul.mubr.bf16.gmra.mxu0 %v6819
      %v7038 = vpop.f32.mrf.mxu0
      %v7039 = vadd.f32 0.0, %v7038
      %v7040 = vpop.f32.mrf.mxu0
      %v7041 = vpop.f32.mrf.mxu0
      %v7042 = vadd.f32 0.0, %v7041
      %v7043 = vpop.f32.mrf.mxu0
      %7044 = vdwg.mxu0
      %v7048 = vunpack.c.l.b16 %v6535
      %v7049 = vunpack.c.l.b16 %v6536
      %v7050 = vunpack.c.l.b16 %v6567
      %v7051 = vpack.c.b16 %v7049, %v7048
      %v7052 = vpack.c.b16 %v7050, %v7050
      %v7054 = vshrl.u32 %v7051, 16
      %v7056 = vshll.u32 %v7051, 16
      %v7058 = vrot.slane %v7056, 1
      %v7059 = vor.u32 %v7054, %v7058
      %v7060 = vsel %vm2922, %v7059, %v6693
      %v7062 = vshll.u32 %v7052, 16
      %v7064 = vrot.slane %v7062, 1
      %v7065 = vsel %vm2922, %v6806, %v7064
      %v7084 = vunpack.c.l.b16 %v6569
      %v7085 = vunpack.c.l.b16 %v6570
      %v7086 = vunpack.c.l.b16 %v6571
      %v7087 = vunpack.c.l.b16 %v6572
      %v7088 = vunpack.c.l.b16 %v6573
      %v7089 = vunpack.c.l.b16 %v6574
      %v7090 = vunpack.c.l.b16 %v6575
      %v7091 = vunpack.c.l.b16 %v6576
      %v7092 = vunpack.c.l.b16 %v6577
      %v7093 = vunpack.c.l.b16 %v6578
      %v7094 = vunpack.c.l.b16 %v6579
      %v7095 = vunpack.c.l.b16 %v6580
      %v7096 = vunpack.c.l.b16 %v6581
      %v7097 = vunpack.c.l.b16 %v6582
      %v7098 = vunpack.c.l.b16 %v6583
      %v7099 = vunpack.c.l.b16 %v6584
      %v7100 = vpack.c.b16 %v7085, %v7084
      %v7101 = vpack.c.b16 %v7087, %v7086
      %v7102 = vpack.c.b16 %v7089, %v7088
      %v7103 = vpack.c.b16 %v7091, %v7090
      %v7104 = vpack.c.b16 %v7093, %v7092
      %v7105 = vpack.c.b16 %v7095, %v7094
      %v7106 = vpack.c.b16 %v7097, %v7096
      %v7107 = vpack.c.b16 %v7099, %v7098
      %7116 = vmatprep.subr.bf16.mxu0 0
      %7117 = vmatpush1.bf16.msra.mxu0 %v7107
      %7118 = vmatprep.subr.bf16.mxu0 0
      %7119 = vmatpush1.bf16.msra.mxu0 %v7106
      %7120 = vmatprep.subr.bf16.mxu0 0
      %7121 = vmatpush1.bf16.msra.mxu0 %v7105
      %7122 = vmatprep.subr.bf16.mxu0 0
      %7123 = vmatpush1.bf16.msra.mxu0 %v7104
      %7124 = vmatprep.subr.bf16.mxu0 0
      %7125 = vmatpush1.bf16.msra.mxu0 %v7103
      %7126 = vmatprep.subr.bf16.mxu0 0
      %7127 = vmatpush1.bf16.msra.mxu0 %v7102
      %7128 = vmatprep.subr.bf16.mxu0 0
      %7129 = vmatpush1.bf16.msra.mxu0 %v7101
      %7130 = vmatprep.subr.bf16.mxu0 0
      %7131 = vmatpush1.bf16.msra.mxu0 %v7100
      %7132 = vmatprep.subr.bf16.mxu0 0
      %7133 = vmatpush2.bf16.msra.mxu0 0
      %7134 = vmatprep.subr.bf16.mxu0 0
      %7135 = vmatpush2.bf16.msra.mxu0 0
      %7136 = vmatprep.subr.bf16.mxu0 0
      %7137 = vmatpush2.bf16.msra.mxu0 0
      %7138 = vmatprep.subr.bf16.mxu0 0
      %7139 = vmatpush2.bf16.msra.mxu0 0
      %7140 = vmatprep.subr.bf16.mxu0 0
      %7141 = vmatpush2.bf16.msra.mxu0 0
      %7142 = vmatprep.subr.bf16.mxu0 0
      %7143 = vmatpush2.bf16.msra.mxu0 0
      %7144 = vmatprep.subr.bf16.mxu0 0
      %7145 = vmatpush2.bf16.msra.mxu0 0
      %7146 = vmatprep.subr.bf16.mxu0 0
      %7147 = vmatpush2.bf16.msra.mxu0 0
      %7148 = vmatprep.mubr.bf16.mxu0 0
      %7149 = vmatmul.mubr.bf16.gmra.mxu0 %v7060
      %v7150 = vpop.f32.mrf.mxu0
      %v7151 = vadd.f32 %v6919, %v7150
      %v7152 = vpop.f32.mrf.mxu0
      %v7153 = vpop.f32.mrf.mxu0
      %v7154 = vadd.f32 %v6922, %v7153
      %v7155 = vpop.f32.mrf.mxu0
      %7156 = vmatprep.mubr.bf16.mxu0 0
      %7157 = vmatmul.mubr.bf16.gmra.mxu0 %v6699
      %v7158 = vpop.f32.mrf.mxu0
      %v7159 = vadd.f32 %v6927, %v7158
      %v7160 = vpop.f32.mrf.mxu0
      %v7161 = vpop.f32.mrf.mxu0
      %v7162 = vadd.f32 %v6930, %v7161
      %v7163 = vpop.f32.mrf.mxu0
      %7164 = vmatprep.mubr.bf16.mxu0 0
      %7165 = vmatmul.mubr.bf16.gmra.mxu0 %v6707
      %v7166 = vpop.f32.mrf.mxu0
      %v7167 = vadd.f32 %v6935, %v7166
      %v7168 = vpop.f32.mrf.mxu0
      %v7169 = vpop.f32.mrf.mxu0
      %v7170 = vadd.f32 %v6938, %v7169
      %v7171 = vpop.f32.mrf.mxu0
      %7172 = vmatprep.mubr.bf16.mxu0 0
      %7173 = vmatmul.mubr.bf16.gmra.mxu0 %v6715
      %v7174 = vpop.f32.mrf.mxu0
      %v7175 = vadd.f32 %v6943, %v7174
      %v7176 = vpop.f32.mrf.mxu0
      %v7177 = vpop.f32.mrf.mxu0
      %v7178 = vadd.f32 %v6946, %v7177
      %v7179 = vpop.f32.mrf.mxu0
      %7180 = vmatprep.mubr.bf16.mxu0 0
      %7181 = vmatmul.mubr.bf16.gmra.mxu0 %v6723
      %v7182 = vpop.f32.mrf.mxu0
      %v7183 = vadd.f32 %v6951, %v7182
      %v7184 = vpop.f32.mrf.mxu0
      %v7185 = vpop.f32.mrf.mxu0
      %v7186 = vadd.f32 %v6954, %v7185
      %v7187 = vpop.f32.mrf.mxu0
      %7188 = vmatprep.mubr.bf16.mxu0 0
      %7189 = vmatmul.mubr.bf16.gmra.mxu0 %v6731
      %v7190 = vpop.f32.mrf.mxu0
      %v7191 = vadd.f32 %v6959, %v7190
      %v7192 = vpop.f32.mrf.mxu0
      %v7193 = vpop.f32.mrf.mxu0
      %v7194 = vadd.f32 %v6962, %v7193
      %v7195 = vpop.f32.mrf.mxu0
      %7196 = vmatprep.mubr.bf16.mxu0 0
      %7197 = vmatmul.mubr.bf16.gmra.mxu0 %v6739
      %v7198 = vpop.f32.mrf.mxu0
      %v7199 = vadd.f32 %v6967, %v7198
      %v7200 = vpop.f32.mrf.mxu0
      %v7201 = vpop.f32.mrf.mxu0
      %v7202 = vadd.f32 %v6970, %v7201
      %v7203 = vpop.f32.mrf.mxu0
      %7204 = vmatprep.mubr.bf16.mxu0 0
      %7205 = vmatmul.mubr.bf16.gmra.mxu0 %v6747
      %v7206 = vpop.f32.mrf.mxu0
      %v7207 = vadd.f32 %v6975, %v7206
      %v7208 = vpop.f32.mrf.mxu0
      %v7209 = vpop.f32.mrf.mxu0
      %v7210 = vadd.f32 %v6978, %v7209
      %v7211 = vpop.f32.mrf.mxu0
      %7212 = vmatprep.mubr.bf16.mxu0 0
      %7213 = vmatmul.mubr.bf16.gmra.mxu0 %v6755
      %v7214 = vpop.f32.mrf.mxu0
      %v7215 = vadd.f32 %v6983, %v7214
      %v7216 = vpop.f32.mrf.mxu0
      %v7217 = vpop.f32.mrf.mxu0
      %v7218 = vadd.f32 %v6986, %v7217
      %v7219 = vpop.f32.mrf.mxu0
      %7220 = vmatprep.mubr.bf16.mxu0 0
      %7221 = vmatmul.mubr.bf16.gmra.mxu0 %v6763
      %v7222 = vpop.f32.mrf.mxu0
      %v7223 = vadd.f32 %v6991, %v7222
      %v7224 = vpop.f32.mrf.mxu0
      %v7225 = vpop.f32.mrf.mxu0
      %v7226 = vadd.f32 %v6994, %v7225
      %v7227 = vpop.f32.mrf.mxu0
      %7228 = vmatprep.mubr.bf16.mxu0 0
      %7229 = vmatmul.mubr.bf16.gmra.mxu0 %v6771
      %v7230 = vpop.f32.mrf.mxu0
      %v7231 = vadd.f32 %v6999, %v7230
      %v7232 = vpop.f32.mrf.mxu0
      %v7233 = vpop.f32.mrf.mxu0
      %v7234 = vadd.f32 %v7002, %v7233
      %v7235 = vpop.f32.mrf.mxu0
      %7236 = vmatprep.mubr.bf16.mxu0 0
      %7237 = vmatmul.mubr.bf16.gmra.mxu0 %v6779
      %v7238 = vpop.f32.mrf.mxu0
      %v7239 = vadd.f32 %v7007, %v7238
      %v7240 = vpop.f32.mrf.mxu0
      %v7241 = vpop.f32.mrf.mxu0
      %v7242 = vadd.f32 %v7010, %v7241
      %v7243 = vpop.f32.mrf.mxu0
      %7244 = vmatprep.mubr.bf16.mxu0 0
      %7245 = vmatmul.mubr.bf16.gmra.mxu0 %v6787
      %v7246 = vpop.f32.mrf.mxu0
      %v7247 = vadd.f32 %v7015, %v7246
      %v7248 = vpop.f32.mrf.mxu0
      %v7249 = vpop.f32.mrf.mxu0
      %v7250 = vadd.f32 %v7018, %v7249
      %v7251 = vpop.f32.mrf.mxu0
      %7252 = vmatprep.mubr.bf16.mxu0 0
      %7253 = vmatmul.mubr.bf16.gmra.mxu0 %v6795
      %v7254 = vpop.f32.mrf.mxu0
      %v7255 = vadd.f32 %v7023, %v7254
      %v7256 = vpop.f32.mrf.mxu0
      %v7257 = vpop.f32.mrf.mxu0
      %v7258 = vadd.f32 %v7026, %v7257
      %v7259 = vpop.f32.mrf.mxu0
      %7260 = vmatprep.mubr.bf16.mxu0 0
      %7261 = vmatmul.mubr.bf16.gmra.mxu0 %v6803
      %v7262 = vpop.f32.mrf.mxu0
      %v7263 = vadd.f32 %v7031, %v7262
      %v7264 = vpop.f32.mrf.mxu0
      %v7265 = vpop.f32.mrf.mxu0
      %v7266 = vadd.f32 %v7034, %v7265
      %v7267 = vpop.f32.mrf.mxu0
      %7268 = vmatprep.mubr.bf16.mxu0 0
      %7269 = vmatmul.mubr.bf16.gmra.mxu0 %v7065
      %v7270 = vpop.f32.mrf.mxu0
      %v7271 = vadd.f32 %v7039, %v7270
      %v7272 = vpop.f32.mrf.mxu0
      %v7273 = vpop.f32.mrf.mxu0
      %v7274 = vadd.f32 %v7042, %v7273
      %v7275 = vpop.f32.mrf.mxu0
      %7276 = vdwg.mxu0
      %v7277 = vld [vmem:[#allocation3 + $0x18] sm:$0xf]
      %v7278 = vld [vmem:[#allocation3 + $0x1c] sm:$0xf]
      %v7279 = vld [vmem:[#allocation3 + $0x20] sm:$0xf]
      %v7280 = vld [vmem:[#allocation3 + $0x24] sm:$0xf]
      %v7281 = vld [vmem:[#allocation3 + $0x28] sm:$0xf]
      %v7282 = vld [vmem:[#allocation3 + $0x2c] sm:$0xf]
      %v7283 = vld [vmem:[#allocation3 + $0x30] sm:$0xf]
      %v7284 = vld [vmem:[#allocation3 + $0x34] sm:$0xf]
      %v7285 = vld [vmem:[#allocation3 + $0x38] sm:$0xf]
      %v7286 = vld [vmem:[#allocation3 + $0x3c] sm:$0xf]
      %v7287 = vld [vmem:[#allocation3 + $0x40] sm:$0xf]
      %v7288 = vld [vmem:[#allocation3 + $0x44] sm:$0xf]
      %v7289 = vld [vmem:[#allocation3 + $0x48] sm:$0xf]
      %v7290 = vld [vmem:[#allocation3 + $0x4c] sm:$0xf]
      %v7291 = vld [vmem:[#allocation3 + $0x50] sm:$0xf]
      %v7292 = vld [vmem:[#allocation3 + $0x54] sm:$0xf]
      %v7293 = vld [vmem:[#allocation3 + $0x58] sm:$0xf]
      %v7294 = vld [vmem:[#allocation3 + $0x5c] sm:$0xf]
      %v7295 = vld [vmem:[#allocation3 + $0x60] sm:$0xf]
      %v7296 = vld [vmem:[#allocation3 + $0x64] sm:$0xf]
      %v7297 = vld [vmem:[#allocation3 + $0x68] sm:$0xf]
      %v7298 = vld [vmem:[#allocation3 + $0x6c] sm:$0xf]
      %v7299 = vld [vmem:[#allocation3 + $0x70] sm:$0xf]
      %v7300 = vld [vmem:[#allocation3 + $0x74] sm:$0xf]
      %v7301 = vld [vmem:[#allocation3 + $0x78] sm:$0xf]
      %v7302 = vld [vmem:[#allocation3 + $0x7c] sm:$0xf]
      %v7303 = vld [vmem:[#allocation3 + $0x80] sm:$0xf]
      %v7304 = vld [vmem:[#allocation3 + $0x84] sm:$0xf]
      %v7305 = vld [vmem:[#allocation3 + $0x88] sm:$0xf]
      %v7306 = vld [vmem:[#allocation3 + $0x8c] sm:$0xf]
      %v7307 = vld [vmem:[#allocation3 + $0x90] sm:$0xf]
      %v7308 = vld [vmem:[#allocation3 + $0x94] sm:$0xf]
      %v7309 = vld [vmem:[#allocation3 + $0x98] sm:$0x1]
      %s7310 = scalar_lea.vmem %s4, 512
      %v7311 = vld [vmem:[%s7310] sm:$0xf]
      %v7312 = vld [vmem:[%s7310 + $0x4] sm:$0xf]
      %v7313 = vld [vmem:[%s7310 + $0x8] sm:$0xf]
      %v7314 = vld [vmem:[%s7310 + $0xc] sm:$0xf]
      %v7315 = vld [vmem:[%s7310 + $0x10] sm:$0xf]
      %v7316 = vld [vmem:[%s7310 + $0x14] sm:$0xf]
      %v7317 = vld [vmem:[%s7310 + $0x18] sm:$0xf]
      %v7318 = vld [vmem:[%s7310 + $0x1c] sm:$0xf]
      %v7319 = vld [vmem:[%s7310 + $0x20] sm:$0xf]
      %v7320 = vld [vmem:[%s7310 + $0x24] sm:$0xf]
      %v7321 = vld [vmem:[%s7310 + $0x28] sm:$0xf]
      %v7322 = vld [vmem:[%s7310 + $0x2c] sm:$0xf]
      %v7323 = vld [vmem:[%s7310 + $0x30] sm:$0xf]
      %v7324 = vld [vmem:[%s7310 + $0x34] sm:$0xf]
      %v7325 = vld [vmem:[%s7310 + $0x38] sm:$0xf]
      %v7326 = vld [vmem:[%s7310 + $0x3c] sm:$0xf]
      %v7360 = vunpack.c.l.b16 %v7277
      %v7361 = vunpack.c.l.b16 %v7278
      %v7362 = vunpack.c.l.b16 %v7279
      %v7363 = vunpack.c.l.b16 %v7280
      %v7364 = vunpack.c.l.b16 %v7281
      %v7365 = vunpack.c.l.b16 %v7282
      %v7366 = vunpack.c.l.b16 %v7283
      %v7367 = vunpack.c.l.b16 %v7284
      %v7368 = vunpack.c.l.b16 %v7285
      %v7369 = vunpack.c.l.b16 %v7286
      %v7370 = vunpack.c.l.b16 %v7287
      %v7371 = vunpack.c.l.b16 %v7288
      %v7372 = vunpack.c.l.b16 %v7289
      %v7373 = vunpack.c.l.b16 %v7290
      %v7374 = vunpack.c.l.b16 %v7291
      %v7375 = vunpack.c.l.b16 %v7292
      %v7376 = vunpack.c.l.b16 %v7293
      %v7377 = vunpack.c.l.b16 %v7294
      %v7378 = vunpack.c.l.b16 %v7295
      %v7379 = vunpack.c.l.b16 %v7296
      %v7380 = vunpack.c.l.b16 %v7297
      %v7381 = vunpack.c.l.b16 %v7298
      %v7382 = vunpack.c.l.b16 %v7299
      %v7383 = vunpack.c.l.b16 %v7300
      %v7384 = vunpack.c.l.b16 %v7301
      %v7385 = vunpack.c.l.b16 %v7302
      %v7386 = vunpack.c.l.b16 %v7303
      %v7387 = vunpack.c.l.b16 %v7304
      %v7388 = vunpack.c.l.b16 %v7305
      %v7389 = vunpack.c.l.b16 %v7306
      %v7390 = vunpack.c.l.b16 %v7307
      %v7391 = vunpack.c.l.b16 %v7308
      %v7392 = vunpack.c.l.b16 %v7309
      %v7393 = vpack.c.b16 %v7361, %v7360
      %v7394 = vpack.c.b16 %v7363, %v7362
      %v7395 = vpack.c.b16 %v7365, %v7364
      %v7396 = vpack.c.b16 %v7367, %v7366
      %v7397 = vpack.c.b16 %v7369, %v7368
      %v7398 = vpack.c.b16 %v7371, %v7370
      %v7399 = vpack.c.b16 %v7373, %v7372
      %v7400 = vpack.c.b16 %v7375, %v7374
      %v7401 = vpack.c.b16 %v7377, %v7376
      %v7402 = vpack.c.b16 %v7379, %v7378
      %v7403 = vpack.c.b16 %v7381, %v7380
      %v7404 = vpack.c.b16 %v7383, %v7382
      %v7405 = vpack.c.b16 %v7385, %v7384
      %v7406 = vpack.c.b16 %v7387, %v7386
      %v7407 = vpack.c.b16 %v7389, %v7388
      %v7408 = vpack.c.b16 %v7391, %v7390
      %v7409 = vpack.c.b16 %v7392, %v7392
      %v7411 = vshrl.u32 %v7393, 16
      %v7413 = vshll.u32 %v7393, 16
      %v7415 = vrot.slane %v7413, 1
      %v7416 = vor.u32 %v7411, %v7415
      %v7418 = vshll.u32 %v7394, 16
      %v7420 = vrot.slane %v7418, 1
      %v7421 = vsel %vm2922, %v7416, %v7420
      %v7422 = vshrl.u32 %v7394, 16
      %v7424 = vor.u32 %v7422, %v7420
      %v7426 = vshll.u32 %v7395, 16
      %v7428 = vrot.slane %v7426, 1
      %v7429 = vsel %vm2922, %v7424, %v7428
      %v7430 = vshrl.u32 %v7395, 16
      %v7432 = vor.u32 %v7430, %v7428
      %v7434 = vshll.u32 %v7396, 16
      %v7436 = vrot.slane %v7434, 1
      %v7437 = vsel %vm2922, %v7432, %v7436
      %v7438 = vshrl.u32 %v7396, 16
      %v7440 = vor.u32 %v7438, %v7436
      %v7442 = vshll.u32 %v7397, 16
      %v7444 = vrot.slane %v7442, 1
      %v7445 = vsel %vm2922, %v7440, %v7444
      %v7446 = vshrl.u32 %v7397, 16
      %v7448 = vor.u32 %v7446, %v7444
      %v7450 = vshll.u32 %v7398, 16
      %v7452 = vrot.slane %v7450, 1
      %v7453 = vsel %vm2922, %v7448, %v7452
      %v7454 = vshrl.u32 %v7398, 16
      %v7456 = vor.u32 %v7454, %v7452
      %v7458 = vshll.u32 %v7399, 16
      %v7460 = vrot.slane %v7458, 1
      %v7461 = vsel %vm2922, %v7456, %v7460
      %v7462 = vshrl.u32 %v7399, 16
      %v7464 = vor.u32 %v7462, %v7460
      %v7466 = vshll.u32 %v7400, 16
      %v7468 = vrot.slane %v7466, 1
      %v7469 = vsel %vm2922, %v7464, %v7468
      %v7470 = vshrl.u32 %v7400, 16
      %v7472 = vor.u32 %v7470, %v7468
      %v7474 = vshll.u32 %v7401, 16
      %v7476 = vrot.slane %v7474, 1
      %v7477 = vsel %vm2922, %v7472, %v7476
      %v7478 = vshrl.u32 %v7401, 16
      %v7480 = vor.u32 %v7478, %v7476
      %v7482 = vshll.u32 %v7402, 16
      %v7484 = vrot.slane %v7482, 1
      %v7485 = vsel %vm2922, %v7480, %v7484
      %v7486 = vshrl.u32 %v7402, 16
      %v7488 = vor.u32 %v7486, %v7484
      %v7490 = vshll.u32 %v7403, 16
      %v7492 = vrot.slane %v7490, 1
      %v7493 = vsel %vm2922, %v7488, %v7492
      %v7494 = vshrl.u32 %v7403, 16
      %v7496 = vor.u32 %v7494, %v7492
      %v7498 = vshll.u32 %v7404, 16
      %v7500 = vrot.slane %v7498, 1
      %v7501 = vsel %vm2922, %v7496, %v7500
      %v7502 = vshrl.u32 %v7404, 16
      %v7504 = vor.u32 %v7502, %v7500
      %v7506 = vshll.u32 %v7405, 16
      %v7508 = vrot.slane %v7506, 1
      %v7509 = vsel %vm2922, %v7504, %v7508
      %v7510 = vshrl.u32 %v7405, 16
      %v7512 = vor.u32 %v7510, %v7508
      %v7514 = vshll.u32 %v7406, 16
      %v7516 = vrot.slane %v7514, 1
      %v7517 = vsel %vm2922, %v7512, %v7516
      %v7518 = vshrl.u32 %v7406, 16
      %v7520 = vor.u32 %v7518, %v7516
      %v7522 = vshll.u32 %v7407, 16
      %v7524 = vrot.slane %v7522, 1
      %v7525 = vsel %vm2922, %v7520, %v7524
      %v7526 = vshrl.u32 %v7407, 16
      %v7528 = vor.u32 %v7526, %v7524
      %v7530 = vshll.u32 %v7408, 16
      %v7532 = vrot.slane %v7530, 1
      %v7533 = vsel %vm2922, %v7528, %v7532
      %v7534 = vshrl.u32 %v7408, 16
      %v7536 = vor.u32 %v7534, %v7532
      %v7538 = vshll.u32 %v7409, 16
      %v7540 = vrot.slane %v7538, 1
      %v7541 = vsel %vm2922, %v7536, %v7540
      %v7574 = vunpack.c.l.b16 %v7311
      %v7575 = vunpack.c.l.b16 %v7312
      %v7576 = vunpack.c.l.b16 %v7313
      %v7577 = vunpack.c.l.b16 %v7314
      %v7578 = vunpack.c.l.b16 %v7315
      %v7579 = vunpack.c.l.b16 %v7316
      %v7580 = vunpack.c.l.b16 %v7317
      %v7581 = vunpack.c.l.b16 %v7318
      %v7582 = vunpack.c.l.b16 %v7319
      %v7583 = vunpack.c.l.b16 %v7320
      %v7584 = vunpack.c.l.b16 %v7321
      %v7585 = vunpack.c.l.b16 %v7322
      %v7586 = vunpack.c.l.b16 %v7323
      %v7587 = vunpack.c.l.b16 %v7324
      %v7588 = vunpack.c.l.b16 %v7325
      %v7589 = vunpack.c.l.b16 %v7326
      %v7590 = vpack.c.b16 %v7575, %v7574
      %v7591 = vpack.c.b16 %v7577, %v7576
      %v7592 = vpack.c.b16 %v7579, %v7578
      %v7593 = vpack.c.b16 %v7581, %v7580
      %v7594 = vpack.c.b16 %v7583, %v7582
      %v7595 = vpack.c.b16 %v7585, %v7584
      %v7596 = vpack.c.b16 %v7587, %v7586
      %v7597 = vpack.c.b16 %v7589, %v7588
      %7606 = vmatprep.subr.bf16.mxu0 0
      %7607 = vmatpush1.bf16.msra.mxu0 %v7597
      %7608 = vmatprep.subr.bf16.mxu0 0
      %7609 = vmatpush1.bf16.msra.mxu0 %v7596
      %7610 = vmatprep.subr.bf16.mxu0 0
      %7611 = vmatpush1.bf16.msra.mxu0 %v7595
      %7612 = vmatprep.subr.bf16.mxu0 0
      %7613 = vmatpush1.bf16.msra.mxu0 %v7594
      %7614 = vmatprep.subr.bf16.mxu0 0
      %7615 = vmatpush1.bf16.msra.mxu0 %v7593
      %7616 = vmatprep.subr.bf16.mxu0 0
      %7617 = vmatpush1.bf16.msra.mxu0 %v7592
      %7618 = vmatprep.subr.bf16.mxu0 0
      %7619 = vmatpush1.bf16.msra.mxu0 %v7591
      %7620 = vmatprep.subr.bf16.mxu0 0
      %7621 = vmatpush1.bf16.msra.mxu0 %v7590
      %7622 = vmatprep.subr.bf16.mxu0 0
      %7623 = vmatpush2.bf16.msra.mxu0 0
      %7624 = vmatprep.subr.bf16.mxu0 0
      %7625 = vmatpush2.bf16.msra.mxu0 0
      %7626 = vmatprep.subr.bf16.mxu0 0
      %7627 = vmatpush2.bf16.msra.mxu0 0
      %7628 = vmatprep.subr.bf16.mxu0 0
      %7629 = vmatpush2.bf16.msra.mxu0 0
      %7630 = vmatprep.subr.bf16.mxu0 0
      %7631 = vmatpush2.bf16.msra.mxu0 0
      %7632 = vmatprep.subr.bf16.mxu0 0
      %7633 = vmatpush2.bf16.msra.mxu0 0
      %7634 = vmatprep.subr.bf16.mxu0 0
      %7635 = vmatpush2.bf16.msra.mxu0 0
      %7636 = vmatprep.subr.bf16.mxu0 0
      %7637 = vmatpush2.bf16.msra.mxu0 0
      %7638 = vmatprep.mubr.bf16.mxu0 0
      %7639 = vmatmul.mubr.bf16.gmra.mxu0 %v7421
      %v7640 = vpop.f32.mrf.mxu0
      %v7641 = vadd.f32 0.0, %v7640
      %v7642 = vpop.f32.mrf.mxu0
      %v7643 = vpop.f32.mrf.mxu0
      %v7644 = vadd.f32 0.0, %v7643
      %v7645 = vpop.f32.mrf.mxu0
      %7646 = vmatprep.mubr.bf16.mxu0 0
      %7647 = vmatmul.mubr.bf16.gmra.mxu0 %v7429
      %v7648 = vpop.f32.mrf.mxu0
      %v7649 = vadd.f32 0.0, %v7648
      %v7650 = vpop.f32.mrf.mxu0
      %v7651 = vpop.f32.mrf.mxu0
      %v7652 = vadd.f32 0.0, %v7651
      %v7653 = vpop.f32.mrf.mxu0
      %7654 = vmatprep.mubr.bf16.mxu0 0
      %7655 = vmatmul.mubr.bf16.gmra.mxu0 %v7437
      %v7656 = vpop.f32.mrf.mxu0
      %v7657 = vadd.f32 0.0, %v7656
      %v7658 = vpop.f32.mrf.mxu0
      %v7659 = vpop.f32.mrf.mxu0
      %v7660 = vadd.f32 0.0, %v7659
      %v7661 = vpop.f32.mrf.mxu0
      %7662 = vmatprep.mubr.bf16.mxu0 0
      %7663 = vmatmul.mubr.bf16.gmra.mxu0 %v7445
      %v7664 = vpop.f32.mrf.mxu0
      %v7665 = vadd.f32 0.0, %v7664
      %v7666 = vpop.f32.mrf.mxu0
      %v7667 = vpop.f32.mrf.mxu0
      %v7668 = vadd.f32 0.0, %v7667
      %v7669 = vpop.f32.mrf.mxu0
      %7670 = vmatprep.mubr.bf16.mxu0 0
      %7671 = vmatmul.mubr.bf16.gmra.mxu0 %v7453
      %v7672 = vpop.f32.mrf.mxu0
      %v7673 = vadd.f32 0.0, %v7672
      %v7674 = vpop.f32.mrf.mxu0
      %v7675 = vpop.f32.mrf.mxu0
      %v7676 = vadd.f32 0.0, %v7675
      %v7677 = vpop.f32.mrf.mxu0
      %7678 = vmatprep.mubr.bf16.mxu0 0
      %7679 = vmatmul.mubr.bf16.gmra.mxu0 %v7461
      %v7680 = vpop.f32.mrf.mxu0
      %v7681 = vadd.f32 0.0, %v7680
      %v7682 = vpop.f32.mrf.mxu0
      %v7683 = vpop.f32.mrf.mxu0
      %v7684 = vadd.f32 0.0, %v7683
      %v7685 = vpop.f32.mrf.mxu0
      %7686 = vmatprep.mubr.bf16.mxu0 0
      %7687 = vmatmul.mubr.bf16.gmra.mxu0 %v7469
      %v7688 = vpop.f32.mrf.mxu0
      %v7689 = vadd.f32 0.0, %v7688
      %v7690 = vpop.f32.mrf.mxu0
      %v7691 = vpop.f32.mrf.mxu0
      %v7692 = vadd.f32 0.0, %v7691
      %v7693 = vpop.f32.mrf.mxu0
      %7694 = vmatprep.mubr.bf16.mxu0 0
      %7695 = vmatmul.mubr.bf16.gmra.mxu0 %v7477
      %v7696 = vpop.f32.mrf.mxu0
      %v7697 = vadd.f32 0.0, %v7696
      %v7698 = vpop.f32.mrf.mxu0
      %v7699 = vpop.f32.mrf.mxu0
      %v7700 = vadd.f32 0.0, %v7699
      %v7701 = vpop.f32.mrf.mxu0
      %7702 = vmatprep.mubr.bf16.mxu0 0
      %7703 = vmatmul.mubr.bf16.gmra.mxu0 %v7485
      %v7704 = vpop.f32.mrf.mxu0
      %v7705 = vadd.f32 0.0, %v7704
      %v7706 = vpop.f32.mrf.mxu0
      %v7707 = vpop.f32.mrf.mxu0
      %v7708 = vadd.f32 0.0, %v7707
      %v7709 = vpop.f32.mrf.mxu0
      %7710 = vmatprep.mubr.bf16.mxu0 0
      %7711 = vmatmul.mubr.bf16.gmra.mxu0 %v7493
      %v7712 = vpop.f32.mrf.mxu0
      %v7713 = vadd.f32 0.0, %v7712
      %v7714 = vpop.f32.mrf.mxu0
      %v7715 = vpop.f32.mrf.mxu0
      %v7716 = vadd.f32 0.0, %v7715
      %v7717 = vpop.f32.mrf.mxu0
      %7718 = vmatprep.mubr.bf16.mxu0 0
      %7719 = vmatmul.mubr.bf16.gmra.mxu0 %v7501
      %v7720 = vpop.f32.mrf.mxu0
      %v7721 = vadd.f32 0.0, %v7720
      %v7722 = vpop.f32.mrf.mxu0
      %v7723 = vpop.f32.mrf.mxu0
      %v7724 = vadd.f32 0.0, %v7723
      %v7725 = vpop.f32.mrf.mxu0
      %7726 = vmatprep.mubr.bf16.mxu0 0
      %7727 = vmatmul.mubr.bf16.gmra.mxu0 %v7509
      %v7728 = vpop.f32.mrf.mxu0
      %v7729 = vadd.f32 0.0, %v7728
      %v7730 = vpop.f32.mrf.mxu0
      %v7731 = vpop.f32.mrf.mxu0
      %v7732 = vadd.f32 0.0, %v7731
      %v7733 = vpop.f32.mrf.mxu0
      %7734 = vmatprep.mubr.bf16.mxu0 0
      %7735 = vmatmul.mubr.bf16.gmra.mxu0 %v7517
      %v7736 = vpop.f32.mrf.mxu0
      %v7737 = vadd.f32 0.0, %v7736
      %v7738 = vpop.f32.mrf.mxu0
      %v7739 = vpop.f32.mrf.mxu0
      %v7740 = vadd.f32 0.0, %v7739
      %v7741 = vpop.f32.mrf.mxu0
      %7742 = vmatprep.mubr.bf16.mxu0 0
      %7743 = vmatmul.mubr.bf16.gmra.mxu0 %v7525
      %v7744 = vpop.f32.mrf.mxu0
      %v7745 = vadd.f32 0.0, %v7744
      %v7746 = vpop.f32.mrf.mxu0
      %v7747 = vpop.f32.mrf.mxu0
      %v7748 = vadd.f32 0.0, %v7747
      %v7749 = vpop.f32.mrf.mxu0
      %7750 = vmatprep.mubr.bf16.mxu0 0
      %7751 = vmatmul.mubr.bf16.gmra.mxu0 %v7533
      %v7752 = vpop.f32.mrf.mxu0
      %v7753 = vadd.f32 0.0, %v7752
      %v7754 = vpop.f32.mrf.mxu0
      %v7755 = vpop.f32.mrf.mxu0
      %v7756 = vadd.f32 0.0, %v7755
      %v7757 = vpop.f32.mrf.mxu0
      %7758 = vmatprep.mubr.bf16.mxu0 0
      %7759 = vmatmul.mubr.bf16.gmra.mxu0 %v7541
      %v7760 = vpop.f32.mrf.mxu0
      %v7761 = vadd.f32 0.0, %v7760
      %v7762 = vpop.f32.mrf.mxu0
      %v7763 = vpop.f32.mrf.mxu0
      %v7764 = vadd.f32 0.0, %v7763
      %v7765 = vpop.f32.mrf.mxu0
      %7766 = vdwg.mxu0
      %v7767 = vadd.f32 %v7151, %v7641
      %v7768 = vadd.f32 %v7154, %v7644
      %v7769 = vadd.f32 %v7159, %v7649
      %v7770 = vadd.f32 %v7162, %v7652
      %v7771 = vadd.f32 %v7167, %v7657
      %v7772 = vadd.f32 %v7170, %v7660
      %v7773 = vadd.f32 %v7175, %v7665
      %v7774 = vadd.f32 %v7178, %v7668
      %v7775 = vadd.f32 %v7183, %v7673
      %v7776 = vadd.f32 %v7186, %v7676
      %v7777 = vadd.f32 %v7191, %v7681
      %v7778 = vadd.f32 %v7194, %v7684
      %v7779 = vadd.f32 %v7199, %v7689
      %v7780 = vadd.f32 %v7202, %v7692
      %v7781 = vadd.f32 %v7207, %v7697
      %v7782 = vadd.f32 %v7210, %v7700
      %v7783 = vadd.f32 %v7215, %v7705
      %v7784 = vadd.f32 %v7218, %v7708
      %v7785 = vadd.f32 %v7223, %v7713
      %v7786 = vadd.f32 %v7226, %v7716
      %v7787 = vadd.f32 %v7231, %v7721
      %v7788 = vadd.f32 %v7234, %v7724
      %v7789 = vadd.f32 %v7239, %v7729
      %v7790 = vadd.f32 %v7242, %v7732
      %v7791 = vadd.f32 %v7247, %v7737
      %v7792 = vadd.f32 %v7250, %v7740
      %v7793 = vadd.f32 %v7255, %v7745
      %v7794 = vadd.f32 %v7258, %v7748
      %v7795 = vadd.f32 %v7263, %v7753
      %v7796 = vadd.f32 %v7266, %v7756
      %v7797 = vadd.f32 %v7271, %v7761
      %v7798 = vadd.f32 %v7274, %v7764
      %v7799 = vmul.f32 %v7767, %v505
      %v7800 = vmul.f32 %v7768, %v506
      %v7801 = vmul.f32 %v7769, %v507
      %v7802 = vmul.f32 %v7770, %v508
      %v7803 = vmul.f32 %v7771, %v509
      %v7804 = vmul.f32 %v7772, %v510
      %v7805 = vmul.f32 %v7773, %v511
      %v7806 = vmul.f32 %v7774, %v512
      %v7807 = vmul.f32 %v7775, %v513
      %v7808 = vmul.f32 %v7776, %v514
      %v7809 = vmul.f32 %v7777, %v515
      %v7810 = vmul.f32 %v7778, %v516
      %v7811 = vmul.f32 %v7779, %v517
      %v7812 = vmul.f32 %v7780, %v518
      %v7813 = vmul.f32 %v7781, %v519
      %v7814 = vmul.f32 %v7782, %v520
      %v7815 = vmul.f32 %v7783, %v521
      %v7816 = vmul.f32 %v7784, %v522
      %v7817 = vmul.f32 %v7785, %v523
      %v7818 = vmul.f32 %v7786, %v524
      %v7819 = vmul.f32 %v7787, %v525
      %v7820 = vmul.f32 %v7788, %v526
      %v7821 = vmul.f32 %v7789, %v527
      %v7822 = vmul.f32 %v7790, %v528
      %v7823 = vmul.f32 %v7791, %v529
      %v7824 = vmul.f32 %v7792, %v530
      %v7825 = vmul.f32 %v7793, %v531
      %v7826 = vmul.f32 %v7794, %v532
      %v7827 = vmul.f32 %v7795, %v533
      %v7828 = vmul.f32 %v7796, %v534
      %v7829 = vmul.f32 %v7797, %v535
      %v7830 = vmul.f32 %v7798, %v536
      %v7831 = vadd.f32 %v6503, %v7799
      %v7832 = vadd.f32 %v6504, %v7800
      %v7833 = vadd.f32 %v6505, %v7801
      %v7834 = vadd.f32 %v6506, %v7802
      %v7835 = vadd.f32 %v6507, %v7803
      %v7836 = vadd.f32 %v6508, %v7804
      %v7837 = vadd.f32 %v6509, %v7805
      %v7838 = vadd.f32 %v6510, %v7806
      %v7839 = vadd.f32 %v6511, %v7807
      %v7840 = vadd.f32 %v6512, %v7808
      %v7841 = vadd.f32 %v6513, %v7809
      %v7842 = vadd.f32 %v6514, %v7810
      %v7843 = vadd.f32 %v6515, %v7811
      %v7844 = vadd.f32 %v6516, %v7812
      %v7845 = vadd.f32 %v6517, %v7813
      %v7846 = vadd.f32 %v6518, %v7814
      %v7847 = vadd.f32 %v6519, %v7815
      %v7848 = vadd.f32 %v6520, %v7816
      %v7849 = vadd.f32 %v6521, %v7817
      %v7850 = vadd.f32 %v6522, %v7818
      %v7851 = vadd.f32 %v6523, %v7819
      %v7852 = vadd.f32 %v6524, %v7820
      %v7853 = vadd.f32 %v6525, %v7821
      %v7854 = vadd.f32 %v6526, %v7822
      %v7855 = vadd.f32 %v6527, %v7823
      %v7856 = vadd.f32 %v6528, %v7824
      %v7857 = vadd.f32 %v6529, %v7825
      %v7858 = vadd.f32 %v6530, %v7826
      %v7859 = vadd.f32 %v6531, %v7827
      %v7860 = vadd.f32 %v6532, %v7828
      %v7861 = vadd.f32 %v6533, %v7829
      %v7862 = vadd.f32 %v6534, %v7830
      %v7863 = vld [vmem:[%s5] sm:$0x1]
      %v7865 = vlaneseq
      %v7866 = vshrl.u32 %v7865, 7
      %v7867 = vsub.s32 0, %v7866
      %v7868 = vrot.slane %v7863, %v7867
      %v7870 = vmul.f32 %v7831, %v7868
      %v7871 = vmul.f32 %v7832, %v7868
      %v7872 = vmul.f32 %v7833, %v7868
      %v7873 = vmul.f32 %v7834, %v7868
      %v7874 = vmul.f32 %v7835, %v7868
      %v7875 = vmul.f32 %v7836, %v7868
      %v7876 = vmul.f32 %v7837, %v7868
      %v7877 = vmul.f32 %v7838, %v7868
      %v7878 = vmul.f32 %v7839, %v7868
      %v7879 = vmul.f32 %v7840, %v7868
      %v7880 = vmul.f32 %v7841, %v7868
      %v7881 = vmul.f32 %v7842, %v7868
      %v7882 = vmul.f32 %v7843, %v7868
      %v7883 = vmul.f32 %v7844, %v7868
      %v7884 = vmul.f32 %v7845, %v7868
      %v7885 = vmul.f32 %v7846, %v7868
      %v7886 = vmul.f32 %v7847, %v7868
      %v7887 = vmul.f32 %v7848, %v7868
      %v7888 = vmul.f32 %v7849, %v7868
      %v7889 = vmul.f32 %v7850, %v7868
      %v7890 = vmul.f32 %v7851, %v7868
      %v7891 = vmul.f32 %v7852, %v7868
      %v7892 = vmul.f32 %v7853, %v7868
      %v7893 = vmul.f32 %v7854, %v7868
      %v7894 = vmul.f32 %v7855, %v7868
      %v7895 = vmul.f32 %v7856, %v7868
      %v7896 = vmul.f32 %v7857, %v7868
      %v7897 = vmul.f32 %v7858, %v7868
      %v7898 = vmul.f32 %v7859, %v7868
      %v7899 = vmul.f32 %v7860, %v7868
      %v7900 = vmul.f32 %v7861, %v7868
      %v7901 = vmul.f32 %v7862, %v7868
      %v7902 = vld [vmem:[%s6] sm:$0x1]
      %v7904 = vlaneseq
      %v7905 = vshrl.u32 %v7904, 7
      %v7906 = vsub.s32 0, %v7905
      %v7907 = vrot.slane %v7902, %v7906
      %v7909 = vadd.f32 %v7870, %v7907
      %v7910 = vadd.f32 %v7871, %v7907
      %v7911 = vadd.f32 %v7872, %v7907
      %v7912 = vadd.f32 %v7873, %v7907
      %v7913 = vadd.f32 %v7874, %v7907
      %v7914 = vadd.f32 %v7875, %v7907
      %v7915 = vadd.f32 %v7876, %v7907
      %v7916 = vadd.f32 %v7877, %v7907
      %v7917 = vadd.f32 %v7878, %v7907
      %v7918 = vadd.f32 %v7879, %v7907
      %v7919 = vadd.f32 %v7880, %v7907
      %v7920 = vadd.f32 %v7881, %v7907
      %v7921 = vadd.f32 %v7882, %v7907
      %v7922 = vadd.f32 %v7883, %v7907
      %v7923 = vadd.f32 %v7884, %v7907
      %v7924 = vadd.f32 %v7885, %v7907
      %v7925 = vadd.f32 %v7886, %v7907
      %v7926 = vadd.f32 %v7887, %v7907
      %v7927 = vadd.f32 %v7888, %v7907
      %v7928 = vadd.f32 %v7889, %v7907
      %v7929 = vadd.f32 %v7890, %v7907
      %v7930 = vadd.f32 %v7891, %v7907
      %v7931 = vadd.f32 %v7892, %v7907
      %v7932 = vadd.f32 %v7893, %v7907
      %v7933 = vadd.f32 %v7894, %v7907
      %v7934 = vadd.f32 %v7895, %v7907
      %v7935 = vadd.f32 %v7896, %v7907
      %v7936 = vadd.f32 %v7897, %v7907
      %v7937 = vadd.f32 %v7898, %v7907
      %v7938 = vadd.f32 %v7899, %v7907
      %v7939 = vadd.f32 %v7900, %v7907
      %v7940 = vadd.f32 %v7901, %v7907
      %v7941 = vmax.f32 %v7909, 0.0
      %v7942 = vmax.f32 %v7910, 0.0
      %v7943 = vmax.f32 %v7911, 0.0
      %v7944 = vmax.f32 %v7912, 0.0
      %v7945 = vmax.f32 %v7913, 0.0
      %v7946 = vmax.f32 %v7914, 0.0
      %v7947 = vmax.f32 %v7915, 0.0
      %v7948 = vmax.f32 %v7916, 0.0
      %v7949 = vmax.f32 %v7917, 0.0
      %v7950 = vmax.f32 %v7918, 0.0
      %v7951 = vmax.f32 %v7919, 0.0
      %v7952 = vmax.f32 %v7920, 0.0
      %v7953 = vmax.f32 %v7921, 0.0
      %v7954 = vmax.f32 %v7922, 0.0
      %v7955 = vmax.f32 %v7923, 0.0
      %v7956 = vmax.f32 %v7924, 0.0
      %v7957 = vmax.f32 %v7925, 0.0
      %v7958 = vmax.f32 %v7926, 0.0
      %v7959 = vmax.f32 %v7927, 0.0
      %v7960 = vmax.f32 %v7928, 0.0
      %v7961 = vmax.f32 %v7929, 0.0
      %v7962 = vmax.f32 %v7930, 0.0
      %v7963 = vmax.f32 %v7931, 0.0
      %v7964 = vmax.f32 %v7932, 0.0
      %v7965 = vmax.f32 %v7933, 0.0
      %v7966 = vmax.f32 %v7934, 0.0
      %v7967 = vmax.f32 %v7935, 0.0
      %v7968 = vmax.f32 %v7936, 0.0
      %v7969 = vmax.f32 %v7937, 0.0
      %v7970 = vmax.f32 %v7938, 0.0
      %v7971 = vmax.f32 %v7939, 0.0
      %v7972 = vmax.f32 %v7940, 0.0
      %7973 = vst [vmem:[%s278] sm:$0xff] %v7941
      %7974 = vst [vmem:[%s278 + $0x8] sm:$0xff] %v7942
      %7975 = vst [vmem:[%s278 + $0x10] sm:$0xff] %v7943
      %7976 = vst [vmem:[%s278 + $0x18] sm:$0xff] %v7944
      %7977 = vst [vmem:[%s278 + $0x20] sm:$0xff] %v7945
      %7978 = vst [vmem:[%s278 + $0x28] sm:$0xff] %v7946
      %7979 = vst [vmem:[%s278 + $0x30] sm:$0xff] %v7947
      %7980 = vst [vmem:[%s278 + $0x38] sm:$0xff] %v7948
      %7981 = vst [vmem:[%s278 + $0x40] sm:$0xff] %v7949
      %7982 = vst [vmem:[%s278 + $0x48] sm:$0xff] %v7950
      %7983 = vst [vmem:[%s278 + $0x50] sm:$0xff] %v7951
      %7984 = vst [vmem:[%s278 + $0x58] sm:$0xff] %v7952
      %7985 = vst [vmem:[%s278 + $0x60] sm:$0xff] %v7953
      %7986 = vst [vmem:[%s278 + $0x68] sm:$0xff] %v7954
      %7987 = vst [vmem:[%s278 + $0x70] sm:$0xff] %v7955
      %7988 = vst [vmem:[%s278 + $0x78] sm:$0xff] %v7956
      %7989 = vst [vmem:[%s278 + $0x80] sm:$0xff] %v7957
      %7990 = vst [vmem:[%s278 + $0x88] sm:$0xff] %v7958
      %7991 = vst [vmem:[%s278 + $0x90] sm:$0xff] %v7959
      %7992 = vst [vmem:[%s278 + $0x98] sm:$0xff] %v7960
      %7993 = vst [vmem:[%s278 + $0xa0] sm:$0xff] %v7961
      %7994 = vst [vmem:[%s278 + $0xa8] sm:$0xff] %v7962
      %7995 = vst [vmem:[%s278 + $0xb0] sm:$0xff] %v7963
      %7996 = vst [vmem:[%s278 + $0xb8] sm:$0xff] %v7964
      %7997 = vst [vmem:[%s278 + $0xc0] sm:$0xff] %v7965
      %7998 = vst [vmem:[%s278 + $0xc8] sm:$0xff] %v7966
      %7999 = vst [vmem:[%s278 + $0xd0] sm:$0xff] %v7967
      %8000 = vst [vmem:[%s278 + $0xd8] sm:$0xff] %v7968
      %8001 = vst [vmem:[%s278 + $0xe0] sm:$0xff] %v7969
      %8002 = vst [vmem:[%s278 + $0xe8] sm:$0xff] %v7970
      %8003 = vst [vmem:[%s278 + $0xf0] sm:$0xff] %v7971
      %8004 = vst [vmem:[%s278 + $0xf8] sm:$0xff] %v7972
      %p8005 = scmp.lt.s32.totalorder %s18, 1
      %s8006 = scalar_select %p8005, %s18, 1
      %s8007 = smul.addr %s8006, 32
      %s8008 = smul.addr %s8007, 8
      %s8009 = scalar_lea.vmem %s7, %s8008
      // Predicated region
      $region49: #{double_conv.1} parent=47 // pred_check
        %p8010 = pneg %p188
      $region50: #{double_conv.1} parent=47 // pred_check_branch
        %8012 = sbr.rel (%p8010) target = $region52
      $region51: #{double_conv.1} parent=47 // pred_region
        _
      $region52: #{double_conv.1} parent=47 // pred_fallthru
        _
    $region48: #{double_conv.1} parent=5 // pred_fallthru
      _
    %p8013 = scmp.le.s32.totalorder 2, %s13
    // Predicated region
    $region53: #{double_conv.1} parent=5 // pred_check
      %p8014 = pneg %p8013
    $region54: #{double_conv.1} parent=5 // pred_check_branch
      %8016 = sbr.rel (%p8014) target = $region56
    $region55: #{double_conv.1} parent=5 // pred_region
      %s8017 = ssub.s32 %s13, 2
      // Predicated region
      $region57: #{double_conv.1} parent=55 // pred_check
        %p8018 = pneg %p194
      $region58: #{double_conv.1} parent=55 // pred_check_branch
        %8020 = sbr.rel (%p8018) target = $region60
      $region59: #{double_conv.1} parent=55 // pred_region
        %p8021 = scmp.lt.s32.totalorder %s19, 1
        %s8022 = scalar_select %p8021, %s19, 1
        %s8023 = smul.addr %s8022, 32
        %s8024 = smul.addr %s8023, 8
        %s8025 = scalar_lea.vmem %s7, %s8024
      $region60: #{double_conv.1} parent=55 // pred_fallthru
        _
    $region56: #{double_conv.1} parent=5 // pred_fallthru
      _
  $region6: #{double_conv.1} parent=0 // loop_footer
    %s17 = sadd.s32 1, %s13
  $region7: #{double_conv.1} parent=0 // loop_footer_branch
    %12 = sbr.rel target = $region3
  $region8: #{double_conv.1} parent=0 // loop_exit
    _

</llo_original>
